<compile_context>
chip_gen: v7x
topology: tpu7x:2x2x1
jax: 0.10.0
libtpu: 0.0.40
codegen_flags: <defaults>
</compile_context>

<pallas_src>
import functools

import jax
import jax.numpy as jnp
from jax import lax
from jax.experimental import pallas as pl
from jax.experimental.pallas import tpu as pltpu


# ----------------------------------------------------------------------------
# Small helpers
# ----------------------------------------------------------------------------
def _round_up(x, m):
    return (x + m - 1) // m * m


def _pick_time_chunk(T, B, D, H, *, budget_bytes=6 << 20, max_chunk=32):
    """Largest chunk <= max_chunk whose per-chunk pipeline blocks (x in, y out,
    double-buffered) plus the xp scratch fit a conservative VMEM budget.
    T is padded up to a multiple of the chunk outside; tail steps are masked
    inside the kernel."""
    for c in range(min(T, max_chunk), 0, -1):
        per = 2 * c * B * (D * 4 + H * 2)      # x (f32 worst case) + y (bf16), 2x buffers
        per += c * B * 4 * H * 4               # xp scratch (f32, single)
        if per <= budget_bytes:
            return c
    return 1


def _reorder_gates(w, H):
    """PyTorch LSTM gate order (i,f,g,o) -> (i,f,o,g) along the last axis."""
    i = w[..., 0 * H:1 * H]
    f = w[..., 1 * H:2 * H]
    g = w[..., 2 * H:3 * H]
    o = w[..., 3 * H:4 * H]
    return jnp.concatenate([i, f, o, g], axis=-1)


def prepare_params(params, n_hidden):
    """One-time parameter prep (outside the jitted forward): transpose,
    gate-reorder, fold biases, and cast MXU operands to bf16."""
    H = n_hidden
    prepped = {"lstm": []}
    for (w_ih, w_hh, b_ih, b_hh) in params["lstm"]:
        wih_t = _reorder_gates(jnp.transpose(w_ih), H).astype(jnp.bfloat16)
        whh_t = _reorder_gates(jnp.transpose(w_hh), H).astype(jnp.bfloat16)
        bias = _reorder_gates(b_ih + b_hh, H).reshape(1, 4 * H)        # f32
        prepped["lstm"].append((wih_t, whh_t, bias))
    prepped["dec_w_t"] = jnp.transpose(params["dec_w"]).astype(jnp.bfloat16)
    prepped["dec_b"] = params["dec_b"]
    return prepped


# ----------------------------------------------------------------------------
# Kernel 1: tiled matmul + bias (decoder)
# ----------------------------------------------------------------------------
def _matmul_bias_kernel(x_ref, w_ref, b_ref, o_ref):
    o_ref[...] = (jnp.dot(x_ref[...].astype(jnp.bfloat16), w_ref[...],
                          preferred_element_type=jnp.float32)
                  + b_ref[...]).astype(o_ref.dtype)


def matmul_bias(x, w, b, *, tile_m=512, tile_n=512):
    """x: (M, K) @ w: (K, N) + b: (N,) -> (M, N) float32.

    w is expected bf16 (cast if not); x is cast to bf16 at the dot.  M is
    padded to the row tile, N to a multiple of the (>=128) column tile so all
    output stores are lane-dense; padding is sliced off here."""
    M, K = x.shape
    N = w.shape[1]
    w = w.astype(jnp.bfloat16)

    tn = min(tile_n, _round_up(N, 128))
    N_pad = _round_up(N, tn)
    tm = min(tile_m, _round_up(M, 16))
    M_pad = _round_up(M, tm)

    x_p = jnp.pad(x, ((0, M_pad - M), (0, 0))) if M_pad != M else x
    w_p = jnp.pad(w, ((0, 0), (0, N_pad - N))) if N_pad != N else w
    b_p = jnp.pad(b.astype(jnp.float32), (0, N_pad - N)).reshape(1, N_pad)

    block_bytes = (tm * K * x.dtype.itemsize + K * tn * 2 + tn * 4
                   + tm * tn * 4)
    vmem_limit = int(min(max(2 * block_bytes + (4 << 20), 32 << 20), 64 << 20))

    out = pl.pallas_call(
        _matmul_bias_kernel,
        out_shape=jax.ShapeDtypeStruct((M_pad, N_pad), jnp.float32),
        grid_spec=pltpu.PrefetchScalarGridSpec(
            num_scalar_prefetch=0,
            grid=(M_pad // tm, N_pad // tn),
            in_specs=[pl.BlockSpec((tm, K), lambda i, j: (i, 0)),
                      pl.BlockSpec((K, tn), lambda i, j: (0, j)),
                      pl.BlockSpec((1, tn), lambda i, j: (0, j))],
            out_specs=pl.BlockSpec((tm, tn), lambda i, j: (i, j))),
        compiler_params=pltpu.CompilerParams(
            dimension_semantics=("parallel", "parallel"),
            vmem_limit_bytes=vmem_limit),
        cost_estimate=pl.CostEstimate(
            flops=2 * M_pad * K * N_pad + M_pad * N_pad,
            transcendentals=0,
            bytes_accessed=(x.dtype.itemsize * M_pad * K + 2 * K * N_pad
                            + 4 * N_pad + 4 * M_pad * N_pad)),
    )(x_p, w_p, b_p)
    return out[:M, :N]


# ----------------------------------------------------------------------------
# Kernel 2: fused LSTM layer (input projection + recurrence) over a time chunk
# ----------------------------------------------------------------------------
def _lstm_fused_kernel(x_ref, h0_ref, c0_ref, wih_ref, whh_ref, b_ref,
                       y_ref, hT_ref, cT_ref, xp_ref,
                       *, chunk, t_valid, unroll):
    """One time-chunk of one LSTM layer for one batch shard.

    x_ref:   (chunk, B, D) raw layer input (f32 one-hot or bf16 activations)
    h0/c0:   (B, H) initial states
    wih_ref: (D, 4H) bf16, whh_ref: (H, 4H) bf16, gate order (i, f, o, g)
    b_ref:   (1, 4H) f32 folded bias (b_ih + b_hh)
    y_ref:   (chunk, B, H) bf16 hidden outputs
    hT/cT:   (B, H) f32 carry; output-resident across the "arbitrary" chunk
             axis (also the final states)
    xp_ref:  (chunk*B, 4H) f32 VMEM scratch holding this chunk's fused input
             projection
    """
    ci = pl.program_id(1)

    @pl.when(ci == 0)
    def _():
        hT_ref[...] = h0_ref[...]
        cT_ref[...] = c0_ref[...]

    B, H = hT_ref.shape
    D = x_ref.shape[-1]

    # Fused input projection for this chunk: one MXU matmul over chunk*B rows,
    # parked in VMEM scratch and sliced per step (keeps vreg pressure low).
    xc = x_ref[...].reshape(chunk * B, D).astype(jnp.bfloat16)
    xp_ref[...] = (jnp.dot(xc, wih_ref[...],
                           preferred_element_type=jnp.float32) + b_ref[...])

    def step(t, carry):
        h, c = carry
        row = pl.multiple_of(t * B, B)
        gates = (xp_ref[pl.ds(row, B), :]
                 + jnp.dot(h.astype(jnp.bfloat16), whh_ref[...],
                           preferred_element_type=jnp.float32))
        # sigmoid over (B, 3H): exp on the EUP, reciprocal on the EUP (approx)
        e = jnp.exp(-gates[:, :3 * H])
        sig = pl.reciprocal(1.0 + e, approx=True)          # i, f, o
        g_g = jnp.tanh(gates[:, 3 * H:])                   # (B, H)
        i_g = sig[:, 0 * H:1 * H]
        f_g = sig[:, 1 * H:2 * H]
        o_g = sig[:, 2 * H:3 * H]
        c_new = f_g * c + i_g * g_g
        h_new = o_g * jnp.tanh(c_new)
        y_ref[t] = h_new.astype(y_ref.dtype)
        if t_valid is not None:
            # T was padded up to a chunk multiple: freeze the carry on tail
            # steps (y rows past T are garbage and sliced off outside).
            valid = (ci * chunk + t) < t_valid
            h_new = jnp.where(valid, h_new, h)
            c_new = jnp.where(valid, c_new, c)
        return h_new, c_new

    h, c = lax.fori_loop(0, chunk, step, (hT_ref[...], cT_ref[...]),
                         unroll=unroll)
    hT_ref[...] = h
    cT_ref[...] = c


def lstm_layer(x, h0, c0, wih_t, whh_t, bias, *, chunk, t_valid, nb):
    """x: (T_pad, B_pad, D) time-major layer input; h0/c0: (B_pad, H);
    wih_t: (D, 4H) bf16; whh_t: (H, 4H) bf16; bias: (1, 4H) f32.
    Returns y: (T_pad, B_pad, H) bf16, h_T: (B_pad, H), c_T: (B_pad, H)."""
    T_pad, B_pad, D = x.shape
    H = whh_t.shape[0]
    H4 = 4 * H
    n_chunks = T_pad // chunk
    B_shard = B_pad // nb
    # Full unroll only while per-step live state is small; cap otherwise so
    # spill stores don't hit the single vst slot (v5e).
    unroll = True if B_shard <= 16 else min(chunk, 8)

    block_bytes = (chunk * B_shard * D * x.dtype.itemsize      # x in
                   + chunk * B_shard * H * 2                   # y out (bf16)
                   + (D + H) * H4 * 2                          # weights (bf16)
                   + H4 * 4                                    # bias
                   + 4 * B_shard * H * 4                       # h0,c0,hT,cT
                   + chunk * B_shard * H4 * 4)                 # xp scratch
    vmem_limit = int(min(max(2 * block_bytes + (4 << 20), 32 << 20), 64 << 20))

    kernel = functools.partial(_lstm_fused_kernel, chunk=chunk,
                               t_valid=t_valid, unroll=unroll)
    return pl.pallas_call(
        kernel,
        out_shape=(jax.ShapeDtypeStruct((T_pad, B_pad, H), jnp.bfloat16),
                   jax.ShapeDtypeStruct((B_pad, H), jnp.float32),
                   jax.ShapeDtypeStruct((B_pad, H), jnp.float32)),
        grid_spec=pltpu.PrefetchScalarGridSpec(
            num_scalar_prefetch=0,
            grid=(nb, n_chunks),
            in_specs=[
                pl.BlockSpec((chunk, B_shard, D), lambda b, ci: (ci, b, 0)),
                pl.BlockSpec((B_shard, H), lambda b, ci: (b, 0)),
                pl.BlockSpec((B_shard, H), lambda b, ci: (b, 0)),
                pl.BlockSpec((D, H4), lambda b, ci: (0, 0)),
                pl.BlockSpec((H, H4), lambda b, ci: (0, 0)),
                pl.BlockSpec((1, H4), lambda b, ci: (0, 0)),
            ],
            out_specs=[
                pl.BlockSpec((chunk, B_shard, H), lambda b, ci: (ci, b, 0)),
                pl.BlockSpec((B_shard, H), lambda b, ci: (b, 0)),
                pl.BlockSpec((B_shard, H), lambda b, ci: (b, 0)),
            ],
            scratch_shapes=[pltpu.VMEM((chunk * B_shard, H4), jnp.float32)]),
        compiler_params=pltpu.CompilerParams(
            dimension_semantics=("parallel", "arbitrary"),
            vmem_limit_bytes=vmem_limit),
        cost_estimate=pl.CostEstimate(
            flops=2 * T_pad * B_pad * (D + H) * H4 + 12 * T_pad * B_pad * H,
            transcendentals=6 * T_pad * B_pad * H,
            bytes_accessed=(x.dtype.itemsize * T_pad * B_pad * D
                            + 2 * (D + H) * H4
                            + 2 * T_pad * B_pad * H
                            + 4 * 4 * B_pad * H)),
    )(x, h0, c0, wih_t, whh_t, bias)


# ----------------------------------------------------------------------------
# Full forward pass
# ----------------------------------------------------------------------------
@jax.jit
def charrnn_forward(x, hc, prepped):
    """Forward pass equivalent to CharRNN.forward (unidirectional LSTM, eval).

    x:       (B, T, V) float32 one-hot characters (batch_first)
    hc:      (h0, c0), each (n_layers, B, H)
    prepped: output of prepare_params()
    returns (out, (h_n, c_n)) with out: (B*T, V) in PyTorch's
    x.view(B*T, n_hidden) row order.
    """
    h0_all, c0_all = hc
    B, T, V = x.shape
    n_layers, _, H = h0_all.shape

    # Pad batch to a bf16-friendly sublane multiple; padded rows are
    # row-independent garbage, sliced off at the end.
    B_pad = _round_up(B, 16)
    if B_pad != B:
        x = jnp.pad(x, ((0, B_pad - B), (0, 0), (0, 0)))
        h0_all = jnp.pad(h0_all, ((0, 0), (0, B_pad - B), (0, 0)))
        c0_all = jnp.pad(c0_all, ((0, 0), (0, B_pad - B), (0, 0)))

    # VMEM-budget-derived time chunk; pad T up to a chunk multiple (tail steps
    # masked inside the kernel so the carry stays exact).
    chunk = _pick_time_chunk(T, B_pad, max(V, H), H)
    T_pad = _round_up(T, chunk)
    t_valid = T if T_pad != T else None

    # Two-TensorCore batch split (v7x) when each shard stays >= 16 rows.
    nb = 2 if (B_pad >= 32 and B_pad % 32 == 0) else 1

    # Time-major layout end-to-end.
    inp = jnp.transpose(x, (1, 0, 2))                       # (T, B_pad, V)
    if T_pad != T:
        inp = jnp.pad(inp, ((0, T_pad - T), (0, 0), (0, 0)))

    h_finals, c_finals = [], []
    for layer in range(n_layers):
        wih_t, whh_t, bias = prepped["lstm"][layer]
        y, hT, cT = lstm_layer(inp, h0_all[layer], c0_all[layer],
                               wih_t, whh_t, bias,
                               chunk=chunk, t_valid=t_valid, nb=nb)
        h_finals.append(hT[:B])
        c_finals.append(cT[:B])
        inp = y                      # inter-layer dropout: identity (eval)

    # Decoder on the time-major flat bf16 activations (vocab padded to 128
    # lanes inside matmul_bias); fix row order on the small logits tensor.
    flat = inp[:T].reshape(T * B_pad, H)
    logits_tbv = matmul_bias(flat, prepped["dec_w_t"],
                             prepped["dec_b"])              # (T*B_pad, V)
    logits_tbv = logits_tbv.reshape(T, B_pad, V)[:, :B]     # (T, B, V)
    logits = jnp.transpose(logits_tbv, (1, 0, 2)).reshape(B * T, V)

    return logits, (jnp.stack(h_finals), jnp.stack(c_finals))


# ----------------------------------------------------------------------------
# Pure-JAX f32 reference (for correctness check)
# ----------------------------------------------------------------------------
def charrnn_ref(x, hc, params):
    h0_all, c0_all = hc
    B, T, V = x.shape
    n_layers = h0_all.shape[0]
    inp = x
    h_finals, c_finals = [], []
    for layer in range(n_layers):
        w_ih, w_hh, b_ih, b_hh = params["lstm"][layer]
        H = w_hh.shape[1]
        h = h0_all[layer]
        c = c0_all[layer]
        ys = []
        for t in range(T):
            g = inp[:, t, :] @ w_ih.T + b_ih + h @ w_hh.T + b_hh
            i_g = jax.nn.sigmoid(g[:, 0 * H:1 * H])
            f_g = jax.nn.sigmoid(g[:, 1 * H:2 * H])
            g_g = jnp.tanh(g[:, 2 * H:3 * H])
            o_g = jax.nn.sigmoid(g[:, 3 * H:4 * H])
            c = f_g * c + i_g * g_g
            h = o_g * jnp.tanh(c)
            ys.append(h)
        inp = jnp.stack(ys, axis=1)
        h_finals.append(h)
        c_finals.append(c)
    flat = inp.reshape(B * T, -1)
    logits = flat @ params["dec_w"].T + params["dec_b"]
    return logits, (jnp.stack(h_finals), jnp.stack(c_finals))


# ----------------------------------------------------------------------------
# Deterministic parameter construction (mirrors CharRNN.__init__ shapes)
# ----------------------------------------------------------------------------
def make_params(key, vocab, n_hidden, n_layers, initrange=1.0):
    params = {"lstm": []}
    stdv = 1.0 / jnp.sqrt(jnp.float32(n_hidden))
    for layer in range(n_layers):
        in_size = vocab if layer == 0 else n_hidden
        key, k1, k2, k3, k4 = jax.random.split(key, 5)
        w_ih = jax.random.uniform(k1, (4 * n_hidden, in_size),
                                  jnp.float32, -stdv, stdv)
        w_hh = jax.random.uniform(k2, (4 * n_hidden, n_hidden),
                                  jnp.float32, -stdv, stdv)
        b_ih = jax.random.uniform(k3, (4 * n_hidden,), jnp.float32, -stdv, stdv)
        b_hh = jax.random.uniform(k4, (4 * n_hidden,), jnp.float32, -stdv, stdv)
        params["lstm"].append((w_ih, w_hh, b_ih, b_hh))
    key, kd = jax.random.split(key)
    # decoder: weight ~ U(-initrange, initrange), bias = 0 (init_weights)
    params["dec_w"] = jax.random.uniform(kd, (vocab, n_hidden),
                                         jnp.float32, -initrange, initrange)
    params["dec_b"] = jnp.zeros((vocab,), jnp.float32)
    return params


if __name__ == "__main__":
    # Small config consistent with the module's forward:
    text = "hello world"
    chars = sorted(set(text))
    vocab = len(chars)          # 8
    n_hidden = 128              # multiple of 128 -> lane-aligned gate slices
    n_layers = 2
    B, T = 2, 8

    key = jax.random.PRNGKey(0)
    params = make_params(key, vocab, n_hidden, n_layers)
    prepped = prepare_params(params, n_hidden)   # one-time prep, outside jit

    # one-hot character inputs, batch_first (B, T, V)
    key, kx = jax.random.split(key)
    idx = jax.random.randint(kx, (B, T), 0, vocab)
    x = jax.nn.one_hot(idx, vocab, dtype=jnp.float32)

    # init_hidden(batch_size): zeros of shape (n_layers, B, n_hidden) for h, c
    h0 = jnp.zeros((n_layers, B, n_hidden), jnp.float32)
    c0 = jnp.zeros((n_layers, B, n_hidden), jnp.float32)

    out, (h_n, c_n) = charrnn_forward(x, (h0, c0), prepped)
    out = jax.block_until_ready(out)
    h_n = jax.block_until_ready(h_n)
    c_n = jax.block_until_ready(c_n)

    # correctness check against pure-JAX f32 reference (kernel uses bf16 MXU
    # operands with f32 accumulation -> loosened tolerances)
    ref_out, (ref_h, ref_c) = charrnn_ref(x, (h0, c0), params)
    assert out.shape == (B * T, vocab)
    assert h_n.shape == (n_layers, B, n_hidden)
    assert c_n.shape == (n_layers, B, n_hidden)
    assert jnp.allclose(out, ref_out, atol=1e-1, rtol=5e-2)
    assert jnp.allclose(h_n, ref_h, atol=3e-2, rtol=3e-2)
    assert jnp.allclose(c_n, ref_c, atol=3e-2, rtol=3e-2)

    print("KERNEL_OK")
</pallas_src>

<mosaic_0001>
module attributes {stable_mosaic.version = 11 : i64} {
  func.func @_lstm_fused_kernel(%arg0: i32, %arg1: i32, %arg2: memref<8x16x8xf32, #tpu.memory_space<vmem>>, %arg3: memref<16x128xf32, #tpu.memory_space<vmem>>, %arg4: memref<16x128xf32, #tpu.memory_space<vmem>>, %arg5: memref<8x512xbf16, #tpu.memory_space<vmem>>, %arg6: memref<128x512xbf16, #tpu.memory_space<vmem>>, %arg7: memref<1x512xf32, #tpu.memory_space<vmem>>, %arg8: memref<8x16x128xbf16, #tpu.memory_space<vmem>>, %arg9: memref<16x128xf32, #tpu.memory_space<vmem>>, %arg10: memref<16x128xf32, #tpu.memory_space<vmem>>, %arg11: memref<128x512xf32, #tpu.memory_space<vmem>>) attributes {dimension_semantics = [#tpu.dimension_semantics<parallel>, #tpu.dimension_semantics<arbitrary>], iteration_bounds = array<i64: 1, 1>, scalar_prefetch = 0 : i64, scratch_operands = 1 : i64, tpu.core_type = #tpu.core_type<tc>, window_params = [{transform_indices = @transform_0, window_bounds = array<i64: 8, 16, 8>}, {transform_indices = @transform_1, window_bounds = array<i64: 16, 128>}, {transform_indices = @transform_2, window_bounds = array<i64: 16, 128>}, {pipeline_mode = #tpu.pipeline_mode<synchronous>, transform_indices = @transform_3, window_bounds = array<i64: 8, 512>}, {pipeline_mode = #tpu.pipeline_mode<synchronous>, transform_indices = @transform_4, window_bounds = array<i64: 128, 512>}, {pipeline_mode = #tpu.pipeline_mode<synchronous>, transform_indices = @transform_5, window_bounds = array<i64: 1, 512>}, {transform_indices = @transform_6, window_bounds = array<i64: 8, 16, 128>}, {transform_indices = @transform_7, window_bounds = array<i64: 16, 128>}, {transform_indices = @transform_8, window_bounds = array<i64: 16, 128>}]} {
    %c0_i32 = arith.constant 0 : i32
    %0 = arith.cmpi eq, %arg1, %c0_i32 : i32
    %1 = arith.extui %0 : i1 to i32
    %c0_i32_0 = arith.constant 0 : i32
    %2 = arith.cmpi ne, %1, %c0_i32_0 : i32
    scf.if %2 {
      %c0_89 = arith.constant 0 : index
      %c0_90 = arith.constant 0 : index
      %256 = vector.load %arg3[%c0_89, %c0_90] : memref<16x128xf32, #tpu.memory_space<vmem>>, vector<16x128xf32>
      %c0_91 = arith.constant 0 : index
      %c0_92 = arith.constant 0 : index
      %257 = vector.load %arg9[%c0_91, %c0_92] : memref<16x128xf32, #tpu.memory_space<vmem>>, vector<16x128xf32>
      tpu.vector_store %arg9[%c0_91, %c0_92], %256 {strides = array<i32>} : memref<16x128xf32, #tpu.memory_space<vmem>>, vector<16x128xf32>,
      %c0_93 = arith.constant 0 : index
      %c0_94 = arith.constant 0 : index
      %258 = vector.load %arg4[%c0_93, %c0_94] : memref<16x128xf32, #tpu.memory_space<vmem>>, vector<16x128xf32>
      %c0_95 = arith.constant 0 : index
      %c0_96 = arith.constant 0 : index
      %259 = vector.load %arg10[%c0_95, %c0_96] : memref<16x128xf32, #tpu.memory_space<vmem>>, vector<16x128xf32>
      tpu.vector_store %arg10[%c0_95, %c0_96], %258 {strides = array<i32>} : memref<16x128xf32, #tpu.memory_space<vmem>>, vector<16x128xf32>,
    } else {
    }
    %c0 = arith.constant 0 : index
    %c0_1 = arith.constant 0 : index
    %c0_2 = arith.constant 0 : index
    %3 = vector.load %arg2[%c0, %c0_1, %c0_2] : memref<8x16x8xf32, #tpu.memory_space<vmem>>, vector<8x16x8xf32>
    %4 = vector.shape_cast %3 : vector<8x16x8xf32> to vector<128x8xf32>
    %5 = arith.truncf %4 : vector<128x8xf32> to vector<128x8xbf16>
    %c0_3 = arith.constant 0 : index
    %c0_4 = arith.constant 0 : index
    %6 = vector.load %arg5[%c0_3, %c0_4] : memref<8x512xbf16, #tpu.memory_space<vmem>>, vector<8x512xbf16>
    %cst = arith.constant dense<0.000000e+00> : vector<128x512xf32>
    %7 = tpu.matmul %5, %6, %cst {dimension_numbers = #tpu.dot_dimension_numbers<[1], [0], [0], [1], [0, 0, 1, 1], [], []>} : vector<128x8xbf16>, vector<8x512xbf16>, vector<128x512xf32> -> vector<128x512xf32>
    %c0_5 = arith.constant 0 : index
    %c0_6 = arith.constant 0 : index
    %8 = vector.load %arg7[%c0_5, %c0_6] : memref<1x512xf32, #tpu.memory_space<vmem>>, vector<1x512xf32>
    %9 = vector.broadcast %8 : vector<1x512xf32> to vector<128x512xf32>
    %10 = arith.addf %7, %9 : vector<128x512xf32>
    %c0_7 = arith.constant 0 : index
    %c0_8 = arith.constant 0 : index
    %11 = vector.load %arg11[%c0_7, %c0_8] : memref<128x512xf32, #tpu.memory_space<vmem>>, vector<128x512xf32>
    tpu.vector_store %arg11[%c0_7, %c0_8], %10 {strides = array<i32>} : memref<128x512xf32, #tpu.memory_space<vmem>>, vector<128x512xf32>,
    %c0_9 = arith.constant 0 : index
    %c0_10 = arith.constant 0 : index
    %12 = vector.load %arg9[%c0_9, %c0_10] : memref<16x128xf32, #tpu.memory_space<vmem>>, vector<16x128xf32>
    %c0_11 = arith.constant 0 : index
    %c0_12 = arith.constant 0 : index
    %13 = vector.load %arg10[%c0_11, %c0_12] : memref<16x128xf32, #tpu.memory_space<vmem>>, vector<16x128xf32>
    %c0_i32_13 = arith.constant 0 : i32
    %c16_i32 = arith.constant 16 : i32
    %14 = arith.muli %c0_i32_13, %c16_i32 : i32
    %15 = tpu.assume_multiple %14, 16 : i32
    %16 = arith.index_cast %15 : i32 to index
    %c0_14 = arith.constant 0 : index
    %17 = vector.load %arg11[%16, %c0_14] : memref<128x512xf32, #tpu.memory_space<vmem>>, vector<16x512xf32>
    %18 = arith.truncf %12 : vector<16x128xf32> to vector<16x128xbf16>
    %c0_15 = arith.constant 0 : index
    %c0_16 = arith.constant 0 : index
    %19 = vector.load %arg6[%c0_15, %c0_16] : memref<128x512xbf16, #tpu.memory_space<vmem>>, vector<128x512xbf16>
    %cst_17 = arith.constant dense<0.000000e+00> : vector<16x512xf32>
    %20 = tpu.matmul %18, %19, %cst_17 {dimension_numbers = #tpu.dot_dimension_numbers<[1], [0], [0], [1], [0, 0, 1, 1], [], []>} : vector<16x128xbf16>, vector<128x512xbf16>, vector<16x512xf32> -> vector<16x512xf32>
    %21 = arith.addf %17, %20 : vector<16x512xf32>
    %22 = vector.extract_strided_slice %21 {offsets = [0, 0], sizes = [16, 384], strides = [1, 1]} : vector<16x512xf32> to vector<16x384xf32>
    %cst_18 = arith.constant 0.000000e+00 : f32
    %23 = vector.broadcast %cst_18 : f32 to vector<16x384xf32>
    %24 = arith.subf %23, %22 : vector<16x384xf32>
    %25 = math.exp %24 : vector<16x384xf32>
    %cst_19 = arith.constant 1.000000e+00 : f32
    %26 = vector.broadcast %cst_19 : f32 to vector<16x384xf32>
    %27 = arith.addf %26, %25 : vector<16x384xf32>
    %28 = tpu.reciprocal %27 {approx = true} : vector<16x384xf32> -> vector<16x384xf32>
    %29 = vector.extract_strided_slice %21 {offsets = [0, 384], sizes = [16, 128], strides = [1, 1]} : vector<16x512xf32> to vector<16x128xf32>
    %30 = math.tanh %29 : vector<16x128xf32>
    %31 = vector.extract_strided_slice %28 {offsets = [0, 0], sizes = [16, 128], strides = [1, 1]} : vector<16x384xf32> to vector<16x128xf32>
    %32 = vector.extract_strided_slice %28 {offsets = [0, 128], sizes = [16, 128], strides = [1, 1]} : vector<16x384xf32> to vector<16x128xf32>
    %33 = vector.extract_strided_slice %28 {offsets = [0, 256], sizes = [16, 128], strides = [1, 1]} : vector<16x384xf32> to vector<16x128xf32>
    %34 = arith.mulf %32, %13 : vector<16x128xf32>
    %35 = arith.mulf %31, %30 : vector<16x128xf32>
    %36 = arith.addf %34, %35 : vector<16x128xf32>
    %37 = math.tanh %36 : vector<16x128xf32>
    %38 = arith.mulf %33, %37 : vector<16x128xf32>
    %39 = arith.truncf %38 : vector<16x128xf32> to vector<16x128xbf16>
    %40 = arith.index_cast %c0_i32_13 : i32 to index
    %c0_20 = arith.constant 0 : index
    %c0_21 = arith.constant 0 : index
    %41 = vector.load %arg8[%40, %c0_20, %c0_21] : memref<8x16x128xbf16, #tpu.memory_space<vmem>>, vector<1x16x128xbf16>
    %42 = vector.shape_cast %41 : vector<1x16x128xbf16> to vector<16x128xbf16>
    %43 = vector.shape_cast %39 : vector<16x128xbf16> to vector<1x16x128xbf16>
    tpu.vector_store %arg8[%40, %c0_20, %c0_21], %43 {strides = array<i32>} : memref<8x16x128xbf16, #tpu.memory_space<vmem>>, vector<1x16x128xbf16>,
    %c1_i32 = arith.constant 1 : i32
    %c16_i32_22 = arith.constant 16 : i32
    %44 = arith.muli %c1_i32, %c16_i32_22 : i32
    %45 = tpu.assume_multiple %44, 16 : i32
    %46 = arith.index_cast %45 : i32 to index
    %c0_23 = arith.constant 0 : index
    %47 = vector.load %arg11[%46, %c0_23] : memref<128x512xf32, #tpu.memory_space<vmem>>, vector<16x512xf32>
    %48 = arith.truncf %38 : vector<16x128xf32> to vector<16x128xbf16>
    %c0_24 = arith.constant 0 : index
    %c0_25 = arith.constant 0 : index
    %49 = vector.load %arg6[%c0_24, %c0_25] : memref<128x512xbf16, #tpu.memory_space<vmem>>, vector<128x512xbf16>
    %cst_26 = arith.constant dense<0.000000e+00> : vector<16x512xf32>
    %50 = tpu.matmul %48, %49, %cst_26 {dimension_numbers = #tpu.dot_dimension_numbers<[1], [0], [0], [1], [0, 0, 1, 1], [], []>} : vector<16x128xbf16>, vector<128x512xbf16>, vector<16x512xf32> -> vector<16x512xf32>
    %51 = arith.addf %47, %50 : vector<16x512xf32>
    %52 = vector.extract_strided_slice %51 {offsets = [0, 0], sizes = [16, 384], strides = [1, 1]} : vector<16x512xf32> to vector<16x384xf32>
    %cst_27 = arith.constant 0.000000e+00 : f32
    %53 = vector.broadcast %cst_27 : f32 to vector<16x384xf32>
    %54 = arith.subf %53, %52 : vector<16x384xf32>
    %55 = math.exp %54 : vector<16x384xf32>
    %cst_28 = arith.constant 1.000000e+00 : f32
    %56 = vector.broadcast %cst_28 : f32 to vector<16x384xf32>
    %57 = arith.addf %56, %55 : vector<16x384xf32>
    %58 = tpu.reciprocal %57 {approx = true} : vector<16x384xf32> -> vector<16x384xf32>
    %59 = vector.extract_strided_slice %51 {offsets = [0, 384], sizes = [16, 128], strides = [1, 1]} : vector<16x512xf32> to vector<16x128xf32>
    %60 = math.tanh %59 : vector<16x128xf32>
    %61 = vector.extract_strided_slice %58 {offsets = [0, 0], sizes = [16, 128], strides = [1, 1]} : vector<16x384xf32> to vector<16x128xf32>
    %62 = vector.extract_strided_slice %58 {offsets = [0, 128], sizes = [16, 128], strides = [1, 1]} : vector<16x384xf32> to vector<16x128xf32>
    %63 = vector.extract_strided_slice %58 {offsets = [0, 256], sizes = [16, 128], strides = [1, 1]} : vector<16x384xf32> to vector<16x128xf32>
    %64 = arith.mulf %62, %36 : vector<16x128xf32>
    %65 = arith.mulf %61, %60 : vector<16x128xf32>
    %66 = arith.addf %64, %65 : vector<16x128xf32>
    %67 = math.tanh %66 : vector<16x128xf32>
    %68 = arith.mulf %63, %67 : vector<16x128xf32>
    %69 = arith.truncf %68 : vector<16x128xf32> to vector<16x128xbf16>
    %70 = arith.index_cast %c1_i32 : i32 to index
    %c0_29 = arith.constant 0 : index
    %c0_30 = arith.constant 0 : index
    %71 = vector.load %arg8[%70, %c0_29, %c0_30] : memref<8x16x128xbf16, #tpu.memory_space<vmem>>, vector<1x16x128xbf16>
    %72 = vector.shape_cast %71 : vector<1x16x128xbf16> to vector<16x128xbf16>
    %73 = vector.shape_cast %69 : vector<16x128xbf16> to vector<1x16x128xbf16>
    tpu.vector_store %arg8[%70, %c0_29, %c0_30], %73 {strides = array<i32>} : memref<8x16x128xbf16, #tpu.memory_space<vmem>>, vector<1x16x128xbf16>,
    %c2_i32 = arith.constant 2 : i32
    %c16_i32_31 = arith.constant 16 : i32
    %74 = arith.muli %c2_i32, %c16_i32_31 : i32
    %75 = tpu.assume_multiple %74, 16 : i32
    %76 = arith.index_cast %75 : i32 to index
    %c0_32 = arith.constant 0 : index
    %77 = vector.load %arg11[%76, %c0_32] : memref<128x512xf32, #tpu.memory_space<vmem>>, vector<16x512xf32>
    %78 = arith.truncf %68 : vector<16x128xf32> to vector<16x128xbf16>
    %c0_33 = arith.constant 0 : index
    %c0_34 = arith.constant 0 : index
    %79 = vector.load %arg6[%c0_33, %c0_34] : memref<128x512xbf16, #tpu.memory_space<vmem>>, vector<128x512xbf16>
    %cst_35 = arith.constant dense<0.000000e+00> : vector<16x512xf32>
    %80 = tpu.matmul %78, %79, %cst_35 {dimension_numbers = #tpu.dot_dimension_numbers<[1], [0], [0], [1], [0, 0, 1, 1], [], []>} : vector<16x128xbf16>, vector<128x512xbf16>, vector<16x512xf32> -> vector<16x512xf32>
    %81 = arith.addf %77, %80 : vector<16x512xf32>
    %82 = vector.extract_strided_slice %81 {offsets = [0, 0], sizes = [16, 384], strides = [1, 1]} : vector<16x512xf32> to vector<16x384xf32>
    %cst_36 = arith.constant 0.000000e+00 : f32
    %83 = vector.broadcast %cst_36 : f32 to vector<16x384xf32>
    %84 = arith.subf %83, %82 : vector<16x384xf32>
    %85 = math.exp %84 : vector<16x384xf32>
    %cst_37 = arith.constant 1.000000e+00 : f32
    %86 = vector.broadcast %cst_37 : f32 to vector<16x384xf32>
    %87 = arith.addf %86, %85 : vector<16x384xf32>
    %88 = tpu.reciprocal %87 {approx = true} : vector<16x384xf32> -> vector<16x384xf32>
    %89 = vector.extract_strided_slice %81 {offsets = [0, 384], sizes = [16, 128], strides = [1, 1]} : vector<16x512xf32> to vector<16x128xf32>
    %90 = math.tanh %89 : vector<16x128xf32>
    %91 = vector.extract_strided_slice %88 {offsets = [0, 0], sizes = [16, 128], strides = [1, 1]} : vector<16x384xf32> to vector<16x128xf32>
    %92 = vector.extract_strided_slice %88 {offsets = [0, 128], sizes = [16, 128], strides = [1, 1]} : vector<16x384xf32> to vector<16x128xf32>
    %93 = vector.extract_strided_slice %88 {offsets = [0, 256], sizes = [16, 128], strides = [1, 1]} : vector<16x384xf32> to vector<16x128xf32>
    %94 = arith.mulf %92, %66 : vector<16x128xf32>
    %95 = arith.mulf %91, %90 : vector<16x128xf32>
    %96 = arith.addf %94, %95 : vector<16x128xf32>
    %97 = math.tanh %96 : vector<16x128xf32>
    %98 = arith.mulf %93, %97 : vector<16x128xf32>
    %99 = arith.truncf %98 : vector<16x128xf32> to vector<16x128xbf16>
    %100 = arith.index_cast %c2_i32 : i32 to index
    %c0_38 = arith.constant 0 : index
    %c0_39 = arith.constant 0 : index
    %101 = vector.load %arg8[%100, %c0_38, %c0_39] : memref<8x16x128xbf16, #tpu.memory_space<vmem>>, vector<1x16x128xbf16>
    %102 = vector.shape_cast %101 : vector<1x16x128xbf16> to vector<16x128xbf16>
    %103 = vector.shape_cast %99 : vector<16x128xbf16> to vector<1x16x128xbf16>
    tpu.vector_store %arg8[%100, %c0_38, %c0_39], %103 {strides = array<i32>} : memref<8x16x128xbf16, #tpu.memory_space<vmem>>, vector<1x16x128xbf16>,
    %c3_i32 = arith.constant 3 : i32
    %c16_i32_40 = arith.constant 16 : i32
    %104 = arith.muli %c3_i32, %c16_i32_40 : i32
    %105 = tpu.assume_multiple %104, 16 : i32
    %106 = arith.index_cast %105 : i32 to index
    %c0_41 = arith.constant 0 : index
    %107 = vector.load %arg11[%106, %c0_41] : memref<128x512xf32, #tpu.memory_space<vmem>>, vector<16x512xf32>
    %108 = arith.truncf %98 : vector<16x128xf32> to vector<16x128xbf16>
    %c0_42 = arith.constant 0 : index
    %c0_43 = arith.constant 0 : index
    %109 = vector.load %arg6[%c0_42, %c0_43] : memref<128x512xbf16, #tpu.memory_space<vmem>>, vector<128x512xbf16>
    %cst_44 = arith.constant dense<0.000000e+00> : vector<16x512xf32>
    %110 = tpu.matmul %108, %109, %cst_44 {dimension_numbers = #tpu.dot_dimension_numbers<[1], [0], [0], [1], [0, 0, 1, 1], [], []>} : vector<16x128xbf16>, vector<128x512xbf16>, vector<16x512xf32> -> vector<16x512xf32>
    %111 = arith.addf %107, %110 : vector<16x512xf32>
    %112 = vector.extract_strided_slice %111 {offsets = [0, 0], sizes = [16, 384], strides = [1, 1]} : vector<16x512xf32> to vector<16x384xf32>
    %cst_45 = arith.constant 0.000000e+00 : f32
    %113 = vector.broadcast %cst_45 : f32 to vector<16x384xf32>
    %114 = arith.subf %113, %112 : vector<16x384xf32>
    %115 = math.exp %114 : vector<16x384xf32>
    %cst_46 = arith.constant 1.000000e+00 : f32
    %116 = vector.broadcast %cst_46 : f32 to vector<16x384xf32>
    %117 = arith.addf %116, %115 : vector<16x384xf32>
    %118 = tpu.reciprocal %117 {approx = true} : vector<16x384xf32> -> vector<16x384xf32>
    %119 = vector.extract_strided_slice %111 {offsets = [0, 384], sizes = [16, 128], strides = [1, 1]} : vector<16x512xf32> to vector<16x128xf32>
    %120 = math.tanh %119 : vector<16x128xf32>
    %121 = vector.extract_strided_slice %118 {offsets = [0, 0], sizes = [16, 128], strides = [1, 1]} : vector<16x384xf32> to vector<16x128xf32>
    %122 = vector.extract_strided_slice %118 {offsets = [0, 128], sizes = [16, 128], strides = [1, 1]} : vector<16x384xf32> to vector<16x128xf32>
    %123 = vector.extract_strided_slice %118 {offsets = [0, 256], sizes = [16, 128], strides = [1, 1]} : vector<16x384xf32> to vector<16x128xf32>
    %124 = arith.mulf %122, %96 : vector<16x128xf32>
    %125 = arith.mulf %121, %120 : vector<16x128xf32>
    %126 = arith.addf %124, %125 : vector<16x128xf32>
    %127 = math.tanh %126 : vector<16x128xf32>
    %128 = arith.mulf %123, %127 : vector<16x128xf32>
    %129 = arith.truncf %128 : vector<16x128xf32> to vector<16x128xbf16>
    %130 = arith.index_cast %c3_i32 : i32 to index
    %c0_47 = arith.constant 0 : index
    %c0_48 = arith.constant 0 : index
    %131 = vector.load %arg8[%130, %c0_47, %c0_48] : memref<8x16x128xbf16, #tpu.memory_space<vmem>>, vector<1x16x128xbf16>
    %132 = vector.shape_cast %131 : vector<1x16x128xbf16> to vector<16x128xbf16>
    %133 = vector.shape_cast %129 : vector<16x128xbf16> to vector<1x16x128xbf16>
    tpu.vector_store %arg8[%130, %c0_47, %c0_48], %133 {strides = array<i32>} : memref<8x16x128xbf16, #tpu.memory_space<vmem>>, vector<1x16x128xbf16>,
    %c4_i32 = arith.constant 4 : i32
    %c16_i32_49 = arith.constant 16 : i32
    %134 = arith.muli %c4_i32, %c16_i32_49 : i32
    %135 = tpu.assume_multiple %134, 16 : i32
    %136 = arith.index_cast %135 : i32 to index
    %c0_50 = arith.constant 0 : index
    %137 = vector.load %arg11[%136, %c0_50] : memref<128x512xf32, #tpu.memory_space<vmem>>, vector<16x512xf32>
    %138 = arith.truncf %128 : vector<16x128xf32> to vector<16x128xbf16>
    %c0_51 = arith.constant 0 : index
    %c0_52 = arith.constant 0 : index
    %139 = vector.load %arg6[%c0_51, %c0_52] : memref<128x512xbf16, #tpu.memory_space<vmem>>, vector<128x512xbf16>
    %cst_53 = arith.constant dense<0.000000e+00> : vector<16x512xf32>
    %140 = tpu.matmul %138, %139, %cst_53 {dimension_numbers = #tpu.dot_dimension_numbers<[1], [0], [0], [1], [0, 0, 1, 1], [], []>} : vector<16x128xbf16>, vector<128x512xbf16>, vector<16x512xf32> -> vector<16x512xf32>
    %141 = arith.addf %137, %140 : vector<16x512xf32>
    %142 = vector.extract_strided_slice %141 {offsets = [0, 0], sizes = [16, 384], strides = [1, 1]} : vector<16x512xf32> to vector<16x384xf32>
    %cst_54 = arith.constant 0.000000e+00 : f32
    %143 = vector.broadcast %cst_54 : f32 to vector<16x384xf32>
    %144 = arith.subf %143, %142 : vector<16x384xf32>
    %145 = math.exp %144 : vector<16x384xf32>
    %cst_55 = arith.constant 1.000000e+00 : f32
    %146 = vector.broadcast %cst_55 : f32 to vector<16x384xf32>
    %147 = arith.addf %146, %145 : vector<16x384xf32>
    %148 = tpu.reciprocal %147 {approx = true} : vector<16x384xf32> -> vector<16x384xf32>
    %149 = vector.extract_strided_slice %141 {offsets = [0, 384], sizes = [16, 128], strides = [1, 1]} : vector<16x512xf32> to vector<16x128xf32>
    %150 = math.tanh %149 : vector<16x128xf32>
    %151 = vector.extract_strided_slice %148 {offsets = [0, 0], sizes = [16, 128], strides = [1, 1]} : vector<16x384xf32> to vector<16x128xf32>
    %152 = vector.extract_strided_slice %148 {offsets = [0, 128], sizes = [16, 128], strides = [1, 1]} : vector<16x384xf32> to vector<16x128xf32>
    %153 = vector.extract_strided_slice %148 {offsets = [0, 256], sizes = [16, 128], strides = [1, 1]} : vector<16x384xf32> to vector<16x128xf32>
    %154 = arith.mulf %152, %126 : vector<16x128xf32>
    %155 = arith.mulf %151, %150 : vector<16x128xf32>
    %156 = arith.addf %154, %155 : vector<16x128xf32>
    %157 = math.tanh %156 : vector<16x128xf32>
    %158 = arith.mulf %153, %157 : vector<16x128xf32>
    %159 = arith.truncf %158 : vector<16x128xf32> to vector<16x128xbf16>
    %160 = arith.index_cast %c4_i32 : i32 to index
    %c0_56 = arith.constant 0 : index
    %c0_57 = arith.constant 0 : index
    %161 = vector.load %arg8[%160, %c0_56, %c0_57] : memref<8x16x128xbf16, #tpu.memory_space<vmem>>, vector<1x16x128xbf16>
    %162 = vector.shape_cast %161 : vector<1x16x128xbf16> to vector<16x128xbf16>
    %163 = vector.shape_cast %159 : vector<16x128xbf16> to vector<1x16x128xbf16>
    tpu.vector_store %arg8[%160, %c0_56, %c0_57], %163 {strides = array<i32>} : memref<8x16x128xbf16, #tpu.memory_space<vmem>>, vector<1x16x128xbf16>,
    %c5_i32 = arith.constant 5 : i32
    %c16_i32_58 = arith.constant 16 : i32
    %164 = arith.muli %c5_i32, %c16_i32_58 : i32
    %165 = tpu.assume_multiple %164, 16 : i32
    %166 = arith.index_cast %165 : i32 to index
    %c0_59 = arith.constant 0 : index
    %167 = vector.load %arg11[%166, %c0_59] : memref<128x512xf32, #tpu.memory_space<vmem>>, vector<16x512xf32>
    %168 = arith.truncf %158 : vector<16x128xf32> to vector<16x128xbf16>
    %c0_60 = arith.constant 0 : index
    %c0_61 = arith.constant 0 : index
    %169 = vector.load %arg6[%c0_60, %c0_61] : memref<128x512xbf16, #tpu.memory_space<vmem>>, vector<128x512xbf16>
    %cst_62 = arith.constant dense<0.000000e+00> : vector<16x512xf32>
    %170 = tpu.matmul %168, %169, %cst_62 {dimension_numbers = #tpu.dot_dimension_numbers<[1], [0], [0], [1], [0, 0, 1, 1], [], []>} : vector<16x128xbf16>, vector<128x512xbf16>, vector<16x512xf32> -> vector<16x512xf32>
    %171 = arith.addf %167, %170 : vector<16x512xf32>
    %172 = vector.extract_strided_slice %171 {offsets = [0, 0], sizes = [16, 384], strides = [1, 1]} : vector<16x512xf32> to vector<16x384xf32>
    %cst_63 = arith.constant 0.000000e+00 : f32
    %173 = vector.broadcast %cst_63 : f32 to vector<16x384xf32>
    %174 = arith.subf %173, %172 : vector<16x384xf32>
    %175 = math.exp %174 : vector<16x384xf32>
    %cst_64 = arith.constant 1.000000e+00 : f32
    %176 = vector.broadcast %cst_64 : f32 to vector<16x384xf32>
    %177 = arith.addf %176, %175 : vector<16x384xf32>
    %178 = tpu.reciprocal %177 {approx = true} : vector<16x384xf32> -> vector<16x384xf32>
    %179 = vector.extract_strided_slice %171 {offsets = [0, 384], sizes = [16, 128], strides = [1, 1]} : vector<16x512xf32> to vector<16x128xf32>
    %180 = math.tanh %179 : vector<16x128xf32>
    %181 = vector.extract_strided_slice %178 {offsets = [0, 0], sizes = [16, 128], strides = [1, 1]} : vector<16x384xf32> to vector<16x128xf32>
    %182 = vector.extract_strided_slice %178 {offsets = [0, 128], sizes = [16, 128], strides = [1, 1]} : vector<16x384xf32> to vector<16x128xf32>
    %183 = vector.extract_strided_slice %178 {offsets = [0, 256], sizes = [16, 128], strides = [1, 1]} : vector<16x384xf32> to vector<16x128xf32>
    %184 = arith.mulf %182, %156 : vector<16x128xf32>
    %185 = arith.mulf %181, %180 : vector<16x128xf32>
    %186 = arith.addf %184, %185 : vector<16x128xf32>
    %187 = math.tanh %186 : vector<16x128xf32>
    %188 = arith.mulf %183, %187 : vector<16x128xf32>
    %189 = arith.truncf %188 : vector<16x128xf32> to vector<16x128xbf16>
    %190 = arith.index_cast %c5_i32 : i32 to index
    %c0_65 = arith.constant 0 : index
    %c0_66 = arith.constant 0 : index
    %191 = vector.load %arg8[%190, %c0_65, %c0_66] : memref<8x16x128xbf16, #tpu.memory_space<vmem>>, vector<1x16x128xbf16>
    %192 = vector.shape_cast %191 : vector<1x16x128xbf16> to vector<16x128xbf16>
    %193 = vector.shape_cast %189 : vector<16x128xbf16> to vector<1x16x128xbf16>
    tpu.vector_store %arg8[%190, %c0_65, %c0_66], %193 {strides = array<i32>} : memref<8x16x128xbf16, #tpu.memory_space<vmem>>, vector<1x16x128xbf16>,
    %c6_i32 = arith.constant 6 : i32
    %c16_i32_67 = arith.constant 16 : i32
    %194 = arith.muli %c6_i32, %c16_i32_67 : i32
    %195 = tpu.assume_multiple %194, 16 : i32
    %196 = arith.index_cast %195 : i32 to index
    %c0_68 = arith.constant 0 : index
    %197 = vector.load %arg11[%196, %c0_68] : memref<128x512xf32, #tpu.memory_space<vmem>>, vector<16x512xf32>
    %198 = arith.truncf %188 : vector<16x128xf32> to vector<16x128xbf16>
    %c0_69 = arith.constant 0 : index
    %c0_70 = arith.constant 0 : index
    %199 = vector.load %arg6[%c0_69, %c0_70] : memref<128x512xbf16, #tpu.memory_space<vmem>>, vector<128x512xbf16>
    %cst_71 = arith.constant dense<0.000000e+00> : vector<16x512xf32>
    %200 = tpu.matmul %198, %199, %cst_71 {dimension_numbers = #tpu.dot_dimension_numbers<[1], [0], [0], [1], [0, 0, 1, 1], [], []>} : vector<16x128xbf16>, vector<128x512xbf16>, vector<16x512xf32> -> vector<16x512xf32>
    %201 = arith.addf %197, %200 : vector<16x512xf32>
    %202 = vector.extract_strided_slice %201 {offsets = [0, 0], sizes = [16, 384], strides = [1, 1]} : vector<16x512xf32> to vector<16x384xf32>
    %cst_72 = arith.constant 0.000000e+00 : f32
    %203 = vector.broadcast %cst_72 : f32 to vector<16x384xf32>
    %204 = arith.subf %203, %202 : vector<16x384xf32>
    %205 = math.exp %204 : vector<16x384xf32>
    %cst_73 = arith.constant 1.000000e+00 : f32
    %206 = vector.broadcast %cst_73 : f32 to vector<16x384xf32>
    %207 = arith.addf %206, %205 : vector<16x384xf32>
    %208 = tpu.reciprocal %207 {approx = true} : vector<16x384xf32> -> vector<16x384xf32>
    %209 = vector.extract_strided_slice %201 {offsets = [0, 384], sizes = [16, 128], strides = [1, 1]} : vector<16x512xf32> to vector<16x128xf32>
    %210 = math.tanh %209 : vector<16x128xf32>
    %211 = vector.extract_strided_slice %208 {offsets = [0, 0], sizes = [16, 128], strides = [1, 1]} : vector<16x384xf32> to vector<16x128xf32>
    %212 = vector.extract_strided_slice %208 {offsets = [0, 128], sizes = [16, 128], strides = [1, 1]} : vector<16x384xf32> to vector<16x128xf32>
    %213 = vector.extract_strided_slice %208 {offsets = [0, 256], sizes = [16, 128], strides = [1, 1]} : vector<16x384xf32> to vector<16x128xf32>
    %214 = arith.mulf %212, %186 : vector<16x128xf32>
    %215 = arith.mulf %211, %210 : vector<16x128xf32>
    %216 = arith.addf %214, %215 : vector<16x128xf32>
    %217 = math.tanh %216 : vector<16x128xf32>
    %218 = arith.mulf %213, %217 : vector<16x128xf32>
    %219 = arith.truncf %218 : vector<16x128xf32> to vector<16x128xbf16>
    %220 = arith.index_cast %c6_i32 : i32 to index
    %c0_74 = arith.constant 0 : index
    %c0_75 = arith.constant 0 : index
    %221 = vector.load %arg8[%220, %c0_74, %c0_75] : memref<8x16x128xbf16, #tpu.memory_space<vmem>>, vector<1x16x128xbf16>
    %222 = vector.shape_cast %221 : vector<1x16x128xbf16> to vector<16x128xbf16>
    %223 = vector.shape_cast %219 : vector<16x128xbf16> to vector<1x16x128xbf16>
    tpu.vector_store %arg8[%220, %c0_74, %c0_75], %223 {strides = array<i32>} : memref<8x16x128xbf16, #tpu.memory_space<vmem>>, vector<1x16x128xbf16>,
    %c7_i32 = arith.constant 7 : i32
    %c16_i32_76 = arith.constant 16 : i32
    %224 = arith.muli %c7_i32, %c16_i32_76 : i32
    %225 = tpu.assume_multiple %224, 16 : i32
    %226 = arith.index_cast %225 : i32 to index
    %c0_77 = arith.constant 0 : index
    %227 = vector.load %arg11[%226, %c0_77] : memref<128x512xf32, #tpu.memory_space<vmem>>, vector<16x512xf32>
    %228 = arith.truncf %218 : vector<16x128xf32> to vector<16x128xbf16>
    %c0_78 = arith.constant 0 : index
    %c0_79 = arith.constant 0 : index
    %229 = vector.load %arg6[%c0_78, %c0_79] : memref<128x512xbf16, #tpu.memory_space<vmem>>, vector<128x512xbf16>
    %cst_80 = arith.constant dense<0.000000e+00> : vector<16x512xf32>
    %230 = tpu.matmul %228, %229, %cst_80 {dimension_numbers = #tpu.dot_dimension_numbers<[1], [0], [0], [1], [0, 0, 1, 1], [], []>} : vector<16x128xbf16>, vector<128x512xbf16>, vector<16x512xf32> -> vector<16x512xf32>
    %231 = arith.addf %227, %230 : vector<16x512xf32>
    %232 = vector.extract_strided_slice %231 {offsets = [0, 0], sizes = [16, 384], strides = [1, 1]} : vector<16x512xf32> to vector<16x384xf32>
    %cst_81 = arith.constant 0.000000e+00 : f32
    %233 = vector.broadcast %cst_81 : f32 to vector<16x384xf32>
    %234 = arith.subf %233, %232 : vector<16x384xf32>
    %235 = math.exp %234 : vector<16x384xf32>
    %cst_82 = arith.constant 1.000000e+00 : f32
    %236 = vector.broadcast %cst_82 : f32 to vector<16x384xf32>
    %237 = arith.addf %236, %235 : vector<16x384xf32>
    %238 = tpu.reciprocal %237 {approx = true} : vector<16x384xf32> -> vector<16x384xf32>
    %239 = vector.extract_strided_slice %231 {offsets = [0, 384], sizes = [16, 128], strides = [1, 1]} : vector<16x512xf32> to vector<16x128xf32>
    %240 = math.tanh %239 : vector<16x128xf32>
    %241 = vector.extract_strided_slice %238 {offsets = [0, 0], sizes = [16, 128], strides = [1, 1]} : vector<16x384xf32> to vector<16x128xf32>
    %242 = vector.extract_strided_slice %238 {offsets = [0, 128], sizes = [16, 128], strides = [1, 1]} : vector<16x384xf32> to vector<16x128xf32>
    %243 = vector.extract_strided_slice %238 {offsets = [0, 256], sizes = [16, 128], strides = [1, 1]} : vector<16x384xf32> to vector<16x128xf32>
    %244 = arith.mulf %242, %216 : vector<16x128xf32>
    %245 = arith.mulf %241, %240 : vector<16x128xf32>
    %246 = arith.addf %244, %245 : vector<16x128xf32>
    %247 = math.tanh %246 : vector<16x128xf32>
    %248 = arith.mulf %243, %247 : vector<16x128xf32>
    %249 = arith.truncf %248 : vector<16x128xf32> to vector<16x128xbf16>
    %250 = arith.index_cast %c7_i32 : i32 to index
    %c0_83 = arith.constant 0 : index
    %c0_84 = arith.constant 0 : index
    %251 = vector.load %arg8[%250, %c0_83, %c0_84] : memref<8x16x128xbf16, #tpu.memory_space<vmem>>, vector<1x16x128xbf16>
    %252 = vector.shape_cast %251 : vector<1x16x128xbf16> to vector<16x128xbf16>
    %253 = vector.shape_cast %249 : vector<16x128xbf16> to vector<1x16x128xbf16>
    tpu.vector_store %arg8[%250, %c0_83, %c0_84], %253 {strides = array<i32>} : memref<8x16x128xbf16, #tpu.memory_space<vmem>>, vector<1x16x128xbf16>,
    %c8_i32 = arith.constant 8 : i32
    %c0_85 = arith.constant 0 : index
    %c0_86 = arith.constant 0 : index
    %254 = vector.load %arg9[%c0_85, %c0_86] : memref<16x128xf32, #tpu.memory_space<vmem>>, vector<16x128xf32>
    tpu.vector_store %arg9[%c0_85, %c0_86], %248 {strides = array<i32>} : memref<16x128xf32, #tpu.memory_space<vmem>>, vector<16x128xf32>,
    %c0_87 = arith.constant 0 : index
    %c0_88 = arith.constant 0 : index
    %255 = vector.load %arg10[%c0_87, %c0_88] : memref<16x128xf32, #tpu.memory_space<vmem>>, vector<16x128xf32>
    tpu.vector_store %arg10[%c0_87, %c0_88], %246 {strides = array<i32>} : memref<16x128xf32, #tpu.memory_space<vmem>>, vector<16x128xf32>,
    return
  }
  func.func @transform_0(%arg0: i32, %arg1: i32) -> (i32, i32, i32) {
    %c0_i32 = arith.constant 0 : i32
    %c0_i32_0 = arith.constant 0 : i32
    return %arg1, %arg0, %c0_i32 : i32, i32, i32
  }
  func.func @transform_1(%arg0: i32, %arg1: i32) -> (i32, i32) {
    %c0_i32 = arith.constant 0 : i32
    %c0_i32_0 = arith.constant 0 : i32
    return %arg0, %c0_i32 : i32, i32
  }
  func.func @transform_2(%arg0: i32, %arg1: i32) -> (i32, i32) {
    %c0_i32 = arith.constant 0 : i32
    %c0_i32_0 = arith.constant 0 : i32
    return %arg0, %c0_i32 : i32, i32
  }
  func.func @transform_3(%arg0: i32, %arg1: i32) -> (i32, i32) {
    %c0_i32 = arith.constant 0 : i32
    %c0_i32_0 = arith.constant 0 : i32
    %c0_i32_1 = arith.constant 0 : i32
    return %c0_i32, %c0_i32_0 : i32, i32
  }
  func.func @transform_4(%arg0: i32, %arg1: i32) -> (i32, i32) {
    %c0_i32 = arith.constant 0 : i32
    %c0_i32_0 = arith.constant 0 : i32
    %c0_i32_1 = arith.constant 0 : i32
    return %c0_i32, %c0_i32_0 : i32, i32
  }
  func.func @transform_5(%arg0: i32, %arg1: i32) -> (i32, i32) {
    %c0_i32 = arith.constant 0 : i32
    %c0_i32_0 = arith.constant 0 : i32
    %c0_i32_1 = arith.constant 0 : i32
    return %c0_i32, %c0_i32_0 : i32, i32
  }
  func.func @transform_6(%arg0: i32, %arg1: i32) -> (i32, i32, i32) {
    %c0_i32 = arith.constant 0 : i32
    %c0_i32_0 = arith.constant 0 : i32
    return %arg1, %arg0, %c0_i32 : i32, i32, i32
  }
  func.func @transform_7(%arg0: i32, %arg1: i32) -> (i32, i32) {
    %c0_i32 = arith.constant 0 : i32
    %c0_i32_0 = arith.constant 0 : i32
    return %arg0, %c0_i32 : i32, i32
  }
  func.func @transform_8(%arg0: i32, %arg1: i32) -> (i32, i32) {
    %c0_i32 = arith.constant 0 : i32
    %c0_i32_0 = arith.constant 0 : i32
    return %arg0, %c0_i32 : i32, i32
  }
}

module attributes {stable_mosaic.version = 11 : i64} {
  func.func @_lstm_fused_kernel(%arg0: i32, %arg1: i32, %arg2: memref<8x16x128xbf16, #tpu.memory_space<vmem>>, %arg3: memref<16x128xf32, #tpu.memory_space<vmem>>, %arg4: memref<16x128xf32, #tpu.memory_space<vmem>>, %arg5: memref<128x512xbf16, #tpu.memory_space<vmem>>, %arg6: memref<128x512xbf16, #tpu.memory_space<vmem>>, %arg7: memref<1x512xf32, #tpu.memory_space<vmem>>, %arg8: memref<8x16x128xbf16, #tpu.memory_space<vmem>>, %arg9: memref<16x128xf32, #tpu.memory_space<vmem>>, %arg10: memref<16x128xf32, #tpu.memory_space<vmem>>, %arg11: memref<128x512xf32, #tpu.memory_space<vmem>>) attributes {dimension_semantics = [#tpu.dimension_semantics<parallel>, #tpu.dimension_semantics<arbitrary>], iteration_bounds = array<i64: 1, 1>, scalar_prefetch = 0 : i64, scratch_operands = 1 : i64, tpu.core_type = #tpu.core_type<tc>, window_params = [{transform_indices = @transform_0, window_bounds = array<i64: 8, 16, 128>}, {transform_indices = @transform_1, window_bounds = array<i64: 16, 128>}, {transform_indices = @transform_2, window_bounds = array<i64: 16, 128>}, {pipeline_mode = #tpu.pipeline_mode<synchronous>, transform_indices = @transform_3, window_bounds = array<i64: 128, 512>}, {pipeline_mode = #tpu.pipeline_mode<synchronous>, transform_indices = @transform_4, window_bounds = array<i64: 128, 512>}, {pipeline_mode = #tpu.pipeline_mode<synchronous>, transform_indices = @transform_5, window_bounds = array<i64: 1, 512>}, {transform_indices = @transform_6, window_bounds = array<i64: 8, 16, 128>}, {transform_indices = @transform_7, window_bounds = array<i64: 16, 128>}, {transform_indices = @transform_8, window_bounds = array<i64: 16, 128>}]} {
    %c0_i32 = arith.constant 0 : i32
    %0 = arith.cmpi eq, %arg1, %c0_i32 : i32
    %1 = arith.extui %0 : i1 to i32
    %c0_i32_0 = arith.constant 0 : i32
    %2 = arith.cmpi ne, %1, %c0_i32_0 : i32
    scf.if %2 {
      %c0_89 = arith.constant 0 : index
      %c0_90 = arith.constant 0 : index
      %255 = vector.load %arg3[%c0_89, %c0_90] : memref<16x128xf32, #tpu.memory_space<vmem>>, vector<16x128xf32>
      %c0_91 = arith.constant 0 : index
      %c0_92 = arith.constant 0 : index
      %256 = vector.load %arg9[%c0_91, %c0_92] : memref<16x128xf32, #tpu.memory_space<vmem>>, vector<16x128xf32>
      tpu.vector_store %arg9[%c0_91, %c0_92], %255 {strides = array<i32>} : memref<16x128xf32, #tpu.memory_space<vmem>>, vector<16x128xf32>,
      %c0_93 = arith.constant 0 : index
      %c0_94 = arith.constant 0 : index
      %257 = vector.load %arg4[%c0_93, %c0_94] : memref<16x128xf32, #tpu.memory_space<vmem>>, vector<16x128xf32>
      %c0_95 = arith.constant 0 : index
      %c0_96 = arith.constant 0 : index
      %258 = vector.load %arg10[%c0_95, %c0_96] : memref<16x128xf32, #tpu.memory_space<vmem>>, vector<16x128xf32>
      tpu.vector_store %arg10[%c0_95, %c0_96], %257 {strides = array<i32>} : memref<16x128xf32, #tpu.memory_space<vmem>>, vector<16x128xf32>,
    } else {
    }
    %c0 = arith.constant 0 : index
    %c0_1 = arith.constant 0 : index
    %c0_2 = arith.constant 0 : index
    %3 = vector.load %arg2[%c0, %c0_1, %c0_2] : memref<8x16x128xbf16, #tpu.memory_space<vmem>>, vector<8x16x128xbf16>
    %4 = vector.shape_cast %3 : vector<8x16x128xbf16> to vector<128x128xbf16>
    %c0_3 = arith.constant 0 : index
    %c0_4 = arith.constant 0 : index
    %5 = vector.load %arg5[%c0_3, %c0_4] : memref<128x512xbf16, #tpu.memory_space<vmem>>, vector<128x512xbf16>
    %cst = arith.constant dense<0.000000e+00> : vector<128x512xf32>
    %6 = tpu.matmul %4, %5, %cst {dimension_numbers = #tpu.dot_dimension_numbers<[1], [0], [0], [1], [0, 0, 1, 1], [], []>} : vector<128x128xbf16>, vector<128x512xbf16>, vector<128x512xf32> -> vector<128x512xf32>
    %c0_5 = arith.constant 0 : index
    %c0_6 = arith.constant 0 : index
    %7 = vector.load %arg7[%c0_5, %c0_6] : memref<1x512xf32, #tpu.memory_space<vmem>>, vector<1x512xf32>
    %8 = vector.broadcast %7 : vector<1x512xf32> to vector<128x512xf32>
    %9 = arith.addf %6, %8 : vector<128x512xf32>
    %c0_7 = arith.constant 0 : index
    %c0_8 = arith.constant 0 : index
    %10 = vector.load %arg11[%c0_7, %c0_8] : memref<128x512xf32, #tpu.memory_space<vmem>>, vector<128x512xf32>
    tpu.vector_store %arg11[%c0_7, %c0_8], %9 {strides = array<i32>} : memref<128x512xf32, #tpu.memory_space<vmem>>, vector<128x512xf32>,
    %c0_9 = arith.constant 0 : index
    %c0_10 = arith.constant 0 : index
    %11 = vector.load %arg9[%c0_9, %c0_10] : memref<16x128xf32, #tpu.memory_space<vmem>>, vector<16x128xf32>
    %c0_11 = arith.constant 0 : index
    %c0_12 = arith.constant 0 : index
    %12 = vector.load %arg10[%c0_11, %c0_12] : memref<16x128xf32, #tpu.memory_space<vmem>>, vector<16x128xf32>
    %c0_i32_13 = arith.constant 0 : i32
    %c16_i32 = arith.constant 16 : i32
    %13 = arith.muli %c0_i32_13, %c16_i32 : i32
    %14 = tpu.assume_multiple %13, 16 : i32
    %15 = arith.index_cast %14 : i32 to index
    %c0_14 = arith.constant 0 : index
    %16 = vector.load %arg11[%15, %c0_14] : memref<128x512xf32, #tpu.memory_space<vmem>>, vector<16x512xf32>
    %17 = arith.truncf %11 : vector<16x128xf32> to vector<16x128xbf16>
    %c0_15 = arith.constant 0 : index
    %c0_16 = arith.constant 0 : index
    %18 = vector.load %arg6[%c0_15, %c0_16] : memref<128x512xbf16, #tpu.memory_space<vmem>>, vector<128x512xbf16>
    %cst_17 = arith.constant dense<0.000000e+00> : vector<16x512xf32>
    %19 = tpu.matmul %17, %18, %cst_17 {dimension_numbers = #tpu.dot_dimension_numbers<[1], [0], [0], [1], [0, 0, 1, 1], [], []>} : vector<16x128xbf16>, vector<128x512xbf16>, vector<16x512xf32> -> vector<16x512xf32>
    %20 = arith.addf %16, %19 : vector<16x512xf32>
    %21 = vector.extract_strided_slice %20 {offsets = [0, 0], sizes = [16, 384], strides = [1, 1]} : vector<16x512xf32> to vector<16x384xf32>
    %cst_18 = arith.constant 0.000000e+00 : f32
    %22 = vector.broadcast %cst_18 : f32 to vector<16x384xf32>
    %23 = arith.subf %22, %21 : vector<16x384xf32>
    %24 = math.exp %23 : vector<16x384xf32>
    %cst_19 = arith.constant 1.000000e+00 : f32
    %25 = vector.broadcast %cst_19 : f32 to vector<16x384xf32>
    %26 = arith.addf %25, %24 : vector<16x384xf32>
    %27 = tpu.reciprocal %26 {approx = true} : vector<16x384xf32> -> vector<16x384xf32>
    %28 = vector.extract_strided_slice %20 {offsets = [0, 384], sizes = [16, 128], strides = [1, 1]} : vector<16x512xf32> to vector<16x128xf32>
    %29 = math.tanh %28 : vector<16x128xf32>
    %30 = vector.extract_strided_slice %27 {offsets = [0, 0], sizes = [16, 128], strides = [1, 1]} : vector<16x384xf32> to vector<16x128xf32>
    %31 = vector.extract_strided_slice %27 {offsets = [0, 128], sizes = [16, 128], strides = [1, 1]} : vector<16x384xf32> to vector<16x128xf32>
    %32 = vector.extract_strided_slice %27 {offsets = [0, 256], sizes = [16, 128], strides = [1, 1]} : vector<16x384xf32> to vector<16x128xf32>
    %33 = arith.mulf %31, %12 : vector<16x128xf32>
    %34 = arith.mulf %30, %29 : vector<16x128xf32>
    %35 = arith.addf %33, %34 : vector<16x128xf32>
    %36 = math.tanh %35 : vector<16x128xf32>
    %37 = arith.mulf %32, %36 : vector<16x128xf32>
    %38 = arith.truncf %37 : vector<16x128xf32> to vector<16x128xbf16>
    %39 = arith.index_cast %c0_i32_13 : i32 to index
    %c0_20 = arith.constant 0 : index
    %c0_21 = arith.constant 0 : index
    %40 = vector.load %arg8[%39, %c0_20, %c0_21] : memref<8x16x128xbf16, #tpu.memory_space<vmem>>, vector<1x16x128xbf16>
    %41 = vector.shape_cast %40 : vector<1x16x128xbf16> to vector<16x128xbf16>
    %42 = vector.shape_cast %38 : vector<16x128xbf16> to vector<1x16x128xbf16>
    tpu.vector_store %arg8[%39, %c0_20, %c0_21], %42 {strides = array<i32>} : memref<8x16x128xbf16, #tpu.memory_space<vmem>>, vector<1x16x128xbf16>,
    %c1_i32 = arith.constant 1 : i32
    %c16_i32_22 = arith.constant 16 : i32
    %43 = arith.muli %c1_i32, %c16_i32_22 : i32
    %44 = tpu.assume_multiple %43, 16 : i32
    %45 = arith.index_cast %44 : i32 to index
    %c0_23 = arith.constant 0 : index
    %46 = vector.load %arg11[%45, %c0_23] : memref<128x512xf32, #tpu.memory_space<vmem>>, vector<16x512xf32>
    %47 = arith.truncf %37 : vector<16x128xf32> to vector<16x128xbf16>
    %c0_24 = arith.constant 0 : index
    %c0_25 = arith.constant 0 : index
    %48 = vector.load %arg6[%c0_24, %c0_25] : memref<128x512xbf16, #tpu.memory_space<vmem>>, vector<128x512xbf16>
    %cst_26 = arith.constant dense<0.000000e+00> : vector<16x512xf32>
    %49 = tpu.matmul %47, %48, %cst_26 {dimension_numbers = #tpu.dot_dimension_numbers<[1], [0], [0], [1], [0, 0, 1, 1], [], []>} : vector<16x128xbf16>, vector<128x512xbf16>, vector<16x512xf32> -> vector<16x512xf32>
    %50 = arith.addf %46, %49 : vector<16x512xf32>
    %51 = vector.extract_strided_slice %50 {offsets = [0, 0], sizes = [16, 384], strides = [1, 1]} : vector<16x512xf32> to vector<16x384xf32>
    %cst_27 = arith.constant 0.000000e+00 : f32
    %52 = vector.broadcast %cst_27 : f32 to vector<16x384xf32>
    %53 = arith.subf %52, %51 : vector<16x384xf32>
    %54 = math.exp %53 : vector<16x384xf32>
    %cst_28 = arith.constant 1.000000e+00 : f32
    %55 = vector.broadcast %cst_28 : f32 to vector<16x384xf32>
    %56 = arith.addf %55, %54 : vector<16x384xf32>
    %57 = tpu.reciprocal %56 {approx = true} : vector<16x384xf32> -> vector<16x384xf32>
    %58 = vector.extract_strided_slice %50 {offsets = [0, 384], sizes = [16, 128], strides = [1, 1]} : vector<16x512xf32> to vector<16x128xf32>
    %59 = math.tanh %58 : vector<16x128xf32>
    %60 = vector.extract_strided_slice %57 {offsets = [0, 0], sizes = [16, 128], strides = [1, 1]} : vector<16x384xf32> to vector<16x128xf32>
    %61 = vector.extract_strided_slice %57 {offsets = [0, 128], sizes = [16, 128], strides = [1, 1]} : vector<16x384xf32> to vector<16x128xf32>
    %62 = vector.extract_strided_slice %57 {offsets = [0, 256], sizes = [16, 128], strides = [1, 1]} : vector<16x384xf32> to vector<16x128xf32>
    %63 = arith.mulf %61, %35 : vector<16x128xf32>
    %64 = arith.mulf %60, %59 : vector<16x128xf32>
    %65 = arith.addf %63, %64 : vector<16x128xf32>
    %66 = math.tanh %65 : vector<16x128xf32>
    %67 = arith.mulf %62, %66 : vector<16x128xf32>
    %68 = arith.truncf %67 : vector<16x128xf32> to vector<16x128xbf16>
    %69 = arith.index_cast %c1_i32 : i32 to index
    %c0_29 = arith.constant 0 : index
    %c0_30 = arith.constant 0 : index
    %70 = vector.load %arg8[%69, %c0_29, %c0_30] : memref<8x16x128xbf16, #tpu.memory_space<vmem>>, vector<1x16x128xbf16>
    %71 = vector.shape_cast %70 : vector<1x16x128xbf16> to vector<16x128xbf16>
    %72 = vector.shape_cast %68 : vector<16x128xbf16> to vector<1x16x128xbf16>
    tpu.vector_store %arg8[%69, %c0_29, %c0_30], %72 {strides = array<i32>} : memref<8x16x128xbf16, #tpu.memory_space<vmem>>, vector<1x16x128xbf16>,
    %c2_i32 = arith.constant 2 : i32
    %c16_i32_31 = arith.constant 16 : i32
    %73 = arith.muli %c2_i32, %c16_i32_31 : i32
    %74 = tpu.assume_multiple %73, 16 : i32
    %75 = arith.index_cast %74 : i32 to index
    %c0_32 = arith.constant 0 : index
    %76 = vector.load %arg11[%75, %c0_32] : memref<128x512xf32, #tpu.memory_space<vmem>>, vector<16x512xf32>
    %77 = arith.truncf %67 : vector<16x128xf32> to vector<16x128xbf16>
    %c0_33 = arith.constant 0 : index
    %c0_34 = arith.constant 0 : index
    %78 = vector.load %arg6[%c0_33, %c0_34] : memref<128x512xbf16, #tpu.memory_space<vmem>>, vector<128x512xbf16>
    %cst_35 = arith.constant dense<0.000000e+00> : vector<16x512xf32>
    %79 = tpu.matmul %77, %78, %cst_35 {dimension_numbers = #tpu.dot_dimension_numbers<[1], [0], [0], [1], [0, 0, 1, 1], [], []>} : vector<16x128xbf16>, vector<128x512xbf16>, vector<16x512xf32> -> vector<16x512xf32>
    %80 = arith.addf %76, %79 : vector<16x512xf32>
    %81 = vector.extract_strided_slice %80 {offsets = [0, 0], sizes = [16, 384], strides = [1, 1]} : vector<16x512xf32> to vector<16x384xf32>
    %cst_36 = arith.constant 0.000000e+00 : f32
    %82 = vector.broadcast %cst_36 : f32 to vector<16x384xf32>
    %83 = arith.subf %82, %81 : vector<16x384xf32>
    %84 = math.exp %83 : vector<16x384xf32>
    %cst_37 = arith.constant 1.000000e+00 : f32
    %85 = vector.broadcast %cst_37 : f32 to vector<16x384xf32>
    %86 = arith.addf %85, %84 : vector<16x384xf32>
    %87 = tpu.reciprocal %86 {approx = true} : vector<16x384xf32> -> vector<16x384xf32>
    %88 = vector.extract_strided_slice %80 {offsets = [0, 384], sizes = [16, 128], strides = [1, 1]} : vector<16x512xf32> to vector<16x128xf32>
    %89 = math.tanh %88 : vector<16x128xf32>
    %90 = vector.extract_strided_slice %87 {offsets = [0, 0], sizes = [16, 128], strides = [1, 1]} : vector<16x384xf32> to vector<16x128xf32>
    %91 = vector.extract_strided_slice %87 {offsets = [0, 128], sizes = [16, 128], strides = [1, 1]} : vector<16x384xf32> to vector<16x128xf32>
    %92 = vector.extract_strided_slice %87 {offsets = [0, 256], sizes = [16, 128], strides = [1, 1]} : vector<16x384xf32> to vector<16x128xf32>
    %93 = arith.mulf %91, %65 : vector<16x128xf32>
    %94 = arith.mulf %90, %89 : vector<16x128xf32>
    %95 = arith.addf %93, %94 : vector<16x128xf32>
    %96 = math.tanh %95 : vector<16x128xf32>
    %97 = arith.mulf %92, %96 : vector<16x128xf32>
    %98 = arith.truncf %97 : vector<16x128xf32> to vector<16x128xbf16>
    %99 = arith.index_cast %c2_i32 : i32 to index
    %c0_38 = arith.constant 0 : index
    %c0_39 = arith.constant 0 : index
    %100 = vector.load %arg8[%99, %c0_38, %c0_39] : memref<8x16x128xbf16, #tpu.memory_space<vmem>>, vector<1x16x128xbf16>
    %101 = vector.shape_cast %100 : vector<1x16x128xbf16> to vector<16x128xbf16>
    %102 = vector.shape_cast %98 : vector<16x128xbf16> to vector<1x16x128xbf16>
    tpu.vector_store %arg8[%99, %c0_38, %c0_39], %102 {strides = array<i32>} : memref<8x16x128xbf16, #tpu.memory_space<vmem>>, vector<1x16x128xbf16>,
    %c3_i32 = arith.constant 3 : i32
    %c16_i32_40 = arith.constant 16 : i32
    %103 = arith.muli %c3_i32, %c16_i32_40 : i32
    %104 = tpu.assume_multiple %103, 16 : i32
    %105 = arith.index_cast %104 : i32 to index
    %c0_41 = arith.constant 0 : index
    %106 = vector.load %arg11[%105, %c0_41] : memref<128x512xf32, #tpu.memory_space<vmem>>, vector<16x512xf32>
    %107 = arith.truncf %97 : vector<16x128xf32> to vector<16x128xbf16>
    %c0_42 = arith.constant 0 : index
    %c0_43 = arith.constant 0 : index
    %108 = vector.load %arg6[%c0_42, %c0_43] : memref<128x512xbf16, #tpu.memory_space<vmem>>, vector<128x512xbf16>
    %cst_44 = arith.constant dense<0.000000e+00> : vector<16x512xf32>
    %109 = tpu.matmul %107, %108, %cst_44 {dimension_numbers = #tpu.dot_dimension_numbers<[1], [0], [0], [1], [0, 0, 1, 1], [], []>} : vector<16x128xbf16>, vector<128x512xbf16>, vector<16x512xf32> -> vector<16x512xf32>
    %110 = arith.addf %106, %109 : vector<16x512xf32>
    %111 = vector.extract_strided_slice %110 {offsets = [0, 0], sizes = [16, 384], strides = [1, 1]} : vector<16x512xf32> to vector<16x384xf32>
    %cst_45 = arith.constant 0.000000e+00 : f32
    %112 = vector.broadcast %cst_45 : f32 to vector<16x384xf32>
    %113 = arith.subf %112, %111 : vector<16x384xf32>
    %114 = math.exp %113 : vector<16x384xf32>
    %cst_46 = arith.constant 1.000000e+00 : f32
    %115 = vector.broadcast %cst_46 : f32 to vector<16x384xf32>
    %116 = arith.addf %115, %114 : vector<16x384xf32>
    %117 = tpu.reciprocal %116 {approx = true} : vector<16x384xf32> -> vector<16x384xf32>
    %118 = vector.extract_strided_slice %110 {offsets = [0, 384], sizes = [16, 128], strides = [1, 1]} : vector<16x512xf32> to vector<16x128xf32>
    %119 = math.tanh %118 : vector<16x128xf32>
    %120 = vector.extract_strided_slice %117 {offsets = [0, 0], sizes = [16, 128], strides = [1, 1]} : vector<16x384xf32> to vector<16x128xf32>
    %121 = vector.extract_strided_slice %117 {offsets = [0, 128], sizes = [16, 128], strides = [1, 1]} : vector<16x384xf32> to vector<16x128xf32>
    %122 = vector.extract_strided_slice %117 {offsets = [0, 256], sizes = [16, 128], strides = [1, 1]} : vector<16x384xf32> to vector<16x128xf32>
    %123 = arith.mulf %121, %95 : vector<16x128xf32>
    %124 = arith.mulf %120, %119 : vector<16x128xf32>
    %125 = arith.addf %123, %124 : vector<16x128xf32>
    %126 = math.tanh %125 : vector<16x128xf32>
    %127 = arith.mulf %122, %126 : vector<16x128xf32>
    %128 = arith.truncf %127 : vector<16x128xf32> to vector<16x128xbf16>
    %129 = arith.index_cast %c3_i32 : i32 to index
    %c0_47 = arith.constant 0 : index
    %c0_48 = arith.constant 0 : index
    %130 = vector.load %arg8[%129, %c0_47, %c0_48] : memref<8x16x128xbf16, #tpu.memory_space<vmem>>, vector<1x16x128xbf16>
    %131 = vector.shape_cast %130 : vector<1x16x128xbf16> to vector<16x128xbf16>
    %132 = vector.shape_cast %128 : vector<16x128xbf16> to vector<1x16x128xbf16>
    tpu.vector_store %arg8[%129, %c0_47, %c0_48], %132 {strides = array<i32>} : memref<8x16x128xbf16, #tpu.memory_space<vmem>>, vector<1x16x128xbf16>,
    %c4_i32 = arith.constant 4 : i32
    %c16_i32_49 = arith.constant 16 : i32
    %133 = arith.muli %c4_i32, %c16_i32_49 : i32
    %134 = tpu.assume_multiple %133, 16 : i32
    %135 = arith.index_cast %134 : i32 to index
    %c0_50 = arith.constant 0 : index
    %136 = vector.load %arg11[%135, %c0_50] : memref<128x512xf32, #tpu.memory_space<vmem>>, vector<16x512xf32>
    %137 = arith.truncf %127 : vector<16x128xf32> to vector<16x128xbf16>
    %c0_51 = arith.constant 0 : index
    %c0_52 = arith.constant 0 : index
    %138 = vector.load %arg6[%c0_51, %c0_52] : memref<128x512xbf16, #tpu.memory_space<vmem>>, vector<128x512xbf16>
    %cst_53 = arith.constant dense<0.000000e+00> : vector<16x512xf32>
    %139 = tpu.matmul %137, %138, %cst_53 {dimension_numbers = #tpu.dot_dimension_numbers<[1], [0], [0], [1], [0, 0, 1, 1], [], []>} : vector<16x128xbf16>, vector<128x512xbf16>, vector<16x512xf32> -> vector<16x512xf32>
    %140 = arith.addf %136, %139 : vector<16x512xf32>
    %141 = vector.extract_strided_slice %140 {offsets = [0, 0], sizes = [16, 384], strides = [1, 1]} : vector<16x512xf32> to vector<16x384xf32>
    %cst_54 = arith.constant 0.000000e+00 : f32
    %142 = vector.broadcast %cst_54 : f32 to vector<16x384xf32>
    %143 = arith.subf %142, %141 : vector<16x384xf32>
    %144 = math.exp %143 : vector<16x384xf32>
    %cst_55 = arith.constant 1.000000e+00 : f32
    %145 = vector.broadcast %cst_55 : f32 to vector<16x384xf32>
    %146 = arith.addf %145, %144 : vector<16x384xf32>
    %147 = tpu.reciprocal %146 {approx = true} : vector<16x384xf32> -> vector<16x384xf32>
    %148 = vector.extract_strided_slice %140 {offsets = [0, 384], sizes = [16, 128], strides = [1, 1]} : vector<16x512xf32> to vector<16x128xf32>
    %149 = math.tanh %148 : vector<16x128xf32>
    %150 = vector.extract_strided_slice %147 {offsets = [0, 0], sizes = [16, 128], strides = [1, 1]} : vector<16x384xf32> to vector<16x128xf32>
    %151 = vector.extract_strided_slice %147 {offsets = [0, 128], sizes = [16, 128], strides = [1, 1]} : vector<16x384xf32> to vector<16x128xf32>
    %152 = vector.extract_strided_slice %147 {offsets = [0, 256], sizes = [16, 128], strides = [1, 1]} : vector<16x384xf32> to vector<16x128xf32>
    %153 = arith.mulf %151, %125 : vector<16x128xf32>
    %154 = arith.mulf %150, %149 : vector<16x128xf32>
    %155 = arith.addf %153, %154 : vector<16x128xf32>
    %156 = math.tanh %155 : vector<16x128xf32>
    %157 = arith.mulf %152, %156 : vector<16x128xf32>
    %158 = arith.truncf %157 : vector<16x128xf32> to vector<16x128xbf16>
    %159 = arith.index_cast %c4_i32 : i32 to index
    %c0_56 = arith.constant 0 : index
    %c0_57 = arith.constant 0 : index
    %160 = vector.load %arg8[%159, %c0_56, %c0_57] : memref<8x16x128xbf16, #tpu.memory_space<vmem>>, vector<1x16x128xbf16>
    %161 = vector.shape_cast %160 : vector<1x16x128xbf16> to vector<16x128xbf16>
    %162 = vector.shape_cast %158 : vector<16x128xbf16> to vector<1x16x128xbf16>
    tpu.vector_store %arg8[%159, %c0_56, %c0_57], %162 {strides = array<i32>} : memref<8x16x128xbf16, #tpu.memory_space<vmem>>, vector<1x16x128xbf16>,
    %c5_i32 = arith.constant 5 : i32
    %c16_i32_58 = arith.constant 16 : i32
    %163 = arith.muli %c5_i32, %c16_i32_58 : i32
    %164 = tpu.assume_multiple %163, 16 : i32
    %165 = arith.index_cast %164 : i32 to index
    %c0_59 = arith.constant 0 : index
    %166 = vector.load %arg11[%165, %c0_59] : memref<128x512xf32, #tpu.memory_space<vmem>>, vector<16x512xf32>
    %167 = arith.truncf %157 : vector<16x128xf32> to vector<16x128xbf16>
    %c0_60 = arith.constant 0 : index
    %c0_61 = arith.constant 0 : index
    %168 = vector.load %arg6[%c0_60, %c0_61] : memref<128x512xbf16, #tpu.memory_space<vmem>>, vector<128x512xbf16>
    %cst_62 = arith.constant dense<0.000000e+00> : vector<16x512xf32>
    %169 = tpu.matmul %167, %168, %cst_62 {dimension_numbers = #tpu.dot_dimension_numbers<[1], [0], [0], [1], [0, 0, 1, 1], [], []>} : vector<16x128xbf16>, vector<128x512xbf16>, vector<16x512xf32> -> vector<16x512xf32>
    %170 = arith.addf %166, %169 : vector<16x512xf32>
    %171 = vector.extract_strided_slice %170 {offsets = [0, 0], sizes = [16, 384], strides = [1, 1]} : vector<16x512xf32> to vector<16x384xf32>
    %cst_63 = arith.constant 0.000000e+00 : f32
    %172 = vector.broadcast %cst_63 : f32 to vector<16x384xf32>
    %173 = arith.subf %172, %171 : vector<16x384xf32>
    %174 = math.exp %173 : vector<16x384xf32>
    %cst_64 = arith.constant 1.000000e+00 : f32
    %175 = vector.broadcast %cst_64 : f32 to vector<16x384xf32>
    %176 = arith.addf %175, %174 : vector<16x384xf32>
    %177 = tpu.reciprocal %176 {approx = true} : vector<16x384xf32> -> vector<16x384xf32>
    %178 = vector.extract_strided_slice %170 {offsets = [0, 384], sizes = [16, 128], strides = [1, 1]} : vector<16x512xf32> to vector<16x128xf32>
    %179 = math.tanh %178 : vector<16x128xf32>
    %180 = vector.extract_strided_slice %177 {offsets = [0, 0], sizes = [16, 128], strides = [1, 1]} : vector<16x384xf32> to vector<16x128xf32>
    %181 = vector.extract_strided_slice %177 {offsets = [0, 128], sizes = [16, 128], strides = [1, 1]} : vector<16x384xf32> to vector<16x128xf32>
    %182 = vector.extract_strided_slice %177 {offsets = [0, 256], sizes = [16, 128], strides = [1, 1]} : vector<16x384xf32> to vector<16x128xf32>
    %183 = arith.mulf %181, %155 : vector<16x128xf32>
    %184 = arith.mulf %180, %179 : vector<16x128xf32>
    %185 = arith.addf %183, %184 : vector<16x128xf32>
    %186 = math.tanh %185 : vector<16x128xf32>
    %187 = arith.mulf %182, %186 : vector<16x128xf32>
    %188 = arith.truncf %187 : vector<16x128xf32> to vector<16x128xbf16>
    %189 = arith.index_cast %c5_i32 : i32 to index
    %c0_65 = arith.constant 0 : index
    %c0_66 = arith.constant 0 : index
    %190 = vector.load %arg8[%189, %c0_65, %c0_66] : memref<8x16x128xbf16, #tpu.memory_space<vmem>>, vector<1x16x128xbf16>
    %191 = vector.shape_cast %190 : vector<1x16x128xbf16> to vector<16x128xbf16>
    %192 = vector.shape_cast %188 : vector<16x128xbf16> to vector<1x16x128xbf16>
    tpu.vector_store %arg8[%189, %c0_65, %c0_66], %192 {strides = array<i32>} : memref<8x16x128xbf16, #tpu.memory_space<vmem>>, vector<1x16x128xbf16>,
    %c6_i32 = arith.constant 6 : i32
    %c16_i32_67 = arith.constant 16 : i32
    %193 = arith.muli %c6_i32, %c16_i32_67 : i32
    %194 = tpu.assume_multiple %193, 16 : i32
    %195 = arith.index_cast %194 : i32 to index
    %c0_68 = arith.constant 0 : index
    %196 = vector.load %arg11[%195, %c0_68] : memref<128x512xf32, #tpu.memory_space<vmem>>, vector<16x512xf32>
    %197 = arith.truncf %187 : vector<16x128xf32> to vector<16x128xbf16>
    %c0_69 = arith.constant 0 : index
    %c0_70 = arith.constant 0 : index
    %198 = vector.load %arg6[%c0_69, %c0_70] : memref<128x512xbf16, #tpu.memory_space<vmem>>, vector<128x512xbf16>
    %cst_71 = arith.constant dense<0.000000e+00> : vector<16x512xf32>
    %199 = tpu.matmul %197, %198, %cst_71 {dimension_numbers = #tpu.dot_dimension_numbers<[1], [0], [0], [1], [0, 0, 1, 1], [], []>} : vector<16x128xbf16>, vector<128x512xbf16>, vector<16x512xf32> -> vector<16x512xf32>
    %200 = arith.addf %196, %199 : vector<16x512xf32>
    %201 = vector.extract_strided_slice %200 {offsets = [0, 0], sizes = [16, 384], strides = [1, 1]} : vector<16x512xf32> to vector<16x384xf32>
    %cst_72 = arith.constant 0.000000e+00 : f32
    %202 = vector.broadcast %cst_72 : f32 to vector<16x384xf32>
    %203 = arith.subf %202, %201 : vector<16x384xf32>
    %204 = math.exp %203 : vector<16x384xf32>
    %cst_73 = arith.constant 1.000000e+00 : f32
    %205 = vector.broadcast %cst_73 : f32 to vector<16x384xf32>
    %206 = arith.addf %205, %204 : vector<16x384xf32>
    %207 = tpu.reciprocal %206 {approx = true} : vector<16x384xf32> -> vector<16x384xf32>
    %208 = vector.extract_strided_slice %200 {offsets = [0, 384], sizes = [16, 128], strides = [1, 1]} : vector<16x512xf32> to vector<16x128xf32>
    %209 = math.tanh %208 : vector<16x128xf32>
    %210 = vector.extract_strided_slice %207 {offsets = [0, 0], sizes = [16, 128], strides = [1, 1]} : vector<16x384xf32> to vector<16x128xf32>
    %211 = vector.extract_strided_slice %207 {offsets = [0, 128], sizes = [16, 128], strides = [1, 1]} : vector<16x384xf32> to vector<16x128xf32>
    %212 = vector.extract_strided_slice %207 {offsets = [0, 256], sizes = [16, 128], strides = [1, 1]} : vector<16x384xf32> to vector<16x128xf32>
    %213 = arith.mulf %211, %185 : vector<16x128xf32>
    %214 = arith.mulf %210, %209 : vector<16x128xf32>
    %215 = arith.addf %213, %214 : vector<16x128xf32>
    %216 = math.tanh %215 : vector<16x128xf32>
    %217 = arith.mulf %212, %216 : vector<16x128xf32>
    %218 = arith.truncf %217 : vector<16x128xf32> to vector<16x128xbf16>
    %219 = arith.index_cast %c6_i32 : i32 to index
    %c0_74 = arith.constant 0 : index
    %c0_75 = arith.constant 0 : index
    %220 = vector.load %arg8[%219, %c0_74, %c0_75] : memref<8x16x128xbf16, #tpu.memory_space<vmem>>, vector<1x16x128xbf16>
    %221 = vector.shape_cast %220 : vector<1x16x128xbf16> to vector<16x128xbf16>
    %222 = vector.shape_cast %218 : vector<16x128xbf16> to vector<1x16x128xbf16>
    tpu.vector_store %arg8[%219, %c0_74, %c0_75], %222 {strides = array<i32>} : memref<8x16x128xbf16, #tpu.memory_space<vmem>>, vector<1x16x128xbf16>,
    %c7_i32 = arith.constant 7 : i32
    %c16_i32_76 = arith.constant 16 : i32
    %223 = arith.muli %c7_i32, %c16_i32_76 : i32
    %224 = tpu.assume_multiple %223, 16 : i32
    %225 = arith.index_cast %224 : i32 to index
    %c0_77 = arith.constant 0 : index
    %226 = vector.load %arg11[%225, %c0_77] : memref<128x512xf32, #tpu.memory_space<vmem>>, vector<16x512xf32>
    %227 = arith.truncf %217 : vector<16x128xf32> to vector<16x128xbf16>
    %c0_78 = arith.constant 0 : index
    %c0_79 = arith.constant 0 : index
    %228 = vector.load %arg6[%c0_78, %c0_79] : memref<128x512xbf16, #tpu.memory_space<vmem>>, vector<128x512xbf16>
    %cst_80 = arith.constant dense<0.000000e+00> : vector<16x512xf32>
    %229 = tpu.matmul %227, %228, %cst_80 {dimension_numbers = #tpu.dot_dimension_numbers<[1], [0], [0], [1], [0, 0, 1, 1], [], []>} : vector<16x128xbf16>, vector<128x512xbf16>, vector<16x512xf32> -> vector<16x512xf32>
    %230 = arith.addf %226, %229 : vector<16x512xf32>
    %231 = vector.extract_strided_slice %230 {offsets = [0, 0], sizes = [16, 384], strides = [1, 1]} : vector<16x512xf32> to vector<16x384xf32>
    %cst_81 = arith.constant 0.000000e+00 : f32
    %232 = vector.broadcast %cst_81 : f32 to vector<16x384xf32>
    %233 = arith.subf %232, %231 : vector<16x384xf32>
    %234 = math.exp %233 : vector<16x384xf32>
    %cst_82 = arith.constant 1.000000e+00 : f32
    %235 = vector.broadcast %cst_82 : f32 to vector<16x384xf32>
    %236 = arith.addf %235, %234 : vector<16x384xf32>
    %237 = tpu.reciprocal %236 {approx = true} : vector<16x384xf32> -> vector<16x384xf32>
    %238 = vector.extract_strided_slice %230 {offsets = [0, 384], sizes = [16, 128], strides = [1, 1]} : vector<16x512xf32> to vector<16x128xf32>
    %239 = math.tanh %238 : vector<16x128xf32>
    %240 = vector.extract_strided_slice %237 {offsets = [0, 0], sizes = [16, 128], strides = [1, 1]} : vector<16x384xf32> to vector<16x128xf32>
    %241 = vector.extract_strided_slice %237 {offsets = [0, 128], sizes = [16, 128], strides = [1, 1]} : vector<16x384xf32> to vector<16x128xf32>
    %242 = vector.extract_strided_slice %237 {offsets = [0, 256], sizes = [16, 128], strides = [1, 1]} : vector<16x384xf32> to vector<16x128xf32>
    %243 = arith.mulf %241, %215 : vector<16x128xf32>
    %244 = arith.mulf %240, %239 : vector<16x128xf32>
    %245 = arith.addf %243, %244 : vector<16x128xf32>
    %246 = math.tanh %245 : vector<16x128xf32>
    %247 = arith.mulf %242, %246 : vector<16x128xf32>
    %248 = arith.truncf %247 : vector<16x128xf32> to vector<16x128xbf16>
    %249 = arith.index_cast %c7_i32 : i32 to index
    %c0_83 = arith.constant 0 : index
    %c0_84 = arith.constant 0 : index
    %250 = vector.load %arg8[%249, %c0_83, %c0_84] : memref<8x16x128xbf16, #tpu.memory_space<vmem>>, vector<1x16x128xbf16>
    %251 = vector.shape_cast %250 : vector<1x16x128xbf16> to vector<16x128xbf16>
    %252 = vector.shape_cast %248 : vector<16x128xbf16> to vector<1x16x128xbf16>
    tpu.vector_store %arg8[%249, %c0_83, %c0_84], %252 {strides = array<i32>} : memref<8x16x128xbf16, #tpu.memory_space<vmem>>, vector<1x16x128xbf16>,
    %c8_i32 = arith.constant 8 : i32
    %c0_85 = arith.constant 0 : index
    %c0_86 = arith.constant 0 : index
    %253 = vector.load %arg9[%c0_85, %c0_86] : memref<16x128xf32, #tpu.memory_space<vmem>>, vector<16x128xf32>
    tpu.vector_store %arg9[%c0_85, %c0_86], %247 {strides = array<i32>} : memref<16x128xf32, #tpu.memory_space<vmem>>, vector<16x128xf32>,
    %c0_87 = arith.constant 0 : index
    %c0_88 = arith.constant 0 : index
    %254 = vector.load %arg10[%c0_87, %c0_88] : memref<16x128xf32, #tpu.memory_space<vmem>>, vector<16x128xf32>
    tpu.vector_store %arg10[%c0_87, %c0_88], %245 {strides = array<i32>} : memref<16x128xf32, #tpu.memory_space<vmem>>, vector<16x128xf32>,
    return
  }
  func.func @transform_0(%arg0: i32, %arg1: i32) -> (i32, i32, i32) {
    %c0_i32 = arith.constant 0 : i32
    %c0_i32_0 = arith.constant 0 : i32
    return %arg1, %arg0, %c0_i32 : i32, i32, i32
  }
  func.func @transform_1(%arg0: i32, %arg1: i32) -> (i32, i32) {
    %c0_i32 = arith.constant 0 : i32
    %c0_i32_0 = arith.constant 0 : i32
    return %arg0, %c0_i32 : i32, i32
  }
  func.func @transform_2(%arg0: i32, %arg1: i32) -> (i32, i32) {
    %c0_i32 = arith.constant 0 : i32
    %c0_i32_0 = arith.constant 0 : i32
    return %arg0, %c0_i32 : i32, i32
  }
  func.func @transform_3(%arg0: i32, %arg1: i32) -> (i32, i32) {
    %c0_i32 = arith.constant 0 : i32
    %c0_i32_0 = arith.constant 0 : i32
    %c0_i32_1 = arith.constant 0 : i32
    return %c0_i32, %c0_i32_0 : i32, i32
  }
  func.func @transform_4(%arg0: i32, %arg1: i32) -> (i32, i32) {
    %c0_i32 = arith.constant 0 : i32
    %c0_i32_0 = arith.constant 0 : i32
    %c0_i32_1 = arith.constant 0 : i32
    return %c0_i32, %c0_i32_0 : i32, i32
  }
  func.func @transform_5(%arg0: i32, %arg1: i32) -> (i32, i32) {
    %c0_i32 = arith.constant 0 : i32
    %c0_i32_0 = arith.constant 0 : i32
    %c0_i32_1 = arith.constant 0 : i32
    return %c0_i32, %c0_i32_0 : i32, i32
  }
  func.func @transform_6(%arg0: i32, %arg1: i32) -> (i32, i32, i32) {
    %c0_i32 = arith.constant 0 : i32
    %c0_i32_0 = arith.constant 0 : i32
    return %arg1, %arg0, %c0_i32 : i32, i32, i32
  }
  func.func @transform_7(%arg0: i32, %arg1: i32) -> (i32, i32) {
    %c0_i32 = arith.constant 0 : i32
    %c0_i32_0 = arith.constant 0 : i32
    return %arg0, %c0_i32 : i32, i32
  }
  func.func @transform_8(%arg0: i32, %arg1: i32) -> (i32, i32) {
    %c0_i32 = arith.constant 0 : i32
    %c0_i32_0 = arith.constant 0 : i32
    return %arg0, %c0_i32 : i32, i32
  }
}

module attributes {stable_mosaic.version = 11 : i64} {
  func.func @_matmul_bias_kernel(%arg0: i32, %arg1: i32, %arg2: memref<128x128xbf16, #tpu.memory_space<vmem>>, %arg3: memref<128x128xbf16, #tpu.memory_space<vmem>>, %arg4: memref<1x128xf32, #tpu.memory_space<vmem>>, %arg5: memref<128x128xf32, #tpu.memory_space<vmem>>) attributes {dimension_semantics = [#tpu.dimension_semantics<parallel>, #tpu.dimension_semantics<parallel>], iteration_bounds = array<i64: 1, 1>, scalar_prefetch = 0 : i64, scratch_operands = 0 : i64, tpu.core_type = #tpu.core_type<tc>, window_params = [{transform_indices = @transform_0, window_bounds = array<i64: 128, 128>}, {transform_indices = @transform_1, window_bounds = array<i64: 128, 128>}, {transform_indices = @transform_2, window_bounds = array<i64: 1, 128>}, {transform_indices = @transform_3, window_bounds = array<i64: 128, 128>}]} {
    %c0 = arith.constant 0 : index
    %c0_0 = arith.constant 0 : index
    %0 = vector.load %arg2[%c0, %c0_0] : memref<128x128xbf16, #tpu.memory_space<vmem>>, vector<128x128xbf16>
    %c0_1 = arith.constant 0 : index
    %c0_2 = arith.constant 0 : index
    %1 = vector.load %arg3[%c0_1, %c0_2] : memref<128x128xbf16, #tpu.memory_space<vmem>>, vector<128x128xbf16>
    %cst = arith.constant dense<0.000000e+00> : vector<128x128xf32>
    %2 = tpu.matmul %0, %1, %cst {dimension_numbers = #tpu.dot_dimension_numbers<[1], [0], [0], [1], [0, 0, 1, 1], [], []>} : vector<128x128xbf16>, vector<128x128xbf16>, vector<128x128xf32> -> vector<128x128xf32>
    %c0_3 = arith.constant 0 : index
    %c0_4 = arith.constant 0 : index
    %3 = vector.load %arg4[%c0_3, %c0_4] : memref<1x128xf32, #tpu.memory_space<vmem>>, vector<1x128xf32>
    %4 = vector.broadcast %3 : vector<1x128xf32> to vector<128x128xf32>
    %5 = arith.addf %2, %4 : vector<128x128xf32>
    %c0_5 = arith.constant 0 : index
    %c0_6 = arith.constant 0 : index
    %6 = vector.load %arg5[%c0_5, %c0_6] : memref<128x128xf32, #tpu.memory_space<vmem>>, vector<128x128xf32>
    tpu.vector_store %arg5[%c0_5, %c0_6], %5 {strides = array<i32>} : memref<128x128xf32, #tpu.memory_space<vmem>>, vector<128x128xf32>,
    return
  }
  func.func @transform_0(%arg0: i32, %arg1: i32) -> (i32, i32) {
    %c0_i32 = arith.constant 0 : i32
    %c0_i32_0 = arith.constant 0 : i32
    return %arg0, %c0_i32 : i32, i32
  }
  func.func @transform_1(%arg0: i32, %arg1: i32) -> (i32, i32) {
    %c0_i32 = arith.constant 0 : i32
    %c0_i32_0 = arith.constant 0 : i32
    return %c0_i32, %arg1 : i32, i32
  }
  func.func @transform_2(%arg0: i32, %arg1: i32) -> (i32, i32) {
    %c0_i32 = arith.constant 0 : i32
    %c0_i32_0 = arith.constant 0 : i32
    return %c0_i32, %arg1 : i32, i32
  }
  func.func @transform_3(%arg0: i32, %arg1: i32) -> (i32, i32) {
    %c0_i32 = arith.constant 0 : i32
    return %arg0, %arg1 : i32, i32
  }
}

</mosaic_0001>

<llo_original>
// kernel: charrnn_forward.5
$region0: #{charrnn_forward.5}
  #allocation0 [shape = 'u32[]', space=smem, size = 0x4, offset = 0x4, fixed_abs, tag = 'smem constant byte address 0x4 - core index']
  #allocation1 [shape = 'u32[144,128]{1,0:T(1,128)}', space=vmem, size = 0x12000, scoped, tag = 'internal scratch']
  %s0 = inlined_call_operand.vmem [shape: bf16[128,128], index: 0, kind: input, shape index: {}]
  %s1 = inlined_call_operand.vmem [shape: bf16[128,128], index: 1, kind: input, shape index: {}]
  %s2 = inlined_call_operand.vmem [shape: f32[1,128], index: 2, kind: input, shape index: {}]
  %s3 = inlined_call_operand.vmem [shape: f32[128,128], index: 3, kind: output, shape index: {}]
  %s4 = sld [smem:[#allocation0]]
  $region22: #{charrnn_forward.5} parent=0
    _
  %s6 = ssub.s32 1, %s4
  %s7 = scalar_select 0, %s6, %s4
  // Predicated region
  $region2: #{charrnn_forward.5} parent=0 // pred_check
    _
  $region3: #{charrnn_forward.5} parent=0 // pred_check_branch
    %9 = sbr.rel (0) target = $region5
  $region4: #{charrnn_forward.5} parent=0 // pred_region
    _
  $region5: #{charrnn_forward.5} parent=0 // pred_fallthru
    _
  // Predicated region
  $region6: #{charrnn_forward.5} parent=0 // pred_check
    _
  $region7: #{charrnn_forward.5} parent=0 // pred_check_branch
    %11 = sbr.rel (0) target = $region9
  $region8: #{charrnn_forward.5} parent=0 // pred_region
    _
  $region9: #{charrnn_forward.5} parent=0 // pred_fallthru
    _
  // Predicated region
  $region10: #{charrnn_forward.5} parent=0 // pred_check
    _
  $region11: #{charrnn_forward.5} parent=0 // pred_check_branch
    %13 = sbr.rel (0) target = $region13
  $region12: #{charrnn_forward.5} parent=0 // pred_region
    _
  $region13: #{charrnn_forward.5} parent=0 // pred_fallthru
    _
  %v15 = vld [vmem:[%s0] sm:$0xf]
  %v16 = vld [vmem:[%s0 + $0x4] sm:$0xf]
  %v17 = vld [vmem:[%s0 + $0x8] sm:$0xf]
  %v18 = vld [vmem:[%s0 + $0xc] sm:$0xf]
  %v19 = vld [vmem:[%s0 + $0x10] sm:$0xf]
  %v20 = vld [vmem:[%s0 + $0x14] sm:$0xf]
  %v21 = vld [vmem:[%s0 + $0x18] sm:$0xf]
  %v22 = vld [vmem:[%s0 + $0x1c] sm:$0xf]
  %v23 = vld [vmem:[%s0 + $0x20] sm:$0xf]
  %v24 = vld [vmem:[%s0 + $0x24] sm:$0xf]
  %v25 = vld [vmem:[%s0 + $0x28] sm:$0xf]
  %v26 = vld [vmem:[%s0 + $0x2c] sm:$0xf]
  %v27 = vld [vmem:[%s0 + $0x30] sm:$0xf]
  %v28 = vld [vmem:[%s0 + $0x34] sm:$0xf]
  %v29 = vld [vmem:[%s0 + $0x38] sm:$0xf]
  %v30 = vld [vmem:[%s0 + $0x3c] sm:$0xf]
  %v31 = vld [vmem:[%s1] sm:$0xf]
  %v32 = vld [vmem:[%s1 + $0x4] sm:$0xf]
  %v33 = vld [vmem:[%s1 + $0x8] sm:$0xf]
  %v34 = vld [vmem:[%s1 + $0xc] sm:$0xf]
  %v35 = vld [vmem:[%s1 + $0x10] sm:$0xf]
  %v36 = vld [vmem:[%s1 + $0x14] sm:$0xf]
  %v37 = vld [vmem:[%s1 + $0x18] sm:$0xf]
  %v38 = vld [vmem:[%s1 + $0x1c] sm:$0xf]
  %v39 = vld [vmem:[%s1 + $0x20] sm:$0xf]
  %v40 = vld [vmem:[%s1 + $0x24] sm:$0xf]
  %v41 = vld [vmem:[%s1 + $0x28] sm:$0xf]
  %v42 = vld [vmem:[%s1 + $0x2c] sm:$0xf]
  %v43 = vld [vmem:[%s1 + $0x30] sm:$0xf]
  %v44 = vld [vmem:[%s1 + $0x34] sm:$0xf]
  %v45 = vld [vmem:[%s1 + $0x38] sm:$0xf]
  %v46 = vld [vmem:[%s1 + $0x3c] sm:$0xf]
  %v47 = vld [vmem:[%s2] sm:$0x1]
  %v49 = vlaneseq
  %v50 = vshrl.u32 %v49, 7
  %v51 = vsub.s32 0, %v50
  %v52 = vrot.slane %v47, %v51
  %v70 = vunpack.c.l.b16 %v15
  %v71 = vunpack.c.l.b16 %v16
  %v72 = vunpack.c.l.b16 %v17
  %v73 = vunpack.c.l.b16 %v18
  %v74 = vunpack.c.l.b16 %v19
  %v75 = vunpack.c.l.b16 %v20
  %v76 = vunpack.c.l.b16 %v21
  %v77 = vunpack.c.l.b16 %v22
  %v78 = vunpack.c.l.b16 %v23
  %v79 = vunpack.c.l.b16 %v24
  %v80 = vunpack.c.l.b16 %v25
  %v81 = vunpack.c.l.b16 %v26
  %v82 = vunpack.c.l.b16 %v27
  %v83 = vunpack.c.l.b16 %v28
  %v84 = vunpack.c.l.b16 %v29
  %v85 = vunpack.c.l.b16 %v30
  %v86 = vpack.c.b16 %v71, %v70
  %v87 = vpack.c.b16 %v73, %v72
  %v88 = vpack.c.b16 %v75, %v74
  %v89 = vpack.c.b16 %v77, %v76
  %v90 = vpack.c.b16 %v79, %v78
  %v91 = vpack.c.b16 %v81, %v80
  %v92 = vpack.c.b16 %v83, %v82
  %v93 = vpack.c.b16 %v85, %v84
  %v118 = vunpack.c.l.b16 %v31
  %v119 = vunpack.c.l.b16 %v32
  %v120 = vunpack.c.l.b16 %v33
  %v121 = vunpack.c.l.b16 %v34
  %v122 = vunpack.c.l.b16 %v35
  %v123 = vunpack.c.l.b16 %v36
  %v124 = vunpack.c.l.b16 %v37
  %v125 = vunpack.c.l.b16 %v38
  %v126 = vunpack.c.l.b16 %v39
  %v127 = vunpack.c.l.b16 %v40
  %v128 = vunpack.c.l.b16 %v41
  %v129 = vunpack.c.l.b16 %v42
  %v130 = vunpack.c.l.b16 %v43
  %v131 = vunpack.c.l.b16 %v44
  %v132 = vunpack.c.l.b16 %v45
  %v133 = vunpack.c.l.b16 %v46
  %v134 = vpack.c.b16 %v119, %v118
  %v135 = vpack.c.b16 %v121, %v120
  %v136 = vpack.c.b16 %v123, %v122
  %v137 = vpack.c.b16 %v125, %v124
  %v138 = vpack.c.b16 %v127, %v126
  %v139 = vpack.c.b16 %v129, %v128
  %v140 = vpack.c.b16 %v131, %v130
  %v141 = vpack.c.b16 %v133, %v132
  %150 = vmatprep.subr.bf16.mxu0 0
  %151 = vmatpush1.bf16.msra.mxu0 %v134
  %152 = vmatprep.subr.bf16.mxu0 0
  %153 = vmatpush1.bf16.msra.mxu0 %v135
  %154 = vmatprep.subr.bf16.mxu0 0
  %155 = vmatpush1.bf16.msra.mxu0 %v136
  %156 = vmatprep.subr.bf16.mxu0 0
  %157 = vmatpush1.bf16.msra.mxu0 %v137
  %158 = vmatprep.subr.bf16.mxu0 0
  %159 = vmatpush1.bf16.msra.mxu0 %v138
  %160 = vmatprep.subr.bf16.mxu0 0
  %161 = vmatpush1.bf16.msra.mxu0 %v139
  %162 = vmatprep.subr.bf16.mxu0 0
  %163 = vmatpush1.bf16.msra.mxu0 %v140
  %164 = vmatprep.subr.bf16.mxu0 0
  %165 = vmatpush1.bf16.msra.mxu0 %v141
  %166 = vmatprep.subr.bf16.mxu0 0
  %167 = vmatpush1.bf16.msra.mxu0 0
  %168 = vmatprep.subr.bf16.mxu0 0
  %169 = vmatpush1.bf16.msra.mxu0 0
  %170 = vmatprep.subr.bf16.mxu0 0
  %171 = vmatpush1.bf16.msra.mxu0 0
  %172 = vmatprep.subr.bf16.mxu0 0
  %173 = vmatpush1.bf16.msra.mxu0 0
  %174 = vmatprep.subr.bf16.mxu0 0
  %175 = vmatpush1.bf16.msra.mxu0 0
  %176 = vmatprep.subr.bf16.mxu0 0
  %177 = vmatpush1.bf16.msra.mxu0 0
  %178 = vmatprep.subr.bf16.mxu0 0
  %179 = vmatpush1.bf16.msra.mxu0 0
  %180 = vmatprep.subr.bf16.mxu0 0
  %181 = vmatpush1.bf16.msra.mxu0 0
  %182 = vmatprep.mubr.bf16.mxu0 0
  %183 = vmatmul.mubr.bf16.gmra.mrb[0].mxu0 %v86
  %v184 = vpop.f32.mrb[0].mxu0
  %v185 = vadd.f32 %v52, %v184
  %v186 = vpop.f32.mrb[0].mxu0
  %v187 = vpop.f32.mrb[0].mxu0
  %v188 = vadd.f32 %v52, %v187
  %v189 = vpop.f32.mrb[0].mxu0
  %190 = vmatprep.mubr.bf16.mxu0 0
  %191 = vmatmul.mubr.bf16.gmra.mrb[0].mxu0 %v87
  %v192 = vpop.f32.mrb[0].mxu0
  %v193 = vadd.f32 %v52, %v192
  %v194 = vpop.f32.mrb[0].mxu0
  %v195 = vpop.f32.mrb[0].mxu0
  %v196 = vadd.f32 %v52, %v195
  %v197 = vpop.f32.mrb[0].mxu0
  %198 = vmatprep.mubr.bf16.mxu0 0
  %199 = vmatmul.mubr.bf16.gmra.mrb[0].mxu0 %v88
  %v200 = vpop.f32.mrb[0].mxu0
  %v201 = vadd.f32 %v52, %v200
  %v202 = vpop.f32.mrb[0].mxu0
  %v203 = vpop.f32.mrb[0].mxu0
  %v204 = vadd.f32 %v52, %v203
  %v205 = vpop.f32.mrb[0].mxu0
  %206 = vmatprep.mubr.bf16.mxu0 0
  %207 = vmatmul.mubr.bf16.gmra.mrb[0].mxu0 %v89
  %v208 = vpop.f32.mrb[0].mxu0
  %v209 = vadd.f32 %v52, %v208
  %v210 = vpop.f32.mrb[0].mxu0
  %v211 = vpop.f32.mrb[0].mxu0
  %v212 = vadd.f32 %v52, %v211
  %v213 = vpop.f32.mrb[0].mxu0
  %214 = vmatprep.mubr.bf16.mxu0 0
  %215 = vmatmul.mubr.bf16.gmra.mrb[0].mxu0 %v90
  %v216 = vpop.f32.mrb[0].mxu0
  %v217 = vadd.f32 %v52, %v216
  %v218 = vpop.f32.mrb[0].mxu0
  %v219 = vpop.f32.mrb[0].mxu0
  %v220 = vadd.f32 %v52, %v219
  %v221 = vpop.f32.mrb[0].mxu0
  %222 = vmatprep.mubr.bf16.mxu0 0
  %223 = vmatmul.mubr.bf16.gmra.mrb[0].mxu0 %v91
  %v224 = vpop.f32.mrb[0].mxu0
  %v225 = vadd.f32 %v52, %v224
  %v226 = vpop.f32.mrb[0].mxu0
  %v227 = vpop.f32.mrb[0].mxu0
  %v228 = vadd.f32 %v52, %v227
  %v229 = vpop.f32.mrb[0].mxu0
  %230 = vmatprep.mubr.bf16.mxu0 0
  %231 = vmatmul.mubr.bf16.gmra.mrb[0].mxu0 %v92
  %v232 = vpop.f32.mrb[0].mxu0
  %v233 = vadd.f32 %v52, %v232
  %v234 = vpop.f32.mrb[0].mxu0
  %v235 = vpop.f32.mrb[0].mxu0
  %v236 = vadd.f32 %v52, %v235
  %v237 = vpop.f32.mrb[0].mxu0
  %238 = vmatprep.mubr.bf16.mxu0 0
  %239 = vmatmul.mubr.bf16.gmra.mrb[0].mxu0 %v93
  %v240 = vpop.f32.mrb[0].mxu0
  %v241 = vadd.f32 %v52, %v240
  %v242 = vpop.f32.mrb[0].mxu0
  %v243 = vpop.f32.mrb[0].mxu0
  %v244 = vadd.f32 %v52, %v243
  %v245 = vpop.f32.mrb[0].mxu0
  %246 = vdwg.mxu0
  %247 = vst [vmem:[%s3] sm:$0xff] %v185
  %248 = vst [vmem:[%s3 + $0x8] sm:$0xff] %v188
  %249 = vst [vmem:[%s3 + $0x10] sm:$0xff] %v193
  %250 = vst [vmem:[%s3 + $0x18] sm:$0xff] %v196
  %251 = vst [vmem:[%s3 + $0x20] sm:$0xff] %v201
  %252 = vst [vmem:[%s3 + $0x28] sm:$0xff] %v204
  %253 = vst [vmem:[%s3 + $0x30] sm:$0xff] %v209
  %254 = vst [vmem:[%s3 + $0x38] sm:$0xff] %v212
  %255 = vst [vmem:[%s3 + $0x40] sm:$0xff] %v217
  %256 = vst [vmem:[%s3 + $0x48] sm:$0xff] %v220
  %257 = vst [vmem:[%s3 + $0x50] sm:$0xff] %v225
  %258 = vst [vmem:[%s3 + $0x58] sm:$0xff] %v228
  %259 = vst [vmem:[%s3 + $0x60] sm:$0xff] %v233
  %260 = vst [vmem:[%s3 + $0x68] sm:$0xff] %v236
  %261 = vst [vmem:[%s3 + $0x70] sm:$0xff] %v241
  %262 = vst [vmem:[%s3 + $0x78] sm:$0xff] %v244
  // Predicated region
  $region14: #{charrnn_forward.5} parent=0 // pred_check
    _
  $region15: #{charrnn_forward.5} parent=0 // pred_check_branch
    %264 = sbr.rel (0) target = $region17
  $region16: #{charrnn_forward.5} parent=0 // pred_region
    _
  $region17: #{charrnn_forward.5} parent=0 // pred_fallthru
    _
  // Predicated region
  $region18: #{charrnn_forward.5} parent=0 // pred_check
    _
  $region19: #{charrnn_forward.5} parent=0 // pred_check_branch
    %266 = sbr.rel (0) target = $region21
  $region20: #{charrnn_forward.5} parent=0 // pred_region
    _
  $region21: #{charrnn_forward.5} parent=0 // pred_fallthru
    _

// kernel: charrnn_forward.3
$region0: #{charrnn_forward.3}
  #allocation0 [shape = 'u32[]', space=smem, size = 0x4, offset = 0x4, fixed_abs, tag = 'smem constant byte address 0x4 - core index']
  #allocation1 [shape = 'u32[144,128]{1,0:T(1,128)}', space=vmem, size = 0x12000, scoped, tag = 'internal scratch']
  #allocation2 [shape = 'f32[128,512]{1,0:T(8,128)}', space=vmem, size = 0x40000, scoped, tag = 'scratch operand']
  %s0 = inlined_call_operand.vmem [shape: f32[8,16,8], index: 0, kind: input, shape index: {}]
  %s1 = inlined_call_operand.vmem [shape: f32[16,128], index: 1, kind: input, shape index: {}]
  %s2 = inlined_call_operand.vmem [shape: f32[16,128], index: 2, kind: input, shape index: {}]
  %s3 = inlined_call_operand.vmem [shape: bf16[8,512], index: 3, kind: input, shape index: {}]
  %s4 = inlined_call_operand.vmem [shape: bf16[128,512], index: 4, kind: input, shape index: {}]
  %s5 = inlined_call_operand.vmem [shape: f32[1,512], index: 5, kind: input, shape index: {}]
  %s6 = inlined_call_operand.vmem [shape: bf16[8,16,128], index: 6, kind: output, shape index: {0}]
  %s7 = inlined_call_operand.vmem [shape: f32[16,128], index: 7, kind: output, shape index: {1}]
  %s8 = inlined_call_operand.vmem [shape: f32[16,128], index: 8, kind: output, shape index: {2}]
  %9 = xla_tuple %s6, %s7, %s8
  %s10 = sld [smem:[#allocation0]]
  $region54: #{charrnn_forward.3} parent=0
    _
  %s12 = ssub.s32 1, %s10
  %s13 = scalar_select 0, %s12, %s10
  // Predicated region
  $region2: #{charrnn_forward.3} parent=0 // pred_check
    _
  $region3: #{charrnn_forward.3} parent=0 // pred_check_branch
    %15 = sbr.rel (0) target = $region5
  $region4: #{charrnn_forward.3} parent=0 // pred_region
    _
  $region5: #{charrnn_forward.3} parent=0 // pred_fallthru
    _
  // Predicated region
  $region6: #{charrnn_forward.3} parent=0 // pred_check
    _
  $region7: #{charrnn_forward.3} parent=0 // pred_check_branch
    %17 = sbr.rel (0) target = $region9
  $region8: #{charrnn_forward.3} parent=0 // pred_region
    _
  $region9: #{charrnn_forward.3} parent=0 // pred_fallthru
    _
  // Predicated region
  $region10: #{charrnn_forward.3} parent=0 // pred_check
    _
  $region11: #{charrnn_forward.3} parent=0 // pred_check_branch
    %19 = sbr.rel (0) target = $region13
  $region12: #{charrnn_forward.3} parent=0 // pred_region
    _
  $region13: #{charrnn_forward.3} parent=0 // pred_fallthru
    _
  // Predicated region
  $region14: #{charrnn_forward.3} parent=0 // pred_check
    _
  $region15: #{charrnn_forward.3} parent=0 // pred_check_branch
    %21 = sbr.rel (0) target = $region17
  $region16: #{charrnn_forward.3} parent=0 // pred_region
    _
  $region17: #{charrnn_forward.3} parent=0 // pred_fallthru
    _
  // Predicated region
  $region18: #{charrnn_forward.3} parent=0 // pred_check
    _
  $region19: #{charrnn_forward.3} parent=0 // pred_check_branch
    %23 = sbr.rel (0) target = $region21
  $region20: #{charrnn_forward.3} parent=0 // pred_region
    _
  $region21: #{charrnn_forward.3} parent=0 // pred_fallthru
    _
  // Predicated region
  $region22: #{charrnn_forward.3} parent=0 // pred_check
    _
  $region23: #{charrnn_forward.3} parent=0 // pred_check_branch
    %25 = sbr.rel (0) target = $region25
  $region24: #{charrnn_forward.3} parent=0 // pred_region
    _
  $region25: #{charrnn_forward.3} parent=0 // pred_fallthru
    _
  %p27 = scmp.eq.s32.totalorder 0, 0
  // Predicated region
  $region26: #{charrnn_forward.3} parent=0 // pred_check
    %p28 = pneg %p27
  $region27: #{charrnn_forward.3} parent=0 // pred_check_branch
    %30 = sbr.rel (%p28) target = $region29
  $region28: #{charrnn_forward.3} parent=0 // pred_region
    %v31 = vld [vmem:[%s1] sm:$0xff]
    %v32 = vld [vmem:[%s1 + $0x8] sm:$0xff]
    %33 = vst [vmem:[%s7] sm:$0xff] %v31
    %34 = vst [vmem:[%s7 + $0x8] sm:$0xff] %v32
    %v35 = vld [vmem:[%s2] sm:$0xff]
    %v36 = vld [vmem:[%s2 + $0x8] sm:$0xff]
    %37 = vst [vmem:[%s8] sm:$0xff] %v35
    %38 = vst [vmem:[%s8 + $0x8] sm:$0xff] %v36
  $region29: #{charrnn_forward.3} parent=0 // pred_fallthru
    _
  %v39 = vld [vmem:[%s0] sm:$0xff]
  %v40 = vld [vmem:[%s0 + $0x8] sm:$0xff]
  %v41 = vld [vmem:[%s0 + $0x10] sm:$0xff]
  %v42 = vld [vmem:[%s0 + $0x18] sm:$0xff]
  %v43 = vld [vmem:[%s0 + $0x20] sm:$0xff]
  %v44 = vld [vmem:[%s0 + $0x28] sm:$0xff]
  %v45 = vld [vmem:[%s0 + $0x30] sm:$0xff]
  %v46 = vld [vmem:[%s0 + $0x38] sm:$0xff]
  %v47 = vld [vmem:[%s0 + $0x40] sm:$0xff]
  %v48 = vld [vmem:[%s0 + $0x48] sm:$0xff]
  %v49 = vld [vmem:[%s0 + $0x50] sm:$0xff]
  %v50 = vld [vmem:[%s0 + $0x58] sm:$0xff]
  %v51 = vld [vmem:[%s0 + $0x60] sm:$0xff]
  %v52 = vld [vmem:[%s0 + $0x68] sm:$0xff]
  %v53 = vld [vmem:[%s0 + $0x70] sm:$0xff]
  %v54 = vld [vmem:[%s0 + $0x78] sm:$0xff]
  %v55 = vpack.c.bf16 %v40, %v39
  %v56 = vpack.c.bf16 %v42, %v41
  %v57 = vpack.c.bf16 %v44, %v43
  %v58 = vpack.c.bf16 %v46, %v45
  %v59 = vpack.c.bf16 %v48, %v47
  %v60 = vpack.c.bf16 %v50, %v49
  %v61 = vpack.c.bf16 %v52, %v51
  %v62 = vpack.c.bf16 %v54, %v53
  %v63 = vld [vmem:[%s3] sm:$0xff]
  %v64 = vld [vmem:[%s3 + $0x8] sm:$0xff]
  %v65 = vld [vmem:[%s5] sm:$0xf]
  %v67 = vlaneseq
  %v68 = vshrl.u32 %v67, 7
  %v69 = vsub.s32 0, %v68
  %v70 = vrot.slane %v65, %v69
  %v71 = vlaneseq
  %v72 = vshrl.u32 %v71, 7
  %v73 = vsub.s32 1, %v72
  %v74 = vrot.slane %v65, %v73
  %v75 = vlaneseq
  %v76 = vshrl.u32 %v75, 7
  %v77 = vsub.s32 2, %v76
  %v78 = vrot.slane %v65, %v77
  %v79 = vlaneseq
  %v80 = vshrl.u32 %v79, 7
  %v81 = vsub.s32 3, %v80
  %v82 = vrot.slane %v65, %v81
  %v89 = vunpack.c.l.b16 %v63
  %v90 = vunpack.c.h.b16 %v63
  %v91 = vunpack.c.l.b16 %v64
  %v92 = vunpack.c.h.b16 %v64
  %v93 = vpack.c.b16 %v89, %v89
  %v94 = vpack.c.b16 %v90, %v90
  %v95 = vpack.c.b16 %v91, %v91
  %v96 = vpack.c.b16 %v92, %v92
  %vm97 = vcmask 64512
  %v99 = vsel %vm97, %v55, 0
  %v102 = vsel %vm97, %v56, 0
  %v105 = vsel %vm97, %v57, 0
  %v108 = vsel %vm97, %v58, 0
  %v111 = vsel %vm97, %v59, 0
  %v114 = vsel %vm97, %v60, 0
  %v117 = vsel %vm97, %v61, 0
  %v120 = vsel %vm97, %v62, 0
  %vm122 = vcmask 1043456
  %v124 = vsel %vm122, %v93, 0
  %v127 = vsel %vm122, %v94, 0
  %v130 = vsel %vm122, %v95, 0
  %v133 = vsel %vm122, %v96, 0
  %135 = vmatprep.subr.bf16.mxu0 %v127
  %136 = vmatpush1.bf16.msra.mxu0 %v124
  %137 = vmatprep.subr.bf16.mxu0 0
  %138 = vmatpush1.bf16.msra.mxu0 0
  %139 = vmatprep.subr.bf16.mxu0 0
  %140 = vmatpush1.bf16.msra.mxu0 0
  %141 = vmatprep.subr.bf16.mxu0 0
  %142 = vmatpush1.bf16.msra.mxu0 0
  %143 = vmatprep.subr.bf16.mxu0 0
  %144 = vmatpush1.bf16.msra.mxu0 0
  %145 = vmatprep.subr.bf16.mxu0 0
  %146 = vmatpush1.bf16.msra.mxu0 0
  %147 = vmatprep.subr.bf16.mxu0 0
  %148 = vmatpush1.bf16.msra.mxu0 0
  %149 = vmatprep.subr.bf16.mxu0 0
  %150 = vmatpush1.bf16.msra.mxu0 0
  %151 = vmatprep.subr.bf16.mxu0 0
  %152 = vmatpush1.bf16.msra.mxu0 0
  %153 = vmatprep.subr.bf16.mxu0 0
  %154 = vmatpush1.bf16.msra.mxu0 0
  %155 = vmatprep.subr.bf16.mxu0 0
  %156 = vmatpush1.bf16.msra.mxu0 0
  %157 = vmatprep.subr.bf16.mxu0 0
  %158 = vmatpush1.bf16.msra.mxu0 0
  %159 = vmatprep.subr.bf16.mxu0 0
  %160 = vmatpush1.bf16.msra.mxu0 0
  %161 = vmatprep.subr.bf16.mxu0 0
  %162 = vmatpush1.bf16.msra.mxu0 0
  %163 = vmatprep.subr.bf16.mxu0 0
  %164 = vmatpush1.bf16.msra.mxu0 0
  %165 = vmatprep.subr.bf16.mxu0 0
  %166 = vmatpush1.bf16.msra.mxu0 0
  %167 = vmatprep.mubr.bf16.mxu0 0
  %168 = vmatmul.mubr.bf16.gmra.mrb[0].mxu0 %v99
  %v169 = vpop.f32.mrb[0].mxu0
  %v170 = vadd.f32 %v70, %v169
  %v171 = vpop.f32.mrb[0].mxu0
  %v172 = vadd.f32 %v74, %v171
  %v173 = vpop.f32.mrb[0].mxu0
  %v174 = vadd.f32 %v70, %v173
  %v175 = vpop.f32.mrb[0].mxu0
  %v176 = vadd.f32 %v74, %v175
  %177 = vmatprep.mubr.bf16.mxu0 0
  %178 = vmatmul.mubr.bf16.gmra.mrb[0].mxu0 %v102
  %v179 = vpop.f32.mrb[0].mxu0
  %v180 = vadd.f32 %v70, %v179
  %v181 = vpop.f32.mrb[0].mxu0
  %v182 = vadd.f32 %v74, %v181
  %v183 = vpop.f32.mrb[0].mxu0
  %v184 = vadd.f32 %v70, %v183
  %v185 = vpop.f32.mrb[0].mxu0
  %v186 = vadd.f32 %v74, %v185
  %187 = vmatprep.mubr.bf16.mxu0 0
  %188 = vmatmul.mubr.bf16.gmra.mrb[0].mxu0 %v105
  %v189 = vpop.f32.mrb[0].mxu0
  %v190 = vadd.f32 %v70, %v189
  %v191 = vpop.f32.mrb[0].mxu0
  %v192 = vadd.f32 %v74, %v191
  %v193 = vpop.f32.mrb[0].mxu0
  %v194 = vadd.f32 %v70, %v193
  %v195 = vpop.f32.mrb[0].mxu0
  %v196 = vadd.f32 %v74, %v195
  %197 = vmatprep.mubr.bf16.mxu0 0
  %198 = vmatmul.mubr.bf16.gmra.mrb[0].mxu0 %v108
  %v199 = vpop.f32.mrb[0].mxu0
  %v200 = vadd.f32 %v70, %v199
  %v201 = vpop.f32.mrb[0].mxu0
  %v202 = vadd.f32 %v74, %v201
  %v203 = vpop.f32.mrb[0].mxu0
  %v204 = vadd.f32 %v70, %v203
  %v205 = vpop.f32.mrb[0].mxu0
  %v206 = vadd.f32 %v74, %v205
  %207 = vmatprep.mubr.bf16.mxu0 0
  %208 = vmatmul.mubr.bf16.gmra.mrb[0].mxu0 %v111
  %v209 = vpop.f32.mrb[0].mxu0
  %v210 = vadd.f32 %v70, %v209
  %v211 = vpop.f32.mrb[0].mxu0
  %v212 = vadd.f32 %v74, %v211
  %v213 = vpop.f32.mrb[0].mxu0
  %v214 = vadd.f32 %v70, %v213
  %v215 = vpop.f32.mrb[0].mxu0
  %v216 = vadd.f32 %v74, %v215
  %217 = vmatprep.mubr.bf16.mxu0 0
  %218 = vmatmul.mubr.bf16.gmra.mrb[0].mxu0 %v114
  %v219 = vpop.f32.mrb[0].mxu0
  %v220 = vadd.f32 %v70, %v219
  %v221 = vpop.f32.mrb[0].mxu0
  %v222 = vadd.f32 %v74, %v221
  %v223 = vpop.f32.mrb[0].mxu0
  %v224 = vadd.f32 %v70, %v223
  %v225 = vpop.f32.mrb[0].mxu0
  %v226 = vadd.f32 %v74, %v225
  %227 = vmatprep.mubr.bf16.mxu0 0
  %228 = vmatmul.mubr.bf16.gmra.mrb[0].mxu0 %v117
  %v229 = vpop.f32.mrb[0].mxu0
  %v230 = vadd.f32 %v70, %v229
  %v231 = vpop.f32.mrb[0].mxu0
  %v232 = vadd.f32 %v74, %v231
  %v233 = vpop.f32.mrb[0].mxu0
  %v234 = vadd.f32 %v70, %v233
  %v235 = vpop.f32.mrb[0].mxu0
  %v236 = vadd.f32 %v74, %v235
  %237 = vmatprep.mubr.bf16.mxu0 0
  %238 = vmatmul.mubr.bf16.gmra.mrb[0].mxu0 %v120
  %v239 = vpop.f32.mrb[0].mxu0
  %v240 = vadd.f32 %v70, %v239
  %v241 = vpop.f32.mrb[0].mxu0
  %v242 = vadd.f32 %v74, %v241
  %v243 = vpop.f32.mrb[0].mxu0
  %v244 = vadd.f32 %v70, %v243
  %v245 = vpop.f32.mrb[0].mxu0
  %v246 = vadd.f32 %v74, %v245
  %247 = vdwg.mxu0
  %248 = vmatprep.subr.bf16.mxu0 %v133
  %249 = vmatpush1.bf16.msra.mxu0 %v130
  %250 = vmatprep.subr.bf16.mxu0 0
  %251 = vmatpush1.bf16.msra.mxu0 0
  %252 = vmatprep.subr.bf16.mxu0 0
  %253 = vmatpush1.bf16.msra.mxu0 0
  %254 = vmatprep.subr.bf16.mxu0 0
  %255 = vmatpush1.bf16.msra.mxu0 0
  %256 = vmatprep.subr.bf16.mxu0 0
  %257 = vmatpush1.bf16.msra.mxu0 0
  %258 = vmatprep.subr.bf16.mxu0 0
  %259 = vmatpush1.bf16.msra.mxu0 0
  %260 = vmatprep.subr.bf16.mxu0 0
  %261 = vmatpush1.bf16.msra.mxu0 0
  %262 = vmatprep.subr.bf16.mxu0 0
  %263 = vmatpush1.bf16.msra.mxu0 0
  %264 = vmatprep.subr.bf16.mxu0 0
  %265 = vmatpush1.bf16.msra.mxu0 0
  %266 = vmatprep.subr.bf16.mxu0 0
  %267 = vmatpush1.bf16.msra.mxu0 0
  %268 = vmatprep.subr.bf16.mxu0 0
  %269 = vmatpush1.bf16.msra.mxu0 0
  %270 = vmatprep.subr.bf16.mxu0 0
  %271 = vmatpush1.bf16.msra.mxu0 0
  %272 = vmatprep.subr.bf16.mxu0 0
  %273 = vmatpush1.bf16.msra.mxu0 0
  %274 = vmatprep.subr.bf16.mxu0 0
  %275 = vmatpush1.bf16.msra.mxu0 0
  %276 = vmatprep.subr.bf16.mxu0 0
  %277 = vmatpush1.bf16.msra.mxu0 0
  %278 = vmatprep.subr.bf16.mxu0 0
  %279 = vmatpush1.bf16.msra.mxu0 0
  %280 = vmatprep.mubr.bf16.mxu0 0
  %281 = vmatmul.mubr.bf16.gmra.mrb[0].mxu0 %v99
  %v282 = vpop.f32.mrb[0].mxu0
  %v283 = vadd.f32 %v78, %v282
  %v284 = vpop.f32.mrb[0].mxu0
  %v285 = vadd.f32 %v82, %v284
  %v286 = vpop.f32.mrb[0].mxu0
  %v287 = vadd.f32 %v78, %v286
  %v288 = vpop.f32.mrb[0].mxu0
  %v289 = vadd.f32 %v82, %v288
  %290 = vmatprep.mubr.bf16.mxu0 0
  %291 = vmatmul.mubr.bf16.gmra.mrb[0].mxu0 %v102
  %v292 = vpop.f32.mrb[0].mxu0
  %v293 = vadd.f32 %v78, %v292
  %v294 = vpop.f32.mrb[0].mxu0
  %v295 = vadd.f32 %v82, %v294
  %v296 = vpop.f32.mrb[0].mxu0
  %v297 = vadd.f32 %v78, %v296
  %v298 = vpop.f32.mrb[0].mxu0
  %v299 = vadd.f32 %v82, %v298
  %300 = vmatprep.mubr.bf16.mxu0 0
  %301 = vmatmul.mubr.bf16.gmra.mrb[0].mxu0 %v105
  %v302 = vpop.f32.mrb[0].mxu0
  %v303 = vadd.f32 %v78, %v302
  %v304 = vpop.f32.mrb[0].mxu0
  %v305 = vadd.f32 %v82, %v304
  %v306 = vpop.f32.mrb[0].mxu0
  %v307 = vadd.f32 %v78, %v306
  %v308 = vpop.f32.mrb[0].mxu0
  %v309 = vadd.f32 %v82, %v308
  %310 = vmatprep.mubr.bf16.mxu0 0
  %311 = vmatmul.mubr.bf16.gmra.mrb[0].mxu0 %v108
  %v312 = vpop.f32.mrb[0].mxu0
  %v313 = vadd.f32 %v78, %v312
  %v314 = vpop.f32.mrb[0].mxu0
  %v315 = vadd.f32 %v82, %v314
  %v316 = vpop.f32.mrb[0].mxu0
  %v317 = vadd.f32 %v78, %v316
  %v318 = vpop.f32.mrb[0].mxu0
  %v319 = vadd.f32 %v82, %v318
  %320 = vmatprep.mubr.bf16.mxu0 0
  %321 = vmatmul.mubr.bf16.gmra.mrb[0].mxu0 %v111
  %v322 = vpop.f32.mrb[0].mxu0
  %v323 = vadd.f32 %v78, %v322
  %v324 = vpop.f32.mrb[0].mxu0
  %v325 = vadd.f32 %v82, %v324
  %v326 = vpop.f32.mrb[0].mxu0
  %v327 = vadd.f32 %v78, %v326
  %v328 = vpop.f32.mrb[0].mxu0
  %v329 = vadd.f32 %v82, %v328
  %330 = vmatprep.mubr.bf16.mxu0 0
  %331 = vmatmul.mubr.bf16.gmra.mrb[0].mxu0 %v114
  %v332 = vpop.f32.mrb[0].mxu0
  %v333 = vadd.f32 %v78, %v332
  %v334 = vpop.f32.mrb[0].mxu0
  %v335 = vadd.f32 %v82, %v334
  %v336 = vpop.f32.mrb[0].mxu0
  %v337 = vadd.f32 %v78, %v336
  %v338 = vpop.f32.mrb[0].mxu0
  %v339 = vadd.f32 %v82, %v338
  %340 = vmatprep.mubr.bf16.mxu0 0
  %341 = vmatmul.mubr.bf16.gmra.mrb[0].mxu0 %v117
  %v342 = vpop.f32.mrb[0].mxu0
  %v343 = vadd.f32 %v78, %v342
  %v344 = vpop.f32.mrb[0].mxu0
  %v345 = vadd.f32 %v82, %v344
  %v346 = vpop.f32.mrb[0].mxu0
  %v347 = vadd.f32 %v78, %v346
  %v348 = vpop.f32.mrb[0].mxu0
  %v349 = vadd.f32 %v82, %v348
  %350 = vmatprep.mubr.bf16.mxu0 0
  %351 = vmatmul.mubr.bf16.gmra.mrb[0].mxu0 %v120
  %v352 = vpop.f32.mrb[0].mxu0
  %v353 = vadd.f32 %v78, %v352
  %v354 = vpop.f32.mrb[0].mxu0
  %v355 = vadd.f32 %v82, %v354
  %v356 = vpop.f32.mrb[0].mxu0
  %v357 = vadd.f32 %v78, %v356
  %v358 = vpop.f32.mrb[0].mxu0
  %v359 = vadd.f32 %v82, %v358
  %360 = vdwg.mxu0
  %361 = vst [vmem:[#allocation2] sm:$0xff] %v170
  %362 = vst [vmem:[#allocation2 + $0x8] sm:$0xff] %v172
  %363 = vst [vmem:[#allocation2 + $0x10] sm:$0xff] %v283
  %364 = vst [vmem:[#allocation2 + $0x18] sm:$0xff] %v285
  %365 = vst [vmem:[#allocation2 + $0x20] sm:$0xff] %v174
  %366 = vst [vmem:[#allocation2 + $0x28] sm:$0xff] %v176
  %367 = vst [vmem:[#allocation2 + $0x30] sm:$0xff] %v287
  %368 = vst [vmem:[#allocation2 + $0x38] sm:$0xff] %v289
  %369 = vst [vmem:[#allocation2 + $0x40] sm:$0xff] %v180
  %370 = vst [vmem:[#allocation2 + $0x48] sm:$0xff] %v182
  %371 = vst [vmem:[#allocation2 + $0x50] sm:$0xff] %v293
  %372 = vst [vmem:[#allocation2 + $0x58] sm:$0xff] %v295
  %373 = vst [vmem:[#allocation2 + $0x60] sm:$0xff] %v184
  %374 = vst [vmem:[#allocation2 + $0x68] sm:$0xff] %v186
  %375 = vst [vmem:[#allocation2 + $0x70] sm:$0xff] %v297
  %376 = vst [vmem:[#allocation2 + $0x78] sm:$0xff] %v299
  %377 = vst [vmem:[#allocation2 + $0x80] sm:$0xff] %v190
  %378 = vst [vmem:[#allocation2 + $0x88] sm:$0xff] %v192
  %379 = vst [vmem:[#allocation2 + $0x90] sm:$0xff] %v303
  %380 = vst [vmem:[#allocation2 + $0x98] sm:$0xff] %v305
  %381 = vst [vmem:[#allocation2 + $0xa0] sm:$0xff] %v194
  %382 = vst [vmem:[#allocation2 + $0xa8] sm:$0xff] %v196
  %383 = vst [vmem:[#allocation2 + $0xb0] sm:$0xff] %v307
  %384 = vst [vmem:[#allocation2 + $0xb8] sm:$0xff] %v309
  %385 = vst [vmem:[#allocation2 + $0xc0] sm:$0xff] %v200
  %386 = vst [vmem:[#allocation2 + $0xc8] sm:$0xff] %v202
  %387 = vst [vmem:[#allocation2 + $0xd0] sm:$0xff] %v313
  %388 = vst [vmem:[#allocation2 + $0xd8] sm:$0xff] %v315
  %389 = vst [vmem:[#allocation2 + $0xe0] sm:$0xff] %v204
  %390 = vst [vmem:[#allocation2 + $0xe8] sm:$0xff] %v206
  %391 = vst [vmem:[#allocation2 + $0xf0] sm:$0xff] %v317
  %392 = vst [vmem:[#allocation2 + $0xf8] sm:$0xff] %v319
  %393 = vst [vmem:[#allocation2 + $0x100] sm:$0xff] %v210
  %394 = vst [vmem:[#allocation2 + $0x108] sm:$0xff] %v212
  %395 = vst [vmem:[#allocation2 + $0x110] sm:$0xff] %v323
  %396 = vst [vmem:[#allocation2 + $0x118] sm:$0xff] %v325
  %397 = vst [vmem:[#allocation2 + $0x120] sm:$0xff] %v214
  %398 = vst [vmem:[#allocation2 + $0x128] sm:$0xff] %v216
  %399 = vst [vmem:[#allocation2 + $0x130] sm:$0xff] %v327
  %400 = vst [vmem:[#allocation2 + $0x138] sm:$0xff] %v329
  %401 = vst [vmem:[#allocation2 + $0x140] sm:$0xff] %v220
  %402 = vst [vmem:[#allocation2 + $0x148] sm:$0xff] %v222
  %403 = vst [vmem:[#allocation2 + $0x150] sm:$0xff] %v333
  %404 = vst [vmem:[#allocation2 + $0x158] sm:$0xff] %v335
  %405 = vst [vmem:[#allocation2 + $0x160] sm:$0xff] %v224
  %406 = vst [vmem:[#allocation2 + $0x168] sm:$0xff] %v226
  %407 = vst [vmem:[#allocation2 + $0x170] sm:$0xff] %v337
  %408 = vst [vmem:[#allocation2 + $0x178] sm:$0xff] %v339
  %409 = vst [vmem:[#allocation2 + $0x180] sm:$0xff] %v230
  %410 = vst [vmem:[#allocation2 + $0x188] sm:$0xff] %v232
  %411 = vst [vmem:[#allocation2 + $0x190] sm:$0xff] %v343
  %412 = vst [vmem:[#allocation2 + $0x198] sm:$0xff] %v345
  %413 = vst [vmem:[#allocation2 + $0x1a0] sm:$0xff] %v234
  %414 = vst [vmem:[#allocation2 + $0x1a8] sm:$0xff] %v236
  %415 = vst [vmem:[#allocation2 + $0x1b0] sm:$0xff] %v347
  %416 = vst [vmem:[#allocation2 + $0x1b8] sm:$0xff] %v349
  %417 = vst [vmem:[#allocation2 + $0x1c0] sm:$0xff] %v240
  %418 = vst [vmem:[#allocation2 + $0x1c8] sm:$0xff] %v242
  %419 = vst [vmem:[#allocation2 + $0x1d0] sm:$0xff] %v353
  %420 = vst [vmem:[#allocation2 + $0x1d8] sm:$0xff] %v355
  %421 = vst [vmem:[#allocation2 + $0x1e0] sm:$0xff] %v244
  %422 = vst [vmem:[#allocation2 + $0x1e8] sm:$0xff] %v246
  %423 = vst [vmem:[#allocation2 + $0x1f0] sm:$0xff] %v357
  %424 = vst [vmem:[#allocation2 + $0x1f8] sm:$0xff] %v359
  %v425 = vld [vmem:[%s7] sm:$0xff]
  %v426 = vld [vmem:[%s7 + $0x8] sm:$0xff]
  %v427 = vld [vmem:[%s8] sm:$0xff]
  %v428 = vld [vmem:[%s8 + $0x8] sm:$0xff]
  %s429 = smul.u32 0, 4
  %s430 = smul.addr %s429, 8
  %s431 = scalar_lea.vmem [#allocation2], %s430
  %v432 = vld [vmem:[%s431] sm:$0xff]
  %v433 = vld [vmem:[%s431 + $0x8] sm:$0xff]
  %v434 = vld [vmem:[%s431 + $0x10] sm:$0xff]
  %v435 = vld [vmem:[%s431 + $0x18] sm:$0xff]
  %v436 = vld [vmem:[%s431 + $0x20] sm:$0xff]
  %v437 = vld [vmem:[%s431 + $0x28] sm:$0xff]
  %v438 = vld [vmem:[%s431 + $0x30] sm:$0xff]
  %v439 = vld [vmem:[%s431 + $0x38] sm:$0xff]
  %v440 = vpack.c.bf16 %v426, %v425
  %v441 = vld [vmem:[%s4] sm:$0xff]
  %v442 = vld [vmem:[%s4 + $0x8] sm:$0xff]
  %v443 = vld [vmem:[%s4 + $0x10] sm:$0xff]
  %v444 = vld [vmem:[%s4 + $0x18] sm:$0xff]
  %v445 = vld [vmem:[%s4 + $0x20] sm:$0xff]
  %v446 = vld [vmem:[%s4 + $0x28] sm:$0xff]
  %v447 = vld [vmem:[%s4 + $0x30] sm:$0xff]
  %v448 = vld [vmem:[%s4 + $0x38] sm:$0xff]
  %v449 = vld [vmem:[%s4 + $0x40] sm:$0xff]
  %v450 = vld [vmem:[%s4 + $0x48] sm:$0xff]
  %v451 = vld [vmem:[%s4 + $0x50] sm:$0xff]
  %v452 = vld [vmem:[%s4 + $0x58] sm:$0xff]
  %v453 = vld [vmem:[%s4 + $0x60] sm:$0xff]
  %v454 = vld [vmem:[%s4 + $0x68] sm:$0xff]
  %v455 = vld [vmem:[%s4 + $0x70] sm:$0xff]
  %v456 = vld [vmem:[%s4 + $0x78] sm:$0xff]
  %v457 = vld [vmem:[%s4 + $0x80] sm:$0xff]
  %v458 = vld [vmem:[%s4 + $0x88] sm:$0xff]
  %v459 = vld [vmem:[%s4 + $0x90] sm:$0xff]
  %v460 = vld [vmem:[%s4 + $0x98] sm:$0xff]
  %v461 = vld [vmem:[%s4 + $0xa0] sm:$0xff]
  %v462 = vld [vmem:[%s4 + $0xa8] sm:$0xff]
  %v463 = vld [vmem:[%s4 + $0xb0] sm:$0xff]
  %v464 = vld [vmem:[%s4 + $0xb8] sm:$0xff]
  %v465 = vld [vmem:[%s4 + $0xc0] sm:$0xff]
  %v466 = vld [vmem:[%s4 + $0xc8] sm:$0xff]
  %v467 = vld [vmem:[%s4 + $0xd0] sm:$0xff]
  %v468 = vld [vmem:[%s4 + $0xd8] sm:$0xff]
  %v469 = vld [vmem:[%s4 + $0xe0] sm:$0xff]
  %v470 = vld [vmem:[%s4 + $0xe8] sm:$0xff]
  %v471 = vld [vmem:[%s4 + $0xf0] sm:$0xff]
  %v472 = vld [vmem:[%s4 + $0xf8] sm:$0xff]
  %v505 = vunpack.c.l.b16 %v441
  %v506 = vunpack.c.h.b16 %v441
  %v507 = vunpack.c.l.b16 %v442
  %v508 = vunpack.c.h.b16 %v442
  %v509 = vunpack.c.l.b16 %v443
  %v510 = vunpack.c.h.b16 %v443
  %v511 = vunpack.c.l.b16 %v444
  %v512 = vunpack.c.h.b16 %v444
  %v513 = vunpack.c.l.b16 %v445
  %v514 = vunpack.c.h.b16 %v445
  %v515 = vunpack.c.l.b16 %v446
  %v516 = vunpack.c.h.b16 %v446
  %v517 = vunpack.c.l.b16 %v447
  %v518 = vunpack.c.h.b16 %v447
  %v519 = vunpack.c.l.b16 %v448
  %v520 = vunpack.c.h.b16 %v448
  %v521 = vunpack.c.l.b16 %v449
  %v522 = vunpack.c.h.b16 %v449
  %v523 = vunpack.c.l.b16 %v450
  %v524 = vunpack.c.h.b16 %v450
  %v525 = vunpack.c.l.b16 %v451
  %v526 = vunpack.c.h.b16 %v451
  %v527 = vunpack.c.l.b16 %v452
  %v528 = vunpack.c.h.b16 %v452
  %v529 = vunpack.c.l.b16 %v453
  %v530 = vunpack.c.h.b16 %v453
  %v531 = vunpack.c.l.b16 %v454
  %v532 = vunpack.c.h.b16 %v454
  %v533 = vunpack.c.l.b16 %v455
  %v534 = vunpack.c.h.b16 %v455
  %v535 = vunpack.c.l.b16 %v456
  %v536 = vunpack.c.h.b16 %v456
  %v537 = vunpack.c.l.b16 %v457
  %v538 = vunpack.c.h.b16 %v457
  %v539 = vunpack.c.l.b16 %v458
  %v540 = vunpack.c.h.b16 %v458
  %v541 = vunpack.c.l.b16 %v459
  %v542 = vunpack.c.h.b16 %v459
  %v543 = vunpack.c.l.b16 %v460
  %v544 = vunpack.c.h.b16 %v460
  %v545 = vunpack.c.l.b16 %v461
  %v546 = vunpack.c.h.b16 %v461
  %v547 = vunpack.c.l.b16 %v462
  %v548 = vunpack.c.h.b16 %v462
  %v549 = vunpack.c.l.b16 %v463
  %v550 = vunpack.c.h.b16 %v463
  %v551 = vunpack.c.l.b16 %v464
  %v552 = vunpack.c.h.b16 %v464
  %v553 = vunpack.c.l.b16 %v465
  %v554 = vunpack.c.h.b16 %v465
  %v555 = vunpack.c.l.b16 %v466
  %v556 = vunpack.c.h.b16 %v466
  %v557 = vunpack.c.l.b16 %v467
  %v558 = vunpack.c.h.b16 %v467
  %v559 = vunpack.c.l.b16 %v468
  %v560 = vunpack.c.h.b16 %v468
  %v561 = vunpack.c.l.b16 %v469
  %v562 = vunpack.c.h.b16 %v469
  %v563 = vunpack.c.l.b16 %v470
  %v564 = vunpack.c.h.b16 %v470
  %v565 = vunpack.c.l.b16 %v471
  %v566 = vunpack.c.h.b16 %v471
  %v567 = vunpack.c.l.b16 %v472
  %v568 = vunpack.c.h.b16 %v472
  %v569 = vpack.c.b16 %v509, %v505
  %v570 = vpack.c.b16 %v510, %v506
  %v571 = vpack.c.b16 %v511, %v507
  %v572 = vpack.c.b16 %v512, %v508
  %v573 = vpack.c.b16 %v517, %v513
  %v574 = vpack.c.b16 %v518, %v514
  %v575 = vpack.c.b16 %v519, %v515
  %v576 = vpack.c.b16 %v520, %v516
  %v577 = vpack.c.b16 %v525, %v521
  %v578 = vpack.c.b16 %v526, %v522
  %v579 = vpack.c.b16 %v527, %v523
  %v580 = vpack.c.b16 %v528, %v524
  %v581 = vpack.c.b16 %v533, %v529
  %v582 = vpack.c.b16 %v534, %v530
  %v583 = vpack.c.b16 %v535, %v531
  %v584 = vpack.c.b16 %v536, %v532
  %v585 = vpack.c.b16 %v541, %v537
  %v586 = vpack.c.b16 %v542, %v538
  %v587 = vpack.c.b16 %v543, %v539
  %v588 = vpack.c.b16 %v544, %v540
  %v589 = vpack.c.b16 %v549, %v545
  %v590 = vpack.c.b16 %v550, %v546
  %v591 = vpack.c.b16 %v551, %v547
  %v592 = vpack.c.b16 %v552, %v548
  %v593 = vpack.c.b16 %v557, %v553
  %v594 = vpack.c.b16 %v558, %v554
  %v595 = vpack.c.b16 %v559, %v555
  %v596 = vpack.c.b16 %v560, %v556
  %v597 = vpack.c.b16 %v565, %v561
  %v598 = vpack.c.b16 %v566, %v562
  %v599 = vpack.c.b16 %v567, %v563
  %v600 = vpack.c.b16 %v568, %v564
  %633 = vmatprep.subr.bf16.mxu0 %v570
  %634 = vmatpush1.bf16.msra.mxu0 %v569
  %635 = vmatprep.subr.bf16.mxu0 %v574
  %636 = vmatpush1.bf16.msra.mxu0 %v573
  %637 = vmatprep.subr.bf16.mxu0 %v578
  %638 = vmatpush1.bf16.msra.mxu0 %v577
  %639 = vmatprep.subr.bf16.mxu0 %v582
  %640 = vmatpush1.bf16.msra.mxu0 %v581
  %641 = vmatprep.subr.bf16.mxu0 %v586
  %642 = vmatpush1.bf16.msra.mxu0 %v585
  %643 = vmatprep.subr.bf16.mxu0 %v590
  %644 = vmatpush1.bf16.msra.mxu0 %v589
  %645 = vmatprep.subr.bf16.mxu0 %v594
  %646 = vmatpush1.bf16.msra.mxu0 %v593
  %647 = vmatprep.subr.bf16.mxu0 %v598
  %648 = vmatpush1.bf16.msra.mxu0 %v597
  %649 = vmatprep.subr.bf16.mxu0 0
  %650 = vmatpush1.bf16.msra.mxu0 0
  %651 = vmatprep.subr.bf16.mxu0 0
  %652 = vmatpush1.bf16.msra.mxu0 0
  %653 = vmatprep.subr.bf16.mxu0 0
  %654 = vmatpush1.bf16.msra.mxu0 0
  %655 = vmatprep.subr.bf16.mxu0 0
  %656 = vmatpush1.bf16.msra.mxu0 0
  %657 = vmatprep.subr.bf16.mxu0 0
  %658 = vmatpush1.bf16.msra.mxu0 0
  %659 = vmatprep.subr.bf16.mxu0 0
  %660 = vmatpush1.bf16.msra.mxu0 0
  %661 = vmatprep.subr.bf16.mxu0 0
  %662 = vmatpush1.bf16.msra.mxu0 0
  %663 = vmatprep.subr.bf16.mxu0 0
  %664 = vmatpush1.bf16.msra.mxu0 0
  %665 = vmatprep.mubr.bf16.mxu0 0
  %666 = vmatmul.mubr.bf16.gmra.mrb[0].mxu0 %v440
  %v667 = vpop.f32.mrb[0].mxu0
  %v668 = vadd.f32 0.0, %v667
  %v669 = vpop.f32.mrb[0].mxu0
  %v670 = vadd.f32 0.0, %v669
  %v671 = vpop.f32.mrb[0].mxu0
  %v672 = vadd.f32 0.0, %v671
  %v673 = vpop.f32.mrb[0].mxu0
  %v674 = vadd.f32 0.0, %v673
  %675 = vdwg.mxu0
  %676 = vmatprep.subr.bf16.mxu0 %v572
  %677 = vmatpush1.bf16.msra.mxu0 %v571
  %678 = vmatprep.subr.bf16.mxu0 %v576
  %679 = vmatpush1.bf16.msra.mxu0 %v575
  %680 = vmatprep.subr.bf16.mxu0 %v580
  %681 = vmatpush1.bf16.msra.mxu0 %v579
  %682 = vmatprep.subr.bf16.mxu0 %v584
  %683 = vmatpush1.bf16.msra.mxu0 %v583
  %684 = vmatprep.subr.bf16.mxu0 %v588
  %685 = vmatpush1.bf16.msra.mxu0 %v587
  %686 = vmatprep.subr.bf16.mxu0 %v592
  %687 = vmatpush1.bf16.msra.mxu0 %v591
  %688 = vmatprep.subr.bf16.mxu0 %v596
  %689 = vmatpush1.bf16.msra.mxu0 %v595
  %690 = vmatprep.subr.bf16.mxu0 %v600
  %691 = vmatpush1.bf16.msra.mxu0 %v599
  %692 = vmatprep.subr.bf16.mxu0 0
  %693 = vmatpush1.bf16.msra.mxu0 0
  %694 = vmatprep.subr.bf16.mxu0 0
  %695 = vmatpush1.bf16.msra.mxu0 0
  %696 = vmatprep.subr.bf16.mxu0 0
  %697 = vmatpush1.bf16.msra.mxu0 0
  %698 = vmatprep.subr.bf16.mxu0 0
  %699 = vmatpush1.bf16.msra.mxu0 0
  %700 = vmatprep.subr.bf16.mxu0 0
  %701 = vmatpush1.bf16.msra.mxu0 0
  %702 = vmatprep.subr.bf16.mxu0 0
  %703 = vmatpush1.bf16.msra.mxu0 0
  %704 = vmatprep.subr.bf16.mxu0 0
  %705 = vmatpush1.bf16.msra.mxu0 0
  %706 = vmatprep.subr.bf16.mxu0 0
  %707 = vmatpush1.bf16.msra.mxu0 0
  %708 = vmatprep.mubr.bf16.mxu0 0
  %709 = vmatmul.mubr.bf16.gmra.mrb[0].mxu0 %v440
  %v710 = vpop.f32.mrb[0].mxu0
  %v711 = vadd.f32 0.0, %v710
  %v712 = vpop.f32.mrb[0].mxu0
  %v713 = vadd.f32 0.0, %v712
  %v714 = vpop.f32.mrb[0].mxu0
  %v715 = vadd.f32 0.0, %v714
  %v716 = vpop.f32.mrb[0].mxu0
  %v717 = vadd.f32 0.0, %v716
  %718 = vdwg.mxu0
  %v719 = vadd.f32 %v432, %v668
  %v720 = vadd.f32 %v433, %v670
  %v721 = vadd.f32 %v434, %v711
  %v722 = vadd.f32 %v435, %v713
  %v723 = vadd.f32 %v436, %v672
  %v724 = vadd.f32 %v437, %v674
  %v725 = vadd.f32 %v438, %v715
  %v726 = vadd.f32 %v439, %v717
  %v727 = vsub.f32 0.0, %v719
  %v728 = vsub.f32 0.0, %v720
  %v729 = vsub.f32 0.0, %v721
  %v730 = vsub.f32 0.0, %v723
  %v731 = vsub.f32 0.0, %v724
  %v732 = vsub.f32 0.0, %v725
  %v733 = vmul.f32 %v727, 1.442695
  %v734 = vpow.pop %v733
  %v735 = vmul.f32 %v728, 1.442695
  %v736 = vpow.pop %v735
  %v737 = vmul.f32 %v729, 1.442695
  %v738 = vpow.pop %v737
  %v739 = vmul.f32 %v730, 1.442695
  %v740 = vpow.pop %v739
  %v741 = vmul.f32 %v731, 1.442695
  %v742 = vpow.pop %v741
  %v743 = vmul.f32 %v732, 1.442695
  %v744 = vpow.pop %v743
  %v745 = vadd.f32 %v734, 1.0
  %v746 = vadd.f32 %v736, 1.0
  %v747 = vadd.f32 %v738, 1.0
  %v748 = vadd.f32 %v740, 1.0
  %v749 = vadd.f32 %v742, 1.0
  %v750 = vadd.f32 %v744, 1.0
  %v751 = vrcp.pop %v745
  %v752 = vrcp.pop %v746
  %v753 = vrcp.pop %v747
  %v754 = vrcp.pop %v748
  %v755 = vrcp.pop %v749
  %v756 = vrcp.pop %v750
  %v757 = vtanh.pop %v722
  %v758 = vtanh.pop %v726
  %v759 = vmul.f32 %v752, %v427
  %v760 = vmul.f32 %v755, %v428
  %v761 = vmul.f32 %v751, %v757
  %v762 = vmul.f32 %v754, %v758
  %v763 = vadd.f32 %v759, %v761
  %v764 = vadd.f32 %v760, %v762
  %v765 = vtanh.pop %v763
  %v766 = vtanh.pop %v764
  %v767 = vmul.f32 %v753, %v765
  %v768 = vmul.f32 %v756, %v766
  %v769 = vpack.c.bf16 %v768, %v767
  %v771 = vunpack.c.l.b16 %v769
  %v772 = vunpack.c.h.b16 %v769
  %v773 = vpack.c.b16 %v771, %v771
  %v774 = vpack.c.b16 %v772, %v772
  %777 = vst [vmem:[%s6] sm:$0xf] %v773
  %778 = vst [vmem:[%s6 + $0x4] sm:$0xf] %v774
  %s779 = smul.u32 2, 4
  %s780 = smul.addr %s779, 8
  %s781 = scalar_lea.vmem [#allocation2], %s780
  %v782 = vld [vmem:[%s781] sm:$0xff]
  %v783 = vld [vmem:[%s781 + $0x8] sm:$0xff]
  %v784 = vld [vmem:[%s781 + $0x10] sm:$0xff]
  %v785 = vld [vmem:[%s781 + $0x18] sm:$0xff]
  %v786 = vld [vmem:[%s781 + $0x20] sm:$0xff]
  %v787 = vld [vmem:[%s781 + $0x28] sm:$0xff]
  %v788 = vld [vmem:[%s781 + $0x30] sm:$0xff]
  %v789 = vld [vmem:[%s781 + $0x38] sm:$0xff]
  %v790 = vld [vmem:[%s4] sm:$0xff]
  %v791 = vld [vmem:[%s4 + $0x8] sm:$0xff]
  %v792 = vld [vmem:[%s4 + $0x10] sm:$0xff]
  %v793 = vld [vmem:[%s4 + $0x18] sm:$0xff]
  %v794 = vld [vmem:[%s4 + $0x20] sm:$0xff]
  %v795 = vld [vmem:[%s4 + $0x28] sm:$0xff]
  %v796 = vld [vmem:[%s4 + $0x30] sm:$0xff]
  %v797 = vld [vmem:[%s4 + $0x38] sm:$0xff]
  %v798 = vld [vmem:[%s4 + $0x40] sm:$0xff]
  %v799 = vld [vmem:[%s4 + $0x48] sm:$0xff]
  %v800 = vld [vmem:[%s4 + $0x50] sm:$0xff]
  %v801 = vld [vmem:[%s4 + $0x58] sm:$0xff]
  %v802 = vld [vmem:[%s4 + $0x60] sm:$0xff]
  %v803 = vld [vmem:[%s4 + $0x68] sm:$0xff]
  %v804 = vld [vmem:[%s4 + $0x70] sm:$0xff]
  %v805 = vld [vmem:[%s4 + $0x78] sm:$0xff]
  %v806 = vld [vmem:[%s4 + $0x80] sm:$0xff]
  %v807 = vld [vmem:[%s4 + $0x88] sm:$0xff]
  %v808 = vld [vmem:[%s4 + $0x90] sm:$0xff]
  %v809 = vld [vmem:[%s4 + $0x98] sm:$0xff]
  %v810 = vld [vmem:[%s4 + $0xa0] sm:$0xff]
  %v811 = vld [vmem:[%s4 + $0xa8] sm:$0xff]
  %v812 = vld [vmem:[%s4 + $0xb0] sm:$0xff]
  %v813 = vld [vmem:[%s4 + $0xb8] sm:$0xff]
  %v814 = vld [vmem:[%s4 + $0xc0] sm:$0xff]
  %v815 = vld [vmem:[%s4 + $0xc8] sm:$0xff]
  %v816 = vld [vmem:[%s4 + $0xd0] sm:$0xff]
  %v817 = vld [vmem:[%s4 + $0xd8] sm:$0xff]
  %v818 = vld [vmem:[%s4 + $0xe0] sm:$0xff]
  %v819 = vld [vmem:[%s4 + $0xe8] sm:$0xff]
  %v820 = vld [vmem:[%s4 + $0xf0] sm:$0xff]
  %v821 = vld [vmem:[%s4 + $0xf8] sm:$0xff]
  %v854 = vunpack.c.l.b16 %v790
  %v855 = vunpack.c.h.b16 %v790
  %v856 = vunpack.c.l.b16 %v791
  %v857 = vunpack.c.h.b16 %v791
  %v858 = vunpack.c.l.b16 %v792
  %v859 = vunpack.c.h.b16 %v792
  %v860 = vunpack.c.l.b16 %v793
  %v861 = vunpack.c.h.b16 %v793
  %v862 = vunpack.c.l.b16 %v794
  %v863 = vunpack.c.h.b16 %v794
  %v864 = vunpack.c.l.b16 %v795
  %v865 = vunpack.c.h.b16 %v795
  %v866 = vunpack.c.l.b16 %v796
  %v867 = vunpack.c.h.b16 %v796
  %v868 = vunpack.c.l.b16 %v797
  %v869 = vunpack.c.h.b16 %v797
  %v870 = vunpack.c.l.b16 %v798
  %v871 = vunpack.c.h.b16 %v798
  %v872 = vunpack.c.l.b16 %v799
  %v873 = vunpack.c.h.b16 %v799
  %v874 = vunpack.c.l.b16 %v800
  %v875 = vunpack.c.h.b16 %v800
  %v876 = vunpack.c.l.b16 %v801
  %v877 = vunpack.c.h.b16 %v801
  %v878 = vunpack.c.l.b16 %v802
  %v879 = vunpack.c.h.b16 %v802
  %v880 = vunpack.c.l.b16 %v803
  %v881 = vunpack.c.h.b16 %v803
  %v882 = vunpack.c.l.b16 %v804
  %v883 = vunpack.c.h.b16 %v804
  %v884 = vunpack.c.l.b16 %v805
  %v885 = vunpack.c.h.b16 %v805
  %v886 = vunpack.c.l.b16 %v806
  %v887 = vunpack.c.h.b16 %v806
  %v888 = vunpack.c.l.b16 %v807
  %v889 = vunpack.c.h.b16 %v807
  %v890 = vunpack.c.l.b16 %v808
  %v891 = vunpack.c.h.b16 %v808
  %v892 = vunpack.c.l.b16 %v809
  %v893 = vunpack.c.h.b16 %v809
  %v894 = vunpack.c.l.b16 %v810
  %v895 = vunpack.c.h.b16 %v810
  %v896 = vunpack.c.l.b16 %v811
  %v897 = vunpack.c.h.b16 %v811
  %v898 = vunpack.c.l.b16 %v812
  %v899 = vunpack.c.h.b16 %v812
  %v900 = vunpack.c.l.b16 %v813
  %v901 = vunpack.c.h.b16 %v813
  %v902 = vunpack.c.l.b16 %v814
  %v903 = vunpack.c.h.b16 %v814
  %v904 = vunpack.c.l.b16 %v815
  %v905 = vunpack.c.h.b16 %v815
  %v906 = vunpack.c.l.b16 %v816
  %v907 = vunpack.c.h.b16 %v816
  %v908 = vunpack.c.l.b16 %v817
  %v909 = vunpack.c.h.b16 %v817
  %v910 = vunpack.c.l.b16 %v818
  %v911 = vunpack.c.h.b16 %v818
  %v912 = vunpack.c.l.b16 %v819
  %v913 = vunpack.c.h.b16 %v819
  %v914 = vunpack.c.l.b16 %v820
  %v915 = vunpack.c.h.b16 %v820
  %v916 = vunpack.c.l.b16 %v821
  %v917 = vunpack.c.h.b16 %v821
  %v918 = vpack.c.b16 %v858, %v854
  %v919 = vpack.c.b16 %v859, %v855
  %v920 = vpack.c.b16 %v860, %v856
  %v921 = vpack.c.b16 %v861, %v857
  %v922 = vpack.c.b16 %v866, %v862
  %v923 = vpack.c.b16 %v867, %v863
  %v924 = vpack.c.b16 %v868, %v864
  %v925 = vpack.c.b16 %v869, %v865
  %v926 = vpack.c.b16 %v874, %v870
  %v927 = vpack.c.b16 %v875, %v871
  %v928 = vpack.c.b16 %v876, %v872
  %v929 = vpack.c.b16 %v877, %v873
  %v930 = vpack.c.b16 %v882, %v878
  %v931 = vpack.c.b16 %v883, %v879
  %v932 = vpack.c.b16 %v884, %v880
  %v933 = vpack.c.b16 %v885, %v881
  %v934 = vpack.c.b16 %v890, %v886
  %v935 = vpack.c.b16 %v891, %v887
  %v936 = vpack.c.b16 %v892, %v888
  %v937 = vpack.c.b16 %v893, %v889
  %v938 = vpack.c.b16 %v898, %v894
  %v939 = vpack.c.b16 %v899, %v895
  %v940 = vpack.c.b16 %v900, %v896
  %v941 = vpack.c.b16 %v901, %v897
  %v942 = vpack.c.b16 %v906, %v902
  %v943 = vpack.c.b16 %v907, %v903
  %v944 = vpack.c.b16 %v908, %v904
  %v945 = vpack.c.b16 %v909, %v905
  %v946 = vpack.c.b16 %v914, %v910
  %v947 = vpack.c.b16 %v915, %v911
  %v948 = vpack.c.b16 %v916, %v912
  %v949 = vpack.c.b16 %v917, %v913
  %982 = vmatprep.subr.bf16.mxu0 %v919
  %983 = vmatpush1.bf16.msra.mxu0 %v918
  %984 = vmatprep.subr.bf16.mxu0 %v923
  %985 = vmatpush1.bf16.msra.mxu0 %v922
  %986 = vmatprep.subr.bf16.mxu0 %v927
  %987 = vmatpush1.bf16.msra.mxu0 %v926
  %988 = vmatprep.subr.bf16.mxu0 %v931
  %989 = vmatpush1.bf16.msra.mxu0 %v930
  %990 = vmatprep.subr.bf16.mxu0 %v935
  %991 = vmatpush1.bf16.msra.mxu0 %v934
  %992 = vmatprep.subr.bf16.mxu0 %v939
  %993 = vmatpush1.bf16.msra.mxu0 %v938
  %994 = vmatprep.subr.bf16.mxu0 %v943
  %995 = vmatpush1.bf16.msra.mxu0 %v942
  %996 = vmatprep.subr.bf16.mxu0 %v947
  %997 = vmatpush1.bf16.msra.mxu0 %v946
  %998 = vmatprep.subr.bf16.mxu0 0
  %999 = vmatpush1.bf16.msra.mxu0 0
  %1000 = vmatprep.subr.bf16.mxu0 0
  %1001 = vmatpush1.bf16.msra.mxu0 0
  %1002 = vmatprep.subr.bf16.mxu0 0
  %1003 = vmatpush1.bf16.msra.mxu0 0
  %1004 = vmatprep.subr.bf16.mxu0 0
  %1005 = vmatpush1.bf16.msra.mxu0 0
  %1006 = vmatprep.subr.bf16.mxu0 0
  %1007 = vmatpush1.bf16.msra.mxu0 0
  %1008 = vmatprep.subr.bf16.mxu0 0
  %1009 = vmatpush1.bf16.msra.mxu0 0
  %1010 = vmatprep.subr.bf16.mxu0 0
  %1011 = vmatpush1.bf16.msra.mxu0 0
  %1012 = vmatprep.subr.bf16.mxu0 0
  %1013 = vmatpush1.bf16.msra.mxu0 0
  %1014 = vmatprep.mubr.bf16.mxu0 0
  %1015 = vmatmul.mubr.bf16.gmra.mrb[0].mxu0 %v769
  %v1016 = vpop.f32.mrb[0].mxu0
  %v1017 = vadd.f32 0.0, %v1016
  %v1018 = vpop.f32.mrb[0].mxu0
  %v1019 = vadd.f32 0.0, %v1018
  %v1020 = vpop.f32.mrb[0].mxu0
  %v1021 = vadd.f32 0.0, %v1020
  %v1022 = vpop.f32.mrb[0].mxu0
  %v1023 = vadd.f32 0.0, %v1022
  %1024 = vdwg.mxu0
  %1025 = vmatprep.subr.bf16.mxu0 %v921
  %1026 = vmatpush1.bf16.msra.mxu0 %v920
  %1027 = vmatprep.subr.bf16.mxu0 %v925
  %1028 = vmatpush1.bf16.msra.mxu0 %v924
  %1029 = vmatprep.subr.bf16.mxu0 %v929
  %1030 = vmatpush1.bf16.msra.mxu0 %v928
  %1031 = vmatprep.subr.bf16.mxu0 %v933
  %1032 = vmatpush1.bf16.msra.mxu0 %v932
  %1033 = vmatprep.subr.bf16.mxu0 %v937
  %1034 = vmatpush1.bf16.msra.mxu0 %v936
  %1035 = vmatprep.subr.bf16.mxu0 %v941
  %1036 = vmatpush1.bf16.msra.mxu0 %v940
  %1037 = vmatprep.subr.bf16.mxu0 %v945
  %1038 = vmatpush1.bf16.msra.mxu0 %v944
  %1039 = vmatprep.subr.bf16.mxu0 %v949
  %1040 = vmatpush1.bf16.msra.mxu0 %v948
  %1041 = vmatprep.subr.bf16.mxu0 0
  %1042 = vmatpush1.bf16.msra.mxu0 0
  %1043 = vmatprep.subr.bf16.mxu0 0
  %1044 = vmatpush1.bf16.msra.mxu0 0
  %1045 = vmatprep.subr.bf16.mxu0 0
  %1046 = vmatpush1.bf16.msra.mxu0 0
  %1047 = vmatprep.subr.bf16.mxu0 0
  %1048 = vmatpush1.bf16.msra.mxu0 0
  %1049 = vmatprep.subr.bf16.mxu0 0
  %1050 = vmatpush1.bf16.msra.mxu0 0
  %1051 = vmatprep.subr.bf16.mxu0 0
  %1052 = vmatpush1.bf16.msra.mxu0 0
  %1053 = vmatprep.subr.bf16.mxu0 0
  %1054 = vmatpush1.bf16.msra.mxu0 0
  %1055 = vmatprep.subr.bf16.mxu0 0
  %1056 = vmatpush1.bf16.msra.mxu0 0
  %1057 = vmatprep.mubr.bf16.mxu0 0
  %1058 = vmatmul.mubr.bf16.gmra.mrb[0].mxu0 %v769
  %v1059 = vpop.f32.mrb[0].mxu0
  %v1060 = vadd.f32 0.0, %v1059
  %v1061 = vpop.f32.mrb[0].mxu0
  %v1062 = vadd.f32 0.0, %v1061
  %v1063 = vpop.f32.mrb[0].mxu0
  %v1064 = vadd.f32 0.0, %v1063
  %v1065 = vpop.f32.mrb[0].mxu0
  %v1066 = vadd.f32 0.0, %v1065
  %1067 = vdwg.mxu0
  %v1068 = vadd.f32 %v782, %v1017
  %v1069 = vadd.f32 %v783, %v1019
  %v1070 = vadd.f32 %v784, %v1060
  %v1071 = vadd.f32 %v785, %v1062
  %v1072 = vadd.f32 %v786, %v1021
  %v1073 = vadd.f32 %v787, %v1023
  %v1074 = vadd.f32 %v788, %v1064
  %v1075 = vadd.f32 %v789, %v1066
  %v1076 = vsub.f32 0.0, %v1068
  %v1077 = vsub.f32 0.0, %v1069
  %v1078 = vsub.f32 0.0, %v1070
  %v1079 = vsub.f32 0.0, %v1072
  %v1080 = vsub.f32 0.0, %v1073
  %v1081 = vsub.f32 0.0, %v1074
  %v1082 = vmul.f32 %v1076, 1.442695
  %v1083 = vpow.pop %v1082
  %v1084 = vmul.f32 %v1077, 1.442695
  %v1085 = vpow.pop %v1084
  %v1086 = vmul.f32 %v1078, 1.442695
  %v1087 = vpow.pop %v1086
  %v1088 = vmul.f32 %v1079, 1.442695
  %v1089 = vpow.pop %v1088
  %v1090 = vmul.f32 %v1080, 1.442695
  %v1091 = vpow.pop %v1090
  %v1092 = vmul.f32 %v1081, 1.442695
  %v1093 = vpow.pop %v1092
  %v1094 = vadd.f32 %v1083, 1.0
  %v1095 = vadd.f32 %v1085, 1.0
  %v1096 = vadd.f32 %v1087, 1.0
  %v1097 = vadd.f32 %v1089, 1.0
  %v1098 = vadd.f32 %v1091, 1.0
  %v1099 = vadd.f32 %v1093, 1.0
  %v1100 = vrcp.pop %v1094
  %v1101 = vrcp.pop %v1095
  %v1102 = vrcp.pop %v1096
  %v1103 = vrcp.pop %v1097
  %v1104 = vrcp.pop %v1098
  %v1105 = vrcp.pop %v1099
  %v1106 = vtanh.pop %v1071
  %v1107 = vtanh.pop %v1075
  %v1108 = vmul.f32 %v1101, %v763
  %v1109 = vmul.f32 %v1104, %v764
  %v1110 = vmul.f32 %v1100, %v1106
  %v1111 = vmul.f32 %v1103, %v1107
  %v1112 = vadd.f32 %v1108, %v1110
  %v1113 = vadd.f32 %v1109, %v1111
  %v1114 = vtanh.pop %v1112
  %v1115 = vtanh.pop %v1113
  %v1116 = vmul.f32 %v1102, %v1114
  %v1117 = vmul.f32 %v1105, %v1115
  %v1118 = vpack.c.bf16 %v1117, %v1116
  %v1120 = vunpack.c.l.b16 %v1118
  %v1121 = vunpack.c.h.b16 %v1118
  %v1122 = vpack.c.b16 %v1120, %v1120
  %v1123 = vpack.c.b16 %v1121, %v1121
  %s1126 = scalar_lea.vmem %s6, 8
  %1127 = vst [vmem:[%s1126] sm:$0xf] %v1122
  %1128 = vst [vmem:[%s1126 + $0x4] sm:$0xf] %v1123
  %s1129 = smul.u32 4, 4
  %s1130 = smul.addr %s1129, 8
  %s1131 = scalar_lea.vmem [#allocation2], %s1130
  %v1132 = vld [vmem:[%s1131] sm:$0xff]
  %v1133 = vld [vmem:[%s1131 + $0x8] sm:$0xff]
  %v1134 = vld [vmem:[%s1131 + $0x10] sm:$0xff]
  %v1135 = vld [vmem:[%s1131 + $0x18] sm:$0xff]
  %v1136 = vld [vmem:[%s1131 + $0x20] sm:$0xff]
  %v1137 = vld [vmem:[%s1131 + $0x28] sm:$0xff]
  %v1138 = vld [vmem:[%s1131 + $0x30] sm:$0xff]
  %v1139 = vld [vmem:[%s1131 + $0x38] sm:$0xff]
  %v1140 = vld [vmem:[%s4] sm:$0xff]
  %v1141 = vld [vmem:[%s4 + $0x8] sm:$0xff]
  %v1142 = vld [vmem:[%s4 + $0x10] sm:$0xff]
  %v1143 = vld [vmem:[%s4 + $0x18] sm:$0xff]
  %v1144 = vld [vmem:[%s4 + $0x20] sm:$0xff]
  %v1145 = vld [vmem:[%s4 + $0x28] sm:$0xff]
  %v1146 = vld [vmem:[%s4 + $0x30] sm:$0xff]
  %v1147 = vld [vmem:[%s4 + $0x38] sm:$0xff]
  %v1148 = vld [vmem:[%s4 + $0x40] sm:$0xff]
  %v1149 = vld [vmem:[%s4 + $0x48] sm:$0xff]
  %v1150 = vld [vmem:[%s4 + $0x50] sm:$0xff]
  %v1151 = vld [vmem:[%s4 + $0x58] sm:$0xff]
  %v1152 = vld [vmem:[%s4 + $0x60] sm:$0xff]
  %v1153 = vld [vmem:[%s4 + $0x68] sm:$0xff]
  %v1154 = vld [vmem:[%s4 + $0x70] sm:$0xff]
  %v1155 = vld [vmem:[%s4 + $0x78] sm:$0xff]
  %v1156 = vld [vmem:[%s4 + $0x80] sm:$0xff]
  %v1157 = vld [vmem:[%s4 + $0x88] sm:$0xff]
  %v1158 = vld [vmem:[%s4 + $0x90] sm:$0xff]
  %v1159 = vld [vmem:[%s4 + $0x98] sm:$0xff]
  %v1160 = vld [vmem:[%s4 + $0xa0] sm:$0xff]
  %v1161 = vld [vmem:[%s4 + $0xa8] sm:$0xff]
  %v1162 = vld [vmem:[%s4 + $0xb0] sm:$0xff]
  %v1163 = vld [vmem:[%s4 + $0xb8] sm:$0xff]
  %v1164 = vld [vmem:[%s4 + $0xc0] sm:$0xff]
  %v1165 = vld [vmem:[%s4 + $0xc8] sm:$0xff]
  %v1166 = vld [vmem:[%s4 + $0xd0] sm:$0xff]
  %v1167 = vld [vmem:[%s4 + $0xd8] sm:$0xff]
  %v1168 = vld [vmem:[%s4 + $0xe0] sm:$0xff]
  %v1169 = vld [vmem:[%s4 + $0xe8] sm:$0xff]
  %v1170 = vld [vmem:[%s4 + $0xf0] sm:$0xff]
  %v1171 = vld [vmem:[%s4 + $0xf8] sm:$0xff]
  %v1204 = vunpack.c.l.b16 %v1140
  %v1205 = vunpack.c.h.b16 %v1140
  %v1206 = vunpack.c.l.b16 %v1141
  %v1207 = vunpack.c.h.b16 %v1141
  %v1208 = vunpack.c.l.b16 %v1142
  %v1209 = vunpack.c.h.b16 %v1142
  %v1210 = vunpack.c.l.b16 %v1143
  %v1211 = vunpack.c.h.b16 %v1143
  %v1212 = vunpack.c.l.b16 %v1144
  %v1213 = vunpack.c.h.b16 %v1144
  %v1214 = vunpack.c.l.b16 %v1145
  %v1215 = vunpack.c.h.b16 %v1145
  %v1216 = vunpack.c.l.b16 %v1146
  %v1217 = vunpack.c.h.b16 %v1146
  %v1218 = vunpack.c.l.b16 %v1147
  %v1219 = vunpack.c.h.b16 %v1147
  %v1220 = vunpack.c.l.b16 %v1148
  %v1221 = vunpack.c.h.b16 %v1148
  %v1222 = vunpack.c.l.b16 %v1149
  %v1223 = vunpack.c.h.b16 %v1149
  %v1224 = vunpack.c.l.b16 %v1150
  %v1225 = vunpack.c.h.b16 %v1150
  %v1226 = vunpack.c.l.b16 %v1151
  %v1227 = vunpack.c.h.b16 %v1151
  %v1228 = vunpack.c.l.b16 %v1152
  %v1229 = vunpack.c.h.b16 %v1152
  %v1230 = vunpack.c.l.b16 %v1153
  %v1231 = vunpack.c.h.b16 %v1153
  %v1232 = vunpack.c.l.b16 %v1154
  %v1233 = vunpack.c.h.b16 %v1154
  %v1234 = vunpack.c.l.b16 %v1155
  %v1235 = vunpack.c.h.b16 %v1155
  %v1236 = vunpack.c.l.b16 %v1156
  %v1237 = vunpack.c.h.b16 %v1156
  %v1238 = vunpack.c.l.b16 %v1157
  %v1239 = vunpack.c.h.b16 %v1157
  %v1240 = vunpack.c.l.b16 %v1158
  %v1241 = vunpack.c.h.b16 %v1158
  %v1242 = vunpack.c.l.b16 %v1159
  %v1243 = vunpack.c.h.b16 %v1159
  %v1244 = vunpack.c.l.b16 %v1160
  %v1245 = vunpack.c.h.b16 %v1160
  %v1246 = vunpack.c.l.b16 %v1161
  %v1247 = vunpack.c.h.b16 %v1161
  %v1248 = vunpack.c.l.b16 %v1162
  %v1249 = vunpack.c.h.b16 %v1162
  %v1250 = vunpack.c.l.b16 %v1163
  %v1251 = vunpack.c.h.b16 %v1163
  %v1252 = vunpack.c.l.b16 %v1164
  %v1253 = vunpack.c.h.b16 %v1164
  %v1254 = vunpack.c.l.b16 %v1165
  %v1255 = vunpack.c.h.b16 %v1165
  %v1256 = vunpack.c.l.b16 %v1166
  %v1257 = vunpack.c.h.b16 %v1166
  %v1258 = vunpack.c.l.b16 %v1167
  %v1259 = vunpack.c.h.b16 %v1167
  %v1260 = vunpack.c.l.b16 %v1168
  %v1261 = vunpack.c.h.b16 %v1168
  %v1262 = vunpack.c.l.b16 %v1169
  %v1263 = vunpack.c.h.b16 %v1169
  %v1264 = vunpack.c.l.b16 %v1170
  %v1265 = vunpack.c.h.b16 %v1170
  %v1266 = vunpack.c.l.b16 %v1171
  %v1267 = vunpack.c.h.b16 %v1171
  %v1268 = vpack.c.b16 %v1208, %v1204
  %v1269 = vpack.c.b16 %v1209, %v1205
  %v1270 = vpack.c.b16 %v1210, %v1206
  %v1271 = vpack.c.b16 %v1211, %v1207
  %v1272 = vpack.c.b16 %v1216, %v1212
  %v1273 = vpack.c.b16 %v1217, %v1213
  %v1274 = vpack.c.b16 %v1218, %v1214
  %v1275 = vpack.c.b16 %v1219, %v1215
  %v1276 = vpack.c.b16 %v1224, %v1220
  %v1277 = vpack.c.b16 %v1225, %v1221
  %v1278 = vpack.c.b16 %v1226, %v1222
  %v1279 = vpack.c.b16 %v1227, %v1223
  %v1280 = vpack.c.b16 %v1232, %v1228
  %v1281 = vpack.c.b16 %v1233, %v1229
  %v1282 = vpack.c.b16 %v1234, %v1230
  %v1283 = vpack.c.b16 %v1235, %v1231
  %v1284 = vpack.c.b16 %v1240, %v1236
  %v1285 = vpack.c.b16 %v1241, %v1237
  %v1286 = vpack.c.b16 %v1242, %v1238
  %v1287 = vpack.c.b16 %v1243, %v1239
  %v1288 = vpack.c.b16 %v1248, %v1244
  %v1289 = vpack.c.b16 %v1249, %v1245
  %v1290 = vpack.c.b16 %v1250, %v1246
  %v1291 = vpack.c.b16 %v1251, %v1247
  %v1292 = vpack.c.b16 %v1256, %v1252
  %v1293 = vpack.c.b16 %v1257, %v1253
  %v1294 = vpack.c.b16 %v1258, %v1254
  %v1295 = vpack.c.b16 %v1259, %v1255
  %v1296 = vpack.c.b16 %v1264, %v1260
  %v1297 = vpack.c.b16 %v1265, %v1261
  %v1298 = vpack.c.b16 %v1266, %v1262
  %v1299 = vpack.c.b16 %v1267, %v1263
  %1332 = vmatprep.subr.bf16.mxu0 %v1269
  %1333 = vmatpush1.bf16.msra.mxu0 %v1268
  %1334 = vmatprep.subr.bf16.mxu0 %v1273
  %1335 = vmatpush1.bf16.msra.mxu0 %v1272
  %1336 = vmatprep.subr.bf16.mxu0 %v1277
  %1337 = vmatpush1.bf16.msra.mxu0 %v1276
  %1338 = vmatprep.subr.bf16.mxu0 %v1281
  %1339 = vmatpush1.bf16.msra.mxu0 %v1280
  %1340 = vmatprep.subr.bf16.mxu0 %v1285
  %1341 = vmatpush1.bf16.msra.mxu0 %v1284
  %1342 = vmatprep.subr.bf16.mxu0 %v1289
  %1343 = vmatpush1.bf16.msra.mxu0 %v1288
  %1344 = vmatprep.subr.bf16.mxu0 %v1293
  %1345 = vmatpush1.bf16.msra.mxu0 %v1292
  %1346 = vmatprep.subr.bf16.mxu0 %v1297
  %1347 = vmatpush1.bf16.msra.mxu0 %v1296
  %1348 = vmatprep.subr.bf16.mxu0 0
  %1349 = vmatpush1.bf16.msra.mxu0 0
  %1350 = vmatprep.subr.bf16.mxu0 0
  %1351 = vmatpush1.bf16.msra.mxu0 0
  %1352 = vmatprep.subr.bf16.mxu0 0
  %1353 = vmatpush1.bf16.msra.mxu0 0
  %1354 = vmatprep.subr.bf16.mxu0 0
  %1355 = vmatpush1.bf16.msra.mxu0 0
  %1356 = vmatprep.subr.bf16.mxu0 0
  %1357 = vmatpush1.bf16.msra.mxu0 0
  %1358 = vmatprep.subr.bf16.mxu0 0
  %1359 = vmatpush1.bf16.msra.mxu0 0
  %1360 = vmatprep.subr.bf16.mxu0 0
  %1361 = vmatpush1.bf16.msra.mxu0 0
  %1362 = vmatprep.subr.bf16.mxu0 0
  %1363 = vmatpush1.bf16.msra.mxu0 0
  %1364 = vmatprep.mubr.bf16.mxu0 0
  %1365 = vmatmul.mubr.bf16.gmra.mrb[0].mxu0 %v1118
  %v1366 = vpop.f32.mrb[0].mxu0
  %v1367 = vadd.f32 0.0, %v1366
  %v1368 = vpop.f32.mrb[0].mxu0
  %v1369 = vadd.f32 0.0, %v1368
  %v1370 = vpop.f32.mrb[0].mxu0
  %v1371 = vadd.f32 0.0, %v1370
  %v1372 = vpop.f32.mrb[0].mxu0
  %v1373 = vadd.f32 0.0, %v1372
  %1374 = vdwg.mxu0
  %1375 = vmatprep.subr.bf16.mxu0 %v1271
  %1376 = vmatpush1.bf16.msra.mxu0 %v1270
  %1377 = vmatprep.subr.bf16.mxu0 %v1275
  %1378 = vmatpush1.bf16.msra.mxu0 %v1274
  %1379 = vmatprep.subr.bf16.mxu0 %v1279
  %1380 = vmatpush1.bf16.msra.mxu0 %v1278
  %1381 = vmatprep.subr.bf16.mxu0 %v1283
  %1382 = vmatpush1.bf16.msra.mxu0 %v1282
  %1383 = vmatprep.subr.bf16.mxu0 %v1287
  %1384 = vmatpush1.bf16.msra.mxu0 %v1286
  %1385 = vmatprep.subr.bf16.mxu0 %v1291
  %1386 = vmatpush1.bf16.msra.mxu0 %v1290
  %1387 = vmatprep.subr.bf16.mxu0 %v1295
  %1388 = vmatpush1.bf16.msra.mxu0 %v1294
  %1389 = vmatprep.subr.bf16.mxu0 %v1299
  %1390 = vmatpush1.bf16.msra.mxu0 %v1298
  %1391 = vmatprep.subr.bf16.mxu0 0
  %1392 = vmatpush1.bf16.msra.mxu0 0
  %1393 = vmatprep.subr.bf16.mxu0 0
  %1394 = vmatpush1.bf16.msra.mxu0 0
  %1395 = vmatprep.subr.bf16.mxu0 0
  %1396 = vmatpush1.bf16.msra.mxu0 0
  %1397 = vmatprep.subr.bf16.mxu0 0
  %1398 = vmatpush1.bf16.msra.mxu0 0
  %1399 = vmatprep.subr.bf16.mxu0 0
  %1400 = vmatpush1.bf16.msra.mxu0 0
  %1401 = vmatprep.subr.bf16.mxu0 0
  %1402 = vmatpush1.bf16.msra.mxu0 0
  %1403 = vmatprep.subr.bf16.mxu0 0
  %1404 = vmatpush1.bf16.msra.mxu0 0
  %1405 = vmatprep.subr.bf16.mxu0 0
  %1406 = vmatpush1.bf16.msra.mxu0 0
  %1407 = vmatprep.mubr.bf16.mxu0 0
  %1408 = vmatmul.mubr.bf16.gmra.mrb[0].mxu0 %v1118
  %v1409 = vpop.f32.mrb[0].mxu0
  %v1410 = vadd.f32 0.0, %v1409
  %v1411 = vpop.f32.mrb[0].mxu0
  %v1412 = vadd.f32 0.0, %v1411
  %v1413 = vpop.f32.mrb[0].mxu0
  %v1414 = vadd.f32 0.0, %v1413
  %v1415 = vpop.f32.mrb[0].mxu0
  %v1416 = vadd.f32 0.0, %v1415
  %1417 = vdwg.mxu0
  %v1418 = vadd.f32 %v1132, %v1367
  %v1419 = vadd.f32 %v1133, %v1369
  %v1420 = vadd.f32 %v1134, %v1410
  %v1421 = vadd.f32 %v1135, %v1412
  %v1422 = vadd.f32 %v1136, %v1371
  %v1423 = vadd.f32 %v1137, %v1373
  %v1424 = vadd.f32 %v1138, %v1414
  %v1425 = vadd.f32 %v1139, %v1416
  %v1426 = vsub.f32 0.0, %v1418
  %v1427 = vsub.f32 0.0, %v1419
  %v1428 = vsub.f32 0.0, %v1420
  %v1429 = vsub.f32 0.0, %v1422
  %v1430 = vsub.f32 0.0, %v1423
  %v1431 = vsub.f32 0.0, %v1424
  %v1432 = vmul.f32 %v1426, 1.442695
  %v1433 = vpow.pop %v1432
  %v1434 = vmul.f32 %v1427, 1.442695
  %v1435 = vpow.pop %v1434
  %v1436 = vmul.f32 %v1428, 1.442695
  %v1437 = vpow.pop %v1436
  %v1438 = vmul.f32 %v1429, 1.442695
  %v1439 = vpow.pop %v1438
  %v1440 = vmul.f32 %v1430, 1.442695
  %v1441 = vpow.pop %v1440
  %v1442 = vmul.f32 %v1431, 1.442695
  %v1443 = vpow.pop %v1442
  %v1444 = vadd.f32 %v1433, 1.0
  %v1445 = vadd.f32 %v1435, 1.0
  %v1446 = vadd.f32 %v1437, 1.0
  %v1447 = vadd.f32 %v1439, 1.0
  %v1448 = vadd.f32 %v1441, 1.0
  %v1449 = vadd.f32 %v1443, 1.0
  %v1450 = vrcp.pop %v1444
  %v1451 = vrcp.pop %v1445
  %v1452 = vrcp.pop %v1446
  %v1453 = vrcp.pop %v1447
  %v1454 = vrcp.pop %v1448
  %v1455 = vrcp.pop %v1449
  %v1456 = vtanh.pop %v1421
  %v1457 = vtanh.pop %v1425
  %v1458 = vmul.f32 %v1451, %v1112
  %v1459 = vmul.f32 %v1454, %v1113
  %v1460 = vmul.f32 %v1450, %v1456
  %v1461 = vmul.f32 %v1453, %v1457
  %v1462 = vadd.f32 %v1458, %v1460
  %v1463 = vadd.f32 %v1459, %v1461
  %v1464 = vtanh.pop %v1462
  %v1465 = vtanh.pop %v1463
  %v1466 = vmul.f32 %v1452, %v1464
  %v1467 = vmul.f32 %v1455, %v1465
  %v1468 = vpack.c.bf16 %v1467, %v1466
  %v1470 = vunpack.c.l.b16 %v1468
  %v1471 = vunpack.c.h.b16 %v1468
  %v1472 = vpack.c.b16 %v1470, %v1470
  %v1473 = vpack.c.b16 %v1471, %v1471
  %s1476 = scalar_lea.vmem %s6, 16
  %1477 = vst [vmem:[%s1476] sm:$0xf] %v1472
  %1478 = vst [vmem:[%s1476 + $0x4] sm:$0xf] %v1473
  %s1479 = smul.u32 6, 4
  %s1480 = smul.addr %s1479, 8
  %s1481 = scalar_lea.vmem [#allocation2], %s1480
  %v1482 = vld [vmem:[%s1481] sm:$0xff]
  %v1483 = vld [vmem:[%s1481 + $0x8] sm:$0xff]
  %v1484 = vld [vmem:[%s1481 + $0x10] sm:$0xff]
  %v1485 = vld [vmem:[%s1481 + $0x18] sm:$0xff]
  %v1486 = vld [vmem:[%s1481 + $0x20] sm:$0xff]
  %v1487 = vld [vmem:[%s1481 + $0x28] sm:$0xff]
  %v1488 = vld [vmem:[%s1481 + $0x30] sm:$0xff]
  %v1489 = vld [vmem:[%s1481 + $0x38] sm:$0xff]
  %v1490 = vld [vmem:[%s4] sm:$0xff]
  %v1491 = vld [vmem:[%s4 + $0x8] sm:$0xff]
  %v1492 = vld [vmem:[%s4 + $0x10] sm:$0xff]
  %v1493 = vld [vmem:[%s4 + $0x18] sm:$0xff]
  %v1494 = vld [vmem:[%s4 + $0x20] sm:$0xff]
  %v1495 = vld [vmem:[%s4 + $0x28] sm:$0xff]
  %v1496 = vld [vmem:[%s4 + $0x30] sm:$0xff]
  %v1497 = vld [vmem:[%s4 + $0x38] sm:$0xff]
  %v1498 = vld [vmem:[%s4 + $0x40] sm:$0xff]
  %v1499 = vld [vmem:[%s4 + $0x48] sm:$0xff]
  %v1500 = vld [vmem:[%s4 + $0x50] sm:$0xff]
  %v1501 = vld [vmem:[%s4 + $0x58] sm:$0xff]
  %v1502 = vld [vmem:[%s4 + $0x60] sm:$0xff]
  %v1503 = vld [vmem:[%s4 + $0x68] sm:$0xff]
  %v1504 = vld [vmem:[%s4 + $0x70] sm:$0xff]
  %v1505 = vld [vmem:[%s4 + $0x78] sm:$0xff]
  %v1506 = vld [vmem:[%s4 + $0x80] sm:$0xff]
  %v1507 = vld [vmem:[%s4 + $0x88] sm:$0xff]
  %v1508 = vld [vmem:[%s4 + $0x90] sm:$0xff]
  %v1509 = vld [vmem:[%s4 + $0x98] sm:$0xff]
  %v1510 = vld [vmem:[%s4 + $0xa0] sm:$0xff]
  %v1511 = vld [vmem:[%s4 + $0xa8] sm:$0xff]
  %v1512 = vld [vmem:[%s4 + $0xb0] sm:$0xff]
  %v1513 = vld [vmem:[%s4 + $0xb8] sm:$0xff]
  %v1514 = vld [vmem:[%s4 + $0xc0] sm:$0xff]
  %v1515 = vld [vmem:[%s4 + $0xc8] sm:$0xff]
  %v1516 = vld [vmem:[%s4 + $0xd0] sm:$0xff]
  %v1517 = vld [vmem:[%s4 + $0xd8] sm:$0xff]
  %v1518 = vld [vmem:[%s4 + $0xe0] sm:$0xff]
  %v1519 = vld [vmem:[%s4 + $0xe8] sm:$0xff]
  %v1520 = vld [vmem:[%s4 + $0xf0] sm:$0xff]
  %v1521 = vld [vmem:[%s4 + $0xf8] sm:$0xff]
  %v1554 = vunpack.c.l.b16 %v1490
  %v1555 = vunpack.c.h.b16 %v1490
  %v1556 = vunpack.c.l.b16 %v1491
  %v1557 = vunpack.c.h.b16 %v1491
  %v1558 = vunpack.c.l.b16 %v1492
  %v1559 = vunpack.c.h.b16 %v1492
  %v1560 = vunpack.c.l.b16 %v1493
  %v1561 = vunpack.c.h.b16 %v1493
  %v1562 = vunpack.c.l.b16 %v1494
  %v1563 = vunpack.c.h.b16 %v1494
  %v1564 = vunpack.c.l.b16 %v1495
  %v1565 = vunpack.c.h.b16 %v1495
  %v1566 = vunpack.c.l.b16 %v1496
  %v1567 = vunpack.c.h.b16 %v1496
  %v1568 = vunpack.c.l.b16 %v1497
  %v1569 = vunpack.c.h.b16 %v1497
  %v1570 = vunpack.c.l.b16 %v1498
  %v1571 = vunpack.c.h.b16 %v1498
  %v1572 = vunpack.c.l.b16 %v1499
  %v1573 = vunpack.c.h.b16 %v1499
  %v1574 = vunpack.c.l.b16 %v1500
  %v1575 = vunpack.c.h.b16 %v1500
  %v1576 = vunpack.c.l.b16 %v1501
  %v1577 = vunpack.c.h.b16 %v1501
  %v1578 = vunpack.c.l.b16 %v1502
  %v1579 = vunpack.c.h.b16 %v1502
  %v1580 = vunpack.c.l.b16 %v1503
  %v1581 = vunpack.c.h.b16 %v1503
  %v1582 = vunpack.c.l.b16 %v1504
  %v1583 = vunpack.c.h.b16 %v1504
  %v1584 = vunpack.c.l.b16 %v1505
  %v1585 = vunpack.c.h.b16 %v1505
  %v1586 = vunpack.c.l.b16 %v1506
  %v1587 = vunpack.c.h.b16 %v1506
  %v1588 = vunpack.c.l.b16 %v1507
  %v1589 = vunpack.c.h.b16 %v1507
  %v1590 = vunpack.c.l.b16 %v1508
  %v1591 = vunpack.c.h.b16 %v1508
  %v1592 = vunpack.c.l.b16 %v1509
  %v1593 = vunpack.c.h.b16 %v1509
  %v1594 = vunpack.c.l.b16 %v1510
  %v1595 = vunpack.c.h.b16 %v1510
  %v1596 = vunpack.c.l.b16 %v1511
  %v1597 = vunpack.c.h.b16 %v1511
  %v1598 = vunpack.c.l.b16 %v1512
  %v1599 = vunpack.c.h.b16 %v1512
  %v1600 = vunpack.c.l.b16 %v1513
  %v1601 = vunpack.c.h.b16 %v1513
  %v1602 = vunpack.c.l.b16 %v1514
  %v1603 = vunpack.c.h.b16 %v1514
  %v1604 = vunpack.c.l.b16 %v1515
  %v1605 = vunpack.c.h.b16 %v1515
  %v1606 = vunpack.c.l.b16 %v1516
  %v1607 = vunpack.c.h.b16 %v1516
  %v1608 = vunpack.c.l.b16 %v1517
  %v1609 = vunpack.c.h.b16 %v1517
  %v1610 = vunpack.c.l.b16 %v1518
  %v1611 = vunpack.c.h.b16 %v1518
  %v1612 = vunpack.c.l.b16 %v1519
  %v1613 = vunpack.c.h.b16 %v1519
  %v1614 = vunpack.c.l.b16 %v1520
  %v1615 = vunpack.c.h.b16 %v1520
  %v1616 = vunpack.c.l.b16 %v1521
  %v1617 = vunpack.c.h.b16 %v1521
  %v1618 = vpack.c.b16 %v1558, %v1554
  %v1619 = vpack.c.b16 %v1559, %v1555
  %v1620 = vpack.c.b16 %v1560, %v1556
  %v1621 = vpack.c.b16 %v1561, %v1557
  %v1622 = vpack.c.b16 %v1566, %v1562
  %v1623 = vpack.c.b16 %v1567, %v1563
  %v1624 = vpack.c.b16 %v1568, %v1564
  %v1625 = vpack.c.b16 %v1569, %v1565
  %v1626 = vpack.c.b16 %v1574, %v1570
  %v1627 = vpack.c.b16 %v1575, %v1571
  %v1628 = vpack.c.b16 %v1576, %v1572
  %v1629 = vpack.c.b16 %v1577, %v1573
  %v1630 = vpack.c.b16 %v1582, %v1578
  %v1631 = vpack.c.b16 %v1583, %v1579
  %v1632 = vpack.c.b16 %v1584, %v1580
  %v1633 = vpack.c.b16 %v1585, %v1581
  %v1634 = vpack.c.b16 %v1590, %v1586
  %v1635 = vpack.c.b16 %v1591, %v1587
  %v1636 = vpack.c.b16 %v1592, %v1588
  %v1637 = vpack.c.b16 %v1593, %v1589
  %v1638 = vpack.c.b16 %v1598, %v1594
  %v1639 = vpack.c.b16 %v1599, %v1595
  %v1640 = vpack.c.b16 %v1600, %v1596
  %v1641 = vpack.c.b16 %v1601, %v1597
  %v1642 = vpack.c.b16 %v1606, %v1602
  %v1643 = vpack.c.b16 %v1607, %v1603
  %v1644 = vpack.c.b16 %v1608, %v1604
  %v1645 = vpack.c.b16 %v1609, %v1605
  %v1646 = vpack.c.b16 %v1614, %v1610
  %v1647 = vpack.c.b16 %v1615, %v1611
  %v1648 = vpack.c.b16 %v1616, %v1612
  %v1649 = vpack.c.b16 %v1617, %v1613
  %1682 = vmatprep.subr.bf16.mxu0 %v1619
  %1683 = vmatpush1.bf16.msra.mxu0 %v1618
  %1684 = vmatprep.subr.bf16.mxu0 %v1623
  %1685 = vmatpush1.bf16.msra.mxu0 %v1622
  %1686 = vmatprep.subr.bf16.mxu0 %v1627
  %1687 = vmatpush1.bf16.msra.mxu0 %v1626
  %1688 = vmatprep.subr.bf16.mxu0 %v1631
  %1689 = vmatpush1.bf16.msra.mxu0 %v1630
  %1690 = vmatprep.subr.bf16.mxu0 %v1635
  %1691 = vmatpush1.bf16.msra.mxu0 %v1634
  %1692 = vmatprep.subr.bf16.mxu0 %v1639
  %1693 = vmatpush1.bf16.msra.mxu0 %v1638
  %1694 = vmatprep.subr.bf16.mxu0 %v1643
  %1695 = vmatpush1.bf16.msra.mxu0 %v1642
  %1696 = vmatprep.subr.bf16.mxu0 %v1647
  %1697 = vmatpush1.bf16.msra.mxu0 %v1646
  %1698 = vmatprep.subr.bf16.mxu0 0
  %1699 = vmatpush1.bf16.msra.mxu0 0
  %1700 = vmatprep.subr.bf16.mxu0 0
  %1701 = vmatpush1.bf16.msra.mxu0 0
  %1702 = vmatprep.subr.bf16.mxu0 0
  %1703 = vmatpush1.bf16.msra.mxu0 0
  %1704 = vmatprep.subr.bf16.mxu0 0
  %1705 = vmatpush1.bf16.msra.mxu0 0
  %1706 = vmatprep.subr.bf16.mxu0 0
  %1707 = vmatpush1.bf16.msra.mxu0 0
  %1708 = vmatprep.subr.bf16.mxu0 0
  %1709 = vmatpush1.bf16.msra.mxu0 0
  %1710 = vmatprep.subr.bf16.mxu0 0
  %1711 = vmatpush1.bf16.msra.mxu0 0
  %1712 = vmatprep.subr.bf16.mxu0 0
  %1713 = vmatpush1.bf16.msra.mxu0 0
  %1714 = vmatprep.mubr.bf16.mxu0 0
  %1715 = vmatmul.mubr.bf16.gmra.mrb[0].mxu0 %v1468
  %v1716 = vpop.f32.mrb[0].mxu0
  %v1717 = vadd.f32 0.0, %v1716
  %v1718 = vpop.f32.mrb[0].mxu0
  %v1719 = vadd.f32 0.0, %v1718
  %v1720 = vpop.f32.mrb[0].mxu0
  %v1721 = vadd.f32 0.0, %v1720
  %v1722 = vpop.f32.mrb[0].mxu0
  %v1723 = vadd.f32 0.0, %v1722
  %1724 = vdwg.mxu0
  %1725 = vmatprep.subr.bf16.mxu0 %v1621
  %1726 = vmatpush1.bf16.msra.mxu0 %v1620
  %1727 = vmatprep.subr.bf16.mxu0 %v1625
  %1728 = vmatpush1.bf16.msra.mxu0 %v1624
  %1729 = vmatprep.subr.bf16.mxu0 %v1629
  %1730 = vmatpush1.bf16.msra.mxu0 %v1628
  %1731 = vmatprep.subr.bf16.mxu0 %v1633
  %1732 = vmatpush1.bf16.msra.mxu0 %v1632
  %1733 = vmatprep.subr.bf16.mxu0 %v1637
  %1734 = vmatpush1.bf16.msra.mxu0 %v1636
  %1735 = vmatprep.subr.bf16.mxu0 %v1641
  %1736 = vmatpush1.bf16.msra.mxu0 %v1640
  %1737 = vmatprep.subr.bf16.mxu0 %v1645
  %1738 = vmatpush1.bf16.msra.mxu0 %v1644
  %1739 = vmatprep.subr.bf16.mxu0 %v1649
  %1740 = vmatpush1.bf16.msra.mxu0 %v1648
  %1741 = vmatprep.subr.bf16.mxu0 0
  %1742 = vmatpush1.bf16.msra.mxu0 0
  %1743 = vmatprep.subr.bf16.mxu0 0
  %1744 = vmatpush1.bf16.msra.mxu0 0
  %1745 = vmatprep.subr.bf16.mxu0 0
  %1746 = vmatpush1.bf16.msra.mxu0 0
  %1747 = vmatprep.subr.bf16.mxu0 0
  %1748 = vmatpush1.bf16.msra.mxu0 0
  %1749 = vmatprep.subr.bf16.mxu0 0
  %1750 = vmatpush1.bf16.msra.mxu0 0
  %1751 = vmatprep.subr.bf16.mxu0 0
  %1752 = vmatpush1.bf16.msra.mxu0 0
  %1753 = vmatprep.subr.bf16.mxu0 0
  %1754 = vmatpush1.bf16.msra.mxu0 0
  %1755 = vmatprep.subr.bf16.mxu0 0
  %1756 = vmatpush1.bf16.msra.mxu0 0
  %1757 = vmatprep.mubr.bf16.mxu0 0
  %1758 = vmatmul.mubr.bf16.gmra.mrb[0].mxu0 %v1468
  %v1759 = vpop.f32.mrb[0].mxu0
  %v1760 = vadd.f32 0.0, %v1759
  %v1761 = vpop.f32.mrb[0].mxu0
  %v1762 = vadd.f32 0.0, %v1761
  %v1763 = vpop.f32.mrb[0].mxu0
  %v1764 = vadd.f32 0.0, %v1763
  %v1765 = vpop.f32.mrb[0].mxu0
  %v1766 = vadd.f32 0.0, %v1765
  %1767 = vdwg.mxu0
  %v1768 = vadd.f32 %v1482, %v1717
  %v1769 = vadd.f32 %v1483, %v1719
  %v1770 = vadd.f32 %v1484, %v1760
  %v1771 = vadd.f32 %v1485, %v1762
  %v1772 = vadd.f32 %v1486, %v1721
  %v1773 = vadd.f32 %v1487, %v1723
  %v1774 = vadd.f32 %v1488, %v1764
  %v1775 = vadd.f32 %v1489, %v1766
  %v1776 = vsub.f32 0.0, %v1768
  %v1777 = vsub.f32 0.0, %v1769
  %v1778 = vsub.f32 0.0, %v1770
  %v1779 = vsub.f32 0.0, %v1772
  %v1780 = vsub.f32 0.0, %v1773
  %v1781 = vsub.f32 0.0, %v1774
  %v1782 = vmul.f32 %v1776, 1.442695
  %v1783 = vpow.pop %v1782
  %v1784 = vmul.f32 %v1777, 1.442695
  %v1785 = vpow.pop %v1784
  %v1786 = vmul.f32 %v1778, 1.442695
  %v1787 = vpow.pop %v1786
  %v1788 = vmul.f32 %v1779, 1.442695
  %v1789 = vpow.pop %v1788
  %v1790 = vmul.f32 %v1780, 1.442695
  %v1791 = vpow.pop %v1790
  %v1792 = vmul.f32 %v1781, 1.442695
  %v1793 = vpow.pop %v1792
  %v1794 = vadd.f32 %v1783, 1.0
  %v1795 = vadd.f32 %v1785, 1.0
  %v1796 = vadd.f32 %v1787, 1.0
  %v1797 = vadd.f32 %v1789, 1.0
  %v1798 = vadd.f32 %v1791, 1.0
  %v1799 = vadd.f32 %v1793, 1.0
  %v1800 = vrcp.pop %v1794
  %v1801 = vrcp.pop %v1795
  %v1802 = vrcp.pop %v1796
  %v1803 = vrcp.pop %v1797
  %v1804 = vrcp.pop %v1798
  %v1805 = vrcp.pop %v1799
  %v1806 = vtanh.pop %v1771
  %v1807 = vtanh.pop %v1775
  %v1808 = vmul.f32 %v1801, %v1462
  %v1809 = vmul.f32 %v1804, %v1463
  %v1810 = vmul.f32 %v1800, %v1806
  %v1811 = vmul.f32 %v1803, %v1807
  %v1812 = vadd.f32 %v1808, %v1810
  %v1813 = vadd.f32 %v1809, %v1811
  %v1814 = vtanh.pop %v1812
  %v1815 = vtanh.pop %v1813
  %v1816 = vmul.f32 %v1802, %v1814
  %v1817 = vmul.f32 %v1805, %v1815
  %v1818 = vpack.c.bf16 %v1817, %v1816
  %v1820 = vunpack.c.l.b16 %v1818
  %v1821 = vunpack.c.h.b16 %v1818
  %v1822 = vpack.c.b16 %v1820, %v1820
  %v1823 = vpack.c.b16 %v1821, %v1821
  %s1826 = scalar_lea.vmem %s6, 24
  %1827 = vst [vmem:[%s1826] sm:$0xf] %v1822
  %1828 = vst [vmem:[%s1826 + $0x4] sm:$0xf] %v1823
  %s1829 = smul.u32 8, 4
  %s1830 = smul.addr %s1829, 8
  %s1831 = scalar_lea.vmem [#allocation2], %s1830
  %v1832 = vld [vmem:[%s1831] sm:$0xff]
  %v1833 = vld [vmem:[%s1831 + $0x8] sm:$0xff]
  %v1834 = vld [vmem:[%s1831 + $0x10] sm:$0xff]
  %v1835 = vld [vmem:[%s1831 + $0x18] sm:$0xff]
  %v1836 = vld [vmem:[%s1831 + $0x20] sm:$0xff]
  %v1837 = vld [vmem:[%s1831 + $0x28] sm:$0xff]
  %v1838 = vld [vmem:[%s1831 + $0x30] sm:$0xff]
  %v1839 = vld [vmem:[%s1831 + $0x38] sm:$0xff]
  %v1840 = vld [vmem:[%s4] sm:$0xff]
  %v1841 = vld [vmem:[%s4 + $0x8] sm:$0xff]
  %v1842 = vld [vmem:[%s4 + $0x10] sm:$0xff]
  %v1843 = vld [vmem:[%s4 + $0x18] sm:$0xff]
  %v1844 = vld [vmem:[%s4 + $0x20] sm:$0xff]
  %v1845 = vld [vmem:[%s4 + $0x28] sm:$0xff]
  %v1846 = vld [vmem:[%s4 + $0x30] sm:$0xff]
  %v1847 = vld [vmem:[%s4 + $0x38] sm:$0xff]
  %v1848 = vld [vmem:[%s4 + $0x40] sm:$0xff]
  %v1849 = vld [vmem:[%s4 + $0x48] sm:$0xff]
  %v1850 = vld [vmem:[%s4 + $0x50] sm:$0xff]
  %v1851 = vld [vmem:[%s4 + $0x58] sm:$0xff]
  %v1852 = vld [vmem:[%s4 + $0x60] sm:$0xff]
  %v1853 = vld [vmem:[%s4 + $0x68] sm:$0xff]
  %v1854 = vld [vmem:[%s4 + $0x70] sm:$0xff]
  %v1855 = vld [vmem:[%s4 + $0x78] sm:$0xff]
  %v1856 = vld [vmem:[%s4 + $0x80] sm:$0xff]
  %v1857 = vld [vmem:[%s4 + $0x88] sm:$0xff]
  %v1858 = vld [vmem:[%s4 + $0x90] sm:$0xff]
  %v1859 = vld [vmem:[%s4 + $0x98] sm:$0xff]
  %v1860 = vld [vmem:[%s4 + $0xa0] sm:$0xff]
  %v1861 = vld [vmem:[%s4 + $0xa8] sm:$0xff]
  %v1862 = vld [vmem:[%s4 + $0xb0] sm:$0xff]
  %v1863 = vld [vmem:[%s4 + $0xb8] sm:$0xff]
  %v1864 = vld [vmem:[%s4 + $0xc0] sm:$0xff]
  %v1865 = vld [vmem:[%s4 + $0xc8] sm:$0xff]
  %v1866 = vld [vmem:[%s4 + $0xd0] sm:$0xff]
  %v1867 = vld [vmem:[%s4 + $0xd8] sm:$0xff]
  %v1868 = vld [vmem:[%s4 + $0xe0] sm:$0xff]
  %v1869 = vld [vmem:[%s4 + $0xe8] sm:$0xff]
  %v1870 = vld [vmem:[%s4 + $0xf0] sm:$0xff]
  %v1871 = vld [vmem:[%s4 + $0xf8] sm:$0xff]
  %v1904 = vunpack.c.l.b16 %v1840
  %v1905 = vunpack.c.h.b16 %v1840
  %v1906 = vunpack.c.l.b16 %v1841
  %v1907 = vunpack.c.h.b16 %v1841
  %v1908 = vunpack.c.l.b16 %v1842
  %v1909 = vunpack.c.h.b16 %v1842
  %v1910 = vunpack.c.l.b16 %v1843
  %v1911 = vunpack.c.h.b16 %v1843
  %v1912 = vunpack.c.l.b16 %v1844
  %v1913 = vunpack.c.h.b16 %v1844
  %v1914 = vunpack.c.l.b16 %v1845
  %v1915 = vunpack.c.h.b16 %v1845
  %v1916 = vunpack.c.l.b16 %v1846
  %v1917 = vunpack.c.h.b16 %v1846
  %v1918 = vunpack.c.l.b16 %v1847
  %v1919 = vunpack.c.h.b16 %v1847
  %v1920 = vunpack.c.l.b16 %v1848
  %v1921 = vunpack.c.h.b16 %v1848
  %v1922 = vunpack.c.l.b16 %v1849
  %v1923 = vunpack.c.h.b16 %v1849
  %v1924 = vunpack.c.l.b16 %v1850
  %v1925 = vunpack.c.h.b16 %v1850
  %v1926 = vunpack.c.l.b16 %v1851
  %v1927 = vunpack.c.h.b16 %v1851
  %v1928 = vunpack.c.l.b16 %v1852
  %v1929 = vunpack.c.h.b16 %v1852
  %v1930 = vunpack.c.l.b16 %v1853
  %v1931 = vunpack.c.h.b16 %v1853
  %v1932 = vunpack.c.l.b16 %v1854
  %v1933 = vunpack.c.h.b16 %v1854
  %v1934 = vunpack.c.l.b16 %v1855
  %v1935 = vunpack.c.h.b16 %v1855
  %v1936 = vunpack.c.l.b16 %v1856
  %v1937 = vunpack.c.h.b16 %v1856
  %v1938 = vunpack.c.l.b16 %v1857
  %v1939 = vunpack.c.h.b16 %v1857
  %v1940 = vunpack.c.l.b16 %v1858
  %v1941 = vunpack.c.h.b16 %v1858
  %v1942 = vunpack.c.l.b16 %v1859
  %v1943 = vunpack.c.h.b16 %v1859
  %v1944 = vunpack.c.l.b16 %v1860
  %v1945 = vunpack.c.h.b16 %v1860
  %v1946 = vunpack.c.l.b16 %v1861
  %v1947 = vunpack.c.h.b16 %v1861
  %v1948 = vunpack.c.l.b16 %v1862
  %v1949 = vunpack.c.h.b16 %v1862
  %v1950 = vunpack.c.l.b16 %v1863
  %v1951 = vunpack.c.h.b16 %v1863
  %v1952 = vunpack.c.l.b16 %v1864
  %v1953 = vunpack.c.h.b16 %v1864
  %v1954 = vunpack.c.l.b16 %v1865
  %v1955 = vunpack.c.h.b16 %v1865
  %v1956 = vunpack.c.l.b16 %v1866
  %v1957 = vunpack.c.h.b16 %v1866
  %v1958 = vunpack.c.l.b16 %v1867
  %v1959 = vunpack.c.h.b16 %v1867
  %v1960 = vunpack.c.l.b16 %v1868
  %v1961 = vunpack.c.h.b16 %v1868
  %v1962 = vunpack.c.l.b16 %v1869
  %v1963 = vunpack.c.h.b16 %v1869
  %v1964 = vunpack.c.l.b16 %v1870
  %v1965 = vunpack.c.h.b16 %v1870
  %v1966 = vunpack.c.l.b16 %v1871
  %v1967 = vunpack.c.h.b16 %v1871
  %v1968 = vpack.c.b16 %v1908, %v1904
  %v1969 = vpack.c.b16 %v1909, %v1905
  %v1970 = vpack.c.b16 %v1910, %v1906
  %v1971 = vpack.c.b16 %v1911, %v1907
  %v1972 = vpack.c.b16 %v1916, %v1912
  %v1973 = vpack.c.b16 %v1917, %v1913
  %v1974 = vpack.c.b16 %v1918, %v1914
  %v1975 = vpack.c.b16 %v1919, %v1915
  %v1976 = vpack.c.b16 %v1924, %v1920
  %v1977 = vpack.c.b16 %v1925, %v1921
  %v1978 = vpack.c.b16 %v1926, %v1922
  %v1979 = vpack.c.b16 %v1927, %v1923
  %v1980 = vpack.c.b16 %v1932, %v1928
  %v1981 = vpack.c.b16 %v1933, %v1929
  %v1982 = vpack.c.b16 %v1934, %v1930
  %v1983 = vpack.c.b16 %v1935, %v1931
  %v1984 = vpack.c.b16 %v1940, %v1936
  %v1985 = vpack.c.b16 %v1941, %v1937
  %v1986 = vpack.c.b16 %v1942, %v1938
  %v1987 = vpack.c.b16 %v1943, %v1939
  %v1988 = vpack.c.b16 %v1948, %v1944
  %v1989 = vpack.c.b16 %v1949, %v1945
  %v1990 = vpack.c.b16 %v1950, %v1946
  %v1991 = vpack.c.b16 %v1951, %v1947
  %v1992 = vpack.c.b16 %v1956, %v1952
  %v1993 = vpack.c.b16 %v1957, %v1953
  %v1994 = vpack.c.b16 %v1958, %v1954
  %v1995 = vpack.c.b16 %v1959, %v1955
  %v1996 = vpack.c.b16 %v1964, %v1960
  %v1997 = vpack.c.b16 %v1965, %v1961
  %v1998 = vpack.c.b16 %v1966, %v1962
  %v1999 = vpack.c.b16 %v1967, %v1963
  %2032 = vmatprep.subr.bf16.mxu0 %v1969
  %2033 = vmatpush1.bf16.msra.mxu0 %v1968
  %2034 = vmatprep.subr.bf16.mxu0 %v1973
  %2035 = vmatpush1.bf16.msra.mxu0 %v1972
  %2036 = vmatprep.subr.bf16.mxu0 %v1977
  %2037 = vmatpush1.bf16.msra.mxu0 %v1976
  %2038 = vmatprep.subr.bf16.mxu0 %v1981
  %2039 = vmatpush1.bf16.msra.mxu0 %v1980
  %2040 = vmatprep.subr.bf16.mxu0 %v1985
  %2041 = vmatpush1.bf16.msra.mxu0 %v1984
  %2042 = vmatprep.subr.bf16.mxu0 %v1989
  %2043 = vmatpush1.bf16.msra.mxu0 %v1988
  %2044 = vmatprep.subr.bf16.mxu0 %v1993
  %2045 = vmatpush1.bf16.msra.mxu0 %v1992
  %2046 = vmatprep.subr.bf16.mxu0 %v1997
  %2047 = vmatpush1.bf16.msra.mxu0 %v1996
  %2048 = vmatprep.subr.bf16.mxu0 0
  %2049 = vmatpush1.bf16.msra.mxu0 0
  %2050 = vmatprep.subr.bf16.mxu0 0
  %2051 = vmatpush1.bf16.msra.mxu0 0
  %2052 = vmatprep.subr.bf16.mxu0 0
  %2053 = vmatpush1.bf16.msra.mxu0 0
  %2054 = vmatprep.subr.bf16.mxu0 0
  %2055 = vmatpush1.bf16.msra.mxu0 0
  %2056 = vmatprep.subr.bf16.mxu0 0
  %2057 = vmatpush1.bf16.msra.mxu0 0
  %2058 = vmatprep.subr.bf16.mxu0 0
  %2059 = vmatpush1.bf16.msra.mxu0 0
  %2060 = vmatprep.subr.bf16.mxu0 0
  %2061 = vmatpush1.bf16.msra.mxu0 0
  %2062 = vmatprep.subr.bf16.mxu0 0
  %2063 = vmatpush1.bf16.msra.mxu0 0
  %2064 = vmatprep.mubr.bf16.mxu0 0
  %2065 = vmatmul.mubr.bf16.gmra.mrb[0].mxu0 %v1818
  %v2066 = vpop.f32.mrb[0].mxu0
  %v2067 = vadd.f32 0.0, %v2066
  %v2068 = vpop.f32.mrb[0].mxu0
  %v2069 = vadd.f32 0.0, %v2068
  %v2070 = vpop.f32.mrb[0].mxu0
  %v2071 = vadd.f32 0.0, %v2070
  %v2072 = vpop.f32.mrb[0].mxu0
  %v2073 = vadd.f32 0.0, %v2072
  %2074 = vdwg.mxu0
  %2075 = vmatprep.subr.bf16.mxu0 %v1971
  %2076 = vmatpush1.bf16.msra.mxu0 %v1970
  %2077 = vmatprep.subr.bf16.mxu0 %v1975
  %2078 = vmatpush1.bf16.msra.mxu0 %v1974
  %2079 = vmatprep.subr.bf16.mxu0 %v1979
  %2080 = vmatpush1.bf16.msra.mxu0 %v1978
  %2081 = vmatprep.subr.bf16.mxu0 %v1983
  %2082 = vmatpush1.bf16.msra.mxu0 %v1982
  %2083 = vmatprep.subr.bf16.mxu0 %v1987
  %2084 = vmatpush1.bf16.msra.mxu0 %v1986
  %2085 = vmatprep.subr.bf16.mxu0 %v1991
  %2086 = vmatpush1.bf16.msra.mxu0 %v1990
  %2087 = vmatprep.subr.bf16.mxu0 %v1995
  %2088 = vmatpush1.bf16.msra.mxu0 %v1994
  %2089 = vmatprep.subr.bf16.mxu0 %v1999
  %2090 = vmatpush1.bf16.msra.mxu0 %v1998
  %2091 = vmatprep.subr.bf16.mxu0 0
  %2092 = vmatpush1.bf16.msra.mxu0 0
  %2093 = vmatprep.subr.bf16.mxu0 0
  %2094 = vmatpush1.bf16.msra.mxu0 0
  %2095 = vmatprep.subr.bf16.mxu0 0
  %2096 = vmatpush1.bf16.msra.mxu0 0
  %2097 = vmatprep.subr.bf16.mxu0 0
  %2098 = vmatpush1.bf16.msra.mxu0 0
  %2099 = vmatprep.subr.bf16.mxu0 0
  %2100 = vmatpush1.bf16.msra.mxu0 0
  %2101 = vmatprep.subr.bf16.mxu0 0
  %2102 = vmatpush1.bf16.msra.mxu0 0
  %2103 = vmatprep.subr.bf16.mxu0 0
  %2104 = vmatpush1.bf16.msra.mxu0 0
  %2105 = vmatprep.subr.bf16.mxu0 0
  %2106 = vmatpush1.bf16.msra.mxu0 0
  %2107 = vmatprep.mubr.bf16.mxu0 0
  %2108 = vmatmul.mubr.bf16.gmra.mrb[0].mxu0 %v1818
  %v2109 = vpop.f32.mrb[0].mxu0
  %v2110 = vadd.f32 0.0, %v2109
  %v2111 = vpop.f32.mrb[0].mxu0
  %v2112 = vadd.f32 0.0, %v2111
  %v2113 = vpop.f32.mrb[0].mxu0
  %v2114 = vadd.f32 0.0, %v2113
  %v2115 = vpop.f32.mrb[0].mxu0
  %v2116 = vadd.f32 0.0, %v2115
  %2117 = vdwg.mxu0
  %v2118 = vadd.f32 %v1832, %v2067
  %v2119 = vadd.f32 %v1833, %v2069
  %v2120 = vadd.f32 %v1834, %v2110
  %v2121 = vadd.f32 %v1835, %v2112
  %v2122 = vadd.f32 %v1836, %v2071
  %v2123 = vadd.f32 %v1837, %v2073
  %v2124 = vadd.f32 %v1838, %v2114
  %v2125 = vadd.f32 %v1839, %v2116
  %v2126 = vsub.f32 0.0, %v2118
  %v2127 = vsub.f32 0.0, %v2119
  %v2128 = vsub.f32 0.0, %v2120
  %v2129 = vsub.f32 0.0, %v2122
  %v2130 = vsub.f32 0.0, %v2123
  %v2131 = vsub.f32 0.0, %v2124
  %v2132 = vmul.f32 %v2126, 1.442695
  %v2133 = vpow.pop %v2132
  %v2134 = vmul.f32 %v2127, 1.442695
  %v2135 = vpow.pop %v2134
  %v2136 = vmul.f32 %v2128, 1.442695
  %v2137 = vpow.pop %v2136
  %v2138 = vmul.f32 %v2129, 1.442695
  %v2139 = vpow.pop %v2138
  %v2140 = vmul.f32 %v2130, 1.442695
  %v2141 = vpow.pop %v2140
  %v2142 = vmul.f32 %v2131, 1.442695
  %v2143 = vpow.pop %v2142
  %v2144 = vadd.f32 %v2133, 1.0
  %v2145 = vadd.f32 %v2135, 1.0
  %v2146 = vadd.f32 %v2137, 1.0
  %v2147 = vadd.f32 %v2139, 1.0
  %v2148 = vadd.f32 %v2141, 1.0
  %v2149 = vadd.f32 %v2143, 1.0
  %v2150 = vrcp.pop %v2144
  %v2151 = vrcp.pop %v2145
  %v2152 = vrcp.pop %v2146
  %v2153 = vrcp.pop %v2147
  %v2154 = vrcp.pop %v2148
  %v2155 = vrcp.pop %v2149
  %v2156 = vtanh.pop %v2121
  %v2157 = vtanh.pop %v2125
  %v2158 = vmul.f32 %v2151, %v1812
  %v2159 = vmul.f32 %v2154, %v1813
  %v2160 = vmul.f32 %v2150, %v2156
  %v2161 = vmul.f32 %v2153, %v2157
  %v2162 = vadd.f32 %v2158, %v2160
  %v2163 = vadd.f32 %v2159, %v2161
  %v2164 = vtanh.pop %v2162
  %v2165 = vtanh.pop %v2163
  %v2166 = vmul.f32 %v2152, %v2164
  %v2167 = vmul.f32 %v2155, %v2165
  %v2168 = vpack.c.bf16 %v2167, %v2166
  %v2170 = vunpack.c.l.b16 %v2168
  %v2171 = vunpack.c.h.b16 %v2168
  %v2172 = vpack.c.b16 %v2170, %v2170
  %v2173 = vpack.c.b16 %v2171, %v2171
  %s2176 = scalar_lea.vmem %s6, 32
  %2177 = vst [vmem:[%s2176] sm:$0xf] %v2172
  %2178 = vst [vmem:[%s2176 + $0x4] sm:$0xf] %v2173
  %s2179 = smul.u32 10, 4
  %s2180 = smul.addr %s2179, 8
  %s2181 = scalar_lea.vmem [#allocation2], %s2180
  %v2182 = vld [vmem:[%s2181] sm:$0xff]
  %v2183 = vld [vmem:[%s2181 + $0x8] sm:$0xff]
  %v2184 = vld [vmem:[%s2181 + $0x10] sm:$0xff]
  %v2185 = vld [vmem:[%s2181 + $0x18] sm:$0xff]
  %v2186 = vld [vmem:[%s2181 + $0x20] sm:$0xff]
  %v2187 = vld [vmem:[%s2181 + $0x28] sm:$0xff]
  %v2188 = vld [vmem:[%s2181 + $0x30] sm:$0xff]
  %v2189 = vld [vmem:[%s2181 + $0x38] sm:$0xff]
  %v2190 = vld [vmem:[%s4] sm:$0xff]
  %v2191 = vld [vmem:[%s4 + $0x8] sm:$0xff]
  %v2192 = vld [vmem:[%s4 + $0x10] sm:$0xff]
  %v2193 = vld [vmem:[%s4 + $0x18] sm:$0xff]
  %v2194 = vld [vmem:[%s4 + $0x20] sm:$0xff]
  %v2195 = vld [vmem:[%s4 + $0x28] sm:$0xff]
  %v2196 = vld [vmem:[%s4 + $0x30] sm:$0xff]
  %v2197 = vld [vmem:[%s4 + $0x38] sm:$0xff]
  %v2198 = vld [vmem:[%s4 + $0x40] sm:$0xff]
  %v2199 = vld [vmem:[%s4 + $0x48] sm:$0xff]
  %v2200 = vld [vmem:[%s4 + $0x50] sm:$0xff]
  %v2201 = vld [vmem:[%s4 + $0x58] sm:$0xff]
  %v2202 = vld [vmem:[%s4 + $0x60] sm:$0xff]
  %v2203 = vld [vmem:[%s4 + $0x68] sm:$0xff]
  %v2204 = vld [vmem:[%s4 + $0x70] sm:$0xff]
  %v2205 = vld [vmem:[%s4 + $0x78] sm:$0xff]
  %v2206 = vld [vmem:[%s4 + $0x80] sm:$0xff]
  %v2207 = vld [vmem:[%s4 + $0x88] sm:$0xff]
  %v2208 = vld [vmem:[%s4 + $0x90] sm:$0xff]
  %v2209 = vld [vmem:[%s4 + $0x98] sm:$0xff]
  %v2210 = vld [vmem:[%s4 + $0xa0] sm:$0xff]
  %v2211 = vld [vmem:[%s4 + $0xa8] sm:$0xff]
  %v2212 = vld [vmem:[%s4 + $0xb0] sm:$0xff]
  %v2213 = vld [vmem:[%s4 + $0xb8] sm:$0xff]
  %v2214 = vld [vmem:[%s4 + $0xc0] sm:$0xff]
  %v2215 = vld [vmem:[%s4 + $0xc8] sm:$0xff]
  %v2216 = vld [vmem:[%s4 + $0xd0] sm:$0xff]
  %v2217 = vld [vmem:[%s4 + $0xd8] sm:$0xff]
  %v2218 = vld [vmem:[%s4 + $0xe0] sm:$0xff]
  %v2219 = vld [vmem:[%s4 + $0xe8] sm:$0xff]
  %v2220 = vld [vmem:[%s4 + $0xf0] sm:$0xff]
  %v2221 = vld [vmem:[%s4 + $0xf8] sm:$0xff]
  %v2254 = vunpack.c.l.b16 %v2190
  %v2255 = vunpack.c.h.b16 %v2190
  %v2256 = vunpack.c.l.b16 %v2191
  %v2257 = vunpack.c.h.b16 %v2191
  %v2258 = vunpack.c.l.b16 %v2192
  %v2259 = vunpack.c.h.b16 %v2192
  %v2260 = vunpack.c.l.b16 %v2193
  %v2261 = vunpack.c.h.b16 %v2193
  %v2262 = vunpack.c.l.b16 %v2194
  %v2263 = vunpack.c.h.b16 %v2194
  %v2264 = vunpack.c.l.b16 %v2195
  %v2265 = vunpack.c.h.b16 %v2195
  %v2266 = vunpack.c.l.b16 %v2196
  %v2267 = vunpack.c.h.b16 %v2196
  %v2268 = vunpack.c.l.b16 %v2197
  %v2269 = vunpack.c.h.b16 %v2197
  %v2270 = vunpack.c.l.b16 %v2198
  %v2271 = vunpack.c.h.b16 %v2198
  %v2272 = vunpack.c.l.b16 %v2199
  %v2273 = vunpack.c.h.b16 %v2199
  %v2274 = vunpack.c.l.b16 %v2200
  %v2275 = vunpack.c.h.b16 %v2200
  %v2276 = vunpack.c.l.b16 %v2201
  %v2277 = vunpack.c.h.b16 %v2201
  %v2278 = vunpack.c.l.b16 %v2202
  %v2279 = vunpack.c.h.b16 %v2202
  %v2280 = vunpack.c.l.b16 %v2203
  %v2281 = vunpack.c.h.b16 %v2203
  %v2282 = vunpack.c.l.b16 %v2204
  %v2283 = vunpack.c.h.b16 %v2204
  %v2284 = vunpack.c.l.b16 %v2205
  %v2285 = vunpack.c.h.b16 %v2205
  %v2286 = vunpack.c.l.b16 %v2206
  %v2287 = vunpack.c.h.b16 %v2206
  %v2288 = vunpack.c.l.b16 %v2207
  %v2289 = vunpack.c.h.b16 %v2207
  %v2290 = vunpack.c.l.b16 %v2208
  %v2291 = vunpack.c.h.b16 %v2208
  %v2292 = vunpack.c.l.b16 %v2209
  %v2293 = vunpack.c.h.b16 %v2209
  %v2294 = vunpack.c.l.b16 %v2210
  %v2295 = vunpack.c.h.b16 %v2210
  %v2296 = vunpack.c.l.b16 %v2211
  %v2297 = vunpack.c.h.b16 %v2211
  %v2298 = vunpack.c.l.b16 %v2212
  %v2299 = vunpack.c.h.b16 %v2212
  %v2300 = vunpack.c.l.b16 %v2213
  %v2301 = vunpack.c.h.b16 %v2213
  %v2302 = vunpack.c.l.b16 %v2214
  %v2303 = vunpack.c.h.b16 %v2214
  %v2304 = vunpack.c.l.b16 %v2215
  %v2305 = vunpack.c.h.b16 %v2215
  %v2306 = vunpack.c.l.b16 %v2216
  %v2307 = vunpack.c.h.b16 %v2216
  %v2308 = vunpack.c.l.b16 %v2217
  %v2309 = vunpack.c.h.b16 %v2217
  %v2310 = vunpack.c.l.b16 %v2218
  %v2311 = vunpack.c.h.b16 %v2218
  %v2312 = vunpack.c.l.b16 %v2219
  %v2313 = vunpack.c.h.b16 %v2219
  %v2314 = vunpack.c.l.b16 %v2220
  %v2315 = vunpack.c.h.b16 %v2220
  %v2316 = vunpack.c.l.b16 %v2221
  %v2317 = vunpack.c.h.b16 %v2221
  %v2318 = vpack.c.b16 %v2258, %v2254
  %v2319 = vpack.c.b16 %v2259, %v2255
  %v2320 = vpack.c.b16 %v2260, %v2256
  %v2321 = vpack.c.b16 %v2261, %v2257
  %v2322 = vpack.c.b16 %v2266, %v2262
  %v2323 = vpack.c.b16 %v2267, %v2263
  %v2324 = vpack.c.b16 %v2268, %v2264
  %v2325 = vpack.c.b16 %v2269, %v2265
  %v2326 = vpack.c.b16 %v2274, %v2270
  %v2327 = vpack.c.b16 %v2275, %v2271
  %v2328 = vpack.c.b16 %v2276, %v2272
  %v2329 = vpack.c.b16 %v2277, %v2273
  %v2330 = vpack.c.b16 %v2282, %v2278
  %v2331 = vpack.c.b16 %v2283, %v2279
  %v2332 = vpack.c.b16 %v2284, %v2280
  %v2333 = vpack.c.b16 %v2285, %v2281
  %v2334 = vpack.c.b16 %v2290, %v2286
  %v2335 = vpack.c.b16 %v2291, %v2287
  %v2336 = vpack.c.b16 %v2292, %v2288
  %v2337 = vpack.c.b16 %v2293, %v2289
  %v2338 = vpack.c.b16 %v2298, %v2294
  %v2339 = vpack.c.b16 %v2299, %v2295
  %v2340 = vpack.c.b16 %v2300, %v2296
  %v2341 = vpack.c.b16 %v2301, %v2297
  %v2342 = vpack.c.b16 %v2306, %v2302
  %v2343 = vpack.c.b16 %v2307, %v2303
  %v2344 = vpack.c.b16 %v2308, %v2304
  %v2345 = vpack.c.b16 %v2309, %v2305
  %v2346 = vpack.c.b16 %v2314, %v2310
  %v2347 = vpack.c.b16 %v2315, %v2311
  %v2348 = vpack.c.b16 %v2316, %v2312
  %v2349 = vpack.c.b16 %v2317, %v2313
  %2382 = vmatprep.subr.bf16.mxu0 %v2319
  %2383 = vmatpush1.bf16.msra.mxu0 %v2318
  %2384 = vmatprep.subr.bf16.mxu0 %v2323
  %2385 = vmatpush1.bf16.msra.mxu0 %v2322
  %2386 = vmatprep.subr.bf16.mxu0 %v2327
  %2387 = vmatpush1.bf16.msra.mxu0 %v2326
  %2388 = vmatprep.subr.bf16.mxu0 %v2331
  %2389 = vmatpush1.bf16.msra.mxu0 %v2330
  %2390 = vmatprep.subr.bf16.mxu0 %v2335
  %2391 = vmatpush1.bf16.msra.mxu0 %v2334
  %2392 = vmatprep.subr.bf16.mxu0 %v2339
  %2393 = vmatpush1.bf16.msra.mxu0 %v2338
  %2394 = vmatprep.subr.bf16.mxu0 %v2343
  %2395 = vmatpush1.bf16.msra.mxu0 %v2342
  %2396 = vmatprep.subr.bf16.mxu0 %v2347
  %2397 = vmatpush1.bf16.msra.mxu0 %v2346
  %2398 = vmatprep.subr.bf16.mxu0 0
  %2399 = vmatpush1.bf16.msra.mxu0 0
  %2400 = vmatprep.subr.bf16.mxu0 0
  %2401 = vmatpush1.bf16.msra.mxu0 0
  %2402 = vmatprep.subr.bf16.mxu0 0
  %2403 = vmatpush1.bf16.msra.mxu0 0
  %2404 = vmatprep.subr.bf16.mxu0 0
  %2405 = vmatpush1.bf16.msra.mxu0 0
  %2406 = vmatprep.subr.bf16.mxu0 0
  %2407 = vmatpush1.bf16.msra.mxu0 0
  %2408 = vmatprep.subr.bf16.mxu0 0
  %2409 = vmatpush1.bf16.msra.mxu0 0
  %2410 = vmatprep.subr.bf16.mxu0 0
  %2411 = vmatpush1.bf16.msra.mxu0 0
  %2412 = vmatprep.subr.bf16.mxu0 0
  %2413 = vmatpush1.bf16.msra.mxu0 0
  %2414 = vmatprep.mubr.bf16.mxu0 0
  %2415 = vmatmul.mubr.bf16.gmra.mrb[0].mxu0 %v2168
  %v2416 = vpop.f32.mrb[0].mxu0
  %v2417 = vadd.f32 0.0, %v2416
  %v2418 = vpop.f32.mrb[0].mxu0
  %v2419 = vadd.f32 0.0, %v2418
  %v2420 = vpop.f32.mrb[0].mxu0
  %v2421 = vadd.f32 0.0, %v2420
  %v2422 = vpop.f32.mrb[0].mxu0
  %v2423 = vadd.f32 0.0, %v2422
  %2424 = vdwg.mxu0
  %2425 = vmatprep.subr.bf16.mxu0 %v2321
  %2426 = vmatpush1.bf16.msra.mxu0 %v2320
  %2427 = vmatprep.subr.bf16.mxu0 %v2325
  %2428 = vmatpush1.bf16.msra.mxu0 %v2324
  %2429 = vmatprep.subr.bf16.mxu0 %v2329
  %2430 = vmatpush1.bf16.msra.mxu0 %v2328
  %2431 = vmatprep.subr.bf16.mxu0 %v2333
  %2432 = vmatpush1.bf16.msra.mxu0 %v2332
  %2433 = vmatprep.subr.bf16.mxu0 %v2337
  %2434 = vmatpush1.bf16.msra.mxu0 %v2336
  %2435 = vmatprep.subr.bf16.mxu0 %v2341
  %2436 = vmatpush1.bf16.msra.mxu0 %v2340
  %2437 = vmatprep.subr.bf16.mxu0 %v2345
  %2438 = vmatpush1.bf16.msra.mxu0 %v2344
  %2439 = vmatprep.subr.bf16.mxu0 %v2349
  %2440 = vmatpush1.bf16.msra.mxu0 %v2348
  %2441 = vmatprep.subr.bf16.mxu0 0
  %2442 = vmatpush1.bf16.msra.mxu0 0
  %2443 = vmatprep.subr.bf16.mxu0 0
  %2444 = vmatpush1.bf16.msra.mxu0 0
  %2445 = vmatprep.subr.bf16.mxu0 0
  %2446 = vmatpush1.bf16.msra.mxu0 0
  %2447 = vmatprep.subr.bf16.mxu0 0
  %2448 = vmatpush1.bf16.msra.mxu0 0
  %2449 = vmatprep.subr.bf16.mxu0 0
  %2450 = vmatpush1.bf16.msra.mxu0 0
  %2451 = vmatprep.subr.bf16.mxu0 0
  %2452 = vmatpush1.bf16.msra.mxu0 0
  %2453 = vmatprep.subr.bf16.mxu0 0
  %2454 = vmatpush1.bf16.msra.mxu0 0
  %2455 = vmatprep.subr.bf16.mxu0 0
  %2456 = vmatpush1.bf16.msra.mxu0 0
  %2457 = vmatprep.mubr.bf16.mxu0 0
  %2458 = vmatmul.mubr.bf16.gmra.mrb[0].mxu0 %v2168
  %v2459 = vpop.f32.mrb[0].mxu0
  %v2460 = vadd.f32 0.0, %v2459
  %v2461 = vpop.f32.mrb[0].mxu0
  %v2462 = vadd.f32 0.0, %v2461
  %v2463 = vpop.f32.mrb[0].mxu0
  %v2464 = vadd.f32 0.0, %v2463
  %v2465 = vpop.f32.mrb[0].mxu0
  %v2466 = vadd.f32 0.0, %v2465
  %2467 = vdwg.mxu0
  %v2468 = vadd.f32 %v2182, %v2417
  %v2469 = vadd.f32 %v2183, %v2419
  %v2470 = vadd.f32 %v2184, %v2460
  %v2471 = vadd.f32 %v2185, %v2462
  %v2472 = vadd.f32 %v2186, %v2421
  %v2473 = vadd.f32 %v2187, %v2423
  %v2474 = vadd.f32 %v2188, %v2464
  %v2475 = vadd.f32 %v2189, %v2466
  %v2476 = vsub.f32 0.0, %v2468
  %v2477 = vsub.f32 0.0, %v2469
  %v2478 = vsub.f32 0.0, %v2470
  %v2479 = vsub.f32 0.0, %v2472
  %v2480 = vsub.f32 0.0, %v2473
  %v2481 = vsub.f32 0.0, %v2474
  %v2482 = vmul.f32 %v2476, 1.442695
  %v2483 = vpow.pop %v2482
  %v2484 = vmul.f32 %v2477, 1.442695
  %v2485 = vpow.pop %v2484
  %v2486 = vmul.f32 %v2478, 1.442695
  %v2487 = vpow.pop %v2486
  %v2488 = vmul.f32 %v2479, 1.442695
  %v2489 = vpow.pop %v2488
  %v2490 = vmul.f32 %v2480, 1.442695
  %v2491 = vpow.pop %v2490
  %v2492 = vmul.f32 %v2481, 1.442695
  %v2493 = vpow.pop %v2492
  %v2494 = vadd.f32 %v2483, 1.0
  %v2495 = vadd.f32 %v2485, 1.0
  %v2496 = vadd.f32 %v2487, 1.0
  %v2497 = vadd.f32 %v2489, 1.0
  %v2498 = vadd.f32 %v2491, 1.0
  %v2499 = vadd.f32 %v2493, 1.0
  %v2500 = vrcp.pop %v2494
  %v2501 = vrcp.pop %v2495
  %v2502 = vrcp.pop %v2496
  %v2503 = vrcp.pop %v2497
  %v2504 = vrcp.pop %v2498
  %v2505 = vrcp.pop %v2499
  %v2506 = vtanh.pop %v2471
  %v2507 = vtanh.pop %v2475
  %v2508 = vmul.f32 %v2501, %v2162
  %v2509 = vmul.f32 %v2504, %v2163
  %v2510 = vmul.f32 %v2500, %v2506
  %v2511 = vmul.f32 %v2503, %v2507
  %v2512 = vadd.f32 %v2508, %v2510
  %v2513 = vadd.f32 %v2509, %v2511
  %v2514 = vtanh.pop %v2512
  %v2515 = vtanh.pop %v2513
  %v2516 = vmul.f32 %v2502, %v2514
  %v2517 = vmul.f32 %v2505, %v2515
  %v2518 = vpack.c.bf16 %v2517, %v2516
  %v2520 = vunpack.c.l.b16 %v2518
  %v2521 = vunpack.c.h.b16 %v2518
  %v2522 = vpack.c.b16 %v2520, %v2520
  %v2523 = vpack.c.b16 %v2521, %v2521
  %s2526 = scalar_lea.vmem %s6, 40
  %2527 = vst [vmem:[%s2526] sm:$0xf] %v2522
  %2528 = vst [vmem:[%s2526 + $0x4] sm:$0xf] %v2523
  %s2529 = smul.u32 12, 4
  %s2530 = smul.addr %s2529, 8
  %s2531 = scalar_lea.vmem [#allocation2], %s2530
  %v2532 = vld [vmem:[%s2531] sm:$0xff]
  %v2533 = vld [vmem:[%s2531 + $0x8] sm:$0xff]
  %v2534 = vld [vmem:[%s2531 + $0x10] sm:$0xff]
  %v2535 = vld [vmem:[%s2531 + $0x18] sm:$0xff]
  %v2536 = vld [vmem:[%s2531 + $0x20] sm:$0xff]
  %v2537 = vld [vmem:[%s2531 + $0x28] sm:$0xff]
  %v2538 = vld [vmem:[%s2531 + $0x30] sm:$0xff]
  %v2539 = vld [vmem:[%s2531 + $0x38] sm:$0xff]
  %v2540 = vld [vmem:[%s4] sm:$0xff]
  %v2541 = vld [vmem:[%s4 + $0x8] sm:$0xff]
  %v2542 = vld [vmem:[%s4 + $0x10] sm:$0xff]
  %v2543 = vld [vmem:[%s4 + $0x18] sm:$0xff]
  %v2544 = vld [vmem:[%s4 + $0x20] sm:$0xff]
  %v2545 = vld [vmem:[%s4 + $0x28] sm:$0xff]
  %v2546 = vld [vmem:[%s4 + $0x30] sm:$0xff]
  %v2547 = vld [vmem:[%s4 + $0x38] sm:$0xff]
  %v2548 = vld [vmem:[%s4 + $0x40] sm:$0xff]
  %v2549 = vld [vmem:[%s4 + $0x48] sm:$0xff]
  %v2550 = vld [vmem:[%s4 + $0x50] sm:$0xff]
  %v2551 = vld [vmem:[%s4 + $0x58] sm:$0xff]
  %v2552 = vld [vmem:[%s4 + $0x60] sm:$0xff]
  %v2553 = vld [vmem:[%s4 + $0x68] sm:$0xff]
  %v2554 = vld [vmem:[%s4 + $0x70] sm:$0xff]
  %v2555 = vld [vmem:[%s4 + $0x78] sm:$0xff]
  %v2556 = vld [vmem:[%s4 + $0x80] sm:$0xff]
  %v2557 = vld [vmem:[%s4 + $0x88] sm:$0xff]
  %v2558 = vld [vmem:[%s4 + $0x90] sm:$0xff]
  %v2559 = vld [vmem:[%s4 + $0x98] sm:$0xff]
  %v2560 = vld [vmem:[%s4 + $0xa0] sm:$0xff]
  %v2561 = vld [vmem:[%s4 + $0xa8] sm:$0xff]
  %v2562 = vld [vmem:[%s4 + $0xb0] sm:$0xff]
  %v2563 = vld [vmem:[%s4 + $0xb8] sm:$0xff]
  %v2564 = vld [vmem:[%s4 + $0xc0] sm:$0xff]
  %v2565 = vld [vmem:[%s4 + $0xc8] sm:$0xff]
  %v2566 = vld [vmem:[%s4 + $0xd0] sm:$0xff]
  %v2567 = vld [vmem:[%s4 + $0xd8] sm:$0xff]
  %v2568 = vld [vmem:[%s4 + $0xe0] sm:$0xff]
  %v2569 = vld [vmem:[%s4 + $0xe8] sm:$0xff]
  %v2570 = vld [vmem:[%s4 + $0xf0] sm:$0xff]
  %v2571 = vld [vmem:[%s4 + $0xf8] sm:$0xff]
  %v2604 = vunpack.c.l.b16 %v2540
  %v2605 = vunpack.c.h.b16 %v2540
  %v2606 = vunpack.c.l.b16 %v2541
  %v2607 = vunpack.c.h.b16 %v2541
  %v2608 = vunpack.c.l.b16 %v2542
  %v2609 = vunpack.c.h.b16 %v2542
  %v2610 = vunpack.c.l.b16 %v2543
  %v2611 = vunpack.c.h.b16 %v2543
  %v2612 = vunpack.c.l.b16 %v2544
  %v2613 = vunpack.c.h.b16 %v2544
  %v2614 = vunpack.c.l.b16 %v2545
  %v2615 = vunpack.c.h.b16 %v2545
  %v2616 = vunpack.c.l.b16 %v2546
  %v2617 = vunpack.c.h.b16 %v2546
  %v2618 = vunpack.c.l.b16 %v2547
  %v2619 = vunpack.c.h.b16 %v2547
  %v2620 = vunpack.c.l.b16 %v2548
  %v2621 = vunpack.c.h.b16 %v2548
  %v2622 = vunpack.c.l.b16 %v2549
  %v2623 = vunpack.c.h.b16 %v2549
  %v2624 = vunpack.c.l.b16 %v2550
  %v2625 = vunpack.c.h.b16 %v2550
  %v2626 = vunpack.c.l.b16 %v2551
  %v2627 = vunpack.c.h.b16 %v2551
  %v2628 = vunpack.c.l.b16 %v2552
  %v2629 = vunpack.c.h.b16 %v2552
  %v2630 = vunpack.c.l.b16 %v2553
  %v2631 = vunpack.c.h.b16 %v2553
  %v2632 = vunpack.c.l.b16 %v2554
  %v2633 = vunpack.c.h.b16 %v2554
  %v2634 = vunpack.c.l.b16 %v2555
  %v2635 = vunpack.c.h.b16 %v2555
  %v2636 = vunpack.c.l.b16 %v2556
  %v2637 = vunpack.c.h.b16 %v2556
  %v2638 = vunpack.c.l.b16 %v2557
  %v2639 = vunpack.c.h.b16 %v2557
  %v2640 = vunpack.c.l.b16 %v2558
  %v2641 = vunpack.c.h.b16 %v2558
  %v2642 = vunpack.c.l.b16 %v2559
  %v2643 = vunpack.c.h.b16 %v2559
  %v2644 = vunpack.c.l.b16 %v2560
  %v2645 = vunpack.c.h.b16 %v2560
  %v2646 = vunpack.c.l.b16 %v2561
  %v2647 = vunpack.c.h.b16 %v2561
  %v2648 = vunpack.c.l.b16 %v2562
  %v2649 = vunpack.c.h.b16 %v2562
  %v2650 = vunpack.c.l.b16 %v2563
  %v2651 = vunpack.c.h.b16 %v2563
  %v2652 = vunpack.c.l.b16 %v2564
  %v2653 = vunpack.c.h.b16 %v2564
  %v2654 = vunpack.c.l.b16 %v2565
  %v2655 = vunpack.c.h.b16 %v2565
  %v2656 = vunpack.c.l.b16 %v2566
  %v2657 = vunpack.c.h.b16 %v2566
  %v2658 = vunpack.c.l.b16 %v2567
  %v2659 = vunpack.c.h.b16 %v2567
  %v2660 = vunpack.c.l.b16 %v2568
  %v2661 = vunpack.c.h.b16 %v2568
  %v2662 = vunpack.c.l.b16 %v2569
  %v2663 = vunpack.c.h.b16 %v2569
  %v2664 = vunpack.c.l.b16 %v2570
  %v2665 = vunpack.c.h.b16 %v2570
  %v2666 = vunpack.c.l.b16 %v2571
  %v2667 = vunpack.c.h.b16 %v2571
  %v2668 = vpack.c.b16 %v2608, %v2604
  %v2669 = vpack.c.b16 %v2609, %v2605
  %v2670 = vpack.c.b16 %v2610, %v2606
  %v2671 = vpack.c.b16 %v2611, %v2607
  %v2672 = vpack.c.b16 %v2616, %v2612
  %v2673 = vpack.c.b16 %v2617, %v2613
  %v2674 = vpack.c.b16 %v2618, %v2614
  %v2675 = vpack.c.b16 %v2619, %v2615
  %v2676 = vpack.c.b16 %v2624, %v2620
  %v2677 = vpack.c.b16 %v2625, %v2621
  %v2678 = vpack.c.b16 %v2626, %v2622
  %v2679 = vpack.c.b16 %v2627, %v2623
  %v2680 = vpack.c.b16 %v2632, %v2628
  %v2681 = vpack.c.b16 %v2633, %v2629
  %v2682 = vpack.c.b16 %v2634, %v2630
  %v2683 = vpack.c.b16 %v2635, %v2631
  %v2684 = vpack.c.b16 %v2640, %v2636
  %v2685 = vpack.c.b16 %v2641, %v2637
  %v2686 = vpack.c.b16 %v2642, %v2638
  %v2687 = vpack.c.b16 %v2643, %v2639
  %v2688 = vpack.c.b16 %v2648, %v2644
  %v2689 = vpack.c.b16 %v2649, %v2645
  %v2690 = vpack.c.b16 %v2650, %v2646
  %v2691 = vpack.c.b16 %v2651, %v2647
  %v2692 = vpack.c.b16 %v2656, %v2652
  %v2693 = vpack.c.b16 %v2657, %v2653
  %v2694 = vpack.c.b16 %v2658, %v2654
  %v2695 = vpack.c.b16 %v2659, %v2655
  %v2696 = vpack.c.b16 %v2664, %v2660
  %v2697 = vpack.c.b16 %v2665, %v2661
  %v2698 = vpack.c.b16 %v2666, %v2662
  %v2699 = vpack.c.b16 %v2667, %v2663
  %2732 = vmatprep.subr.bf16.mxu0 %v2669
  %2733 = vmatpush1.bf16.msra.mxu0 %v2668
  %2734 = vmatprep.subr.bf16.mxu0 %v2673
  %2735 = vmatpush1.bf16.msra.mxu0 %v2672
  %2736 = vmatprep.subr.bf16.mxu0 %v2677
  %2737 = vmatpush1.bf16.msra.mxu0 %v2676
  %2738 = vmatprep.subr.bf16.mxu0 %v2681
  %2739 = vmatpush1.bf16.msra.mxu0 %v2680
  %2740 = vmatprep.subr.bf16.mxu0 %v2685
  %2741 = vmatpush1.bf16.msra.mxu0 %v2684
  %2742 = vmatprep.subr.bf16.mxu0 %v2689
  %2743 = vmatpush1.bf16.msra.mxu0 %v2688
  %2744 = vmatprep.subr.bf16.mxu0 %v2693
  %2745 = vmatpush1.bf16.msra.mxu0 %v2692
  %2746 = vmatprep.subr.bf16.mxu0 %v2697
  %2747 = vmatpush1.bf16.msra.mxu0 %v2696
  %2748 = vmatprep.subr.bf16.mxu0 0
  %2749 = vmatpush1.bf16.msra.mxu0 0
  %2750 = vmatprep.subr.bf16.mxu0 0
  %2751 = vmatpush1.bf16.msra.mxu0 0
  %2752 = vmatprep.subr.bf16.mxu0 0
  %2753 = vmatpush1.bf16.msra.mxu0 0
  %2754 = vmatprep.subr.bf16.mxu0 0
  %2755 = vmatpush1.bf16.msra.mxu0 0
  %2756 = vmatprep.subr.bf16.mxu0 0
  %2757 = vmatpush1.bf16.msra.mxu0 0
  %2758 = vmatprep.subr.bf16.mxu0 0
  %2759 = vmatpush1.bf16.msra.mxu0 0
  %2760 = vmatprep.subr.bf16.mxu0 0
  %2761 = vmatpush1.bf16.msra.mxu0 0
  %2762 = vmatprep.subr.bf16.mxu0 0
  %2763 = vmatpush1.bf16.msra.mxu0 0
  %2764 = vmatprep.mubr.bf16.mxu0 0
  %2765 = vmatmul.mubr.bf16.gmra.mrb[0].mxu0 %v2518
  %v2766 = vpop.f32.mrb[0].mxu0
  %v2767 = vadd.f32 0.0, %v2766
  %v2768 = vpop.f32.mrb[0].mxu0
  %v2769 = vadd.f32 0.0, %v2768
  %v2770 = vpop.f32.mrb[0].mxu0
  %v2771 = vadd.f32 0.0, %v2770
  %v2772 = vpop.f32.mrb[0].mxu0
  %v2773 = vadd.f32 0.0, %v2772
  %2774 = vdwg.mxu0
  %2775 = vmatprep.subr.bf16.mxu0 %v2671
  %2776 = vmatpush1.bf16.msra.mxu0 %v2670
  %2777 = vmatprep.subr.bf16.mxu0 %v2675
  %2778 = vmatpush1.bf16.msra.mxu0 %v2674
  %2779 = vmatprep.subr.bf16.mxu0 %v2679
  %2780 = vmatpush1.bf16.msra.mxu0 %v2678
  %2781 = vmatprep.subr.bf16.mxu0 %v2683
  %2782 = vmatpush1.bf16.msra.mxu0 %v2682
  %2783 = vmatprep.subr.bf16.mxu0 %v2687
  %2784 = vmatpush1.bf16.msra.mxu0 %v2686
  %2785 = vmatprep.subr.bf16.mxu0 %v2691
  %2786 = vmatpush1.bf16.msra.mxu0 %v2690
  %2787 = vmatprep.subr.bf16.mxu0 %v2695
  %2788 = vmatpush1.bf16.msra.mxu0 %v2694
  %2789 = vmatprep.subr.bf16.mxu0 %v2699
  %2790 = vmatpush1.bf16.msra.mxu0 %v2698
  %2791 = vmatprep.subr.bf16.mxu0 0
  %2792 = vmatpush1.bf16.msra.mxu0 0
  %2793 = vmatprep.subr.bf16.mxu0 0
  %2794 = vmatpush1.bf16.msra.mxu0 0
  %2795 = vmatprep.subr.bf16.mxu0 0
  %2796 = vmatpush1.bf16.msra.mxu0 0
  %2797 = vmatprep.subr.bf16.mxu0 0
  %2798 = vmatpush1.bf16.msra.mxu0 0
  %2799 = vmatprep.subr.bf16.mxu0 0
  %2800 = vmatpush1.bf16.msra.mxu0 0
  %2801 = vmatprep.subr.bf16.mxu0 0
  %2802 = vmatpush1.bf16.msra.mxu0 0
  %2803 = vmatprep.subr.bf16.mxu0 0
  %2804 = vmatpush1.bf16.msra.mxu0 0
  %2805 = vmatprep.subr.bf16.mxu0 0
  %2806 = vmatpush1.bf16.msra.mxu0 0
  %2807 = vmatprep.mubr.bf16.mxu0 0
  %2808 = vmatmul.mubr.bf16.gmra.mrb[0].mxu0 %v2518
  %v2809 = vpop.f32.mrb[0].mxu0
  %v2810 = vadd.f32 0.0, %v2809
  %v2811 = vpop.f32.mrb[0].mxu0
  %v2812 = vadd.f32 0.0, %v2811
  %v2813 = vpop.f32.mrb[0].mxu0
  %v2814 = vadd.f32 0.0, %v2813
  %v2815 = vpop.f32.mrb[0].mxu0
  %v2816 = vadd.f32 0.0, %v2815
  %2817 = vdwg.mxu0
  %v2818 = vadd.f32 %v2532, %v2767
  %v2819 = vadd.f32 %v2533, %v2769
  %v2820 = vadd.f32 %v2534, %v2810
  %v2821 = vadd.f32 %v2535, %v2812
  %v2822 = vadd.f32 %v2536, %v2771
  %v2823 = vadd.f32 %v2537, %v2773
  %v2824 = vadd.f32 %v2538, %v2814
  %v2825 = vadd.f32 %v2539, %v2816
  %v2826 = vsub.f32 0.0, %v2818
  %v2827 = vsub.f32 0.0, %v2819
  %v2828 = vsub.f32 0.0, %v2820
  %v2829 = vsub.f32 0.0, %v2822
  %v2830 = vsub.f32 0.0, %v2823
  %v2831 = vsub.f32 0.0, %v2824
  %v2832 = vmul.f32 %v2826, 1.442695
  %v2833 = vpow.pop %v2832
  %v2834 = vmul.f32 %v2827, 1.442695
  %v2835 = vpow.pop %v2834
  %v2836 = vmul.f32 %v2828, 1.442695
  %v2837 = vpow.pop %v2836
  %v2838 = vmul.f32 %v2829, 1.442695
  %v2839 = vpow.pop %v2838
  %v2840 = vmul.f32 %v2830, 1.442695
  %v2841 = vpow.pop %v2840
  %v2842 = vmul.f32 %v2831, 1.442695
  %v2843 = vpow.pop %v2842
  %v2844 = vadd.f32 %v2833, 1.0
  %v2845 = vadd.f32 %v2835, 1.0
  %v2846 = vadd.f32 %v2837, 1.0
  %v2847 = vadd.f32 %v2839, 1.0
  %v2848 = vadd.f32 %v2841, 1.0
  %v2849 = vadd.f32 %v2843, 1.0
  %v2850 = vrcp.pop %v2844
  %v2851 = vrcp.pop %v2845
  %v2852 = vrcp.pop %v2846
  %v2853 = vrcp.pop %v2847
  %v2854 = vrcp.pop %v2848
  %v2855 = vrcp.pop %v2849
  %v2856 = vtanh.pop %v2821
  %v2857 = vtanh.pop %v2825
  %v2858 = vmul.f32 %v2851, %v2512
  %v2859 = vmul.f32 %v2854, %v2513
  %v2860 = vmul.f32 %v2850, %v2856
  %v2861 = vmul.f32 %v2853, %v2857
  %v2862 = vadd.f32 %v2858, %v2860
  %v2863 = vadd.f32 %v2859, %v2861
  %v2864 = vtanh.pop %v2862
  %v2865 = vtanh.pop %v2863
  %v2866 = vmul.f32 %v2852, %v2864
  %v2867 = vmul.f32 %v2855, %v2865
  %v2868 = vpack.c.bf16 %v2867, %v2866
  %v2870 = vunpack.c.l.b16 %v2868
  %v2871 = vunpack.c.h.b16 %v2868
  %v2872 = vpack.c.b16 %v2870, %v2870
  %v2873 = vpack.c.b16 %v2871, %v2871
  %s2876 = scalar_lea.vmem %s6, 48
  %2877 = vst [vmem:[%s2876] sm:$0xf] %v2872
  %2878 = vst [vmem:[%s2876 + $0x4] sm:$0xf] %v2873
  %s2879 = smul.u32 14, 4
  %s2880 = smul.addr %s2879, 8
  %s2881 = scalar_lea.vmem [#allocation2], %s2880
  %v2882 = vld [vmem:[%s2881] sm:$0xff]
  %v2883 = vld [vmem:[%s2881 + $0x8] sm:$0xff]
  %v2884 = vld [vmem:[%s2881 + $0x10] sm:$0xff]
  %v2885 = vld [vmem:[%s2881 + $0x18] sm:$0xff]
  %v2886 = vld [vmem:[%s2881 + $0x20] sm:$0xff]
  %v2887 = vld [vmem:[%s2881 + $0x28] sm:$0xff]
  %v2888 = vld [vmem:[%s2881 + $0x30] sm:$0xff]
  %v2889 = vld [vmem:[%s2881 + $0x38] sm:$0xff]
  %v2890 = vld [vmem:[%s4] sm:$0xff]
  %v2891 = vld [vmem:[%s4 + $0x8] sm:$0xff]
  %v2892 = vld [vmem:[%s4 + $0x10] sm:$0xff]
  %v2893 = vld [vmem:[%s4 + $0x18] sm:$0xff]
  %v2894 = vld [vmem:[%s4 + $0x20] sm:$0xff]
  %v2895 = vld [vmem:[%s4 + $0x28] sm:$0xff]
  %v2896 = vld [vmem:[%s4 + $0x30] sm:$0xff]
  %v2897 = vld [vmem:[%s4 + $0x38] sm:$0xff]
  %v2898 = vld [vmem:[%s4 + $0x40] sm:$0xff]
  %v2899 = vld [vmem:[%s4 + $0x48] sm:$0xff]
  %v2900 = vld [vmem:[%s4 + $0x50] sm:$0xff]
  %v2901 = vld [vmem:[%s4 + $0x58] sm:$0xff]
  %v2902 = vld [vmem:[%s4 + $0x60] sm:$0xff]
  %v2903 = vld [vmem:[%s4 + $0x68] sm:$0xff]
  %v2904 = vld [vmem:[%s4 + $0x70] sm:$0xff]
  %v2905 = vld [vmem:[%s4 + $0x78] sm:$0xff]
  %v2906 = vld [vmem:[%s4 + $0x80] sm:$0xff]
  %v2907 = vld [vmem:[%s4 + $0x88] sm:$0xff]
  %v2908 = vld [vmem:[%s4 + $0x90] sm:$0xff]
  %v2909 = vld [vmem:[%s4 + $0x98] sm:$0xff]
  %v2910 = vld [vmem:[%s4 + $0xa0] sm:$0xff]
  %v2911 = vld [vmem:[%s4 + $0xa8] sm:$0xff]
  %v2912 = vld [vmem:[%s4 + $0xb0] sm:$0xff]
  %v2913 = vld [vmem:[%s4 + $0xb8] sm:$0xff]
  %v2914 = vld [vmem:[%s4 + $0xc0] sm:$0xff]
  %v2915 = vld [vmem:[%s4 + $0xc8] sm:$0xff]
  %v2916 = vld [vmem:[%s4 + $0xd0] sm:$0xff]
  %v2917 = vld [vmem:[%s4 + $0xd8] sm:$0xff]
  %v2918 = vld [vmem:[%s4 + $0xe0] sm:$0xff]
  %v2919 = vld [vmem:[%s4 + $0xe8] sm:$0xff]
  %v2920 = vld [vmem:[%s4 + $0xf0] sm:$0xff]
  %v2921 = vld [vmem:[%s4 + $0xf8] sm:$0xff]
  %v2954 = vunpack.c.l.b16 %v2890
  %v2955 = vunpack.c.h.b16 %v2890
  %v2956 = vunpack.c.l.b16 %v2891
  %v2957 = vunpack.c.h.b16 %v2891
  %v2958 = vunpack.c.l.b16 %v2892
  %v2959 = vunpack.c.h.b16 %v2892
  %v2960 = vunpack.c.l.b16 %v2893
  %v2961 = vunpack.c.h.b16 %v2893
  %v2962 = vunpack.c.l.b16 %v2894
  %v2963 = vunpack.c.h.b16 %v2894
  %v2964 = vunpack.c.l.b16 %v2895
  %v2965 = vunpack.c.h.b16 %v2895
  %v2966 = vunpack.c.l.b16 %v2896
  %v2967 = vunpack.c.h.b16 %v2896
  %v2968 = vunpack.c.l.b16 %v2897
  %v2969 = vunpack.c.h.b16 %v2897
  %v2970 = vunpack.c.l.b16 %v2898
  %v2971 = vunpack.c.h.b16 %v2898
  %v2972 = vunpack.c.l.b16 %v2899
  %v2973 = vunpack.c.h.b16 %v2899
  %v2974 = vunpack.c.l.b16 %v2900
  %v2975 = vunpack.c.h.b16 %v2900
  %v2976 = vunpack.c.l.b16 %v2901
  %v2977 = vunpack.c.h.b16 %v2901
  %v2978 = vunpack.c.l.b16 %v2902
  %v2979 = vunpack.c.h.b16 %v2902
  %v2980 = vunpack.c.l.b16 %v2903
  %v2981 = vunpack.c.h.b16 %v2903
  %v2982 = vunpack.c.l.b16 %v2904
  %v2983 = vunpack.c.h.b16 %v2904
  %v2984 = vunpack.c.l.b16 %v2905
  %v2985 = vunpack.c.h.b16 %v2905
  %v2986 = vunpack.c.l.b16 %v2906
  %v2987 = vunpack.c.h.b16 %v2906
  %v2988 = vunpack.c.l.b16 %v2907
  %v2989 = vunpack.c.h.b16 %v2907
  %v2990 = vunpack.c.l.b16 %v2908
  %v2991 = vunpack.c.h.b16 %v2908
  %v2992 = vunpack.c.l.b16 %v2909
  %v2993 = vunpack.c.h.b16 %v2909
  %v2994 = vunpack.c.l.b16 %v2910
  %v2995 = vunpack.c.h.b16 %v2910
  %v2996 = vunpack.c.l.b16 %v2911
  %v2997 = vunpack.c.h.b16 %v2911
  %v2998 = vunpack.c.l.b16 %v2912
  %v2999 = vunpack.c.h.b16 %v2912
  %v3000 = vunpack.c.l.b16 %v2913
  %v3001 = vunpack.c.h.b16 %v2913
  %v3002 = vunpack.c.l.b16 %v2914
  %v3003 = vunpack.c.h.b16 %v2914
  %v3004 = vunpack.c.l.b16 %v2915
  %v3005 = vunpack.c.h.b16 %v2915
  %v3006 = vunpack.c.l.b16 %v2916
  %v3007 = vunpack.c.h.b16 %v2916
  %v3008 = vunpack.c.l.b16 %v2917
  %v3009 = vunpack.c.h.b16 %v2917
  %v3010 = vunpack.c.l.b16 %v2918
  %v3011 = vunpack.c.h.b16 %v2918
  %v3012 = vunpack.c.l.b16 %v2919
  %v3013 = vunpack.c.h.b16 %v2919
  %v3014 = vunpack.c.l.b16 %v2920
  %v3015 = vunpack.c.h.b16 %v2920
  %v3016 = vunpack.c.l.b16 %v2921
  %v3017 = vunpack.c.h.b16 %v2921
  %v3018 = vpack.c.b16 %v2958, %v2954
  %v3019 = vpack.c.b16 %v2959, %v2955
  %v3020 = vpack.c.b16 %v2960, %v2956
  %v3021 = vpack.c.b16 %v2961, %v2957
  %v3022 = vpack.c.b16 %v2966, %v2962
  %v3023 = vpack.c.b16 %v2967, %v2963
  %v3024 = vpack.c.b16 %v2968, %v2964
  %v3025 = vpack.c.b16 %v2969, %v2965
  %v3026 = vpack.c.b16 %v2974, %v2970
  %v3027 = vpack.c.b16 %v2975, %v2971
  %v3028 = vpack.c.b16 %v2976, %v2972
  %v3029 = vpack.c.b16 %v2977, %v2973
  %v3030 = vpack.c.b16 %v2982, %v2978
  %v3031 = vpack.c.b16 %v2983, %v2979
  %v3032 = vpack.c.b16 %v2984, %v2980
  %v3033 = vpack.c.b16 %v2985, %v2981
  %v3034 = vpack.c.b16 %v2990, %v2986
  %v3035 = vpack.c.b16 %v2991, %v2987
  %v3036 = vpack.c.b16 %v2992, %v2988
  %v3037 = vpack.c.b16 %v2993, %v2989
  %v3038 = vpack.c.b16 %v2998, %v2994
  %v3039 = vpack.c.b16 %v2999, %v2995
  %v3040 = vpack.c.b16 %v3000, %v2996
  %v3041 = vpack.c.b16 %v3001, %v2997
  %v3042 = vpack.c.b16 %v3006, %v3002
  %v3043 = vpack.c.b16 %v3007, %v3003
  %v3044 = vpack.c.b16 %v3008, %v3004
  %v3045 = vpack.c.b16 %v3009, %v3005
  %v3046 = vpack.c.b16 %v3014, %v3010
  %v3047 = vpack.c.b16 %v3015, %v3011
  %v3048 = vpack.c.b16 %v3016, %v3012
  %v3049 = vpack.c.b16 %v3017, %v3013
  %3082 = vmatprep.subr.bf16.mxu0 %v3019
  %3083 = vmatpush1.bf16.msra.mxu0 %v3018
  %3084 = vmatprep.subr.bf16.mxu0 %v3023
  %3085 = vmatpush1.bf16.msra.mxu0 %v3022
  %3086 = vmatprep.subr.bf16.mxu0 %v3027
  %3087 = vmatpush1.bf16.msra.mxu0 %v3026
  %3088 = vmatprep.subr.bf16.mxu0 %v3031
  %3089 = vmatpush1.bf16.msra.mxu0 %v3030
  %3090 = vmatprep.subr.bf16.mxu0 %v3035
  %3091 = vmatpush1.bf16.msra.mxu0 %v3034
  %3092 = vmatprep.subr.bf16.mxu0 %v3039
  %3093 = vmatpush1.bf16.msra.mxu0 %v3038
  %3094 = vmatprep.subr.bf16.mxu0 %v3043
  %3095 = vmatpush1.bf16.msra.mxu0 %v3042
  %3096 = vmatprep.subr.bf16.mxu0 %v3047
  %3097 = vmatpush1.bf16.msra.mxu0 %v3046
  %3098 = vmatprep.subr.bf16.mxu0 0
  %3099 = vmatpush1.bf16.msra.mxu0 0
  %3100 = vmatprep.subr.bf16.mxu0 0
  %3101 = vmatpush1.bf16.msra.mxu0 0
  %3102 = vmatprep.subr.bf16.mxu0 0
  %3103 = vmatpush1.bf16.msra.mxu0 0
  %3104 = vmatprep.subr.bf16.mxu0 0
  %3105 = vmatpush1.bf16.msra.mxu0 0
  %3106 = vmatprep.subr.bf16.mxu0 0
  %3107 = vmatpush1.bf16.msra.mxu0 0
  %3108 = vmatprep.subr.bf16.mxu0 0
  %3109 = vmatpush1.bf16.msra.mxu0 0
  %3110 = vmatprep.subr.bf16.mxu0 0
  %3111 = vmatpush1.bf16.msra.mxu0 0
  %3112 = vmatprep.subr.bf16.mxu0 0
  %3113 = vmatpush1.bf16.msra.mxu0 0
  %3114 = vmatprep.mubr.bf16.mxu0 0
  %3115 = vmatmul.mubr.bf16.gmra.mrb[0].mxu0 %v2868
  %v3116 = vpop.f32.mrb[0].mxu0
  %v3117 = vadd.f32 0.0, %v3116
  %v3118 = vpop.f32.mrb[0].mxu0
  %v3119 = vadd.f32 0.0, %v3118
  %v3120 = vpop.f32.mrb[0].mxu0
  %v3121 = vadd.f32 0.0, %v3120
  %v3122 = vpop.f32.mrb[0].mxu0
  %v3123 = vadd.f32 0.0, %v3122
  %3124 = vdwg.mxu0
  %3125 = vmatprep.subr.bf16.mxu0 %v3021
  %3126 = vmatpush1.bf16.msra.mxu0 %v3020
  %3127 = vmatprep.subr.bf16.mxu0 %v3025
  %3128 = vmatpush1.bf16.msra.mxu0 %v3024
  %3129 = vmatprep.subr.bf16.mxu0 %v3029
  %3130 = vmatpush1.bf16.msra.mxu0 %v3028
  %3131 = vmatprep.subr.bf16.mxu0 %v3033
  %3132 = vmatpush1.bf16.msra.mxu0 %v3032
  %3133 = vmatprep.subr.bf16.mxu0 %v3037
  %3134 = vmatpush1.bf16.msra.mxu0 %v3036
  %3135 = vmatprep.subr.bf16.mxu0 %v3041
  %3136 = vmatpush1.bf16.msra.mxu0 %v3040
  %3137 = vmatprep.subr.bf16.mxu0 %v3045
  %3138 = vmatpush1.bf16.msra.mxu0 %v3044
  %3139 = vmatprep.subr.bf16.mxu0 %v3049
  %3140 = vmatpush1.bf16.msra.mxu0 %v3048
  %3141 = vmatprep.subr.bf16.mxu0 0
  %3142 = vmatpush1.bf16.msra.mxu0 0
  %3143 = vmatprep.subr.bf16.mxu0 0
  %3144 = vmatpush1.bf16.msra.mxu0 0
  %3145 = vmatprep.subr.bf16.mxu0 0
  %3146 = vmatpush1.bf16.msra.mxu0 0
  %3147 = vmatprep.subr.bf16.mxu0 0
  %3148 = vmatpush1.bf16.msra.mxu0 0
  %3149 = vmatprep.subr.bf16.mxu0 0
  %3150 = vmatpush1.bf16.msra.mxu0 0
  %3151 = vmatprep.subr.bf16.mxu0 0
  %3152 = vmatpush1.bf16.msra.mxu0 0
  %3153 = vmatprep.subr.bf16.mxu0 0
  %3154 = vmatpush1.bf16.msra.mxu0 0
  %3155 = vmatprep.subr.bf16.mxu0 0
  %3156 = vmatpush1.bf16.msra.mxu0 0
  %3157 = vmatprep.mubr.bf16.mxu0 0
  %3158 = vmatmul.mubr.bf16.gmra.mrb[0].mxu0 %v2868
  %v3159 = vpop.f32.mrb[0].mxu0
  %v3160 = vadd.f32 0.0, %v3159
  %v3161 = vpop.f32.mrb[0].mxu0
  %v3162 = vadd.f32 0.0, %v3161
  %v3163 = vpop.f32.mrb[0].mxu0
  %v3164 = vadd.f32 0.0, %v3163
  %v3165 = vpop.f32.mrb[0].mxu0
  %v3166 = vadd.f32 0.0, %v3165
  %3167 = vdwg.mxu0
  %v3168 = vadd.f32 %v2882, %v3117
  %v3169 = vadd.f32 %v2883, %v3119
  %v3170 = vadd.f32 %v2884, %v3160
  %v3171 = vadd.f32 %v2885, %v3162
  %v3172 = vadd.f32 %v2886, %v3121
  %v3173 = vadd.f32 %v2887, %v3123
  %v3174 = vadd.f32 %v2888, %v3164
  %v3175 = vadd.f32 %v2889, %v3166
  %v3176 = vsub.f32 0.0, %v3168
  %v3177 = vsub.f32 0.0, %v3169
  %v3178 = vsub.f32 0.0, %v3170
  %v3179 = vsub.f32 0.0, %v3172
  %v3180 = vsub.f32 0.0, %v3173
  %v3181 = vsub.f32 0.0, %v3174
  %v3182 = vmul.f32 %v3176, 1.442695
  %v3183 = vpow.pop %v3182
  %v3184 = vmul.f32 %v3177, 1.442695
  %v3185 = vpow.pop %v3184
  %v3186 = vmul.f32 %v3178, 1.442695
  %v3187 = vpow.pop %v3186
  %v3188 = vmul.f32 %v3179, 1.442695
  %v3189 = vpow.pop %v3188
  %v3190 = vmul.f32 %v3180, 1.442695
  %v3191 = vpow.pop %v3190
  %v3192 = vmul.f32 %v3181, 1.442695
  %v3193 = vpow.pop %v3192
  %v3194 = vadd.f32 %v3183, 1.0
  %v3195 = vadd.f32 %v3185, 1.0
  %v3196 = vadd.f32 %v3187, 1.0
  %v3197 = vadd.f32 %v3189, 1.0
  %v3198 = vadd.f32 %v3191, 1.0
  %v3199 = vadd.f32 %v3193, 1.0
  %v3200 = vrcp.pop %v3194
  %v3201 = vrcp.pop %v3195
  %v3202 = vrcp.pop %v3196
  %v3203 = vrcp.pop %v3197
  %v3204 = vrcp.pop %v3198
  %v3205 = vrcp.pop %v3199
  %v3206 = vtanh.pop %v3171
  %v3207 = vtanh.pop %v3175
  %v3208 = vmul.f32 %v3201, %v2862
  %v3209 = vmul.f32 %v3204, %v2863
  %v3210 = vmul.f32 %v3200, %v3206
  %v3211 = vmul.f32 %v3203, %v3207
  %v3212 = vadd.f32 %v3208, %v3210
  %v3213 = vadd.f32 %v3209, %v3211
  %v3214 = vtanh.pop %v3212
  %v3215 = vtanh.pop %v3213
  %v3216 = vmul.f32 %v3202, %v3214
  %v3217 = vmul.f32 %v3205, %v3215
  %v3218 = vpack.c.bf16 %v3217, %v3216
  %v3220 = vunpack.c.l.b16 %v3218
  %v3221 = vunpack.c.h.b16 %v3218
  %v3222 = vpack.c.b16 %v3220, %v3220
  %v3223 = vpack.c.b16 %v3221, %v3221
  %s3226 = scalar_lea.vmem %s6, 56
  %3227 = vst [vmem:[%s3226] sm:$0xf] %v3222
  %3228 = vst [vmem:[%s3226 + $0x4] sm:$0xf] %v3223
  %3229 = vst [vmem:[%s7] sm:$0xff] %v3216
  %3230 = vst [vmem:[%s7 + $0x8] sm:$0xff] %v3217
  %3231 = vst [vmem:[%s8] sm:$0xff] %v3212
  %3232 = vst [vmem:[%s8 + $0x8] sm:$0xff] %v3213
  // Predicated region
  $region30: #{charrnn_forward.3} parent=0 // pred_check
    _
  $region31: #{charrnn_forward.3} parent=0 // pred_check_branch
    %3234 = sbr.rel (0) target = $region33
  $region32: #{charrnn_forward.3} parent=0 // pred_region
    _
  $region33: #{charrnn_forward.3} parent=0 // pred_fallthru
    _
  // Predicated region
  $region34: #{charrnn_forward.3} parent=0 // pred_check
    _
  $region35: #{charrnn_forward.3} parent=0 // pred_check_branch
    %3236 = sbr.rel (0) target = $region37
  $region36: #{charrnn_forward.3} parent=0 // pred_region
    _
  $region37: #{charrnn_forward.3} parent=0 // pred_fallthru
    _
  // Predicated region
  $region38: #{charrnn_forward.3} parent=0 // pred_check
    _
  $region39: #{charrnn_forward.3} parent=0 // pred_check_branch
    %3238 = sbr.rel (0) target = $region41
  $region40: #{charrnn_forward.3} parent=0 // pred_region
    _
  $region41: #{charrnn_forward.3} parent=0 // pred_fallthru
    _
  // Predicated region
  $region42: #{charrnn_forward.3} parent=0 // pred_check
    _
  $region43: #{charrnn_forward.3} parent=0 // pred_check_branch
    %3240 = sbr.rel (0) target = $region45
  $region44: #{charrnn_forward.3} parent=0 // pred_region
    _
  $region45: #{charrnn_forward.3} parent=0 // pred_fallthru
    _
  // Predicated region
  $region46: #{charrnn_forward.3} parent=0 // pred_check
    _
  $region47: #{charrnn_forward.3} parent=0 // pred_check_branch
    %3242 = sbr.rel (0) target = $region49
  $region48: #{charrnn_forward.3} parent=0 // pred_region
    _
  $region49: #{charrnn_forward.3} parent=0 // pred_fallthru
    _
  // Predicated region
  $region50: #{charrnn_forward.3} parent=0 // pred_check
    _
  $region51: #{charrnn_forward.3} parent=0 // pred_check_branch
    %3244 = sbr.rel (0) target = $region53
  $region52: #{charrnn_forward.3} parent=0 // pred_region
    _
  $region53: #{charrnn_forward.3} parent=0 // pred_fallthru
    _

// kernel: charrnn_forward.4
$region0: #{charrnn_forward.4}
  #allocation0 [shape = 'u32[]', space=smem, size = 0x4, offset = 0x4, fixed_abs, tag = 'smem constant byte address 0x4 - core index']
  #allocation1 [shape = 'u32[144,128]{1,0:T(1,128)}', space=vmem, size = 0x12000, scoped, tag = 'internal scratch']
  #allocation2 [shape = 'f32[128,512]{1,0:T(8,128)}', space=vmem, size = 0x40000, scoped, tag = 'scratch operand']
  %s0 = inlined_call_operand.vmem [shape: bf16[8,16,128], index: 0, kind: input, shape index: {}]
  %s1 = inlined_call_operand.vmem [shape: f32[16,128], index: 1, kind: input, shape index: {}]
  %s2 = inlined_call_operand.vmem [shape: f32[16,128], index: 2, kind: input, shape index: {}]
  %s3 = inlined_call_operand.vmem [shape: bf16[128,512], index: 3, kind: input, shape index: {}]
  %s4 = inlined_call_operand.hbm [shape: bf16[128,512], index: 4, kind: input, shape index: {}]
  %s5 = inlined_call_operand.vmem [shape: f32[1,512], index: 5, kind: input, shape index: {}]
  %s6 = inlined_call_operand.vmem [shape: bf16[8,16,128], index: 6, kind: output, shape index: {0}]
  %s7 = inlined_call_operand.vmem [shape: f32[16,128], index: 7, kind: output, shape index: {1}]
  %s8 = inlined_call_operand.vmem [shape: f32[16,128], index: 8, kind: output, shape index: {2}]
  %9 = xla_tuple %s6, %s7, %s8
  %s10 = sld [smem:[#allocation0]]
  $region58: #{charrnn_forward.4} parent=0
    _
  %s12 = ssub.s32 1, %s10
  %s13 = scalar_select 0, %s12, %s10
  $region1: #{charrnn_forward.4} parent=0
    #allocation3 [shape = 'u8[131072]{0}', space=vmem, size = 0x20000, scoped, tag = 'input window, operand 4, single buffered']
    #allocation4 [shape = 's32[1]{0}', space=sflag, size = 0x4, scoped, tag = 'scoped memory for charrnn_forward.4']
    %14 = vsyncpa [#allocation4], 0
    // Predicated region
    $region2: #{charrnn_forward.4} parent=1 // pred_check
      _
    $region3: #{charrnn_forward.4} parent=1 // pred_check_branch
      %16 = sbr.rel (0) target = $region5
    $region4: #{charrnn_forward.4} parent=1 // pred_region
      _
    $region5: #{charrnn_forward.4} parent=1 // pred_fallthru
      _
    // Predicated region
    $region6: #{charrnn_forward.4} parent=1 // pred_check
      _
    $region7: #{charrnn_forward.4} parent=1 // pred_check_branch
      %18 = sbr.rel (0) target = $region9
    $region8: #{charrnn_forward.4} parent=1 // pred_region
      _
    $region9: #{charrnn_forward.4} parent=1 // pred_fallthru
      _
    // Predicated region
    $region10: #{charrnn_forward.4} parent=1 // pred_check
      _
    $region11: #{charrnn_forward.4} parent=1 // pred_check_branch
      %20 = sbr.rel (0) target = $region13
    $region12: #{charrnn_forward.4} parent=1 // pred_region
      _
    $region13: #{charrnn_forward.4} parent=1 // pred_fallthru
      _
    // Predicated region
    $region14: #{charrnn_forward.4} parent=1 // pred_check
      _
    $region15: #{charrnn_forward.4} parent=1 // pred_check_branch
      %22 = sbr.rel (0) target = $region17
    $region16: #{charrnn_forward.4} parent=1 // pred_region
      _
    $region17: #{charrnn_forward.4} parent=1 // pred_fallthru
      _
    // Predicated region
    $region18: #{charrnn_forward.4} parent=1 // pred_check
      _
    $region19: #{charrnn_forward.4} parent=1 // pred_check_branch
      %24 = sbr.rel (0) target = $region21
    $region20: #{charrnn_forward.4} parent=1 // pred_region
      %s26 = ssub.s32 4096, 4096
      %27 = vsyncadd [#allocation4], %s26
      %s28 = sshll.u32 [#allocation3], 4
      %s29 = int_to_ptr.vmem [resolvable:$true] %s28
      %34 = dma.hbm_to_vmem [thread:$0]  %s4, 4096, %s29, [#allocation4], 256, 256, 16
    $region21: #{charrnn_forward.4} parent=1 // pred_fallthru
      _
    // Predicated region
    $region22: #{charrnn_forward.4} parent=1 // pred_check
      _
    $region23: #{charrnn_forward.4} parent=1 // pred_check_branch
      %36 = sbr.rel (0) target = $region25
    $region24: #{charrnn_forward.4} parent=1 // pred_region
      _
    $region25: #{charrnn_forward.4} parent=1 // pred_fallthru
      _
    // Predicated region
    $region26: #{charrnn_forward.4} parent=1 // pred_check
      _
    $region27: #{charrnn_forward.4} parent=1 // pred_check_branch
      %38 = sbr.rel (0) target = $region29
    $region28: #{charrnn_forward.4} parent=1 // pred_region
      %39 = dma.done [#allocation4], 4096
    $region29: #{charrnn_forward.4} parent=1 // pred_fallthru
      _
    %p41 = scmp.eq.s32.totalorder 0, 0
    // Predicated region
    $region30: #{charrnn_forward.4} parent=1 // pred_check
      %p42 = pneg %p41
    $region31: #{charrnn_forward.4} parent=1 // pred_check_branch
      %44 = sbr.rel (%p42) target = $region33
    $region32: #{charrnn_forward.4} parent=1 // pred_region
      %v45 = vld [vmem:[%s1] sm:$0xff]
      %v46 = vld [vmem:[%s1 + $0x8] sm:$0xff]
      %47 = vst [vmem:[%s7] sm:$0xff] %v45
      %48 = vst [vmem:[%s7 + $0x8] sm:$0xff] %v46
      %v49 = vld [vmem:[%s2] sm:$0xff]
      %v50 = vld [vmem:[%s2 + $0x8] sm:$0xff]
      %51 = vst [vmem:[%s8] sm:$0xff] %v49
      %52 = vst [vmem:[%s8 + $0x8] sm:$0xff] %v50
    $region33: #{charrnn_forward.4} parent=1 // pred_fallthru
      _
    %v53 = vld [vmem:[%s0] sm:$0xf]
    %v54 = vld [vmem:[%s0 + $0x4] sm:$0xf]
    %v55 = vld [vmem:[%s0 + $0x8] sm:$0xf]
    %v56 = vld [vmem:[%s0 + $0xc] sm:$0xf]
    %v57 = vld [vmem:[%s0 + $0x10] sm:$0xf]
    %v58 = vld [vmem:[%s0 + $0x14] sm:$0xf]
    %v59 = vld [vmem:[%s0 + $0x18] sm:$0xf]
    %v60 = vld [vmem:[%s0 + $0x1c] sm:$0xf]
    %v61 = vld [vmem:[%s0 + $0x20] sm:$0xf]
    %v62 = vld [vmem:[%s0 + $0x24] sm:$0xf]
    %v63 = vld [vmem:[%s0 + $0x28] sm:$0xf]
    %v64 = vld [vmem:[%s0 + $0x2c] sm:$0xf]
    %v65 = vld [vmem:[%s0 + $0x30] sm:$0xf]
    %v66 = vld [vmem:[%s0 + $0x34] sm:$0xf]
    %v67 = vld [vmem:[%s0 + $0x38] sm:$0xf]
    %v68 = vld [vmem:[%s0 + $0x3c] sm:$0xf]
    %v69 = vld [vmem:[%s3] sm:$0xff]
    %v70 = vld [vmem:[%s3 + $0x8] sm:$0xff]
    %v71 = vld [vmem:[%s3 + $0x10] sm:$0xff]
    %v72 = vld [vmem:[%s3 + $0x18] sm:$0xff]
    %v73 = vld [vmem:[%s3 + $0x20] sm:$0xff]
    %v74 = vld [vmem:[%s3 + $0x28] sm:$0xff]
    %v75 = vld [vmem:[%s3 + $0x30] sm:$0xff]
    %v76 = vld [vmem:[%s3 + $0x38] sm:$0xff]
    %v77 = vld [vmem:[%s3 + $0x40] sm:$0xff]
    %v78 = vld [vmem:[%s3 + $0x48] sm:$0xff]
    %v79 = vld [vmem:[%s3 + $0x50] sm:$0xff]
    %v80 = vld [vmem:[%s3 + $0x58] sm:$0xff]
    %v81 = vld [vmem:[%s3 + $0x60] sm:$0xff]
    %v82 = vld [vmem:[%s3 + $0x68] sm:$0xff]
    %v83 = vld [vmem:[%s3 + $0x70] sm:$0xff]
    %v84 = vld [vmem:[%s3 + $0x78] sm:$0xff]
    %v85 = vld [vmem:[%s3 + $0x80] sm:$0xff]
    %v86 = vld [vmem:[%s3 + $0x88] sm:$0xff]
    %v87 = vld [vmem:[%s3 + $0x90] sm:$0xff]
    %v88 = vld [vmem:[%s3 + $0x98] sm:$0xff]
    %v89 = vld [vmem:[%s3 + $0xa0] sm:$0xff]
    %v90 = vld [vmem:[%s3 + $0xa8] sm:$0xff]
    %v91 = vld [vmem:[%s3 + $0xb0] sm:$0xff]
    %v92 = vld [vmem:[%s3 + $0xb8] sm:$0xff]
    %v93 = vld [vmem:[%s3 + $0xc0] sm:$0xff]
    %v94 = vld [vmem:[%s3 + $0xc8] sm:$0xff]
    %v95 = vld [vmem:[%s3 + $0xd0] sm:$0xff]
    %v96 = vld [vmem:[%s3 + $0xd8] sm:$0xff]
    %v97 = vld [vmem:[%s3 + $0xe0] sm:$0xff]
    %v98 = vld [vmem:[%s3 + $0xe8] sm:$0xff]
    %v99 = vld [vmem:[%s3 + $0xf0] sm:$0xff]
    %v100 = vld [vmem:[%s3 + $0xf8] sm:$0xff]
    %v101 = vld [vmem:[%s5] sm:$0xf]
    %v103 = vlaneseq
    %v104 = vshrl.u32 %v103, 7
    %v105 = vsub.s32 0, %v104
    %v106 = vrot.slane %v101, %v105
    %v107 = vlaneseq
    %v108 = vshrl.u32 %v107, 7
    %v109 = vsub.s32 1, %v108
    %v110 = vrot.slane %v101, %v109
    %v111 = vlaneseq
    %v112 = vshrl.u32 %v111, 7
    %v113 = vsub.s32 2, %v112
    %v114 = vrot.slane %v101, %v113
    %v115 = vlaneseq
    %v116 = vshrl.u32 %v115, 7
    %v117 = vsub.s32 3, %v116
    %v118 = vrot.slane %v101, %v117
    %v139 = vunpack.c.l.b16 %v53
    %v140 = vunpack.c.l.b16 %v54
    %v141 = vunpack.c.l.b16 %v55
    %v142 = vunpack.c.l.b16 %v56
    %v143 = vunpack.c.l.b16 %v57
    %v144 = vunpack.c.l.b16 %v58
    %v145 = vunpack.c.l.b16 %v59
    %v146 = vunpack.c.l.b16 %v60
    %v147 = vunpack.c.l.b16 %v61
    %v148 = vunpack.c.l.b16 %v62
    %v149 = vunpack.c.l.b16 %v63
    %v150 = vunpack.c.l.b16 %v64
    %v151 = vunpack.c.l.b16 %v65
    %v152 = vunpack.c.l.b16 %v66
    %v153 = vunpack.c.l.b16 %v67
    %v154 = vunpack.c.l.b16 %v68
    %v155 = vpack.c.b16 %v140, %v139
    %v156 = vpack.c.b16 %v142, %v141
    %v157 = vpack.c.b16 %v144, %v143
    %v158 = vpack.c.b16 %v146, %v145
    %v159 = vpack.c.b16 %v148, %v147
    %v160 = vpack.c.b16 %v150, %v149
    %v161 = vpack.c.b16 %v152, %v151
    %v162 = vpack.c.b16 %v154, %v153
    %v203 = vunpack.c.l.b16 %v69
    %v204 = vunpack.c.h.b16 %v69
    %v205 = vunpack.c.l.b16 %v70
    %v206 = vunpack.c.h.b16 %v70
    %v207 = vunpack.c.l.b16 %v71
    %v208 = vunpack.c.h.b16 %v71
    %v209 = vunpack.c.l.b16 %v72
    %v210 = vunpack.c.h.b16 %v72
    %v211 = vunpack.c.l.b16 %v73
    %v212 = vunpack.c.h.b16 %v73
    %v213 = vunpack.c.l.b16 %v74
    %v214 = vunpack.c.h.b16 %v74
    %v215 = vunpack.c.l.b16 %v75
    %v216 = vunpack.c.h.b16 %v75
    %v217 = vunpack.c.l.b16 %v76
    %v218 = vunpack.c.h.b16 %v76
    %v219 = vunpack.c.l.b16 %v77
    %v220 = vunpack.c.h.b16 %v77
    %v221 = vunpack.c.l.b16 %v78
    %v222 = vunpack.c.h.b16 %v78
    %v223 = vunpack.c.l.b16 %v79
    %v224 = vunpack.c.h.b16 %v79
    %v225 = vunpack.c.l.b16 %v80
    %v226 = vunpack.c.h.b16 %v80
    %v227 = vunpack.c.l.b16 %v81
    %v228 = vunpack.c.h.b16 %v81
    %v229 = vunpack.c.l.b16 %v82
    %v230 = vunpack.c.h.b16 %v82
    %v231 = vunpack.c.l.b16 %v83
    %v232 = vunpack.c.h.b16 %v83
    %v233 = vunpack.c.l.b16 %v84
    %v234 = vunpack.c.h.b16 %v84
    %v235 = vunpack.c.l.b16 %v85
    %v236 = vunpack.c.h.b16 %v85
    %v237 = vunpack.c.l.b16 %v86
    %v238 = vunpack.c.h.b16 %v86
    %v239 = vunpack.c.l.b16 %v87
    %v240 = vunpack.c.h.b16 %v87
    %v241 = vunpack.c.l.b16 %v88
    %v242 = vunpack.c.h.b16 %v88
    %v243 = vunpack.c.l.b16 %v89
    %v244 = vunpack.c.h.b16 %v89
    %v245 = vunpack.c.l.b16 %v90
    %v246 = vunpack.c.h.b16 %v90
    %v247 = vunpack.c.l.b16 %v91
    %v248 = vunpack.c.h.b16 %v91
    %v249 = vunpack.c.l.b16 %v92
    %v250 = vunpack.c.h.b16 %v92
    %v251 = vunpack.c.l.b16 %v93
    %v252 = vunpack.c.h.b16 %v93
    %v253 = vunpack.c.l.b16 %v94
    %v254 = vunpack.c.h.b16 %v94
    %v255 = vunpack.c.l.b16 %v95
    %v256 = vunpack.c.h.b16 %v95
    %v257 = vunpack.c.l.b16 %v96
    %v258 = vunpack.c.h.b16 %v96
    %v259 = vunpack.c.l.b16 %v97
    %v260 = vunpack.c.h.b16 %v97
    %v261 = vunpack.c.l.b16 %v98
    %v262 = vunpack.c.h.b16 %v98
    %v263 = vunpack.c.l.b16 %v99
    %v264 = vunpack.c.h.b16 %v99
    %v265 = vunpack.c.l.b16 %v100
    %v266 = vunpack.c.h.b16 %v100
    %v267 = vpack.c.b16 %v207, %v203
    %v268 = vpack.c.b16 %v208, %v204
    %v269 = vpack.c.b16 %v209, %v205
    %v270 = vpack.c.b16 %v210, %v206
    %v271 = vpack.c.b16 %v215, %v211
    %v272 = vpack.c.b16 %v216, %v212
    %v273 = vpack.c.b16 %v217, %v213
    %v274 = vpack.c.b16 %v218, %v214
    %v275 = vpack.c.b16 %v223, %v219
    %v276 = vpack.c.b16 %v224, %v220
    %v277 = vpack.c.b16 %v225, %v221
    %v278 = vpack.c.b16 %v226, %v222
    %v279 = vpack.c.b16 %v231, %v227
    %v280 = vpack.c.b16 %v232, %v228
    %v281 = vpack.c.b16 %v233, %v229
    %v282 = vpack.c.b16 %v234, %v230
    %v283 = vpack.c.b16 %v239, %v235
    %v284 = vpack.c.b16 %v240, %v236
    %v285 = vpack.c.b16 %v241, %v237
    %v286 = vpack.c.b16 %v242, %v238
    %v287 = vpack.c.b16 %v247, %v243
    %v288 = vpack.c.b16 %v248, %v244
    %v289 = vpack.c.b16 %v249, %v245
    %v290 = vpack.c.b16 %v250, %v246
    %v291 = vpack.c.b16 %v255, %v251
    %v292 = vpack.c.b16 %v256, %v252
    %v293 = vpack.c.b16 %v257, %v253
    %v294 = vpack.c.b16 %v258, %v254
    %v295 = vpack.c.b16 %v263, %v259
    %v296 = vpack.c.b16 %v264, %v260
    %v297 = vpack.c.b16 %v265, %v261
    %v298 = vpack.c.b16 %v266, %v262
    %331 = vmatprep.subr.bf16.mxu0 %v268
    %332 = vmatpush1.bf16.msra.mxu0 %v267
    %333 = vmatprep.subr.bf16.mxu0 %v272
    %334 = vmatpush1.bf16.msra.mxu0 %v271
    %335 = vmatprep.subr.bf16.mxu0 %v276
    %336 = vmatpush1.bf16.msra.mxu0 %v275
    %337 = vmatprep.subr.bf16.mxu0 %v280
    %338 = vmatpush1.bf16.msra.mxu0 %v279
    %339 = vmatprep.subr.bf16.mxu0 %v284
    %340 = vmatpush1.bf16.msra.mxu0 %v283
    %341 = vmatprep.subr.bf16.mxu0 %v288
    %342 = vmatpush1.bf16.msra.mxu0 %v287
    %343 = vmatprep.subr.bf16.mxu0 %v292
    %344 = vmatpush1.bf16.msra.mxu0 %v291
    %345 = vmatprep.subr.bf16.mxu0 %v296
    %346 = vmatpush1.bf16.msra.mxu0 %v295
    %347 = vmatprep.subr.bf16.mxu0 0
    %348 = vmatpush1.bf16.msra.mxu0 0
    %349 = vmatprep.subr.bf16.mxu0 0
    %350 = vmatpush1.bf16.msra.mxu0 0
    %351 = vmatprep.subr.bf16.mxu0 0
    %352 = vmatpush1.bf16.msra.mxu0 0
    %353 = vmatprep.subr.bf16.mxu0 0
    %354 = vmatpush1.bf16.msra.mxu0 0
    %355 = vmatprep.subr.bf16.mxu0 0
    %356 = vmatpush1.bf16.msra.mxu0 0
    %357 = vmatprep.subr.bf16.mxu0 0
    %358 = vmatpush1.bf16.msra.mxu0 0
    %359 = vmatprep.subr.bf16.mxu0 0
    %360 = vmatpush1.bf16.msra.mxu0 0
    %361 = vmatprep.subr.bf16.mxu0 0
    %362 = vmatpush1.bf16.msra.mxu0 0
    %363 = vmatprep.mubr.bf16.mxu0 0
    %364 = vmatmul.mubr.bf16.gmra.mrb[0].mxu0 %v155
    %v365 = vpop.f32.mrb[0].mxu0
    %v366 = vadd.f32 %v106, %v365
    %v367 = vpop.f32.mrb[0].mxu0
    %v368 = vadd.f32 %v110, %v367
    %v369 = vpop.f32.mrb[0].mxu0
    %v370 = vadd.f32 %v106, %v369
    %v371 = vpop.f32.mrb[0].mxu0
    %v372 = vadd.f32 %v110, %v371
    %373 = vmatprep.mubr.bf16.mxu0 0
    %374 = vmatmul.mubr.bf16.gmra.mrb[0].mxu0 %v156
    %v375 = vpop.f32.mrb[0].mxu0
    %v376 = vadd.f32 %v106, %v375
    %v377 = vpop.f32.mrb[0].mxu0
    %v378 = vadd.f32 %v110, %v377
    %v379 = vpop.f32.mrb[0].mxu0
    %v380 = vadd.f32 %v106, %v379
    %v381 = vpop.f32.mrb[0].mxu0
    %v382 = vadd.f32 %v110, %v381
    %383 = vmatprep.mubr.bf16.mxu0 0
    %384 = vmatmul.mubr.bf16.gmra.mrb[0].mxu0 %v157
    %v385 = vpop.f32.mrb[0].mxu0
    %v386 = vadd.f32 %v106, %v385
    %v387 = vpop.f32.mrb[0].mxu0
    %v388 = vadd.f32 %v110, %v387
    %v389 = vpop.f32.mrb[0].mxu0
    %v390 = vadd.f32 %v106, %v389
    %v391 = vpop.f32.mrb[0].mxu0
    %v392 = vadd.f32 %v110, %v391
    %393 = vmatprep.mubr.bf16.mxu0 0
    %394 = vmatmul.mubr.bf16.gmra.mrb[0].mxu0 %v158
    %v395 = vpop.f32.mrb[0].mxu0
    %v396 = vadd.f32 %v106, %v395
    %v397 = vpop.f32.mrb[0].mxu0
    %v398 = vadd.f32 %v110, %v397
    %v399 = vpop.f32.mrb[0].mxu0
    %v400 = vadd.f32 %v106, %v399
    %v401 = vpop.f32.mrb[0].mxu0
    %v402 = vadd.f32 %v110, %v401
    %403 = vmatprep.mubr.bf16.mxu0 0
    %404 = vmatmul.mubr.bf16.gmra.mrb[0].mxu0 %v159
    %v405 = vpop.f32.mrb[0].mxu0
    %v406 = vadd.f32 %v106, %v405
    %v407 = vpop.f32.mrb[0].mxu0
    %v408 = vadd.f32 %v110, %v407
    %v409 = vpop.f32.mrb[0].mxu0
    %v410 = vadd.f32 %v106, %v409
    %v411 = vpop.f32.mrb[0].mxu0
    %v412 = vadd.f32 %v110, %v411
    %413 = vmatprep.mubr.bf16.mxu0 0
    %414 = vmatmul.mubr.bf16.gmra.mrb[0].mxu0 %v160
    %v415 = vpop.f32.mrb[0].mxu0
    %v416 = vadd.f32 %v106, %v415
    %v417 = vpop.f32.mrb[0].mxu0
    %v418 = vadd.f32 %v110, %v417
    %v419 = vpop.f32.mrb[0].mxu0
    %v420 = vadd.f32 %v106, %v419
    %v421 = vpop.f32.mrb[0].mxu0
    %v422 = vadd.f32 %v110, %v421
    %423 = vmatprep.mubr.bf16.mxu0 0
    %424 = vmatmul.mubr.bf16.gmra.mrb[0].mxu0 %v161
    %v425 = vpop.f32.mrb[0].mxu0
    %v426 = vadd.f32 %v106, %v425
    %v427 = vpop.f32.mrb[0].mxu0
    %v428 = vadd.f32 %v110, %v427
    %v429 = vpop.f32.mrb[0].mxu0
    %v430 = vadd.f32 %v106, %v429
    %v431 = vpop.f32.mrb[0].mxu0
    %v432 = vadd.f32 %v110, %v431
    %433 = vmatprep.mubr.bf16.mxu0 0
    %434 = vmatmul.mubr.bf16.gmra.mrb[0].mxu0 %v162
    %v435 = vpop.f32.mrb[0].mxu0
    %v436 = vadd.f32 %v106, %v435
    %v437 = vpop.f32.mrb[0].mxu0
    %v438 = vadd.f32 %v110, %v437
    %v439 = vpop.f32.mrb[0].mxu0
    %v440 = vadd.f32 %v106, %v439
    %v441 = vpop.f32.mrb[0].mxu0
    %v442 = vadd.f32 %v110, %v441
    %443 = vdwg.mxu0
    %444 = vmatprep.subr.bf16.mxu0 %v270
    %445 = vmatpush1.bf16.msra.mxu0 %v269
    %446 = vmatprep.subr.bf16.mxu0 %v274
    %447 = vmatpush1.bf16.msra.mxu0 %v273
    %448 = vmatprep.subr.bf16.mxu0 %v278
    %449 = vmatpush1.bf16.msra.mxu0 %v277
    %450 = vmatprep.subr.bf16.mxu0 %v282
    %451 = vmatpush1.bf16.msra.mxu0 %v281
    %452 = vmatprep.subr.bf16.mxu0 %v286
    %453 = vmatpush1.bf16.msra.mxu0 %v285
    %454 = vmatprep.subr.bf16.mxu0 %v290
    %455 = vmatpush1.bf16.msra.mxu0 %v289
    %456 = vmatprep.subr.bf16.mxu0 %v294
    %457 = vmatpush1.bf16.msra.mxu0 %v293
    %458 = vmatprep.subr.bf16.mxu0 %v298
    %459 = vmatpush1.bf16.msra.mxu0 %v297
    %460 = vmatprep.subr.bf16.mxu0 0
    %461 = vmatpush1.bf16.msra.mxu0 0
    %462 = vmatprep.subr.bf16.mxu0 0
    %463 = vmatpush1.bf16.msra.mxu0 0
    %464 = vmatprep.subr.bf16.mxu0 0
    %465 = vmatpush1.bf16.msra.mxu0 0
    %466 = vmatprep.subr.bf16.mxu0 0
    %467 = vmatpush1.bf16.msra.mxu0 0
    %468 = vmatprep.subr.bf16.mxu0 0
    %469 = vmatpush1.bf16.msra.mxu0 0
    %470 = vmatprep.subr.bf16.mxu0 0
    %471 = vmatpush1.bf16.msra.mxu0 0
    %472 = vmatprep.subr.bf16.mxu0 0
    %473 = vmatpush1.bf16.msra.mxu0 0
    %474 = vmatprep.subr.bf16.mxu0 0
    %475 = vmatpush1.bf16.msra.mxu0 0
    %476 = vmatprep.mubr.bf16.mxu0 0
    %477 = vmatmul.mubr.bf16.gmra.mrb[0].mxu0 %v155
    %v478 = vpop.f32.mrb[0].mxu0
    %v479 = vadd.f32 %v114, %v478
    %v480 = vpop.f32.mrb[0].mxu0
    %v481 = vadd.f32 %v118, %v480
    %v482 = vpop.f32.mrb[0].mxu0
    %v483 = vadd.f32 %v114, %v482
    %v484 = vpop.f32.mrb[0].mxu0
    %v485 = vadd.f32 %v118, %v484
    %486 = vmatprep.mubr.bf16.mxu0 0
    %487 = vmatmul.mubr.bf16.gmra.mrb[0].mxu0 %v156
    %v488 = vpop.f32.mrb[0].mxu0
    %v489 = vadd.f32 %v114, %v488
    %v490 = vpop.f32.mrb[0].mxu0
    %v491 = vadd.f32 %v118, %v490
    %v492 = vpop.f32.mrb[0].mxu0
    %v493 = vadd.f32 %v114, %v492
    %v494 = vpop.f32.mrb[0].mxu0
    %v495 = vadd.f32 %v118, %v494
    %496 = vmatprep.mubr.bf16.mxu0 0
    %497 = vmatmul.mubr.bf16.gmra.mrb[0].mxu0 %v157
    %v498 = vpop.f32.mrb[0].mxu0
    %v499 = vadd.f32 %v114, %v498
    %v500 = vpop.f32.mrb[0].mxu0
    %v501 = vadd.f32 %v118, %v500
    %v502 = vpop.f32.mrb[0].mxu0
    %v503 = vadd.f32 %v114, %v502
    %v504 = vpop.f32.mrb[0].mxu0
    %v505 = vadd.f32 %v118, %v504
    %506 = vmatprep.mubr.bf16.mxu0 0
    %507 = vmatmul.mubr.bf16.gmra.mrb[0].mxu0 %v158
    %v508 = vpop.f32.mrb[0].mxu0
    %v509 = vadd.f32 %v114, %v508
    %v510 = vpop.f32.mrb[0].mxu0
    %v511 = vadd.f32 %v118, %v510
    %v512 = vpop.f32.mrb[0].mxu0
    %v513 = vadd.f32 %v114, %v512
    %v514 = vpop.f32.mrb[0].mxu0
    %v515 = vadd.f32 %v118, %v514
    %516 = vmatprep.mubr.bf16.mxu0 0
    %517 = vmatmul.mubr.bf16.gmra.mrb[0].mxu0 %v159
    %v518 = vpop.f32.mrb[0].mxu0
    %v519 = vadd.f32 %v114, %v518
    %v520 = vpop.f32.mrb[0].mxu0
    %v521 = vadd.f32 %v118, %v520
    %v522 = vpop.f32.mrb[0].mxu0
    %v523 = vadd.f32 %v114, %v522
    %v524 = vpop.f32.mrb[0].mxu0
    %v525 = vadd.f32 %v118, %v524
    %526 = vmatprep.mubr.bf16.mxu0 0
    %527 = vmatmul.mubr.bf16.gmra.mrb[0].mxu0 %v160
    %v528 = vpop.f32.mrb[0].mxu0
    %v529 = vadd.f32 %v114, %v528
    %v530 = vpop.f32.mrb[0].mxu0
    %v531 = vadd.f32 %v118, %v530
    %v532 = vpop.f32.mrb[0].mxu0
    %v533 = vadd.f32 %v114, %v532
    %v534 = vpop.f32.mrb[0].mxu0
    %v535 = vadd.f32 %v118, %v534
    %536 = vmatprep.mubr.bf16.mxu0 0
    %537 = vmatmul.mubr.bf16.gmra.mrb[0].mxu0 %v161
    %v538 = vpop.f32.mrb[0].mxu0
    %v539 = vadd.f32 %v114, %v538
    %v540 = vpop.f32.mrb[0].mxu0
    %v541 = vadd.f32 %v118, %v540
    %v542 = vpop.f32.mrb[0].mxu0
    %v543 = vadd.f32 %v114, %v542
    %v544 = vpop.f32.mrb[0].mxu0
    %v545 = vadd.f32 %v118, %v544
    %546 = vmatprep.mubr.bf16.mxu0 0
    %547 = vmatmul.mubr.bf16.gmra.mrb[0].mxu0 %v162
    %v548 = vpop.f32.mrb[0].mxu0
    %v549 = vadd.f32 %v114, %v548
    %v550 = vpop.f32.mrb[0].mxu0
    %v551 = vadd.f32 %v118, %v550
    %v552 = vpop.f32.mrb[0].mxu0
    %v553 = vadd.f32 %v114, %v552
    %v554 = vpop.f32.mrb[0].mxu0
    %v555 = vadd.f32 %v118, %v554
    %556 = vdwg.mxu0
    %557 = vst [vmem:[#allocation2] sm:$0xff] %v366
    %558 = vst [vmem:[#allocation2 + $0x8] sm:$0xff] %v368
    %559 = vst [vmem:[#allocation2 + $0x10] sm:$0xff] %v479
    %560 = vst [vmem:[#allocation2 + $0x18] sm:$0xff] %v481
    %561 = vst [vmem:[#allocation2 + $0x20] sm:$0xff] %v370
    %562 = vst [vmem:[#allocation2 + $0x28] sm:$0xff] %v372
    %563 = vst [vmem:[#allocation2 + $0x30] sm:$0xff] %v483
    %564 = vst [vmem:[#allocation2 + $0x38] sm:$0xff] %v485
    %565 = vst [vmem:[#allocation2 + $0x40] sm:$0xff] %v376
    %566 = vst [vmem:[#allocation2 + $0x48] sm:$0xff] %v378
    %567 = vst [vmem:[#allocation2 + $0x50] sm:$0xff] %v489
    %568 = vst [vmem:[#allocation2 + $0x58] sm:$0xff] %v491
    %569 = vst [vmem:[#allocation2 + $0x60] sm:$0xff] %v380
    %570 = vst [vmem:[#allocation2 + $0x68] sm:$0xff] %v382
    %571 = vst [vmem:[#allocation2 + $0x70] sm:$0xff] %v493
    %572 = vst [vmem:[#allocation2 + $0x78] sm:$0xff] %v495
    %573 = vst [vmem:[#allocation2 + $0x80] sm:$0xff] %v386
    %574 = vst [vmem:[#allocation2 + $0x88] sm:$0xff] %v388
    %575 = vst [vmem:[#allocation2 + $0x90] sm:$0xff] %v499
    %576 = vst [vmem:[#allocation2 + $0x98] sm:$0xff] %v501
    %577 = vst [vmem:[#allocation2 + $0xa0] sm:$0xff] %v390
    %578 = vst [vmem:[#allocation2 + $0xa8] sm:$0xff] %v392
    %579 = vst [vmem:[#allocation2 + $0xb0] sm:$0xff] %v503
    %580 = vst [vmem:[#allocation2 + $0xb8] sm:$0xff] %v505
    %581 = vst [vmem:[#allocation2 + $0xc0] sm:$0xff] %v396
    %582 = vst [vmem:[#allocation2 + $0xc8] sm:$0xff] %v398
    %583 = vst [vmem:[#allocation2 + $0xd0] sm:$0xff] %v509
    %584 = vst [vmem:[#allocation2 + $0xd8] sm:$0xff] %v511
    %585 = vst [vmem:[#allocation2 + $0xe0] sm:$0xff] %v400
    %586 = vst [vmem:[#allocation2 + $0xe8] sm:$0xff] %v402
    %587 = vst [vmem:[#allocation2 + $0xf0] sm:$0xff] %v513
    %588 = vst [vmem:[#allocation2 + $0xf8] sm:$0xff] %v515
    %589 = vst [vmem:[#allocation2 + $0x100] sm:$0xff] %v406
    %590 = vst [vmem:[#allocation2 + $0x108] sm:$0xff] %v408
    %591 = vst [vmem:[#allocation2 + $0x110] sm:$0xff] %v519
    %592 = vst [vmem:[#allocation2 + $0x118] sm:$0xff] %v521
    %593 = vst [vmem:[#allocation2 + $0x120] sm:$0xff] %v410
    %594 = vst [vmem:[#allocation2 + $0x128] sm:$0xff] %v412
    %595 = vst [vmem:[#allocation2 + $0x130] sm:$0xff] %v523
    %596 = vst [vmem:[#allocation2 + $0x138] sm:$0xff] %v525
    %597 = vst [vmem:[#allocation2 + $0x140] sm:$0xff] %v416
    %598 = vst [vmem:[#allocation2 + $0x148] sm:$0xff] %v418
    %599 = vst [vmem:[#allocation2 + $0x150] sm:$0xff] %v529
    %600 = vst [vmem:[#allocation2 + $0x158] sm:$0xff] %v531
    %601 = vst [vmem:[#allocation2 + $0x160] sm:$0xff] %v420
    %602 = vst [vmem:[#allocation2 + $0x168] sm:$0xff] %v422
    %603 = vst [vmem:[#allocation2 + $0x170] sm:$0xff] %v533
    %604 = vst [vmem:[#allocation2 + $0x178] sm:$0xff] %v535
    %605 = vst [vmem:[#allocation2 + $0x180] sm:$0xff] %v426
    %606 = vst [vmem:[#allocation2 + $0x188] sm:$0xff] %v428
    %607 = vst [vmem:[#allocation2 + $0x190] sm:$0xff] %v539
    %608 = vst [vmem:[#allocation2 + $0x198] sm:$0xff] %v541
    %609 = vst [vmem:[#allocation2 + $0x1a0] sm:$0xff] %v430
    %610 = vst [vmem:[#allocation2 + $0x1a8] sm:$0xff] %v432
    %611 = vst [vmem:[#allocation2 + $0x1b0] sm:$0xff] %v543
    %612 = vst [vmem:[#allocation2 + $0x1b8] sm:$0xff] %v545
    %613 = vst [vmem:[#allocation2 + $0x1c0] sm:$0xff] %v436
    %614 = vst [vmem:[#allocation2 + $0x1c8] sm:$0xff] %v438
    %615 = vst [vmem:[#allocation2 + $0x1d0] sm:$0xff] %v549
    %616 = vst [vmem:[#allocation2 + $0x1d8] sm:$0xff] %v551
    %617 = vst [vmem:[#allocation2 + $0x1e0] sm:$0xff] %v440
    %618 = vst [vmem:[#allocation2 + $0x1e8] sm:$0xff] %v442
    %619 = vst [vmem:[#allocation2 + $0x1f0] sm:$0xff] %v553
    %620 = vst [vmem:[#allocation2 + $0x1f8] sm:$0xff] %v555
    %v621 = vld [vmem:[%s7] sm:$0xff]
    %v622 = vld [vmem:[%s7 + $0x8] sm:$0xff]
    %v623 = vld [vmem:[%s8] sm:$0xff]
    %v624 = vld [vmem:[%s8 + $0x8] sm:$0xff]
    %s625 = smul.u32 0, 4
    %s626 = smul.addr %s625, 8
    %s627 = scalar_lea.vmem [#allocation2], %s626
    %v628 = vld [vmem:[%s627] sm:$0xff]
    %v629 = vld [vmem:[%s627 + $0x8] sm:$0xff]
    %v630 = vld [vmem:[%s627 + $0x10] sm:$0xff]
    %v631 = vld [vmem:[%s627 + $0x18] sm:$0xff]
    %v632 = vld [vmem:[%s627 + $0x20] sm:$0xff]
    %v633 = vld [vmem:[%s627 + $0x28] sm:$0xff]
    %v634 = vld [vmem:[%s627 + $0x30] sm:$0xff]
    %v635 = vld [vmem:[%s627 + $0x38] sm:$0xff]
    %v636 = vpack.c.bf16 %v622, %v621
    %v637 = vld [vmem:[#allocation3] sm:$0xff]
    %v638 = vld [vmem:[#allocation3 + $0x8] sm:$0xff]
    %v639 = vld [vmem:[#allocation3 + $0x10] sm:$0xff]
    %v640 = vld [vmem:[#allocation3 + $0x18] sm:$0xff]
    %v641 = vld [vmem:[#allocation3 + $0x20] sm:$0xff]
    %v642 = vld [vmem:[#allocation3 + $0x28] sm:$0xff]
    %v643 = vld [vmem:[#allocation3 + $0x30] sm:$0xff]
    %v644 = vld [vmem:[#allocation3 + $0x38] sm:$0xff]
    %v645 = vld [vmem:[#allocation3 + $0x40] sm:$0xff]
    %v646 = vld [vmem:[#allocation3 + $0x48] sm:$0xff]
    %v647 = vld [vmem:[#allocation3 + $0x50] sm:$0xff]
    %v648 = vld [vmem:[#allocation3 + $0x58] sm:$0xff]
    %v649 = vld [vmem:[#allocation3 + $0x60] sm:$0xff]
    %v650 = vld [vmem:[#allocation3 + $0x68] sm:$0xff]
    %v651 = vld [vmem:[#allocation3 + $0x70] sm:$0xff]
    %v652 = vld [vmem:[#allocation3 + $0x78] sm:$0xff]
    %v653 = vld [vmem:[#allocation3 + $0x80] sm:$0xff]
    %v654 = vld [vmem:[#allocation3 + $0x88] sm:$0xff]
    %v655 = vld [vmem:[#allocation3 + $0x90] sm:$0xff]
    %v656 = vld [vmem:[#allocation3 + $0x98] sm:$0xff]
    %v657 = vld [vmem:[#allocation3 + $0xa0] sm:$0xff]
    %v658 = vld [vmem:[#allocation3 + $0xa8] sm:$0xff]
    %v659 = vld [vmem:[#allocation3 + $0xb0] sm:$0xff]
    %v660 = vld [vmem:[#allocation3 + $0xb8] sm:$0xff]
    %v661 = vld [vmem:[#allocation3 + $0xc0] sm:$0xff]
    %v662 = vld [vmem:[#allocation3 + $0xc8] sm:$0xff]
    %v663 = vld [vmem:[#allocation3 + $0xd0] sm:$0xff]
    %v664 = vld [vmem:[#allocation3 + $0xd8] sm:$0xff]
    %v665 = vld [vmem:[#allocation3 + $0xe0] sm:$0xff]
    %v666 = vld [vmem:[#allocation3 + $0xe8] sm:$0xff]
    %v667 = vld [vmem:[#allocation3 + $0xf0] sm:$0xff]
    %v668 = vld [vmem:[#allocation3 + $0xf8] sm:$0xff]
    %v701 = vunpack.c.l.b16 %v637
    %v702 = vunpack.c.h.b16 %v637
    %v703 = vunpack.c.l.b16 %v638
    %v704 = vunpack.c.h.b16 %v638
    %v705 = vunpack.c.l.b16 %v639
    %v706 = vunpack.c.h.b16 %v639
    %v707 = vunpack.c.l.b16 %v640
    %v708 = vunpack.c.h.b16 %v640
    %v709 = vunpack.c.l.b16 %v641
    %v710 = vunpack.c.h.b16 %v641
    %v711 = vunpack.c.l.b16 %v642
    %v712 = vunpack.c.h.b16 %v642
    %v713 = vunpack.c.l.b16 %v643
    %v714 = vunpack.c.h.b16 %v643
    %v715 = vunpack.c.l.b16 %v644
    %v716 = vunpack.c.h.b16 %v644
    %v717 = vunpack.c.l.b16 %v645
    %v718 = vunpack.c.h.b16 %v645
    %v719 = vunpack.c.l.b16 %v646
    %v720 = vunpack.c.h.b16 %v646
    %v721 = vunpack.c.l.b16 %v647
    %v722 = vunpack.c.h.b16 %v647
    %v723 = vunpack.c.l.b16 %v648
    %v724 = vunpack.c.h.b16 %v648
    %v725 = vunpack.c.l.b16 %v649
    %v726 = vunpack.c.h.b16 %v649
    %v727 = vunpack.c.l.b16 %v650
    %v728 = vunpack.c.h.b16 %v650
    %v729 = vunpack.c.l.b16 %v651
    %v730 = vunpack.c.h.b16 %v651
    %v731 = vunpack.c.l.b16 %v652
    %v732 = vunpack.c.h.b16 %v652
    %v733 = vunpack.c.l.b16 %v653
    %v734 = vunpack.c.h.b16 %v653
    %v735 = vunpack.c.l.b16 %v654
    %v736 = vunpack.c.h.b16 %v654
    %v737 = vunpack.c.l.b16 %v655
    %v738 = vunpack.c.h.b16 %v655
    %v739 = vunpack.c.l.b16 %v656
    %v740 = vunpack.c.h.b16 %v656
    %v741 = vunpack.c.l.b16 %v657
    %v742 = vunpack.c.h.b16 %v657
    %v743 = vunpack.c.l.b16 %v658
    %v744 = vunpack.c.h.b16 %v658
    %v745 = vunpack.c.l.b16 %v659
    %v746 = vunpack.c.h.b16 %v659
    %v747 = vunpack.c.l.b16 %v660
    %v748 = vunpack.c.h.b16 %v660
    %v749 = vunpack.c.l.b16 %v661
    %v750 = vunpack.c.h.b16 %v661
    %v751 = vunpack.c.l.b16 %v662
    %v752 = vunpack.c.h.b16 %v662
    %v753 = vunpack.c.l.b16 %v663
    %v754 = vunpack.c.h.b16 %v663
    %v755 = vunpack.c.l.b16 %v664
    %v756 = vunpack.c.h.b16 %v664
    %v757 = vunpack.c.l.b16 %v665
    %v758 = vunpack.c.h.b16 %v665
    %v759 = vunpack.c.l.b16 %v666
    %v760 = vunpack.c.h.b16 %v666
    %v761 = vunpack.c.l.b16 %v667
    %v762 = vunpack.c.h.b16 %v667
    %v763 = vunpack.c.l.b16 %v668
    %v764 = vunpack.c.h.b16 %v668
    %v765 = vpack.c.b16 %v705, %v701
    %v766 = vpack.c.b16 %v706, %v702
    %v767 = vpack.c.b16 %v707, %v703
    %v768 = vpack.c.b16 %v708, %v704
    %v769 = vpack.c.b16 %v713, %v709
    %v770 = vpack.c.b16 %v714, %v710
    %v771 = vpack.c.b16 %v715, %v711
    %v772 = vpack.c.b16 %v716, %v712
    %v773 = vpack.c.b16 %v721, %v717
    %v774 = vpack.c.b16 %v722, %v718
    %v775 = vpack.c.b16 %v723, %v719
    %v776 = vpack.c.b16 %v724, %v720
    %v777 = vpack.c.b16 %v729, %v725
    %v778 = vpack.c.b16 %v730, %v726
    %v779 = vpack.c.b16 %v731, %v727
    %v780 = vpack.c.b16 %v732, %v728
    %v781 = vpack.c.b16 %v737, %v733
    %v782 = vpack.c.b16 %v738, %v734
    %v783 = vpack.c.b16 %v739, %v735
    %v784 = vpack.c.b16 %v740, %v736
    %v785 = vpack.c.b16 %v745, %v741
    %v786 = vpack.c.b16 %v746, %v742
    %v787 = vpack.c.b16 %v747, %v743
    %v788 = vpack.c.b16 %v748, %v744
    %v789 = vpack.c.b16 %v753, %v749
    %v790 = vpack.c.b16 %v754, %v750
    %v791 = vpack.c.b16 %v755, %v751
    %v792 = vpack.c.b16 %v756, %v752
    %v793 = vpack.c.b16 %v761, %v757
    %v794 = vpack.c.b16 %v762, %v758
    %v795 = vpack.c.b16 %v763, %v759
    %v796 = vpack.c.b16 %v764, %v760
    %829 = vmatprep.subr.bf16.mxu0 %v766
    %830 = vmatpush1.bf16.msra.mxu0 %v765
    %831 = vmatprep.subr.bf16.mxu0 %v770
    %832 = vmatpush1.bf16.msra.mxu0 %v769
    %833 = vmatprep.subr.bf16.mxu0 %v774
    %834 = vmatpush1.bf16.msra.mxu0 %v773
    %835 = vmatprep.subr.bf16.mxu0 %v778
    %836 = vmatpush1.bf16.msra.mxu0 %v777
    %837 = vmatprep.subr.bf16.mxu0 %v782
    %838 = vmatpush1.bf16.msra.mxu0 %v781
    %839 = vmatprep.subr.bf16.mxu0 %v786
    %840 = vmatpush1.bf16.msra.mxu0 %v785
    %841 = vmatprep.subr.bf16.mxu0 %v790
    %842 = vmatpush1.bf16.msra.mxu0 %v789
    %843 = vmatprep.subr.bf16.mxu0 %v794
    %844 = vmatpush1.bf16.msra.mxu0 %v793
    %845 = vmatprep.subr.bf16.mxu0 0
    %846 = vmatpush1.bf16.msra.mxu0 0
    %847 = vmatprep.subr.bf16.mxu0 0
    %848 = vmatpush1.bf16.msra.mxu0 0
    %849 = vmatprep.subr.bf16.mxu0 0
    %850 = vmatpush1.bf16.msra.mxu0 0
    %851 = vmatprep.subr.bf16.mxu0 0
    %852 = vmatpush1.bf16.msra.mxu0 0
    %853 = vmatprep.subr.bf16.mxu0 0
    %854 = vmatpush1.bf16.msra.mxu0 0
    %855 = vmatprep.subr.bf16.mxu0 0
    %856 = vmatpush1.bf16.msra.mxu0 0
    %857 = vmatprep.subr.bf16.mxu0 0
    %858 = vmatpush1.bf16.msra.mxu0 0
    %859 = vmatprep.subr.bf16.mxu0 0
    %860 = vmatpush1.bf16.msra.mxu0 0
    %861 = vmatprep.mubr.bf16.mxu0 0
    %862 = vmatmul.mubr.bf16.gmra.mrb[0].mxu0 %v636
    %v863 = vpop.f32.mrb[0].mxu0
    %v864 = vadd.f32 0.0, %v863
    %v865 = vpop.f32.mrb[0].mxu0
    %v866 = vadd.f32 0.0, %v865
    %v867 = vpop.f32.mrb[0].mxu0
    %v868 = vadd.f32 0.0, %v867
    %v869 = vpop.f32.mrb[0].mxu0
    %v870 = vadd.f32 0.0, %v869
    %871 = vdwg.mxu0
    %872 = vmatprep.subr.bf16.mxu0 %v768
    %873 = vmatpush1.bf16.msra.mxu0 %v767
    %874 = vmatprep.subr.bf16.mxu0 %v772
    %875 = vmatpush1.bf16.msra.mxu0 %v771
    %876 = vmatprep.subr.bf16.mxu0 %v776
    %877 = vmatpush1.bf16.msra.mxu0 %v775
    %878 = vmatprep.subr.bf16.mxu0 %v780
    %879 = vmatpush1.bf16.msra.mxu0 %v779
    %880 = vmatprep.subr.bf16.mxu0 %v784
    %881 = vmatpush1.bf16.msra.mxu0 %v783
    %882 = vmatprep.subr.bf16.mxu0 %v788
    %883 = vmatpush1.bf16.msra.mxu0 %v787
    %884 = vmatprep.subr.bf16.mxu0 %v792
    %885 = vmatpush1.bf16.msra.mxu0 %v791
    %886 = vmatprep.subr.bf16.mxu0 %v796
    %887 = vmatpush1.bf16.msra.mxu0 %v795
    %888 = vmatprep.subr.bf16.mxu0 0
    %889 = vmatpush1.bf16.msra.mxu0 0
    %890 = vmatprep.subr.bf16.mxu0 0
    %891 = vmatpush1.bf16.msra.mxu0 0
    %892 = vmatprep.subr.bf16.mxu0 0
    %893 = vmatpush1.bf16.msra.mxu0 0
    %894 = vmatprep.subr.bf16.mxu0 0
    %895 = vmatpush1.bf16.msra.mxu0 0
    %896 = vmatprep.subr.bf16.mxu0 0
    %897 = vmatpush1.bf16.msra.mxu0 0
    %898 = vmatprep.subr.bf16.mxu0 0
    %899 = vmatpush1.bf16.msra.mxu0 0
    %900 = vmatprep.subr.bf16.mxu0 0
    %901 = vmatpush1.bf16.msra.mxu0 0
    %902 = vmatprep.subr.bf16.mxu0 0
    %903 = vmatpush1.bf16.msra.mxu0 0
    %904 = vmatprep.mubr.bf16.mxu0 0
    %905 = vmatmul.mubr.bf16.gmra.mrb[0].mxu0 %v636
    %v906 = vpop.f32.mrb[0].mxu0
    %v907 = vadd.f32 0.0, %v906
    %v908 = vpop.f32.mrb[0].mxu0
    %v909 = vadd.f32 0.0, %v908
    %v910 = vpop.f32.mrb[0].mxu0
    %v911 = vadd.f32 0.0, %v910
    %v912 = vpop.f32.mrb[0].mxu0
    %v913 = vadd.f32 0.0, %v912
    %914 = vdwg.mxu0
    %v915 = vadd.f32 %v628, %v864
    %v916 = vadd.f32 %v629, %v866
    %v917 = vadd.f32 %v630, %v907
    %v918 = vadd.f32 %v631, %v909
    %v919 = vadd.f32 %v632, %v868
    %v920 = vadd.f32 %v633, %v870
    %v921 = vadd.f32 %v634, %v911
    %v922 = vadd.f32 %v635, %v913
    %v923 = vsub.f32 0.0, %v915
    %v924 = vsub.f32 0.0, %v916
    %v925 = vsub.f32 0.0, %v917
    %v926 = vsub.f32 0.0, %v919
    %v927 = vsub.f32 0.0, %v920
    %v928 = vsub.f32 0.0, %v921
    %v929 = vmul.f32 %v923, 1.442695
    %v930 = vpow.pop %v929
    %v931 = vmul.f32 %v924, 1.442695
    %v932 = vpow.pop %v931
    %v933 = vmul.f32 %v925, 1.442695
    %v934 = vpow.pop %v933
    %v935 = vmul.f32 %v926, 1.442695
    %v936 = vpow.pop %v935
    %v937 = vmul.f32 %v927, 1.442695
    %v938 = vpow.pop %v937
    %v939 = vmul.f32 %v928, 1.442695
    %v940 = vpow.pop %v939
    %v941 = vadd.f32 %v930, 1.0
    %v942 = vadd.f32 %v932, 1.0
    %v943 = vadd.f32 %v934, 1.0
    %v944 = vadd.f32 %v936, 1.0
    %v945 = vadd.f32 %v938, 1.0
    %v946 = vadd.f32 %v940, 1.0
    %v947 = vrcp.pop %v941
    %v948 = vrcp.pop %v942
    %v949 = vrcp.pop %v943
    %v950 = vrcp.pop %v944
    %v951 = vrcp.pop %v945
    %v952 = vrcp.pop %v946
    %v953 = vtanh.pop %v918
    %v954 = vtanh.pop %v922
    %v955 = vmul.f32 %v948, %v623
    %v956 = vmul.f32 %v951, %v624
    %v957 = vmul.f32 %v947, %v953
    %v958 = vmul.f32 %v950, %v954
    %v959 = vadd.f32 %v955, %v957
    %v960 = vadd.f32 %v956, %v958
    %v961 = vtanh.pop %v959
    %v962 = vtanh.pop %v960
    %v963 = vmul.f32 %v949, %v961
    %v964 = vmul.f32 %v952, %v962
    %v965 = vpack.c.bf16 %v964, %v963
    %v967 = vunpack.c.l.b16 %v965
    %v968 = vunpack.c.h.b16 %v965
    %v969 = vpack.c.b16 %v967, %v967
    %v970 = vpack.c.b16 %v968, %v968
    %973 = vst [vmem:[%s6] sm:$0xf] %v969
    %974 = vst [vmem:[%s6 + $0x4] sm:$0xf] %v970
    %s975 = smul.u32 2, 4
    %s976 = smul.addr %s975, 8
    %s977 = scalar_lea.vmem [#allocation2], %s976
    %v978 = vld [vmem:[%s977] sm:$0xff]
    %v979 = vld [vmem:[%s977 + $0x8] sm:$0xff]
    %v980 = vld [vmem:[%s977 + $0x10] sm:$0xff]
    %v981 = vld [vmem:[%s977 + $0x18] sm:$0xff]
    %v982 = vld [vmem:[%s977 + $0x20] sm:$0xff]
    %v983 = vld [vmem:[%s977 + $0x28] sm:$0xff]
    %v984 = vld [vmem:[%s977 + $0x30] sm:$0xff]
    %v985 = vld [vmem:[%s977 + $0x38] sm:$0xff]
    %v986 = vld [vmem:[#allocation3] sm:$0xff]
    %v987 = vld [vmem:[#allocation3 + $0x8] sm:$0xff]
    %v988 = vld [vmem:[#allocation3 + $0x10] sm:$0xff]
    %v989 = vld [vmem:[#allocation3 + $0x18] sm:$0xff]
    %v990 = vld [vmem:[#allocation3 + $0x20] sm:$0xff]
    %v991 = vld [vmem:[#allocation3 + $0x28] sm:$0xff]
    %v992 = vld [vmem:[#allocation3 + $0x30] sm:$0xff]
    %v993 = vld [vmem:[#allocation3 + $0x38] sm:$0xff]
    %v994 = vld [vmem:[#allocation3 + $0x40] sm:$0xff]
    %v995 = vld [vmem:[#allocation3 + $0x48] sm:$0xff]
    %v996 = vld [vmem:[#allocation3 + $0x50] sm:$0xff]
    %v997 = vld [vmem:[#allocation3 + $0x58] sm:$0xff]
    %v998 = vld [vmem:[#allocation3 + $0x60] sm:$0xff]
    %v999 = vld [vmem:[#allocation3 + $0x68] sm:$0xff]
    %v1000 = vld [vmem:[#allocation3 + $0x70] sm:$0xff]
    %v1001 = vld [vmem:[#allocation3 + $0x78] sm:$0xff]
    %v1002 = vld [vmem:[#allocation3 + $0x80] sm:$0xff]
    %v1003 = vld [vmem:[#allocation3 + $0x88] sm:$0xff]
    %v1004 = vld [vmem:[#allocation3 + $0x90] sm:$0xff]
    %v1005 = vld [vmem:[#allocation3 + $0x98] sm:$0xff]
    %v1006 = vld [vmem:[#allocation3 + $0xa0] sm:$0xff]
    %v1007 = vld [vmem:[#allocation3 + $0xa8] sm:$0xff]
    %v1008 = vld [vmem:[#allocation3 + $0xb0] sm:$0xff]
    %v1009 = vld [vmem:[#allocation3 + $0xb8] sm:$0xff]
    %v1010 = vld [vmem:[#allocation3 + $0xc0] sm:$0xff]
    %v1011 = vld [vmem:[#allocation3 + $0xc8] sm:$0xff]
    %v1012 = vld [vmem:[#allocation3 + $0xd0] sm:$0xff]
    %v1013 = vld [vmem:[#allocation3 + $0xd8] sm:$0xff]
    %v1014 = vld [vmem:[#allocation3 + $0xe0] sm:$0xff]
    %v1015 = vld [vmem:[#allocation3 + $0xe8] sm:$0xff]
    %v1016 = vld [vmem:[#allocation3 + $0xf0] sm:$0xff]
    %v1017 = vld [vmem:[#allocation3 + $0xf8] sm:$0xff]
    %v1050 = vunpack.c.l.b16 %v986
    %v1051 = vunpack.c.h.b16 %v986
    %v1052 = vunpack.c.l.b16 %v987
    %v1053 = vunpack.c.h.b16 %v987
    %v1054 = vunpack.c.l.b16 %v988
    %v1055 = vunpack.c.h.b16 %v988
    %v1056 = vunpack.c.l.b16 %v989
    %v1057 = vunpack.c.h.b16 %v989
    %v1058 = vunpack.c.l.b16 %v990
    %v1059 = vunpack.c.h.b16 %v990
    %v1060 = vunpack.c.l.b16 %v991
    %v1061 = vunpack.c.h.b16 %v991
    %v1062 = vunpack.c.l.b16 %v992
    %v1063 = vunpack.c.h.b16 %v992
    %v1064 = vunpack.c.l.b16 %v993
    %v1065 = vunpack.c.h.b16 %v993
    %v1066 = vunpack.c.l.b16 %v994
    %v1067 = vunpack.c.h.b16 %v994
    %v1068 = vunpack.c.l.b16 %v995
    %v1069 = vunpack.c.h.b16 %v995
    %v1070 = vunpack.c.l.b16 %v996
    %v1071 = vunpack.c.h.b16 %v996
    %v1072 = vunpack.c.l.b16 %v997
    %v1073 = vunpack.c.h.b16 %v997
    %v1074 = vunpack.c.l.b16 %v998
    %v1075 = vunpack.c.h.b16 %v998
    %v1076 = vunpack.c.l.b16 %v999
    %v1077 = vunpack.c.h.b16 %v999
    %v1078 = vunpack.c.l.b16 %v1000
    %v1079 = vunpack.c.h.b16 %v1000
    %v1080 = vunpack.c.l.b16 %v1001
    %v1081 = vunpack.c.h.b16 %v1001
    %v1082 = vunpack.c.l.b16 %v1002
    %v1083 = vunpack.c.h.b16 %v1002
    %v1084 = vunpack.c.l.b16 %v1003
    %v1085 = vunpack.c.h.b16 %v1003
    %v1086 = vunpack.c.l.b16 %v1004
    %v1087 = vunpack.c.h.b16 %v1004
    %v1088 = vunpack.c.l.b16 %v1005
    %v1089 = vunpack.c.h.b16 %v1005
    %v1090 = vunpack.c.l.b16 %v1006
    %v1091 = vunpack.c.h.b16 %v1006
    %v1092 = vunpack.c.l.b16 %v1007
    %v1093 = vunpack.c.h.b16 %v1007
    %v1094 = vunpack.c.l.b16 %v1008
    %v1095 = vunpack.c.h.b16 %v1008
    %v1096 = vunpack.c.l.b16 %v1009
    %v1097 = vunpack.c.h.b16 %v1009
    %v1098 = vunpack.c.l.b16 %v1010
    %v1099 = vunpack.c.h.b16 %v1010
    %v1100 = vunpack.c.l.b16 %v1011
    %v1101 = vunpack.c.h.b16 %v1011
    %v1102 = vunpack.c.l.b16 %v1012
    %v1103 = vunpack.c.h.b16 %v1012
    %v1104 = vunpack.c.l.b16 %v1013
    %v1105 = vunpack.c.h.b16 %v1013
    %v1106 = vunpack.c.l.b16 %v1014
    %v1107 = vunpack.c.h.b16 %v1014
    %v1108 = vunpack.c.l.b16 %v1015
    %v1109 = vunpack.c.h.b16 %v1015
    %v1110 = vunpack.c.l.b16 %v1016
    %v1111 = vunpack.c.h.b16 %v1016
    %v1112 = vunpack.c.l.b16 %v1017
    %v1113 = vunpack.c.h.b16 %v1017
    %v1114 = vpack.c.b16 %v1054, %v1050
    %v1115 = vpack.c.b16 %v1055, %v1051
    %v1116 = vpack.c.b16 %v1056, %v1052
    %v1117 = vpack.c.b16 %v1057, %v1053
    %v1118 = vpack.c.b16 %v1062, %v1058
    %v1119 = vpack.c.b16 %v1063, %v1059
    %v1120 = vpack.c.b16 %v1064, %v1060
    %v1121 = vpack.c.b16 %v1065, %v1061
    %v1122 = vpack.c.b16 %v1070, %v1066
    %v1123 = vpack.c.b16 %v1071, %v1067
    %v1124 = vpack.c.b16 %v1072, %v1068
    %v1125 = vpack.c.b16 %v1073, %v1069
    %v1126 = vpack.c.b16 %v1078, %v1074
    %v1127 = vpack.c.b16 %v1079, %v1075
    %v1128 = vpack.c.b16 %v1080, %v1076
    %v1129 = vpack.c.b16 %v1081, %v1077
    %v1130 = vpack.c.b16 %v1086, %v1082
    %v1131 = vpack.c.b16 %v1087, %v1083
    %v1132 = vpack.c.b16 %v1088, %v1084
    %v1133 = vpack.c.b16 %v1089, %v1085
    %v1134 = vpack.c.b16 %v1094, %v1090
    %v1135 = vpack.c.b16 %v1095, %v1091
    %v1136 = vpack.c.b16 %v1096, %v1092
    %v1137 = vpack.c.b16 %v1097, %v1093
    %v1138 = vpack.c.b16 %v1102, %v1098
    %v1139 = vpack.c.b16 %v1103, %v1099
    %v1140 = vpack.c.b16 %v1104, %v1100
    %v1141 = vpack.c.b16 %v1105, %v1101
    %v1142 = vpack.c.b16 %v1110, %v1106
    %v1143 = vpack.c.b16 %v1111, %v1107
    %v1144 = vpack.c.b16 %v1112, %v1108
    %v1145 = vpack.c.b16 %v1113, %v1109
    %1178 = vmatprep.subr.bf16.mxu0 %v1115
    %1179 = vmatpush1.bf16.msra.mxu0 %v1114
    %1180 = vmatprep.subr.bf16.mxu0 %v1119
    %1181 = vmatpush1.bf16.msra.mxu0 %v1118
    %1182 = vmatprep.subr.bf16.mxu0 %v1123
    %1183 = vmatpush1.bf16.msra.mxu0 %v1122
    %1184 = vmatprep.subr.bf16.mxu0 %v1127
    %1185 = vmatpush1.bf16.msra.mxu0 %v1126
    %1186 = vmatprep.subr.bf16.mxu0 %v1131
    %1187 = vmatpush1.bf16.msra.mxu0 %v1130
    %1188 = vmatprep.subr.bf16.mxu0 %v1135
    %1189 = vmatpush1.bf16.msra.mxu0 %v1134
    %1190 = vmatprep.subr.bf16.mxu0 %v1139
    %1191 = vmatpush1.bf16.msra.mxu0 %v1138
    %1192 = vmatprep.subr.bf16.mxu0 %v1143
    %1193 = vmatpush1.bf16.msra.mxu0 %v1142
    %1194 = vmatprep.subr.bf16.mxu0 0
    %1195 = vmatpush1.bf16.msra.mxu0 0
    %1196 = vmatprep.subr.bf16.mxu0 0
    %1197 = vmatpush1.bf16.msra.mxu0 0
    %1198 = vmatprep.subr.bf16.mxu0 0
    %1199 = vmatpush1.bf16.msra.mxu0 0
    %1200 = vmatprep.subr.bf16.mxu0 0
    %1201 = vmatpush1.bf16.msra.mxu0 0
    %1202 = vmatprep.subr.bf16.mxu0 0
    %1203 = vmatpush1.bf16.msra.mxu0 0
    %1204 = vmatprep.subr.bf16.mxu0 0
    %1205 = vmatpush1.bf16.msra.mxu0 0
    %1206 = vmatprep.subr.bf16.mxu0 0
    %1207 = vmatpush1.bf16.msra.mxu0 0
    %1208 = vmatprep.subr.bf16.mxu0 0
    %1209 = vmatpush1.bf16.msra.mxu0 0
    %1210 = vmatprep.mubr.bf16.mxu0 0
    %1211 = vmatmul.mubr.bf16.gmra.mrb[0].mxu0 %v965
    %v1212 = vpop.f32.mrb[0].mxu0
    %v1213 = vadd.f32 0.0, %v1212
    %v1214 = vpop.f32.mrb[0].mxu0
    %v1215 = vadd.f32 0.0, %v1214
    %v1216 = vpop.f32.mrb[0].mxu0
    %v1217 = vadd.f32 0.0, %v1216
    %v1218 = vpop.f32.mrb[0].mxu0
    %v1219 = vadd.f32 0.0, %v1218
    %1220 = vdwg.mxu0
    %1221 = vmatprep.subr.bf16.mxu0 %v1117
    %1222 = vmatpush1.bf16.msra.mxu0 %v1116
    %1223 = vmatprep.subr.bf16.mxu0 %v1121
    %1224 = vmatpush1.bf16.msra.mxu0 %v1120
    %1225 = vmatprep.subr.bf16.mxu0 %v1125
    %1226 = vmatpush1.bf16.msra.mxu0 %v1124
    %1227 = vmatprep.subr.bf16.mxu0 %v1129
    %1228 = vmatpush1.bf16.msra.mxu0 %v1128
    %1229 = vmatprep.subr.bf16.mxu0 %v1133
    %1230 = vmatpush1.bf16.msra.mxu0 %v1132
    %1231 = vmatprep.subr.bf16.mxu0 %v1137
    %1232 = vmatpush1.bf16.msra.mxu0 %v1136
    %1233 = vmatprep.subr.bf16.mxu0 %v1141
    %1234 = vmatpush1.bf16.msra.mxu0 %v1140
    %1235 = vmatprep.subr.bf16.mxu0 %v1145
    %1236 = vmatpush1.bf16.msra.mxu0 %v1144
    %1237 = vmatprep.subr.bf16.mxu0 0
    %1238 = vmatpush1.bf16.msra.mxu0 0
    %1239 = vmatprep.subr.bf16.mxu0 0
    %1240 = vmatpush1.bf16.msra.mxu0 0
    %1241 = vmatprep.subr.bf16.mxu0 0
    %1242 = vmatpush1.bf16.msra.mxu0 0
    %1243 = vmatprep.subr.bf16.mxu0 0
    %1244 = vmatpush1.bf16.msra.mxu0 0
    %1245 = vmatprep.subr.bf16.mxu0 0
    %1246 = vmatpush1.bf16.msra.mxu0 0
    %1247 = vmatprep.subr.bf16.mxu0 0
    %1248 = vmatpush1.bf16.msra.mxu0 0
    %1249 = vmatprep.subr.bf16.mxu0 0
    %1250 = vmatpush1.bf16.msra.mxu0 0
    %1251 = vmatprep.subr.bf16.mxu0 0
    %1252 = vmatpush1.bf16.msra.mxu0 0
    %1253 = vmatprep.mubr.bf16.mxu0 0
    %1254 = vmatmul.mubr.bf16.gmra.mrb[0].mxu0 %v965
    %v1255 = vpop.f32.mrb[0].mxu0
    %v1256 = vadd.f32 0.0, %v1255
    %v1257 = vpop.f32.mrb[0].mxu0
    %v1258 = vadd.f32 0.0, %v1257
    %v1259 = vpop.f32.mrb[0].mxu0
    %v1260 = vadd.f32 0.0, %v1259
    %v1261 = vpop.f32.mrb[0].mxu0
    %v1262 = vadd.f32 0.0, %v1261
    %1263 = vdwg.mxu0
    %v1264 = vadd.f32 %v978, %v1213
    %v1265 = vadd.f32 %v979, %v1215
    %v1266 = vadd.f32 %v980, %v1256
    %v1267 = vadd.f32 %v981, %v1258
    %v1268 = vadd.f32 %v982, %v1217
    %v1269 = vadd.f32 %v983, %v1219
    %v1270 = vadd.f32 %v984, %v1260
    %v1271 = vadd.f32 %v985, %v1262
    %v1272 = vsub.f32 0.0, %v1264
    %v1273 = vsub.f32 0.0, %v1265
    %v1274 = vsub.f32 0.0, %v1266
    %v1275 = vsub.f32 0.0, %v1268
    %v1276 = vsub.f32 0.0, %v1269
    %v1277 = vsub.f32 0.0, %v1270
    %v1278 = vmul.f32 %v1272, 1.442695
    %v1279 = vpow.pop %v1278
    %v1280 = vmul.f32 %v1273, 1.442695
    %v1281 = vpow.pop %v1280
    %v1282 = vmul.f32 %v1274, 1.442695
    %v1283 = vpow.pop %v1282
    %v1284 = vmul.f32 %v1275, 1.442695
    %v1285 = vpow.pop %v1284
    %v1286 = vmul.f32 %v1276, 1.442695
    %v1287 = vpow.pop %v1286
    %v1288 = vmul.f32 %v1277, 1.442695
    %v1289 = vpow.pop %v1288
    %v1290 = vadd.f32 %v1279, 1.0
    %v1291 = vadd.f32 %v1281, 1.0
    %v1292 = vadd.f32 %v1283, 1.0
    %v1293 = vadd.f32 %v1285, 1.0
    %v1294 = vadd.f32 %v1287, 1.0
    %v1295 = vadd.f32 %v1289, 1.0
    %v1296 = vrcp.pop %v1290
    %v1297 = vrcp.pop %v1291
    %v1298 = vrcp.pop %v1292
    %v1299 = vrcp.pop %v1293
    %v1300 = vrcp.pop %v1294
    %v1301 = vrcp.pop %v1295
    %v1302 = vtanh.pop %v1267
    %v1303 = vtanh.pop %v1271
    %v1304 = vmul.f32 %v1297, %v959
    %v1305 = vmul.f32 %v1300, %v960
    %v1306 = vmul.f32 %v1296, %v1302
    %v1307 = vmul.f32 %v1299, %v1303
    %v1308 = vadd.f32 %v1304, %v1306
    %v1309 = vadd.f32 %v1305, %v1307
    %v1310 = vtanh.pop %v1308
    %v1311 = vtanh.pop %v1309
    %v1312 = vmul.f32 %v1298, %v1310
    %v1313 = vmul.f32 %v1301, %v1311
    %v1314 = vpack.c.bf16 %v1313, %v1312
    %v1316 = vunpack.c.l.b16 %v1314
    %v1317 = vunpack.c.h.b16 %v1314
    %v1318 = vpack.c.b16 %v1316, %v1316
    %v1319 = vpack.c.b16 %v1317, %v1317
    %s1322 = scalar_lea.vmem %s6, 8
    %1323 = vst [vmem:[%s1322] sm:$0xf] %v1318
    %1324 = vst [vmem:[%s1322 + $0x4] sm:$0xf] %v1319
    %s1325 = smul.u32 4, 4
    %s1326 = smul.addr %s1325, 8
    %s1327 = scalar_lea.vmem [#allocation2], %s1326
    %v1328 = vld [vmem:[%s1327] sm:$0xff]
    %v1329 = vld [vmem:[%s1327 + $0x8] sm:$0xff]
    %v1330 = vld [vmem:[%s1327 + $0x10] sm:$0xff]
    %v1331 = vld [vmem:[%s1327 + $0x18] sm:$0xff]
    %v1332 = vld [vmem:[%s1327 + $0x20] sm:$0xff]
    %v1333 = vld [vmem:[%s1327 + $0x28] sm:$0xff]
    %v1334 = vld [vmem:[%s1327 + $0x30] sm:$0xff]
    %v1335 = vld [vmem:[%s1327 + $0x38] sm:$0xff]
    %v1336 = vld [vmem:[#allocation3] sm:$0xff]
    %v1337 = vld [vmem:[#allocation3 + $0x8] sm:$0xff]
    %v1338 = vld [vmem:[#allocation3 + $0x10] sm:$0xff]
    %v1339 = vld [vmem:[#allocation3 + $0x18] sm:$0xff]
    %v1340 = vld [vmem:[#allocation3 + $0x20] sm:$0xff]
    %v1341 = vld [vmem:[#allocation3 + $0x28] sm:$0xff]
    %v1342 = vld [vmem:[#allocation3 + $0x30] sm:$0xff]
    %v1343 = vld [vmem:[#allocation3 + $0x38] sm:$0xff]
    %v1344 = vld [vmem:[#allocation3 + $0x40] sm:$0xff]
    %v1345 = vld [vmem:[#allocation3 + $0x48] sm:$0xff]
    %v1346 = vld [vmem:[#allocation3 + $0x50] sm:$0xff]
    %v1347 = vld [vmem:[#allocation3 + $0x58] sm:$0xff]
    %v1348 = vld [vmem:[#allocation3 + $0x60] sm:$0xff]
    %v1349 = vld [vmem:[#allocation3 + $0x68] sm:$0xff]
    %v1350 = vld [vmem:[#allocation3 + $0x70] sm:$0xff]
    %v1351 = vld [vmem:[#allocation3 + $0x78] sm:$0xff]
    %v1352 = vld [vmem:[#allocation3 + $0x80] sm:$0xff]
    %v1353 = vld [vmem:[#allocation3 + $0x88] sm:$0xff]
    %v1354 = vld [vmem:[#allocation3 + $0x90] sm:$0xff]
    %v1355 = vld [vmem:[#allocation3 + $0x98] sm:$0xff]
    %v1356 = vld [vmem:[#allocation3 + $0xa0] sm:$0xff]
    %v1357 = vld [vmem:[#allocation3 + $0xa8] sm:$0xff]
    %v1358 = vld [vmem:[#allocation3 + $0xb0] sm:$0xff]
    %v1359 = vld [vmem:[#allocation3 + $0xb8] sm:$0xff]
    %v1360 = vld [vmem:[#allocation3 + $0xc0] sm:$0xff]
    %v1361 = vld [vmem:[#allocation3 + $0xc8] sm:$0xff]
    %v1362 = vld [vmem:[#allocation3 + $0xd0] sm:$0xff]
    %v1363 = vld [vmem:[#allocation3 + $0xd8] sm:$0xff]
    %v1364 = vld [vmem:[#allocation3 + $0xe0] sm:$0xff]
    %v1365 = vld [vmem:[#allocation3 + $0xe8] sm:$0xff]
    %v1366 = vld [vmem:[#allocation3 + $0xf0] sm:$0xff]
    %v1367 = vld [vmem:[#allocation3 + $0xf8] sm:$0xff]
    %v1400 = vunpack.c.l.b16 %v1336
    %v1401 = vunpack.c.h.b16 %v1336
    %v1402 = vunpack.c.l.b16 %v1337
    %v1403 = vunpack.c.h.b16 %v1337
    %v1404 = vunpack.c.l.b16 %v1338
    %v1405 = vunpack.c.h.b16 %v1338
    %v1406 = vunpack.c.l.b16 %v1339
    %v1407 = vunpack.c.h.b16 %v1339
    %v1408 = vunpack.c.l.b16 %v1340
    %v1409 = vunpack.c.h.b16 %v1340
    %v1410 = vunpack.c.l.b16 %v1341
    %v1411 = vunpack.c.h.b16 %v1341
    %v1412 = vunpack.c.l.b16 %v1342
    %v1413 = vunpack.c.h.b16 %v1342
    %v1414 = vunpack.c.l.b16 %v1343
    %v1415 = vunpack.c.h.b16 %v1343
    %v1416 = vunpack.c.l.b16 %v1344
    %v1417 = vunpack.c.h.b16 %v1344
    %v1418 = vunpack.c.l.b16 %v1345
    %v1419 = vunpack.c.h.b16 %v1345
    %v1420 = vunpack.c.l.b16 %v1346
    %v1421 = vunpack.c.h.b16 %v1346
    %v1422 = vunpack.c.l.b16 %v1347
    %v1423 = vunpack.c.h.b16 %v1347
    %v1424 = vunpack.c.l.b16 %v1348
    %v1425 = vunpack.c.h.b16 %v1348
    %v1426 = vunpack.c.l.b16 %v1349
    %v1427 = vunpack.c.h.b16 %v1349
    %v1428 = vunpack.c.l.b16 %v1350
    %v1429 = vunpack.c.h.b16 %v1350
    %v1430 = vunpack.c.l.b16 %v1351
    %v1431 = vunpack.c.h.b16 %v1351
    %v1432 = vunpack.c.l.b16 %v1352
    %v1433 = vunpack.c.h.b16 %v1352
    %v1434 = vunpack.c.l.b16 %v1353
    %v1435 = vunpack.c.h.b16 %v1353
    %v1436 = vunpack.c.l.b16 %v1354
    %v1437 = vunpack.c.h.b16 %v1354
    %v1438 = vunpack.c.l.b16 %v1355
    %v1439 = vunpack.c.h.b16 %v1355
    %v1440 = vunpack.c.l.b16 %v1356
    %v1441 = vunpack.c.h.b16 %v1356
    %v1442 = vunpack.c.l.b16 %v1357
    %v1443 = vunpack.c.h.b16 %v1357
    %v1444 = vunpack.c.l.b16 %v1358
    %v1445 = vunpack.c.h.b16 %v1358
    %v1446 = vunpack.c.l.b16 %v1359
    %v1447 = vunpack.c.h.b16 %v1359
    %v1448 = vunpack.c.l.b16 %v1360
    %v1449 = vunpack.c.h.b16 %v1360
    %v1450 = vunpack.c.l.b16 %v1361
    %v1451 = vunpack.c.h.b16 %v1361
    %v1452 = vunpack.c.l.b16 %v1362
    %v1453 = vunpack.c.h.b16 %v1362
    %v1454 = vunpack.c.l.b16 %v1363
    %v1455 = vunpack.c.h.b16 %v1363
    %v1456 = vunpack.c.l.b16 %v1364
    %v1457 = vunpack.c.h.b16 %v1364
    %v1458 = vunpack.c.l.b16 %v1365
    %v1459 = vunpack.c.h.b16 %v1365
    %v1460 = vunpack.c.l.b16 %v1366
    %v1461 = vunpack.c.h.b16 %v1366
    %v1462 = vunpack.c.l.b16 %v1367
    %v1463 = vunpack.c.h.b16 %v1367
    %v1464 = vpack.c.b16 %v1404, %v1400
    %v1465 = vpack.c.b16 %v1405, %v1401
    %v1466 = vpack.c.b16 %v1406, %v1402
    %v1467 = vpack.c.b16 %v1407, %v1403
    %v1468 = vpack.c.b16 %v1412, %v1408
    %v1469 = vpack.c.b16 %v1413, %v1409
    %v1470 = vpack.c.b16 %v1414, %v1410
    %v1471 = vpack.c.b16 %v1415, %v1411
    %v1472 = vpack.c.b16 %v1420, %v1416
    %v1473 = vpack.c.b16 %v1421, %v1417
    %v1474 = vpack.c.b16 %v1422, %v1418
    %v1475 = vpack.c.b16 %v1423, %v1419
    %v1476 = vpack.c.b16 %v1428, %v1424
    %v1477 = vpack.c.b16 %v1429, %v1425
    %v1478 = vpack.c.b16 %v1430, %v1426
    %v1479 = vpack.c.b16 %v1431, %v1427
    %v1480 = vpack.c.b16 %v1436, %v1432
    %v1481 = vpack.c.b16 %v1437, %v1433
    %v1482 = vpack.c.b16 %v1438, %v1434
    %v1483 = vpack.c.b16 %v1439, %v1435
    %v1484 = vpack.c.b16 %v1444, %v1440
    %v1485 = vpack.c.b16 %v1445, %v1441
    %v1486 = vpack.c.b16 %v1446, %v1442
    %v1487 = vpack.c.b16 %v1447, %v1443
    %v1488 = vpack.c.b16 %v1452, %v1448
    %v1489 = vpack.c.b16 %v1453, %v1449
    %v1490 = vpack.c.b16 %v1454, %v1450
    %v1491 = vpack.c.b16 %v1455, %v1451
    %v1492 = vpack.c.b16 %v1460, %v1456
    %v1493 = vpack.c.b16 %v1461, %v1457
    %v1494 = vpack.c.b16 %v1462, %v1458
    %v1495 = vpack.c.b16 %v1463, %v1459
    %1528 = vmatprep.subr.bf16.mxu0 %v1465
    %1529 = vmatpush1.bf16.msra.mxu0 %v1464
    %1530 = vmatprep.subr.bf16.mxu0 %v1469
    %1531 = vmatpush1.bf16.msra.mxu0 %v1468
    %1532 = vmatprep.subr.bf16.mxu0 %v1473
    %1533 = vmatpush1.bf16.msra.mxu0 %v1472
    %1534 = vmatprep.subr.bf16.mxu0 %v1477
    %1535 = vmatpush1.bf16.msra.mxu0 %v1476
    %1536 = vmatprep.subr.bf16.mxu0 %v1481
    %1537 = vmatpush1.bf16.msra.mxu0 %v1480
    %1538 = vmatprep.subr.bf16.mxu0 %v1485
    %1539 = vmatpush1.bf16.msra.mxu0 %v1484
    %1540 = vmatprep.subr.bf16.mxu0 %v1489
    %1541 = vmatpush1.bf16.msra.mxu0 %v1488
    %1542 = vmatprep.subr.bf16.mxu0 %v1493
    %1543 = vmatpush1.bf16.msra.mxu0 %v1492
    %1544 = vmatprep.subr.bf16.mxu0 0
    %1545 = vmatpush1.bf16.msra.mxu0 0
    %1546 = vmatprep.subr.bf16.mxu0 0
    %1547 = vmatpush1.bf16.msra.mxu0 0
    %1548 = vmatprep.subr.bf16.mxu0 0
    %1549 = vmatpush1.bf16.msra.mxu0 0
    %1550 = vmatprep.subr.bf16.mxu0 0
    %1551 = vmatpush1.bf16.msra.mxu0 0
    %1552 = vmatprep.subr.bf16.mxu0 0
    %1553 = vmatpush1.bf16.msra.mxu0 0
    %1554 = vmatprep.subr.bf16.mxu0 0
    %1555 = vmatpush1.bf16.msra.mxu0 0
    %1556 = vmatprep.subr.bf16.mxu0 0
    %1557 = vmatpush1.bf16.msra.mxu0 0
    %1558 = vmatprep.subr.bf16.mxu0 0
    %1559 = vmatpush1.bf16.msra.mxu0 0
    %1560 = vmatprep.mubr.bf16.mxu0 0
    %1561 = vmatmul.mubr.bf16.gmra.mrb[0].mxu0 %v1314
    %v1562 = vpop.f32.mrb[0].mxu0
    %v1563 = vadd.f32 0.0, %v1562
    %v1564 = vpop.f32.mrb[0].mxu0
    %v1565 = vadd.f32 0.0, %v1564
    %v1566 = vpop.f32.mrb[0].mxu0
    %v1567 = vadd.f32 0.0, %v1566
    %v1568 = vpop.f32.mrb[0].mxu0
    %v1569 = vadd.f32 0.0, %v1568
    %1570 = vdwg.mxu0
    %1571 = vmatprep.subr.bf16.mxu0 %v1467
    %1572 = vmatpush1.bf16.msra.mxu0 %v1466
    %1573 = vmatprep.subr.bf16.mxu0 %v1471
    %1574 = vmatpush1.bf16.msra.mxu0 %v1470
    %1575 = vmatprep.subr.bf16.mxu0 %v1475
    %1576 = vmatpush1.bf16.msra.mxu0 %v1474
    %1577 = vmatprep.subr.bf16.mxu0 %v1479
    %1578 = vmatpush1.bf16.msra.mxu0 %v1478
    %1579 = vmatprep.subr.bf16.mxu0 %v1483
    %1580 = vmatpush1.bf16.msra.mxu0 %v1482
    %1581 = vmatprep.subr.bf16.mxu0 %v1487
    %1582 = vmatpush1.bf16.msra.mxu0 %v1486
    %1583 = vmatprep.subr.bf16.mxu0 %v1491
    %1584 = vmatpush1.bf16.msra.mxu0 %v1490
    %1585 = vmatprep.subr.bf16.mxu0 %v1495
    %1586 = vmatpush1.bf16.msra.mxu0 %v1494
    %1587 = vmatprep.subr.bf16.mxu0 0
    %1588 = vmatpush1.bf16.msra.mxu0 0
    %1589 = vmatprep.subr.bf16.mxu0 0
    %1590 = vmatpush1.bf16.msra.mxu0 0
    %1591 = vmatprep.subr.bf16.mxu0 0
    %1592 = vmatpush1.bf16.msra.mxu0 0
    %1593 = vmatprep.subr.bf16.mxu0 0
    %1594 = vmatpush1.bf16.msra.mxu0 0
    %1595 = vmatprep.subr.bf16.mxu0 0
    %1596 = vmatpush1.bf16.msra.mxu0 0
    %1597 = vmatprep.subr.bf16.mxu0 0
    %1598 = vmatpush1.bf16.msra.mxu0 0
    %1599 = vmatprep.subr.bf16.mxu0 0
    %1600 = vmatpush1.bf16.msra.mxu0 0
    %1601 = vmatprep.subr.bf16.mxu0 0
    %1602 = vmatpush1.bf16.msra.mxu0 0
    %1603 = vmatprep.mubr.bf16.mxu0 0
    %1604 = vmatmul.mubr.bf16.gmra.mrb[0].mxu0 %v1314
    %v1605 = vpop.f32.mrb[0].mxu0
    %v1606 = vadd.f32 0.0, %v1605
    %v1607 = vpop.f32.mrb[0].mxu0
    %v1608 = vadd.f32 0.0, %v1607
    %v1609 = vpop.f32.mrb[0].mxu0
    %v1610 = vadd.f32 0.0, %v1609
    %v1611 = vpop.f32.mrb[0].mxu0
    %v1612 = vadd.f32 0.0, %v1611
    %1613 = vdwg.mxu0
    %v1614 = vadd.f32 %v1328, %v1563
    %v1615 = vadd.f32 %v1329, %v1565
    %v1616 = vadd.f32 %v1330, %v1606
    %v1617 = vadd.f32 %v1331, %v1608
    %v1618 = vadd.f32 %v1332, %v1567
    %v1619 = vadd.f32 %v1333, %v1569
    %v1620 = vadd.f32 %v1334, %v1610
    %v1621 = vadd.f32 %v1335, %v1612
    %v1622 = vsub.f32 0.0, %v1614
    %v1623 = vsub.f32 0.0, %v1615
    %v1624 = vsub.f32 0.0, %v1616
    %v1625 = vsub.f32 0.0, %v1618
    %v1626 = vsub.f32 0.0, %v1619
    %v1627 = vsub.f32 0.0, %v1620
    %v1628 = vmul.f32 %v1622, 1.442695
    %v1629 = vpow.pop %v1628
    %v1630 = vmul.f32 %v1623, 1.442695
    %v1631 = vpow.pop %v1630
    %v1632 = vmul.f32 %v1624, 1.442695
    %v1633 = vpow.pop %v1632
    %v1634 = vmul.f32 %v1625, 1.442695
    %v1635 = vpow.pop %v1634
    %v1636 = vmul.f32 %v1626, 1.442695
    %v1637 = vpow.pop %v1636
    %v1638 = vmul.f32 %v1627, 1.442695
    %v1639 = vpow.pop %v1638
    %v1640 = vadd.f32 %v1629, 1.0
    %v1641 = vadd.f32 %v1631, 1.0
    %v1642 = vadd.f32 %v1633, 1.0
    %v1643 = vadd.f32 %v1635, 1.0
    %v1644 = vadd.f32 %v1637, 1.0
    %v1645 = vadd.f32 %v1639, 1.0
    %v1646 = vrcp.pop %v1640
    %v1647 = vrcp.pop %v1641
    %v1648 = vrcp.pop %v1642
    %v1649 = vrcp.pop %v1643
    %v1650 = vrcp.pop %v1644
    %v1651 = vrcp.pop %v1645
    %v1652 = vtanh.pop %v1617
    %v1653 = vtanh.pop %v1621
    %v1654 = vmul.f32 %v1647, %v1308
    %v1655 = vmul.f32 %v1650, %v1309
    %v1656 = vmul.f32 %v1646, %v1652
    %v1657 = vmul.f32 %v1649, %v1653
    %v1658 = vadd.f32 %v1654, %v1656
    %v1659 = vadd.f32 %v1655, %v1657
    %v1660 = vtanh.pop %v1658
    %v1661 = vtanh.pop %v1659
    %v1662 = vmul.f32 %v1648, %v1660
    %v1663 = vmul.f32 %v1651, %v1661
    %v1664 = vpack.c.bf16 %v1663, %v1662
    %v1666 = vunpack.c.l.b16 %v1664
    %v1667 = vunpack.c.h.b16 %v1664
    %v1668 = vpack.c.b16 %v1666, %v1666
    %v1669 = vpack.c.b16 %v1667, %v1667
    %s1672 = scalar_lea.vmem %s6, 16
    %1673 = vst [vmem:[%s1672] sm:$0xf] %v1668
    %1674 = vst [vmem:[%s1672 + $0x4] sm:$0xf] %v1669
    %s1675 = smul.u32 6, 4
    %s1676 = smul.addr %s1675, 8
    %s1677 = scalar_lea.vmem [#allocation2], %s1676
    %v1678 = vld [vmem:[%s1677] sm:$0xff]
    %v1679 = vld [vmem:[%s1677 + $0x8] sm:$0xff]
    %v1680 = vld [vmem:[%s1677 + $0x10] sm:$0xff]
    %v1681 = vld [vmem:[%s1677 + $0x18] sm:$0xff]
    %v1682 = vld [vmem:[%s1677 + $0x20] sm:$0xff]
    %v1683 = vld [vmem:[%s1677 + $0x28] sm:$0xff]
    %v1684 = vld [vmem:[%s1677 + $0x30] sm:$0xff]
    %v1685 = vld [vmem:[%s1677 + $0x38] sm:$0xff]
    %v1686 = vld [vmem:[#allocation3] sm:$0xff]
    %v1687 = vld [vmem:[#allocation3 + $0x8] sm:$0xff]
    %v1688 = vld [vmem:[#allocation3 + $0x10] sm:$0xff]
    %v1689 = vld [vmem:[#allocation3 + $0x18] sm:$0xff]
    %v1690 = vld [vmem:[#allocation3 + $0x20] sm:$0xff]
    %v1691 = vld [vmem:[#allocation3 + $0x28] sm:$0xff]
    %v1692 = vld [vmem:[#allocation3 + $0x30] sm:$0xff]
    %v1693 = vld [vmem:[#allocation3 + $0x38] sm:$0xff]
    %v1694 = vld [vmem:[#allocation3 + $0x40] sm:$0xff]
    %v1695 = vld [vmem:[#allocation3 + $0x48] sm:$0xff]
    %v1696 = vld [vmem:[#allocation3 + $0x50] sm:$0xff]
    %v1697 = vld [vmem:[#allocation3 + $0x58] sm:$0xff]
    %v1698 = vld [vmem:[#allocation3 + $0x60] sm:$0xff]
    %v1699 = vld [vmem:[#allocation3 + $0x68] sm:$0xff]
    %v1700 = vld [vmem:[#allocation3 + $0x70] sm:$0xff]
    %v1701 = vld [vmem:[#allocation3 + $0x78] sm:$0xff]
    %v1702 = vld [vmem:[#allocation3 + $0x80] sm:$0xff]
    %v1703 = vld [vmem:[#allocation3 + $0x88] sm:$0xff]
    %v1704 = vld [vmem:[#allocation3 + $0x90] sm:$0xff]
    %v1705 = vld [vmem:[#allocation3 + $0x98] sm:$0xff]
    %v1706 = vld [vmem:[#allocation3 + $0xa0] sm:$0xff]
    %v1707 = vld [vmem:[#allocation3 + $0xa8] sm:$0xff]
    %v1708 = vld [vmem:[#allocation3 + $0xb0] sm:$0xff]
    %v1709 = vld [vmem:[#allocation3 + $0xb8] sm:$0xff]
    %v1710 = vld [vmem:[#allocation3 + $0xc0] sm:$0xff]
    %v1711 = vld [vmem:[#allocation3 + $0xc8] sm:$0xff]
    %v1712 = vld [vmem:[#allocation3 + $0xd0] sm:$0xff]
    %v1713 = vld [vmem:[#allocation3 + $0xd8] sm:$0xff]
    %v1714 = vld [vmem:[#allocation3 + $0xe0] sm:$0xff]
    %v1715 = vld [vmem:[#allocation3 + $0xe8] sm:$0xff]
    %v1716 = vld [vmem:[#allocation3 + $0xf0] sm:$0xff]
    %v1717 = vld [vmem:[#allocation3 + $0xf8] sm:$0xff]
    %v1750 = vunpack.c.l.b16 %v1686
    %v1751 = vunpack.c.h.b16 %v1686
    %v1752 = vunpack.c.l.b16 %v1687
    %v1753 = vunpack.c.h.b16 %v1687
    %v1754 = vunpack.c.l.b16 %v1688
    %v1755 = vunpack.c.h.b16 %v1688
    %v1756 = vunpack.c.l.b16 %v1689
    %v1757 = vunpack.c.h.b16 %v1689
    %v1758 = vunpack.c.l.b16 %v1690
    %v1759 = vunpack.c.h.b16 %v1690
    %v1760 = vunpack.c.l.b16 %v1691
    %v1761 = vunpack.c.h.b16 %v1691
    %v1762 = vunpack.c.l.b16 %v1692
    %v1763 = vunpack.c.h.b16 %v1692
    %v1764 = vunpack.c.l.b16 %v1693
    %v1765 = vunpack.c.h.b16 %v1693
    %v1766 = vunpack.c.l.b16 %v1694
    %v1767 = vunpack.c.h.b16 %v1694
    %v1768 = vunpack.c.l.b16 %v1695
    %v1769 = vunpack.c.h.b16 %v1695
    %v1770 = vunpack.c.l.b16 %v1696
    %v1771 = vunpack.c.h.b16 %v1696
    %v1772 = vunpack.c.l.b16 %v1697
    %v1773 = vunpack.c.h.b16 %v1697
    %v1774 = vunpack.c.l.b16 %v1698
    %v1775 = vunpack.c.h.b16 %v1698
    %v1776 = vunpack.c.l.b16 %v1699
    %v1777 = vunpack.c.h.b16 %v1699
    %v1778 = vunpack.c.l.b16 %v1700
    %v1779 = vunpack.c.h.b16 %v1700
    %v1780 = vunpack.c.l.b16 %v1701
    %v1781 = vunpack.c.h.b16 %v1701
    %v1782 = vunpack.c.l.b16 %v1702
    %v1783 = vunpack.c.h.b16 %v1702
    %v1784 = vunpack.c.l.b16 %v1703
    %v1785 = vunpack.c.h.b16 %v1703
    %v1786 = vunpack.c.l.b16 %v1704
    %v1787 = vunpack.c.h.b16 %v1704
    %v1788 = vunpack.c.l.b16 %v1705
    %v1789 = vunpack.c.h.b16 %v1705
    %v1790 = vunpack.c.l.b16 %v1706
    %v1791 = vunpack.c.h.b16 %v1706
    %v1792 = vunpack.c.l.b16 %v1707
    %v1793 = vunpack.c.h.b16 %v1707
    %v1794 = vunpack.c.l.b16 %v1708
    %v1795 = vunpack.c.h.b16 %v1708
    %v1796 = vunpack.c.l.b16 %v1709
    %v1797 = vunpack.c.h.b16 %v1709
    %v1798 = vunpack.c.l.b16 %v1710
    %v1799 = vunpack.c.h.b16 %v1710
    %v1800 = vunpack.c.l.b16 %v1711
    %v1801 = vunpack.c.h.b16 %v1711
    %v1802 = vunpack.c.l.b16 %v1712
    %v1803 = vunpack.c.h.b16 %v1712
    %v1804 = vunpack.c.l.b16 %v1713
    %v1805 = vunpack.c.h.b16 %v1713
    %v1806 = vunpack.c.l.b16 %v1714
    %v1807 = vunpack.c.h.b16 %v1714
    %v1808 = vunpack.c.l.b16 %v1715
    %v1809 = vunpack.c.h.b16 %v1715
    %v1810 = vunpack.c.l.b16 %v1716
    %v1811 = vunpack.c.h.b16 %v1716
    %v1812 = vunpack.c.l.b16 %v1717
    %v1813 = vunpack.c.h.b16 %v1717
    %v1814 = vpack.c.b16 %v1754, %v1750
    %v1815 = vpack.c.b16 %v1755, %v1751
    %v1816 = vpack.c.b16 %v1756, %v1752
    %v1817 = vpack.c.b16 %v1757, %v1753
    %v1818 = vpack.c.b16 %v1762, %v1758
    %v1819 = vpack.c.b16 %v1763, %v1759
    %v1820 = vpack.c.b16 %v1764, %v1760
    %v1821 = vpack.c.b16 %v1765, %v1761
    %v1822 = vpack.c.b16 %v1770, %v1766
    %v1823 = vpack.c.b16 %v1771, %v1767
    %v1824 = vpack.c.b16 %v1772, %v1768
    %v1825 = vpack.c.b16 %v1773, %v1769
    %v1826 = vpack.c.b16 %v1778, %v1774
    %v1827 = vpack.c.b16 %v1779, %v1775
    %v1828 = vpack.c.b16 %v1780, %v1776
    %v1829 = vpack.c.b16 %v1781, %v1777
    %v1830 = vpack.c.b16 %v1786, %v1782
    %v1831 = vpack.c.b16 %v1787, %v1783
    %v1832 = vpack.c.b16 %v1788, %v1784
    %v1833 = vpack.c.b16 %v1789, %v1785
    %v1834 = vpack.c.b16 %v1794, %v1790
    %v1835 = vpack.c.b16 %v1795, %v1791
    %v1836 = vpack.c.b16 %v1796, %v1792
    %v1837 = vpack.c.b16 %v1797, %v1793
    %v1838 = vpack.c.b16 %v1802, %v1798
    %v1839 = vpack.c.b16 %v1803, %v1799
    %v1840 = vpack.c.b16 %v1804, %v1800
    %v1841 = vpack.c.b16 %v1805, %v1801
    %v1842 = vpack.c.b16 %v1810, %v1806
    %v1843 = vpack.c.b16 %v1811, %v1807
    %v1844 = vpack.c.b16 %v1812, %v1808
    %v1845 = vpack.c.b16 %v1813, %v1809
    %1878 = vmatprep.subr.bf16.mxu0 %v1815
    %1879 = vmatpush1.bf16.msra.mxu0 %v1814
    %1880 = vmatprep.subr.bf16.mxu0 %v1819
    %1881 = vmatpush1.bf16.msra.mxu0 %v1818
    %1882 = vmatprep.subr.bf16.mxu0 %v1823
    %1883 = vmatpush1.bf16.msra.mxu0 %v1822
    %1884 = vmatprep.subr.bf16.mxu0 %v1827
    %1885 = vmatpush1.bf16.msra.mxu0 %v1826
    %1886 = vmatprep.subr.bf16.mxu0 %v1831
    %1887 = vmatpush1.bf16.msra.mxu0 %v1830
    %1888 = vmatprep.subr.bf16.mxu0 %v1835
    %1889 = vmatpush1.bf16.msra.mxu0 %v1834
    %1890 = vmatprep.subr.bf16.mxu0 %v1839
    %1891 = vmatpush1.bf16.msra.mxu0 %v1838
    %1892 = vmatprep.subr.bf16.mxu0 %v1843
    %1893 = vmatpush1.bf16.msra.mxu0 %v1842
    %1894 = vmatprep.subr.bf16.mxu0 0
    %1895 = vmatpush1.bf16.msra.mxu0 0
    %1896 = vmatprep.subr.bf16.mxu0 0
    %1897 = vmatpush1.bf16.msra.mxu0 0
    %1898 = vmatprep.subr.bf16.mxu0 0
    %1899 = vmatpush1.bf16.msra.mxu0 0
    %1900 = vmatprep.subr.bf16.mxu0 0
    %1901 = vmatpush1.bf16.msra.mxu0 0
    %1902 = vmatprep.subr.bf16.mxu0 0
    %1903 = vmatpush1.bf16.msra.mxu0 0
    %1904 = vmatprep.subr.bf16.mxu0 0
    %1905 = vmatpush1.bf16.msra.mxu0 0
    %1906 = vmatprep.subr.bf16.mxu0 0
    %1907 = vmatpush1.bf16.msra.mxu0 0
    %1908 = vmatprep.subr.bf16.mxu0 0
    %1909 = vmatpush1.bf16.msra.mxu0 0
    %1910 = vmatprep.mubr.bf16.mxu0 0
    %1911 = vmatmul.mubr.bf16.gmra.mrb[0].mxu0 %v1664
    %v1912 = vpop.f32.mrb[0].mxu0
    %v1913 = vadd.f32 0.0, %v1912
    %v1914 = vpop.f32.mrb[0].mxu0
    %v1915 = vadd.f32 0.0, %v1914
    %v1916 = vpop.f32.mrb[0].mxu0
    %v1917 = vadd.f32 0.0, %v1916
    %v1918 = vpop.f32.mrb[0].mxu0
    %v1919 = vadd.f32 0.0, %v1918
    %1920 = vdwg.mxu0
    %1921 = vmatprep.subr.bf16.mxu0 %v1817
    %1922 = vmatpush1.bf16.msra.mxu0 %v1816
    %1923 = vmatprep.subr.bf16.mxu0 %v1821
    %1924 = vmatpush1.bf16.msra.mxu0 %v1820
    %1925 = vmatprep.subr.bf16.mxu0 %v1825
    %1926 = vmatpush1.bf16.msra.mxu0 %v1824
    %1927 = vmatprep.subr.bf16.mxu0 %v1829
    %1928 = vmatpush1.bf16.msra.mxu0 %v1828
    %1929 = vmatprep.subr.bf16.mxu0 %v1833
    %1930 = vmatpush1.bf16.msra.mxu0 %v1832
    %1931 = vmatprep.subr.bf16.mxu0 %v1837
    %1932 = vmatpush1.bf16.msra.mxu0 %v1836
    %1933 = vmatprep.subr.bf16.mxu0 %v1841
    %1934 = vmatpush1.bf16.msra.mxu0 %v1840
    %1935 = vmatprep.subr.bf16.mxu0 %v1845
    %1936 = vmatpush1.bf16.msra.mxu0 %v1844
    %1937 = vmatprep.subr.bf16.mxu0 0
    %1938 = vmatpush1.bf16.msra.mxu0 0
    %1939 = vmatprep.subr.bf16.mxu0 0
    %1940 = vmatpush1.bf16.msra.mxu0 0
    %1941 = vmatprep.subr.bf16.mxu0 0
    %1942 = vmatpush1.bf16.msra.mxu0 0
    %1943 = vmatprep.subr.bf16.mxu0 0
    %1944 = vmatpush1.bf16.msra.mxu0 0
    %1945 = vmatprep.subr.bf16.mxu0 0
    %1946 = vmatpush1.bf16.msra.mxu0 0
    %1947 = vmatprep.subr.bf16.mxu0 0
    %1948 = vmatpush1.bf16.msra.mxu0 0
    %1949 = vmatprep.subr.bf16.mxu0 0
    %1950 = vmatpush1.bf16.msra.mxu0 0
    %1951 = vmatprep.subr.bf16.mxu0 0
    %1952 = vmatpush1.bf16.msra.mxu0 0
    %1953 = vmatprep.mubr.bf16.mxu0 0
    %1954 = vmatmul.mubr.bf16.gmra.mrb[0].mxu0 %v1664
    %v1955 = vpop.f32.mrb[0].mxu0
    %v1956 = vadd.f32 0.0, %v1955
    %v1957 = vpop.f32.mrb[0].mxu0
    %v1958 = vadd.f32 0.0, %v1957
    %v1959 = vpop.f32.mrb[0].mxu0
    %v1960 = vadd.f32 0.0, %v1959
    %v1961 = vpop.f32.mrb[0].mxu0
    %v1962 = vadd.f32 0.0, %v1961
    %1963 = vdwg.mxu0
    %v1964 = vadd.f32 %v1678, %v1913
    %v1965 = vadd.f32 %v1679, %v1915
    %v1966 = vadd.f32 %v1680, %v1956
    %v1967 = vadd.f32 %v1681, %v1958
    %v1968 = vadd.f32 %v1682, %v1917
    %v1969 = vadd.f32 %v1683, %v1919
    %v1970 = vadd.f32 %v1684, %v1960
    %v1971 = vadd.f32 %v1685, %v1962
    %v1972 = vsub.f32 0.0, %v1964
    %v1973 = vsub.f32 0.0, %v1965
    %v1974 = vsub.f32 0.0, %v1966
    %v1975 = vsub.f32 0.0, %v1968
    %v1976 = vsub.f32 0.0, %v1969
    %v1977 = vsub.f32 0.0, %v1970
    %v1978 = vmul.f32 %v1972, 1.442695
    %v1979 = vpow.pop %v1978
    %v1980 = vmul.f32 %v1973, 1.442695
    %v1981 = vpow.pop %v1980
    %v1982 = vmul.f32 %v1974, 1.442695
    %v1983 = vpow.pop %v1982
    %v1984 = vmul.f32 %v1975, 1.442695
    %v1985 = vpow.pop %v1984
    %v1986 = vmul.f32 %v1976, 1.442695
    %v1987 = vpow.pop %v1986
    %v1988 = vmul.f32 %v1977, 1.442695
    %v1989 = vpow.pop %v1988
    %v1990 = vadd.f32 %v1979, 1.0
    %v1991 = vadd.f32 %v1981, 1.0
    %v1992 = vadd.f32 %v1983, 1.0
    %v1993 = vadd.f32 %v1985, 1.0
    %v1994 = vadd.f32 %v1987, 1.0
    %v1995 = vadd.f32 %v1989, 1.0
    %v1996 = vrcp.pop %v1990
    %v1997 = vrcp.pop %v1991
    %v1998 = vrcp.pop %v1992
    %v1999 = vrcp.pop %v1993
    %v2000 = vrcp.pop %v1994
    %v2001 = vrcp.pop %v1995
    %v2002 = vtanh.pop %v1967
    %v2003 = vtanh.pop %v1971
    %v2004 = vmul.f32 %v1997, %v1658
    %v2005 = vmul.f32 %v2000, %v1659
    %v2006 = vmul.f32 %v1996, %v2002
    %v2007 = vmul.f32 %v1999, %v2003
    %v2008 = vadd.f32 %v2004, %v2006
    %v2009 = vadd.f32 %v2005, %v2007
    %v2010 = vtanh.pop %v2008
    %v2011 = vtanh.pop %v2009
    %v2012 = vmul.f32 %v1998, %v2010
    %v2013 = vmul.f32 %v2001, %v2011
    %v2014 = vpack.c.bf16 %v2013, %v2012
    %v2016 = vunpack.c.l.b16 %v2014
    %v2017 = vunpack.c.h.b16 %v2014
    %v2018 = vpack.c.b16 %v2016, %v2016
    %v2019 = vpack.c.b16 %v2017, %v2017
    %s2022 = scalar_lea.vmem %s6, 24
    %2023 = vst [vmem:[%s2022] sm:$0xf] %v2018
    %2024 = vst [vmem:[%s2022 + $0x4] sm:$0xf] %v2019
    %s2025 = smul.u32 8, 4
    %s2026 = smul.addr %s2025, 8
    %s2027 = scalar_lea.vmem [#allocation2], %s2026
    %v2028 = vld [vmem:[%s2027] sm:$0xff]
    %v2029 = vld [vmem:[%s2027 + $0x8] sm:$0xff]
    %v2030 = vld [vmem:[%s2027 + $0x10] sm:$0xff]
    %v2031 = vld [vmem:[%s2027 + $0x18] sm:$0xff]
    %v2032 = vld [vmem:[%s2027 + $0x20] sm:$0xff]
    %v2033 = vld [vmem:[%s2027 + $0x28] sm:$0xff]
    %v2034 = vld [vmem:[%s2027 + $0x30] sm:$0xff]
    %v2035 = vld [vmem:[%s2027 + $0x38] sm:$0xff]
    %v2036 = vld [vmem:[#allocation3] sm:$0xff]
    %v2037 = vld [vmem:[#allocation3 + $0x8] sm:$0xff]
    %v2038 = vld [vmem:[#allocation3 + $0x10] sm:$0xff]
    %v2039 = vld [vmem:[#allocation3 + $0x18] sm:$0xff]
    %v2040 = vld [vmem:[#allocation3 + $0x20] sm:$0xff]
    %v2041 = vld [vmem:[#allocation3 + $0x28] sm:$0xff]
    %v2042 = vld [vmem:[#allocation3 + $0x30] sm:$0xff]
    %v2043 = vld [vmem:[#allocation3 + $0x38] sm:$0xff]
    %v2044 = vld [vmem:[#allocation3 + $0x40] sm:$0xff]
    %v2045 = vld [vmem:[#allocation3 + $0x48] sm:$0xff]
    %v2046 = vld [vmem:[#allocation3 + $0x50] sm:$0xff]
    %v2047 = vld [vmem:[#allocation3 + $0x58] sm:$0xff]
    %v2048 = vld [vmem:[#allocation3 + $0x60] sm:$0xff]
    %v2049 = vld [vmem:[#allocation3 + $0x68] sm:$0xff]
    %v2050 = vld [vmem:[#allocation3 + $0x70] sm:$0xff]
    %v2051 = vld [vmem:[#allocation3 + $0x78] sm:$0xff]
    %v2052 = vld [vmem:[#allocation3 + $0x80] sm:$0xff]
    %v2053 = vld [vmem:[#allocation3 + $0x88] sm:$0xff]
    %v2054 = vld [vmem:[#allocation3 + $0x90] sm:$0xff]
    %v2055 = vld [vmem:[#allocation3 + $0x98] sm:$0xff]
    %v2056 = vld [vmem:[#allocation3 + $0xa0] sm:$0xff]
    %v2057 = vld [vmem:[#allocation3 + $0xa8] sm:$0xff]
    %v2058 = vld [vmem:[#allocation3 + $0xb0] sm:$0xff]
    %v2059 = vld [vmem:[#allocation3 + $0xb8] sm:$0xff]
    %v2060 = vld [vmem:[#allocation3 + $0xc0] sm:$0xff]
    %v2061 = vld [vmem:[#allocation3 + $0xc8] sm:$0xff]
    %v2062 = vld [vmem:[#allocation3 + $0xd0] sm:$0xff]
    %v2063 = vld [vmem:[#allocation3 + $0xd8] sm:$0xff]
    %v2064 = vld [vmem:[#allocation3 + $0xe0] sm:$0xff]
    %v2065 = vld [vmem:[#allocation3 + $0xe8] sm:$0xff]
    %v2066 = vld [vmem:[#allocation3 + $0xf0] sm:$0xff]
    %v2067 = vld [vmem:[#allocation3 + $0xf8] sm:$0xff]
    %v2100 = vunpack.c.l.b16 %v2036
    %v2101 = vunpack.c.h.b16 %v2036
    %v2102 = vunpack.c.l.b16 %v2037
    %v2103 = vunpack.c.h.b16 %v2037
    %v2104 = vunpack.c.l.b16 %v2038
    %v2105 = vunpack.c.h.b16 %v2038
    %v2106 = vunpack.c.l.b16 %v2039
    %v2107 = vunpack.c.h.b16 %v2039
    %v2108 = vunpack.c.l.b16 %v2040
    %v2109 = vunpack.c.h.b16 %v2040
    %v2110 = vunpack.c.l.b16 %v2041
    %v2111 = vunpack.c.h.b16 %v2041
    %v2112 = vunpack.c.l.b16 %v2042
    %v2113 = vunpack.c.h.b16 %v2042
    %v2114 = vunpack.c.l.b16 %v2043
    %v2115 = vunpack.c.h.b16 %v2043
    %v2116 = vunpack.c.l.b16 %v2044
    %v2117 = vunpack.c.h.b16 %v2044
    %v2118 = vunpack.c.l.b16 %v2045
    %v2119 = vunpack.c.h.b16 %v2045
    %v2120 = vunpack.c.l.b16 %v2046
    %v2121 = vunpack.c.h.b16 %v2046
    %v2122 = vunpack.c.l.b16 %v2047
    %v2123 = vunpack.c.h.b16 %v2047
    %v2124 = vunpack.c.l.b16 %v2048
    %v2125 = vunpack.c.h.b16 %v2048
    %v2126 = vunpack.c.l.b16 %v2049
    %v2127 = vunpack.c.h.b16 %v2049
    %v2128 = vunpack.c.l.b16 %v2050
    %v2129 = vunpack.c.h.b16 %v2050
    %v2130 = vunpack.c.l.b16 %v2051
    %v2131 = vunpack.c.h.b16 %v2051
    %v2132 = vunpack.c.l.b16 %v2052
    %v2133 = vunpack.c.h.b16 %v2052
    %v2134 = vunpack.c.l.b16 %v2053
    %v2135 = vunpack.c.h.b16 %v2053
    %v2136 = vunpack.c.l.b16 %v2054
    %v2137 = vunpack.c.h.b16 %v2054
    %v2138 = vunpack.c.l.b16 %v2055
    %v2139 = vunpack.c.h.b16 %v2055
    %v2140 = vunpack.c.l.b16 %v2056
    %v2141 = vunpack.c.h.b16 %v2056
    %v2142 = vunpack.c.l.b16 %v2057
    %v2143 = vunpack.c.h.b16 %v2057
    %v2144 = vunpack.c.l.b16 %v2058
    %v2145 = vunpack.c.h.b16 %v2058
    %v2146 = vunpack.c.l.b16 %v2059
    %v2147 = vunpack.c.h.b16 %v2059
    %v2148 = vunpack.c.l.b16 %v2060
    %v2149 = vunpack.c.h.b16 %v2060
    %v2150 = vunpack.c.l.b16 %v2061
    %v2151 = vunpack.c.h.b16 %v2061
    %v2152 = vunpack.c.l.b16 %v2062
    %v2153 = vunpack.c.h.b16 %v2062
    %v2154 = vunpack.c.l.b16 %v2063
    %v2155 = vunpack.c.h.b16 %v2063
    %v2156 = vunpack.c.l.b16 %v2064
    %v2157 = vunpack.c.h.b16 %v2064
    %v2158 = vunpack.c.l.b16 %v2065
    %v2159 = vunpack.c.h.b16 %v2065
    %v2160 = vunpack.c.l.b16 %v2066
    %v2161 = vunpack.c.h.b16 %v2066
    %v2162 = vunpack.c.l.b16 %v2067
    %v2163 = vunpack.c.h.b16 %v2067
    %v2164 = vpack.c.b16 %v2104, %v2100
    %v2165 = vpack.c.b16 %v2105, %v2101
    %v2166 = vpack.c.b16 %v2106, %v2102
    %v2167 = vpack.c.b16 %v2107, %v2103
    %v2168 = vpack.c.b16 %v2112, %v2108
    %v2169 = vpack.c.b16 %v2113, %v2109
    %v2170 = vpack.c.b16 %v2114, %v2110
    %v2171 = vpack.c.b16 %v2115, %v2111
    %v2172 = vpack.c.b16 %v2120, %v2116
    %v2173 = vpack.c.b16 %v2121, %v2117
    %v2174 = vpack.c.b16 %v2122, %v2118
    %v2175 = vpack.c.b16 %v2123, %v2119
    %v2176 = vpack.c.b16 %v2128, %v2124
    %v2177 = vpack.c.b16 %v2129, %v2125
    %v2178 = vpack.c.b16 %v2130, %v2126
    %v2179 = vpack.c.b16 %v2131, %v2127
    %v2180 = vpack.c.b16 %v2136, %v2132
    %v2181 = vpack.c.b16 %v2137, %v2133
    %v2182 = vpack.c.b16 %v2138, %v2134
    %v2183 = vpack.c.b16 %v2139, %v2135
    %v2184 = vpack.c.b16 %v2144, %v2140
    %v2185 = vpack.c.b16 %v2145, %v2141
    %v2186 = vpack.c.b16 %v2146, %v2142
    %v2187 = vpack.c.b16 %v2147, %v2143
    %v2188 = vpack.c.b16 %v2152, %v2148
    %v2189 = vpack.c.b16 %v2153, %v2149
    %v2190 = vpack.c.b16 %v2154, %v2150
    %v2191 = vpack.c.b16 %v2155, %v2151
    %v2192 = vpack.c.b16 %v2160, %v2156
    %v2193 = vpack.c.b16 %v2161, %v2157
    %v2194 = vpack.c.b16 %v2162, %v2158
    %v2195 = vpack.c.b16 %v2163, %v2159
    %2228 = vmatprep.subr.bf16.mxu0 %v2165
    %2229 = vmatpush1.bf16.msra.mxu0 %v2164
    %2230 = vmatprep.subr.bf16.mxu0 %v2169
    %2231 = vmatpush1.bf16.msra.mxu0 %v2168
    %2232 = vmatprep.subr.bf16.mxu0 %v2173
    %2233 = vmatpush1.bf16.msra.mxu0 %v2172
    %2234 = vmatprep.subr.bf16.mxu0 %v2177
    %2235 = vmatpush1.bf16.msra.mxu0 %v2176
    %2236 = vmatprep.subr.bf16.mxu0 %v2181
    %2237 = vmatpush1.bf16.msra.mxu0 %v2180
    %2238 = vmatprep.subr.bf16.mxu0 %v2185
    %2239 = vmatpush1.bf16.msra.mxu0 %v2184
    %2240 = vmatprep.subr.bf16.mxu0 %v2189
    %2241 = vmatpush1.bf16.msra.mxu0 %v2188
    %2242 = vmatprep.subr.bf16.mxu0 %v2193
    %2243 = vmatpush1.bf16.msra.mxu0 %v2192
    %2244 = vmatprep.subr.bf16.mxu0 0
    %2245 = vmatpush1.bf16.msra.mxu0 0
    %2246 = vmatprep.subr.bf16.mxu0 0
    %2247 = vmatpush1.bf16.msra.mxu0 0
    %2248 = vmatprep.subr.bf16.mxu0 0
    %2249 = vmatpush1.bf16.msra.mxu0 0
    %2250 = vmatprep.subr.bf16.mxu0 0
    %2251 = vmatpush1.bf16.msra.mxu0 0
    %2252 = vmatprep.subr.bf16.mxu0 0
    %2253 = vmatpush1.bf16.msra.mxu0 0
    %2254 = vmatprep.subr.bf16.mxu0 0
    %2255 = vmatpush1.bf16.msra.mxu0 0
    %2256 = vmatprep.subr.bf16.mxu0 0
    %2257 = vmatpush1.bf16.msra.mxu0 0
    %2258 = vmatprep.subr.bf16.mxu0 0
    %2259 = vmatpush1.bf16.msra.mxu0 0
    %2260 = vmatprep.mubr.bf16.mxu0 0
    %2261 = vmatmul.mubr.bf16.gmra.mrb[0].mxu0 %v2014
    %v2262 = vpop.f32.mrb[0].mxu0
    %v2263 = vadd.f32 0.0, %v2262
    %v2264 = vpop.f32.mrb[0].mxu0
    %v2265 = vadd.f32 0.0, %v2264
    %v2266 = vpop.f32.mrb[0].mxu0
    %v2267 = vadd.f32 0.0, %v2266
    %v2268 = vpop.f32.mrb[0].mxu0
    %v2269 = vadd.f32 0.0, %v2268
    %2270 = vdwg.mxu0
    %2271 = vmatprep.subr.bf16.mxu0 %v2167
    %2272 = vmatpush1.bf16.msra.mxu0 %v2166
    %2273 = vmatprep.subr.bf16.mxu0 %v2171
    %2274 = vmatpush1.bf16.msra.mxu0 %v2170
    %2275 = vmatprep.subr.bf16.mxu0 %v2175
    %2276 = vmatpush1.bf16.msra.mxu0 %v2174
    %2277 = vmatprep.subr.bf16.mxu0 %v2179
    %2278 = vmatpush1.bf16.msra.mxu0 %v2178
    %2279 = vmatprep.subr.bf16.mxu0 %v2183
    %2280 = vmatpush1.bf16.msra.mxu0 %v2182
    %2281 = vmatprep.subr.bf16.mxu0 %v2187
    %2282 = vmatpush1.bf16.msra.mxu0 %v2186
    %2283 = vmatprep.subr.bf16.mxu0 %v2191
    %2284 = vmatpush1.bf16.msra.mxu0 %v2190
    %2285 = vmatprep.subr.bf16.mxu0 %v2195
    %2286 = vmatpush1.bf16.msra.mxu0 %v2194
    %2287 = vmatprep.subr.bf16.mxu0 0
    %2288 = vmatpush1.bf16.msra.mxu0 0
    %2289 = vmatprep.subr.bf16.mxu0 0
    %2290 = vmatpush1.bf16.msra.mxu0 0
    %2291 = vmatprep.subr.bf16.mxu0 0
    %2292 = vmatpush1.bf16.msra.mxu0 0
    %2293 = vmatprep.subr.bf16.mxu0 0
    %2294 = vmatpush1.bf16.msra.mxu0 0
    %2295 = vmatprep.subr.bf16.mxu0 0
    %2296 = vmatpush1.bf16.msra.mxu0 0
    %2297 = vmatprep.subr.bf16.mxu0 0
    %2298 = vmatpush1.bf16.msra.mxu0 0
    %2299 = vmatprep.subr.bf16.mxu0 0
    %2300 = vmatpush1.bf16.msra.mxu0 0
    %2301 = vmatprep.subr.bf16.mxu0 0
    %2302 = vmatpush1.bf16.msra.mxu0 0
    %2303 = vmatprep.mubr.bf16.mxu0 0
    %2304 = vmatmul.mubr.bf16.gmra.mrb[0].mxu0 %v2014
    %v2305 = vpop.f32.mrb[0].mxu0
    %v2306 = vadd.f32 0.0, %v2305
    %v2307 = vpop.f32.mrb[0].mxu0
    %v2308 = vadd.f32 0.0, %v2307
    %v2309 = vpop.f32.mrb[0].mxu0
    %v2310 = vadd.f32 0.0, %v2309
    %v2311 = vpop.f32.mrb[0].mxu0
    %v2312 = vadd.f32 0.0, %v2311
    %2313 = vdwg.mxu0
    %v2314 = vadd.f32 %v2028, %v2263
    %v2315 = vadd.f32 %v2029, %v2265
    %v2316 = vadd.f32 %v2030, %v2306
    %v2317 = vadd.f32 %v2031, %v2308
    %v2318 = vadd.f32 %v2032, %v2267
    %v2319 = vadd.f32 %v2033, %v2269
    %v2320 = vadd.f32 %v2034, %v2310
    %v2321 = vadd.f32 %v2035, %v2312
    %v2322 = vsub.f32 0.0, %v2314
    %v2323 = vsub.f32 0.0, %v2315
    %v2324 = vsub.f32 0.0, %v2316
    %v2325 = vsub.f32 0.0, %v2318
    %v2326 = vsub.f32 0.0, %v2319
    %v2327 = vsub.f32 0.0, %v2320
    %v2328 = vmul.f32 %v2322, 1.442695
    %v2329 = vpow.pop %v2328
    %v2330 = vmul.f32 %v2323, 1.442695
    %v2331 = vpow.pop %v2330
    %v2332 = vmul.f32 %v2324, 1.442695
    %v2333 = vpow.pop %v2332
    %v2334 = vmul.f32 %v2325, 1.442695
    %v2335 = vpow.pop %v2334
    %v2336 = vmul.f32 %v2326, 1.442695
    %v2337 = vpow.pop %v2336
    %v2338 = vmul.f32 %v2327, 1.442695
    %v2339 = vpow.pop %v2338
    %v2340 = vadd.f32 %v2329, 1.0
    %v2341 = vadd.f32 %v2331, 1.0
    %v2342 = vadd.f32 %v2333, 1.0
    %v2343 = vadd.f32 %v2335, 1.0
    %v2344 = vadd.f32 %v2337, 1.0
    %v2345 = vadd.f32 %v2339, 1.0
    %v2346 = vrcp.pop %v2340
    %v2347 = vrcp.pop %v2341
    %v2348 = vrcp.pop %v2342
    %v2349 = vrcp.pop %v2343
    %v2350 = vrcp.pop %v2344
    %v2351 = vrcp.pop %v2345
    %v2352 = vtanh.pop %v2317
    %v2353 = vtanh.pop %v2321
    %v2354 = vmul.f32 %v2347, %v2008
    %v2355 = vmul.f32 %v2350, %v2009
    %v2356 = vmul.f32 %v2346, %v2352
    %v2357 = vmul.f32 %v2349, %v2353
    %v2358 = vadd.f32 %v2354, %v2356
    %v2359 = vadd.f32 %v2355, %v2357
    %v2360 = vtanh.pop %v2358
    %v2361 = vtanh.pop %v2359
    %v2362 = vmul.f32 %v2348, %v2360
    %v2363 = vmul.f32 %v2351, %v2361
    %v2364 = vpack.c.bf16 %v2363, %v2362
    %v2366 = vunpack.c.l.b16 %v2364
    %v2367 = vunpack.c.h.b16 %v2364
    %v2368 = vpack.c.b16 %v2366, %v2366
    %v2369 = vpack.c.b16 %v2367, %v2367
    %s2372 = scalar_lea.vmem %s6, 32
    %2373 = vst [vmem:[%s2372] sm:$0xf] %v2368
    %2374 = vst [vmem:[%s2372 + $0x4] sm:$0xf] %v2369
    %s2375 = smul.u32 10, 4
    %s2376 = smul.addr %s2375, 8
    %s2377 = scalar_lea.vmem [#allocation2], %s2376
    %v2378 = vld [vmem:[%s2377] sm:$0xff]
    %v2379 = vld [vmem:[%s2377 + $0x8] sm:$0xff]
    %v2380 = vld [vmem:[%s2377 + $0x10] sm:$0xff]
    %v2381 = vld [vmem:[%s2377 + $0x18] sm:$0xff]
    %v2382 = vld [vmem:[%s2377 + $0x20] sm:$0xff]
    %v2383 = vld [vmem:[%s2377 + $0x28] sm:$0xff]
    %v2384 = vld [vmem:[%s2377 + $0x30] sm:$0xff]
    %v2385 = vld [vmem:[%s2377 + $0x38] sm:$0xff]
    %v2386 = vld [vmem:[#allocation3] sm:$0xff]
    %v2387 = vld [vmem:[#allocation3 + $0x8] sm:$0xff]
    %v2388 = vld [vmem:[#allocation3 + $0x10] sm:$0xff]
    %v2389 = vld [vmem:[#allocation3 + $0x18] sm:$0xff]
    %v2390 = vld [vmem:[#allocation3 + $0x20] sm:$0xff]
    %v2391 = vld [vmem:[#allocation3 + $0x28] sm:$0xff]
    %v2392 = vld [vmem:[#allocation3 + $0x30] sm:$0xff]
    %v2393 = vld [vmem:[#allocation3 + $0x38] sm:$0xff]
    %v2394 = vld [vmem:[#allocation3 + $0x40] sm:$0xff]
    %v2395 = vld [vmem:[#allocation3 + $0x48] sm:$0xff]
    %v2396 = vld [vmem:[#allocation3 + $0x50] sm:$0xff]
    %v2397 = vld [vmem:[#allocation3 + $0x58] sm:$0xff]
    %v2398 = vld [vmem:[#allocation3 + $0x60] sm:$0xff]
    %v2399 = vld [vmem:[#allocation3 + $0x68] sm:$0xff]
    %v2400 = vld [vmem:[#allocation3 + $0x70] sm:$0xff]
    %v2401 = vld [vmem:[#allocation3 + $0x78] sm:$0xff]
    %v2402 = vld [vmem:[#allocation3 + $0x80] sm:$0xff]
    %v2403 = vld [vmem:[#allocation3 + $0x88] sm:$0xff]
    %v2404 = vld [vmem:[#allocation3 + $0x90] sm:$0xff]
    %v2405 = vld [vmem:[#allocation3 + $0x98] sm:$0xff]
    %v2406 = vld [vmem:[#allocation3 + $0xa0] sm:$0xff]
    %v2407 = vld [vmem:[#allocation3 + $0xa8] sm:$0xff]
    %v2408 = vld [vmem:[#allocation3 + $0xb0] sm:$0xff]
    %v2409 = vld [vmem:[#allocation3 + $0xb8] sm:$0xff]
    %v2410 = vld [vmem:[#allocation3 + $0xc0] sm:$0xff]
    %v2411 = vld [vmem:[#allocation3 + $0xc8] sm:$0xff]
    %v2412 = vld [vmem:[#allocation3 + $0xd0] sm:$0xff]
    %v2413 = vld [vmem:[#allocation3 + $0xd8] sm:$0xff]
    %v2414 = vld [vmem:[#allocation3 + $0xe0] sm:$0xff]
    %v2415 = vld [vmem:[#allocation3 + $0xe8] sm:$0xff]
    %v2416 = vld [vmem:[#allocation3 + $0xf0] sm:$0xff]
    %v2417 = vld [vmem:[#allocation3 + $0xf8] sm:$0xff]
    %v2450 = vunpack.c.l.b16 %v2386
    %v2451 = vunpack.c.h.b16 %v2386
    %v2452 = vunpack.c.l.b16 %v2387
    %v2453 = vunpack.c.h.b16 %v2387
    %v2454 = vunpack.c.l.b16 %v2388
    %v2455 = vunpack.c.h.b16 %v2388
    %v2456 = vunpack.c.l.b16 %v2389
    %v2457 = vunpack.c.h.b16 %v2389
    %v2458 = vunpack.c.l.b16 %v2390
    %v2459 = vunpack.c.h.b16 %v2390
    %v2460 = vunpack.c.l.b16 %v2391
    %v2461 = vunpack.c.h.b16 %v2391
    %v2462 = vunpack.c.l.b16 %v2392
    %v2463 = vunpack.c.h.b16 %v2392
    %v2464 = vunpack.c.l.b16 %v2393
    %v2465 = vunpack.c.h.b16 %v2393
    %v2466 = vunpack.c.l.b16 %v2394
    %v2467 = vunpack.c.h.b16 %v2394
    %v2468 = vunpack.c.l.b16 %v2395
    %v2469 = vunpack.c.h.b16 %v2395
    %v2470 = vunpack.c.l.b16 %v2396
    %v2471 = vunpack.c.h.b16 %v2396
    %v2472 = vunpack.c.l.b16 %v2397
    %v2473 = vunpack.c.h.b16 %v2397
    %v2474 = vunpack.c.l.b16 %v2398
    %v2475 = vunpack.c.h.b16 %v2398
    %v2476 = vunpack.c.l.b16 %v2399
    %v2477 = vunpack.c.h.b16 %v2399
    %v2478 = vunpack.c.l.b16 %v2400
    %v2479 = vunpack.c.h.b16 %v2400
    %v2480 = vunpack.c.l.b16 %v2401
    %v2481 = vunpack.c.h.b16 %v2401
    %v2482 = vunpack.c.l.b16 %v2402
    %v2483 = vunpack.c.h.b16 %v2402
    %v2484 = vunpack.c.l.b16 %v2403
    %v2485 = vunpack.c.h.b16 %v2403
    %v2486 = vunpack.c.l.b16 %v2404
    %v2487 = vunpack.c.h.b16 %v2404
    %v2488 = vunpack.c.l.b16 %v2405
    %v2489 = vunpack.c.h.b16 %v2405
    %v2490 = vunpack.c.l.b16 %v2406
    %v2491 = vunpack.c.h.b16 %v2406
    %v2492 = vunpack.c.l.b16 %v2407
    %v2493 = vunpack.c.h.b16 %v2407
    %v2494 = vunpack.c.l.b16 %v2408
    %v2495 = vunpack.c.h.b16 %v2408
    %v2496 = vunpack.c.l.b16 %v2409
    %v2497 = vunpack.c.h.b16 %v2409
    %v2498 = vunpack.c.l.b16 %v2410
    %v2499 = vunpack.c.h.b16 %v2410
    %v2500 = vunpack.c.l.b16 %v2411
    %v2501 = vunpack.c.h.b16 %v2411
    %v2502 = vunpack.c.l.b16 %v2412
    %v2503 = vunpack.c.h.b16 %v2412
    %v2504 = vunpack.c.l.b16 %v2413
    %v2505 = vunpack.c.h.b16 %v2413
    %v2506 = vunpack.c.l.b16 %v2414
    %v2507 = vunpack.c.h.b16 %v2414
    %v2508 = vunpack.c.l.b16 %v2415
    %v2509 = vunpack.c.h.b16 %v2415
    %v2510 = vunpack.c.l.b16 %v2416
    %v2511 = vunpack.c.h.b16 %v2416
    %v2512 = vunpack.c.l.b16 %v2417
    %v2513 = vunpack.c.h.b16 %v2417
    %v2514 = vpack.c.b16 %v2454, %v2450
    %v2515 = vpack.c.b16 %v2455, %v2451
    %v2516 = vpack.c.b16 %v2456, %v2452
    %v2517 = vpack.c.b16 %v2457, %v2453
    %v2518 = vpack.c.b16 %v2462, %v2458
    %v2519 = vpack.c.b16 %v2463, %v2459
    %v2520 = vpack.c.b16 %v2464, %v2460
    %v2521 = vpack.c.b16 %v2465, %v2461
    %v2522 = vpack.c.b16 %v2470, %v2466
    %v2523 = vpack.c.b16 %v2471, %v2467
    %v2524 = vpack.c.b16 %v2472, %v2468
    %v2525 = vpack.c.b16 %v2473, %v2469
    %v2526 = vpack.c.b16 %v2478, %v2474
    %v2527 = vpack.c.b16 %v2479, %v2475
    %v2528 = vpack.c.b16 %v2480, %v2476
    %v2529 = vpack.c.b16 %v2481, %v2477
    %v2530 = vpack.c.b16 %v2486, %v2482
    %v2531 = vpack.c.b16 %v2487, %v2483
    %v2532 = vpack.c.b16 %v2488, %v2484
    %v2533 = vpack.c.b16 %v2489, %v2485
    %v2534 = vpack.c.b16 %v2494, %v2490
    %v2535 = vpack.c.b16 %v2495, %v2491
    %v2536 = vpack.c.b16 %v2496, %v2492
    %v2537 = vpack.c.b16 %v2497, %v2493
    %v2538 = vpack.c.b16 %v2502, %v2498
    %v2539 = vpack.c.b16 %v2503, %v2499
    %v2540 = vpack.c.b16 %v2504, %v2500
    %v2541 = vpack.c.b16 %v2505, %v2501
    %v2542 = vpack.c.b16 %v2510, %v2506
    %v2543 = vpack.c.b16 %v2511, %v2507
    %v2544 = vpack.c.b16 %v2512, %v2508
    %v2545 = vpack.c.b16 %v2513, %v2509
    %2578 = vmatprep.subr.bf16.mxu0 %v2515
    %2579 = vmatpush1.bf16.msra.mxu0 %v2514
    %2580 = vmatprep.subr.bf16.mxu0 %v2519
    %2581 = vmatpush1.bf16.msra.mxu0 %v2518
    %2582 = vmatprep.subr.bf16.mxu0 %v2523
    %2583 = vmatpush1.bf16.msra.mxu0 %v2522
    %2584 = vmatprep.subr.bf16.mxu0 %v2527
    %2585 = vmatpush1.bf16.msra.mxu0 %v2526
    %2586 = vmatprep.subr.bf16.mxu0 %v2531
    %2587 = vmatpush1.bf16.msra.mxu0 %v2530
    %2588 = vmatprep.subr.bf16.mxu0 %v2535
    %2589 = vmatpush1.bf16.msra.mxu0 %v2534
    %2590 = vmatprep.subr.bf16.mxu0 %v2539
    %2591 = vmatpush1.bf16.msra.mxu0 %v2538
    %2592 = vmatprep.subr.bf16.mxu0 %v2543
    %2593 = vmatpush1.bf16.msra.mxu0 %v2542
    %2594 = vmatprep.subr.bf16.mxu0 0
    %2595 = vmatpush1.bf16.msra.mxu0 0
    %2596 = vmatprep.subr.bf16.mxu0 0
    %2597 = vmatpush1.bf16.msra.mxu0 0
    %2598 = vmatprep.subr.bf16.mxu0 0
    %2599 = vmatpush1.bf16.msra.mxu0 0
    %2600 = vmatprep.subr.bf16.mxu0 0
    %2601 = vmatpush1.bf16.msra.mxu0 0
    %2602 = vmatprep.subr.bf16.mxu0 0
    %2603 = vmatpush1.bf16.msra.mxu0 0
    %2604 = vmatprep.subr.bf16.mxu0 0
    %2605 = vmatpush1.bf16.msra.mxu0 0
    %2606 = vmatprep.subr.bf16.mxu0 0
    %2607 = vmatpush1.bf16.msra.mxu0 0
    %2608 = vmatprep.subr.bf16.mxu0 0
    %2609 = vmatpush1.bf16.msra.mxu0 0
    %2610 = vmatprep.mubr.bf16.mxu0 0
    %2611 = vmatmul.mubr.bf16.gmra.mrb[0].mxu0 %v2364
    %v2612 = vpop.f32.mrb[0].mxu0
    %v2613 = vadd.f32 0.0, %v2612
    %v2614 = vpop.f32.mrb[0].mxu0
    %v2615 = vadd.f32 0.0, %v2614
    %v2616 = vpop.f32.mrb[0].mxu0
    %v2617 = vadd.f32 0.0, %v2616
    %v2618 = vpop.f32.mrb[0].mxu0
    %v2619 = vadd.f32 0.0, %v2618
    %2620 = vdwg.mxu0
    %2621 = vmatprep.subr.bf16.mxu0 %v2517
    %2622 = vmatpush1.bf16.msra.mxu0 %v2516
    %2623 = vmatprep.subr.bf16.mxu0 %v2521
    %2624 = vmatpush1.bf16.msra.mxu0 %v2520
    %2625 = vmatprep.subr.bf16.mxu0 %v2525
    %2626 = vmatpush1.bf16.msra.mxu0 %v2524
    %2627 = vmatprep.subr.bf16.mxu0 %v2529
    %2628 = vmatpush1.bf16.msra.mxu0 %v2528
    %2629 = vmatprep.subr.bf16.mxu0 %v2533
    %2630 = vmatpush1.bf16.msra.mxu0 %v2532
    %2631 = vmatprep.subr.bf16.mxu0 %v2537
    %2632 = vmatpush1.bf16.msra.mxu0 %v2536
    %2633 = vmatprep.subr.bf16.mxu0 %v2541
    %2634 = vmatpush1.bf16.msra.mxu0 %v2540
    %2635 = vmatprep.subr.bf16.mxu0 %v2545
    %2636 = vmatpush1.bf16.msra.mxu0 %v2544
    %2637 = vmatprep.subr.bf16.mxu0 0
    %2638 = vmatpush1.bf16.msra.mxu0 0
    %2639 = vmatprep.subr.bf16.mxu0 0
    %2640 = vmatpush1.bf16.msra.mxu0 0
    %2641 = vmatprep.subr.bf16.mxu0 0
    %2642 = vmatpush1.bf16.msra.mxu0 0
    %2643 = vmatprep.subr.bf16.mxu0 0
    %2644 = vmatpush1.bf16.msra.mxu0 0
    %2645 = vmatprep.subr.bf16.mxu0 0
    %2646 = vmatpush1.bf16.msra.mxu0 0
    %2647 = vmatprep.subr.bf16.mxu0 0
    %2648 = vmatpush1.bf16.msra.mxu0 0
    %2649 = vmatprep.subr.bf16.mxu0 0
    %2650 = vmatpush1.bf16.msra.mxu0 0
    %2651 = vmatprep.subr.bf16.mxu0 0
    %2652 = vmatpush1.bf16.msra.mxu0 0
    %2653 = vmatprep.mubr.bf16.mxu0 0
    %2654 = vmatmul.mubr.bf16.gmra.mrb[0].mxu0 %v2364
    %v2655 = vpop.f32.mrb[0].mxu0
    %v2656 = vadd.f32 0.0, %v2655
    %v2657 = vpop.f32.mrb[0].mxu0
    %v2658 = vadd.f32 0.0, %v2657
    %v2659 = vpop.f32.mrb[0].mxu0
    %v2660 = vadd.f32 0.0, %v2659
    %v2661 = vpop.f32.mrb[0].mxu0
    %v2662 = vadd.f32 0.0, %v2661
    %2663 = vdwg.mxu0
    %v2664 = vadd.f32 %v2378, %v2613
    %v2665 = vadd.f32 %v2379, %v2615
    %v2666 = vadd.f32 %v2380, %v2656
    %v2667 = vadd.f32 %v2381, %v2658
    %v2668 = vadd.f32 %v2382, %v2617
    %v2669 = vadd.f32 %v2383, %v2619
    %v2670 = vadd.f32 %v2384, %v2660
    %v2671 = vadd.f32 %v2385, %v2662
    %v2672 = vsub.f32 0.0, %v2664
    %v2673 = vsub.f32 0.0, %v2665
    %v2674 = vsub.f32 0.0, %v2666
    %v2675 = vsub.f32 0.0, %v2668
    %v2676 = vsub.f32 0.0, %v2669
    %v2677 = vsub.f32 0.0, %v2670
    %v2678 = vmul.f32 %v2672, 1.442695
    %v2679 = vpow.pop %v2678
    %v2680 = vmul.f32 %v2673, 1.442695
    %v2681 = vpow.pop %v2680
    %v2682 = vmul.f32 %v2674, 1.442695
    %v2683 = vpow.pop %v2682
    %v2684 = vmul.f32 %v2675, 1.442695
    %v2685 = vpow.pop %v2684
    %v2686 = vmul.f32 %v2676, 1.442695
    %v2687 = vpow.pop %v2686
    %v2688 = vmul.f32 %v2677, 1.442695
    %v2689 = vpow.pop %v2688
    %v2690 = vadd.f32 %v2679, 1.0
    %v2691 = vadd.f32 %v2681, 1.0
    %v2692 = vadd.f32 %v2683, 1.0
    %v2693 = vadd.f32 %v2685, 1.0
    %v2694 = vadd.f32 %v2687, 1.0
    %v2695 = vadd.f32 %v2689, 1.0
    %v2696 = vrcp.pop %v2690
    %v2697 = vrcp.pop %v2691
    %v2698 = vrcp.pop %v2692
    %v2699 = vrcp.pop %v2693
    %v2700 = vrcp.pop %v2694
    %v2701 = vrcp.pop %v2695
    %v2702 = vtanh.pop %v2667
    %v2703 = vtanh.pop %v2671
    %v2704 = vmul.f32 %v2697, %v2358
    %v2705 = vmul.f32 %v2700, %v2359
    %v2706 = vmul.f32 %v2696, %v2702
    %v2707 = vmul.f32 %v2699, %v2703
    %v2708 = vadd.f32 %v2704, %v2706
    %v2709 = vadd.f32 %v2705, %v2707
    %v2710 = vtanh.pop %v2708
    %v2711 = vtanh.pop %v2709
    %v2712 = vmul.f32 %v2698, %v2710
    %v2713 = vmul.f32 %v2701, %v2711
    %v2714 = vpack.c.bf16 %v2713, %v2712
    %v2716 = vunpack.c.l.b16 %v2714
    %v2717 = vunpack.c.h.b16 %v2714
    %v2718 = vpack.c.b16 %v2716, %v2716
    %v2719 = vpack.c.b16 %v2717, %v2717
    %s2722 = scalar_lea.vmem %s6, 40
    %2723 = vst [vmem:[%s2722] sm:$0xf] %v2718
    %2724 = vst [vmem:[%s2722 + $0x4] sm:$0xf] %v2719
    %s2725 = smul.u32 12, 4
    %s2726 = smul.addr %s2725, 8
    %s2727 = scalar_lea.vmem [#allocation2], %s2726
    %v2728 = vld [vmem:[%s2727] sm:$0xff]
    %v2729 = vld [vmem:[%s2727 + $0x8] sm:$0xff]
    %v2730 = vld [vmem:[%s2727 + $0x10] sm:$0xff]
    %v2731 = vld [vmem:[%s2727 + $0x18] sm:$0xff]
    %v2732 = vld [vmem:[%s2727 + $0x20] sm:$0xff]
    %v2733 = vld [vmem:[%s2727 + $0x28] sm:$0xff]
    %v2734 = vld [vmem:[%s2727 + $0x30] sm:$0xff]
    %v2735 = vld [vmem:[%s2727 + $0x38] sm:$0xff]
    %v2736 = vld [vmem:[#allocation3] sm:$0xff]
    %v2737 = vld [vmem:[#allocation3 + $0x8] sm:$0xff]
    %v2738 = vld [vmem:[#allocation3 + $0x10] sm:$0xff]
    %v2739 = vld [vmem:[#allocation3 + $0x18] sm:$0xff]
    %v2740 = vld [vmem:[#allocation3 + $0x20] sm:$0xff]
    %v2741 = vld [vmem:[#allocation3 + $0x28] sm:$0xff]
    %v2742 = vld [vmem:[#allocation3 + $0x30] sm:$0xff]
    %v2743 = vld [vmem:[#allocation3 + $0x38] sm:$0xff]
    %v2744 = vld [vmem:[#allocation3 + $0x40] sm:$0xff]
    %v2745 = vld [vmem:[#allocation3 + $0x48] sm:$0xff]
    %v2746 = vld [vmem:[#allocation3 + $0x50] sm:$0xff]
    %v2747 = vld [vmem:[#allocation3 + $0x58] sm:$0xff]
    %v2748 = vld [vmem:[#allocation3 + $0x60] sm:$0xff]
    %v2749 = vld [vmem:[#allocation3 + $0x68] sm:$0xff]
    %v2750 = vld [vmem:[#allocation3 + $0x70] sm:$0xff]
    %v2751 = vld [vmem:[#allocation3 + $0x78] sm:$0xff]
    %v2752 = vld [vmem:[#allocation3 + $0x80] sm:$0xff]
    %v2753 = vld [vmem:[#allocation3 + $0x88] sm:$0xff]
    %v2754 = vld [vmem:[#allocation3 + $0x90] sm:$0xff]
    %v2755 = vld [vmem:[#allocation3 + $0x98] sm:$0xff]
    %v2756 = vld [vmem:[#allocation3 + $0xa0] sm:$0xff]
    %v2757 = vld [vmem:[#allocation3 + $0xa8] sm:$0xff]
    %v2758 = vld [vmem:[#allocation3 + $0xb0] sm:$0xff]
    %v2759 = vld [vmem:[#allocation3 + $0xb8] sm:$0xff]
    %v2760 = vld [vmem:[#allocation3 + $0xc0] sm:$0xff]
    %v2761 = vld [vmem:[#allocation3 + $0xc8] sm:$0xff]
    %v2762 = vld [vmem:[#allocation3 + $0xd0] sm:$0xff]
    %v2763 = vld [vmem:[#allocation3 + $0xd8] sm:$0xff]
    %v2764 = vld [vmem:[#allocation3 + $0xe0] sm:$0xff]
    %v2765 = vld [vmem:[#allocation3 + $0xe8] sm:$0xff]
    %v2766 = vld [vmem:[#allocation3 + $0xf0] sm:$0xff]
    %v2767 = vld [vmem:[#allocation3 + $0xf8] sm:$0xff]
    %v2800 = vunpack.c.l.b16 %v2736
    %v2801 = vunpack.c.h.b16 %v2736
    %v2802 = vunpack.c.l.b16 %v2737
    %v2803 = vunpack.c.h.b16 %v2737
    %v2804 = vunpack.c.l.b16 %v2738
    %v2805 = vunpack.c.h.b16 %v2738
    %v2806 = vunpack.c.l.b16 %v2739
    %v2807 = vunpack.c.h.b16 %v2739
    %v2808 = vunpack.c.l.b16 %v2740
    %v2809 = vunpack.c.h.b16 %v2740
    %v2810 = vunpack.c.l.b16 %v2741
    %v2811 = vunpack.c.h.b16 %v2741
    %v2812 = vunpack.c.l.b16 %v2742
    %v2813 = vunpack.c.h.b16 %v2742
    %v2814 = vunpack.c.l.b16 %v2743
    %v2815 = vunpack.c.h.b16 %v2743
    %v2816 = vunpack.c.l.b16 %v2744
    %v2817 = vunpack.c.h.b16 %v2744
    %v2818 = vunpack.c.l.b16 %v2745
    %v2819 = vunpack.c.h.b16 %v2745
    %v2820 = vunpack.c.l.b16 %v2746
    %v2821 = vunpack.c.h.b16 %v2746
    %v2822 = vunpack.c.l.b16 %v2747
    %v2823 = vunpack.c.h.b16 %v2747
    %v2824 = vunpack.c.l.b16 %v2748
    %v2825 = vunpack.c.h.b16 %v2748
    %v2826 = vunpack.c.l.b16 %v2749
    %v2827 = vunpack.c.h.b16 %v2749
    %v2828 = vunpack.c.l.b16 %v2750
    %v2829 = vunpack.c.h.b16 %v2750
    %v2830 = vunpack.c.l.b16 %v2751
    %v2831 = vunpack.c.h.b16 %v2751
    %v2832 = vunpack.c.l.b16 %v2752
    %v2833 = vunpack.c.h.b16 %v2752
    %v2834 = vunpack.c.l.b16 %v2753
    %v2835 = vunpack.c.h.b16 %v2753
    %v2836 = vunpack.c.l.b16 %v2754
    %v2837 = vunpack.c.h.b16 %v2754
    %v2838 = vunpack.c.l.b16 %v2755
    %v2839 = vunpack.c.h.b16 %v2755
    %v2840 = vunpack.c.l.b16 %v2756
    %v2841 = vunpack.c.h.b16 %v2756
    %v2842 = vunpack.c.l.b16 %v2757
    %v2843 = vunpack.c.h.b16 %v2757
    %v2844 = vunpack.c.l.b16 %v2758
    %v2845 = vunpack.c.h.b16 %v2758
    %v2846 = vunpack.c.l.b16 %v2759
    %v2847 = vunpack.c.h.b16 %v2759
    %v2848 = vunpack.c.l.b16 %v2760
    %v2849 = vunpack.c.h.b16 %v2760
    %v2850 = vunpack.c.l.b16 %v2761
    %v2851 = vunpack.c.h.b16 %v2761
    %v2852 = vunpack.c.l.b16 %v2762
    %v2853 = vunpack.c.h.b16 %v2762
    %v2854 = vunpack.c.l.b16 %v2763
    %v2855 = vunpack.c.h.b16 %v2763
    %v2856 = vunpack.c.l.b16 %v2764
    %v2857 = vunpack.c.h.b16 %v2764
    %v2858 = vunpack.c.l.b16 %v2765
    %v2859 = vunpack.c.h.b16 %v2765
    %v2860 = vunpack.c.l.b16 %v2766
    %v2861 = vunpack.c.h.b16 %v2766
    %v2862 = vunpack.c.l.b16 %v2767
    %v2863 = vunpack.c.h.b16 %v2767
    %v2864 = vpack.c.b16 %v2804, %v2800
    %v2865 = vpack.c.b16 %v2805, %v2801
    %v2866 = vpack.c.b16 %v2806, %v2802
    %v2867 = vpack.c.b16 %v2807, %v2803
    %v2868 = vpack.c.b16 %v2812, %v2808
    %v2869 = vpack.c.b16 %v2813, %v2809
    %v2870 = vpack.c.b16 %v2814, %v2810
    %v2871 = vpack.c.b16 %v2815, %v2811
    %v2872 = vpack.c.b16 %v2820, %v2816
    %v2873 = vpack.c.b16 %v2821, %v2817
    %v2874 = vpack.c.b16 %v2822, %v2818
    %v2875 = vpack.c.b16 %v2823, %v2819
    %v2876 = vpack.c.b16 %v2828, %v2824
    %v2877 = vpack.c.b16 %v2829, %v2825
    %v2878 = vpack.c.b16 %v2830, %v2826
    %v2879 = vpack.c.b16 %v2831, %v2827
    %v2880 = vpack.c.b16 %v2836, %v2832
    %v2881 = vpack.c.b16 %v2837, %v2833
    %v2882 = vpack.c.b16 %v2838, %v2834
    %v2883 = vpack.c.b16 %v2839, %v2835
    %v2884 = vpack.c.b16 %v2844, %v2840
    %v2885 = vpack.c.b16 %v2845, %v2841
    %v2886 = vpack.c.b16 %v2846, %v2842
    %v2887 = vpack.c.b16 %v2847, %v2843
    %v2888 = vpack.c.b16 %v2852, %v2848
    %v2889 = vpack.c.b16 %v2853, %v2849
    %v2890 = vpack.c.b16 %v2854, %v2850
    %v2891 = vpack.c.b16 %v2855, %v2851
    %v2892 = vpack.c.b16 %v2860, %v2856
    %v2893 = vpack.c.b16 %v2861, %v2857
    %v2894 = vpack.c.b16 %v2862, %v2858
    %v2895 = vpack.c.b16 %v2863, %v2859
    %2928 = vmatprep.subr.bf16.mxu0 %v2865
    %2929 = vmatpush1.bf16.msra.mxu0 %v2864
    %2930 = vmatprep.subr.bf16.mxu0 %v2869
    %2931 = vmatpush1.bf16.msra.mxu0 %v2868
    %2932 = vmatprep.subr.bf16.mxu0 %v2873
    %2933 = vmatpush1.bf16.msra.mxu0 %v2872
    %2934 = vmatprep.subr.bf16.mxu0 %v2877
    %2935 = vmatpush1.bf16.msra.mxu0 %v2876
    %2936 = vmatprep.subr.bf16.mxu0 %v2881
    %2937 = vmatpush1.bf16.msra.mxu0 %v2880
    %2938 = vmatprep.subr.bf16.mxu0 %v2885
    %2939 = vmatpush1.bf16.msra.mxu0 %v2884
    %2940 = vmatprep.subr.bf16.mxu0 %v2889
    %2941 = vmatpush1.bf16.msra.mxu0 %v2888
    %2942 = vmatprep.subr.bf16.mxu0 %v2893
    %2943 = vmatpush1.bf16.msra.mxu0 %v2892
    %2944 = vmatprep.subr.bf16.mxu0 0
    %2945 = vmatpush1.bf16.msra.mxu0 0
    %2946 = vmatprep.subr.bf16.mxu0 0
    %2947 = vmatpush1.bf16.msra.mxu0 0
    %2948 = vmatprep.subr.bf16.mxu0 0
    %2949 = vmatpush1.bf16.msra.mxu0 0
    %2950 = vmatprep.subr.bf16.mxu0 0
    %2951 = vmatpush1.bf16.msra.mxu0 0
    %2952 = vmatprep.subr.bf16.mxu0 0
    %2953 = vmatpush1.bf16.msra.mxu0 0
    %2954 = vmatprep.subr.bf16.mxu0 0
    %2955 = vmatpush1.bf16.msra.mxu0 0
    %2956 = vmatprep.subr.bf16.mxu0 0
    %2957 = vmatpush1.bf16.msra.mxu0 0
    %2958 = vmatprep.subr.bf16.mxu0 0
    %2959 = vmatpush1.bf16.msra.mxu0 0
    %2960 = vmatprep.mubr.bf16.mxu0 0
    %2961 = vmatmul.mubr.bf16.gmra.mrb[0].mxu0 %v2714
    %v2962 = vpop.f32.mrb[0].mxu0
    %v2963 = vadd.f32 0.0, %v2962
    %v2964 = vpop.f32.mrb[0].mxu0
    %v2965 = vadd.f32 0.0, %v2964
    %v2966 = vpop.f32.mrb[0].mxu0
    %v2967 = vadd.f32 0.0, %v2966
    %v2968 = vpop.f32.mrb[0].mxu0
    %v2969 = vadd.f32 0.0, %v2968
    %2970 = vdwg.mxu0
    %2971 = vmatprep.subr.bf16.mxu0 %v2867
    %2972 = vmatpush1.bf16.msra.mxu0 %v2866
    %2973 = vmatprep.subr.bf16.mxu0 %v2871
    %2974 = vmatpush1.bf16.msra.mxu0 %v2870
    %2975 = vmatprep.subr.bf16.mxu0 %v2875
    %2976 = vmatpush1.bf16.msra.mxu0 %v2874
    %2977 = vmatprep.subr.bf16.mxu0 %v2879
    %2978 = vmatpush1.bf16.msra.mxu0 %v2878
    %2979 = vmatprep.subr.bf16.mxu0 %v2883
    %2980 = vmatpush1.bf16.msra.mxu0 %v2882
    %2981 = vmatprep.subr.bf16.mxu0 %v2887
    %2982 = vmatpush1.bf16.msra.mxu0 %v2886
    %2983 = vmatprep.subr.bf16.mxu0 %v2891
    %2984 = vmatpush1.bf16.msra.mxu0 %v2890
    %2985 = vmatprep.subr.bf16.mxu0 %v2895
    %2986 = vmatpush1.bf16.msra.mxu0 %v2894
    %2987 = vmatprep.subr.bf16.mxu0 0
    %2988 = vmatpush1.bf16.msra.mxu0 0
    %2989 = vmatprep.subr.bf16.mxu0 0
    %2990 = vmatpush1.bf16.msra.mxu0 0
    %2991 = vmatprep.subr.bf16.mxu0 0
    %2992 = vmatpush1.bf16.msra.mxu0 0
    %2993 = vmatprep.subr.bf16.mxu0 0
    %2994 = vmatpush1.bf16.msra.mxu0 0
    %2995 = vmatprep.subr.bf16.mxu0 0
    %2996 = vmatpush1.bf16.msra.mxu0 0
    %2997 = vmatprep.subr.bf16.mxu0 0
    %2998 = vmatpush1.bf16.msra.mxu0 0
    %2999 = vmatprep.subr.bf16.mxu0 0
    %3000 = vmatpush1.bf16.msra.mxu0 0
    %3001 = vmatprep.subr.bf16.mxu0 0
    %3002 = vmatpush1.bf16.msra.mxu0 0
    %3003 = vmatprep.mubr.bf16.mxu0 0
    %3004 = vmatmul.mubr.bf16.gmra.mrb[0].mxu0 %v2714
    %v3005 = vpop.f32.mrb[0].mxu0
    %v3006 = vadd.f32 0.0, %v3005
    %v3007 = vpop.f32.mrb[0].mxu0
    %v3008 = vadd.f32 0.0, %v3007
    %v3009 = vpop.f32.mrb[0].mxu0
    %v3010 = vadd.f32 0.0, %v3009
    %v3011 = vpop.f32.mrb[0].mxu0
    %v3012 = vadd.f32 0.0, %v3011
    %3013 = vdwg.mxu0
    %v3014 = vadd.f32 %v2728, %v2963
    %v3015 = vadd.f32 %v2729, %v2965
    %v3016 = vadd.f32 %v2730, %v3006
    %v3017 = vadd.f32 %v2731, %v3008
    %v3018 = vadd.f32 %v2732, %v2967
    %v3019 = vadd.f32 %v2733, %v2969
    %v3020 = vadd.f32 %v2734, %v3010
    %v3021 = vadd.f32 %v2735, %v3012
    %v3022 = vsub.f32 0.0, %v3014
    %v3023 = vsub.f32 0.0, %v3015
    %v3024 = vsub.f32 0.0, %v3016
    %v3025 = vsub.f32 0.0, %v3018
    %v3026 = vsub.f32 0.0, %v3019
    %v3027 = vsub.f32 0.0, %v3020
    %v3028 = vmul.f32 %v3022, 1.442695
    %v3029 = vpow.pop %v3028
    %v3030 = vmul.f32 %v3023, 1.442695
    %v3031 = vpow.pop %v3030
    %v3032 = vmul.f32 %v3024, 1.442695
    %v3033 = vpow.pop %v3032
    %v3034 = vmul.f32 %v3025, 1.442695
    %v3035 = vpow.pop %v3034
    %v3036 = vmul.f32 %v3026, 1.442695
    %v3037 = vpow.pop %v3036
    %v3038 = vmul.f32 %v3027, 1.442695
    %v3039 = vpow.pop %v3038
    %v3040 = vadd.f32 %v3029, 1.0
    %v3041 = vadd.f32 %v3031, 1.0
    %v3042 = vadd.f32 %v3033, 1.0
    %v3043 = vadd.f32 %v3035, 1.0
    %v3044 = vadd.f32 %v3037, 1.0
    %v3045 = vadd.f32 %v3039, 1.0
    %v3046 = vrcp.pop %v3040
    %v3047 = vrcp.pop %v3041
    %v3048 = vrcp.pop %v3042
    %v3049 = vrcp.pop %v3043
    %v3050 = vrcp.pop %v3044
    %v3051 = vrcp.pop %v3045
    %v3052 = vtanh.pop %v3017
    %v3053 = vtanh.pop %v3021
    %v3054 = vmul.f32 %v3047, %v2708
    %v3055 = vmul.f32 %v3050, %v2709
    %v3056 = vmul.f32 %v3046, %v3052
    %v3057 = vmul.f32 %v3049, %v3053
    %v3058 = vadd.f32 %v3054, %v3056
    %v3059 = vadd.f32 %v3055, %v3057
    %v3060 = vtanh.pop %v3058
    %v3061 = vtanh.pop %v3059
    %v3062 = vmul.f32 %v3048, %v3060
    %v3063 = vmul.f32 %v3051, %v3061
    %v3064 = vpack.c.bf16 %v3063, %v3062
    %v3066 = vunpack.c.l.b16 %v3064
    %v3067 = vunpack.c.h.b16 %v3064
    %v3068 = vpack.c.b16 %v3066, %v3066
    %v3069 = vpack.c.b16 %v3067, %v3067
    %s3072 = scalar_lea.vmem %s6, 48
    %3073 = vst [vmem:[%s3072] sm:$0xf] %v3068
    %3074 = vst [vmem:[%s3072 + $0x4] sm:$0xf] %v3069
    %s3075 = smul.u32 14, 4
    %s3076 = smul.addr %s3075, 8
    %s3077 = scalar_lea.vmem [#allocation2], %s3076
    %v3078 = vld [vmem:[%s3077] sm:$0xff]
    %v3079 = vld [vmem:[%s3077 + $0x8] sm:$0xff]
    %v3080 = vld [vmem:[%s3077 + $0x10] sm:$0xff]
    %v3081 = vld [vmem:[%s3077 + $0x18] sm:$0xff]
    %v3082 = vld [vmem:[%s3077 + $0x20] sm:$0xff]
    %v3083 = vld [vmem:[%s3077 + $0x28] sm:$0xff]
    %v3084 = vld [vmem:[%s3077 + $0x30] sm:$0xff]
    %v3085 = vld [vmem:[%s3077 + $0x38] sm:$0xff]
    %v3086 = vld [vmem:[#allocation3] sm:$0xff]
    %v3087 = vld [vmem:[#allocation3 + $0x8] sm:$0xff]
    %v3088 = vld [vmem:[#allocation3 + $0x10] sm:$0xff]
    %v3089 = vld [vmem:[#allocation3 + $0x18] sm:$0xff]
    %v3090 = vld [vmem:[#allocation3 + $0x20] sm:$0xff]
    %v3091 = vld [vmem:[#allocation3 + $0x28] sm:$0xff]
    %v3092 = vld [vmem:[#allocation3 + $0x30] sm:$0xff]
    %v3093 = vld [vmem:[#allocation3 + $0x38] sm:$0xff]
    %v3094 = vld [vmem:[#allocation3 + $0x40] sm:$0xff]
    %v3095 = vld [vmem:[#allocation3 + $0x48] sm:$0xff]
    %v3096 = vld [vmem:[#allocation3 + $0x50] sm:$0xff]
    %v3097 = vld [vmem:[#allocation3 + $0x58] sm:$0xff]
    %v3098 = vld [vmem:[#allocation3 + $0x60] sm:$0xff]
    %v3099 = vld [vmem:[#allocation3 + $0x68] sm:$0xff]
    %v3100 = vld [vmem:[#allocation3 + $0x70] sm:$0xff]
    %v3101 = vld [vmem:[#allocation3 + $0x78] sm:$0xff]
    %v3102 = vld [vmem:[#allocation3 + $0x80] sm:$0xff]
    %v3103 = vld [vmem:[#allocation3 + $0x88] sm:$0xff]
    %v3104 = vld [vmem:[#allocation3 + $0x90] sm:$0xff]
    %v3105 = vld [vmem:[#allocation3 + $0x98] sm:$0xff]
    %v3106 = vld [vmem:[#allocation3 + $0xa0] sm:$0xff]
    %v3107 = vld [vmem:[#allocation3 + $0xa8] sm:$0xff]
    %v3108 = vld [vmem:[#allocation3 + $0xb0] sm:$0xff]
    %v3109 = vld [vmem:[#allocation3 + $0xb8] sm:$0xff]
    %v3110 = vld [vmem:[#allocation3 + $0xc0] sm:$0xff]
    %v3111 = vld [vmem:[#allocation3 + $0xc8] sm:$0xff]
    %v3112 = vld [vmem:[#allocation3 + $0xd0] sm:$0xff]
    %v3113 = vld [vmem:[#allocation3 + $0xd8] sm:$0xff]
    %v3114 = vld [vmem:[#allocation3 + $0xe0] sm:$0xff]
    %v3115 = vld [vmem:[#allocation3 + $0xe8] sm:$0xff]
    %v3116 = vld [vmem:[#allocation3 + $0xf0] sm:$0xff]
    %v3117 = vld [vmem:[#allocation3 + $0xf8] sm:$0xff]
    %v3150 = vunpack.c.l.b16 %v3086
    %v3151 = vunpack.c.h.b16 %v3086
    %v3152 = vunpack.c.l.b16 %v3087
    %v3153 = vunpack.c.h.b16 %v3087
    %v3154 = vunpack.c.l.b16 %v3088
    %v3155 = vunpack.c.h.b16 %v3088
    %v3156 = vunpack.c.l.b16 %v3089
    %v3157 = vunpack.c.h.b16 %v3089
    %v3158 = vunpack.c.l.b16 %v3090
    %v3159 = vunpack.c.h.b16 %v3090
    %v3160 = vunpack.c.l.b16 %v3091
    %v3161 = vunpack.c.h.b16 %v3091
    %v3162 = vunpack.c.l.b16 %v3092
    %v3163 = vunpack.c.h.b16 %v3092
    %v3164 = vunpack.c.l.b16 %v3093
    %v3165 = vunpack.c.h.b16 %v3093
    %v3166 = vunpack.c.l.b16 %v3094
    %v3167 = vunpack.c.h.b16 %v3094
    %v3168 = vunpack.c.l.b16 %v3095
    %v3169 = vunpack.c.h.b16 %v3095
    %v3170 = vunpack.c.l.b16 %v3096
    %v3171 = vunpack.c.h.b16 %v3096
    %v3172 = vunpack.c.l.b16 %v3097
    %v3173 = vunpack.c.h.b16 %v3097
    %v3174 = vunpack.c.l.b16 %v3098
    %v3175 = vunpack.c.h.b16 %v3098
    %v3176 = vunpack.c.l.b16 %v3099
    %v3177 = vunpack.c.h.b16 %v3099
    %v3178 = vunpack.c.l.b16 %v3100
    %v3179 = vunpack.c.h.b16 %v3100
    %v3180 = vunpack.c.l.b16 %v3101
    %v3181 = vunpack.c.h.b16 %v3101
    %v3182 = vunpack.c.l.b16 %v3102
    %v3183 = vunpack.c.h.b16 %v3102
    %v3184 = vunpack.c.l.b16 %v3103
    %v3185 = vunpack.c.h.b16 %v3103
    %v3186 = vunpack.c.l.b16 %v3104
    %v3187 = vunpack.c.h.b16 %v3104
    %v3188 = vunpack.c.l.b16 %v3105
    %v3189 = vunpack.c.h.b16 %v3105
    %v3190 = vunpack.c.l.b16 %v3106
    %v3191 = vunpack.c.h.b16 %v3106
    %v3192 = vunpack.c.l.b16 %v3107
    %v3193 = vunpack.c.h.b16 %v3107
    %v3194 = vunpack.c.l.b16 %v3108
    %v3195 = vunpack.c.h.b16 %v3108
    %v3196 = vunpack.c.l.b16 %v3109
    %v3197 = vunpack.c.h.b16 %v3109
    %v3198 = vunpack.c.l.b16 %v3110
    %v3199 = vunpack.c.h.b16 %v3110
    %v3200 = vunpack.c.l.b16 %v3111
    %v3201 = vunpack.c.h.b16 %v3111
    %v3202 = vunpack.c.l.b16 %v3112
    %v3203 = vunpack.c.h.b16 %v3112
    %v3204 = vunpack.c.l.b16 %v3113
    %v3205 = vunpack.c.h.b16 %v3113
    %v3206 = vunpack.c.l.b16 %v3114
    %v3207 = vunpack.c.h.b16 %v3114
    %v3208 = vunpack.c.l.b16 %v3115
    %v3209 = vunpack.c.h.b16 %v3115
    %v3210 = vunpack.c.l.b16 %v3116
    %v3211 = vunpack.c.h.b16 %v3116
    %v3212 = vunpack.c.l.b16 %v3117
    %v3213 = vunpack.c.h.b16 %v3117
    %v3214 = vpack.c.b16 %v3154, %v3150
    %v3215 = vpack.c.b16 %v3155, %v3151
    %v3216 = vpack.c.b16 %v3156, %v3152
    %v3217 = vpack.c.b16 %v3157, %v3153
    %v3218 = vpack.c.b16 %v3162, %v3158
    %v3219 = vpack.c.b16 %v3163, %v3159
    %v3220 = vpack.c.b16 %v3164, %v3160
    %v3221 = vpack.c.b16 %v3165, %v3161
    %v3222 = vpack.c.b16 %v3170, %v3166
    %v3223 = vpack.c.b16 %v3171, %v3167
    %v3224 = vpack.c.b16 %v3172, %v3168
    %v3225 = vpack.c.b16 %v3173, %v3169
    %v3226 = vpack.c.b16 %v3178, %v3174
    %v3227 = vpack.c.b16 %v3179, %v3175
    %v3228 = vpack.c.b16 %v3180, %v3176
    %v3229 = vpack.c.b16 %v3181, %v3177
    %v3230 = vpack.c.b16 %v3186, %v3182
    %v3231 = vpack.c.b16 %v3187, %v3183
    %v3232 = vpack.c.b16 %v3188, %v3184
    %v3233 = vpack.c.b16 %v3189, %v3185
    %v3234 = vpack.c.b16 %v3194, %v3190
    %v3235 = vpack.c.b16 %v3195, %v3191
    %v3236 = vpack.c.b16 %v3196, %v3192
    %v3237 = vpack.c.b16 %v3197, %v3193
    %v3238 = vpack.c.b16 %v3202, %v3198
    %v3239 = vpack.c.b16 %v3203, %v3199
    %v3240 = vpack.c.b16 %v3204, %v3200
    %v3241 = vpack.c.b16 %v3205, %v3201
    %v3242 = vpack.c.b16 %v3210, %v3206
    %v3243 = vpack.c.b16 %v3211, %v3207
    %v3244 = vpack.c.b16 %v3212, %v3208
    %v3245 = vpack.c.b16 %v3213, %v3209
    %3278 = vmatprep.subr.bf16.mxu0 %v3215
    %3279 = vmatpush1.bf16.msra.mxu0 %v3214
    %3280 = vmatprep.subr.bf16.mxu0 %v3219
    %3281 = vmatpush1.bf16.msra.mxu0 %v3218
    %3282 = vmatprep.subr.bf16.mxu0 %v3223
    %3283 = vmatpush1.bf16.msra.mxu0 %v3222
    %3284 = vmatprep.subr.bf16.mxu0 %v3227
    %3285 = vmatpush1.bf16.msra.mxu0 %v3226
    %3286 = vmatprep.subr.bf16.mxu0 %v3231
    %3287 = vmatpush1.bf16.msra.mxu0 %v3230
    %3288 = vmatprep.subr.bf16.mxu0 %v3235
    %3289 = vmatpush1.bf16.msra.mxu0 %v3234
    %3290 = vmatprep.subr.bf16.mxu0 %v3239
    %3291 = vmatpush1.bf16.msra.mxu0 %v3238
    %3292 = vmatprep.subr.bf16.mxu0 %v3243
    %3293 = vmatpush1.bf16.msra.mxu0 %v3242
    %3294 = vmatprep.subr.bf16.mxu0 0
    %3295 = vmatpush1.bf16.msra.mxu0 0
    %3296 = vmatprep.subr.bf16.mxu0 0
    %3297 = vmatpush1.bf16.msra.mxu0 0
    %3298 = vmatprep.subr.bf16.mxu0 0
    %3299 = vmatpush1.bf16.msra.mxu0 0
    %3300 = vmatprep.subr.bf16.mxu0 0
    %3301 = vmatpush1.bf16.msra.mxu0 0
    %3302 = vmatprep.subr.bf16.mxu0 0
    %3303 = vmatpush1.bf16.msra.mxu0 0
    %3304 = vmatprep.subr.bf16.mxu0 0
    %3305 = vmatpush1.bf16.msra.mxu0 0
    %3306 = vmatprep.subr.bf16.mxu0 0
    %3307 = vmatpush1.bf16.msra.mxu0 0
    %3308 = vmatprep.subr.bf16.mxu0 0
    %3309 = vmatpush1.bf16.msra.mxu0 0
    %3310 = vmatprep.mubr.bf16.mxu0 0
    %3311 = vmatmul.mubr.bf16.gmra.mrb[0].mxu0 %v3064
    %v3312 = vpop.f32.mrb[0].mxu0
    %v3313 = vadd.f32 0.0, %v3312
    %v3314 = vpop.f32.mrb[0].mxu0
    %v3315 = vadd.f32 0.0, %v3314
    %v3316 = vpop.f32.mrb[0].mxu0
    %v3317 = vadd.f32 0.0, %v3316
    %v3318 = vpop.f32.mrb[0].mxu0
    %v3319 = vadd.f32 0.0, %v3318
    %3320 = vdwg.mxu0
    %3321 = vmatprep.subr.bf16.mxu0 %v3217
    %3322 = vmatpush1.bf16.msra.mxu0 %v3216
    %3323 = vmatprep.subr.bf16.mxu0 %v3221
    %3324 = vmatpush1.bf16.msra.mxu0 %v3220
    %3325 = vmatprep.subr.bf16.mxu0 %v3225
    %3326 = vmatpush1.bf16.msra.mxu0 %v3224
    %3327 = vmatprep.subr.bf16.mxu0 %v3229
    %3328 = vmatpush1.bf16.msra.mxu0 %v3228
    %3329 = vmatprep.subr.bf16.mxu0 %v3233
    %3330 = vmatpush1.bf16.msra.mxu0 %v3232
    %3331 = vmatprep.subr.bf16.mxu0 %v3237
    %3332 = vmatpush1.bf16.msra.mxu0 %v3236
    %3333 = vmatprep.subr.bf16.mxu0 %v3241
    %3334 = vmatpush1.bf16.msra.mxu0 %v3240
    %3335 = vmatprep.subr.bf16.mxu0 %v3245
    %3336 = vmatpush1.bf16.msra.mxu0 %v3244
    %3337 = vmatprep.subr.bf16.mxu0 0
    %3338 = vmatpush1.bf16.msra.mxu0 0
    %3339 = vmatprep.subr.bf16.mxu0 0
    %3340 = vmatpush1.bf16.msra.mxu0 0
    %3341 = vmatprep.subr.bf16.mxu0 0
    %3342 = vmatpush1.bf16.msra.mxu0 0
    %3343 = vmatprep.subr.bf16.mxu0 0
    %3344 = vmatpush1.bf16.msra.mxu0 0
    %3345 = vmatprep.subr.bf16.mxu0 0
    %3346 = vmatpush1.bf16.msra.mxu0 0
    %3347 = vmatprep.subr.bf16.mxu0 0
    %3348 = vmatpush1.bf16.msra.mxu0 0
    %3349 = vmatprep.subr.bf16.mxu0 0
    %3350 = vmatpush1.bf16.msra.mxu0 0
    %3351 = vmatprep.subr.bf16.mxu0 0
    %3352 = vmatpush1.bf16.msra.mxu0 0
    %3353 = vmatprep.mubr.bf16.mxu0 0
    %3354 = vmatmul.mubr.bf16.gmra.mrb[0].mxu0 %v3064
    %v3355 = vpop.f32.mrb[0].mxu0
    %v3356 = vadd.f32 0.0, %v3355
    %v3357 = vpop.f32.mrb[0].mxu0
    %v3358 = vadd.f32 0.0, %v3357
    %v3359 = vpop.f32.mrb[0].mxu0
    %v3360 = vadd.f32 0.0, %v3359
    %v3361 = vpop.f32.mrb[0].mxu0
    %v3362 = vadd.f32 0.0, %v3361
    %3363 = vdwg.mxu0
    %v3364 = vadd.f32 %v3078, %v3313
    %v3365 = vadd.f32 %v3079, %v3315
    %v3366 = vadd.f32 %v3080, %v3356
    %v3367 = vadd.f32 %v3081, %v3358
    %v3368 = vadd.f32 %v3082, %v3317
    %v3369 = vadd.f32 %v3083, %v3319
    %v3370 = vadd.f32 %v3084, %v3360
    %v3371 = vadd.f32 %v3085, %v3362
    %v3372 = vsub.f32 0.0, %v3364
    %v3373 = vsub.f32 0.0, %v3365
    %v3374 = vsub.f32 0.0, %v3366
    %v3375 = vsub.f32 0.0, %v3368
    %v3376 = vsub.f32 0.0, %v3369
    %v3377 = vsub.f32 0.0, %v3370
    %v3378 = vmul.f32 %v3372, 1.442695
    %v3379 = vpow.pop %v3378
    %v3380 = vmul.f32 %v3373, 1.442695
    %v3381 = vpow.pop %v3380
    %v3382 = vmul.f32 %v3374, 1.442695
    %v3383 = vpow.pop %v3382
    %v3384 = vmul.f32 %v3375, 1.442695
    %v3385 = vpow.pop %v3384
    %v3386 = vmul.f32 %v3376, 1.442695
    %v3387 = vpow.pop %v3386
    %v3388 = vmul.f32 %v3377, 1.442695
    %v3389 = vpow.pop %v3388
    %v3390 = vadd.f32 %v3379, 1.0
    %v3391 = vadd.f32 %v3381, 1.0
    %v3392 = vadd.f32 %v3383, 1.0
    %v3393 = vadd.f32 %v3385, 1.0
    %v3394 = vadd.f32 %v3387, 1.0
    %v3395 = vadd.f32 %v3389, 1.0
    %v3396 = vrcp.pop %v3390
    %v3397 = vrcp.pop %v3391
    %v3398 = vrcp.pop %v3392
    %v3399 = vrcp.pop %v3393
    %v3400 = vrcp.pop %v3394
    %v3401 = vrcp.pop %v3395
    %v3402 = vtanh.pop %v3367
    %v3403 = vtanh.pop %v3371
    %v3404 = vmul.f32 %v3397, %v3058
    %v3405 = vmul.f32 %v3400, %v3059
    %v3406 = vmul.f32 %v3396, %v3402
    %v3407 = vmul.f32 %v3399, %v3403
    %v3408 = vadd.f32 %v3404, %v3406
    %v3409 = vadd.f32 %v3405, %v3407
    %v3410 = vtanh.pop %v3408
    %v3411 = vtanh.pop %v3409
    %v3412 = vmul.f32 %v3398, %v3410
    %v3413 = vmul.f32 %v3401, %v3411
    %v3414 = vpack.c.bf16 %v3413, %v3412
    %v3416 = vunpack.c.l.b16 %v3414
    %v3417 = vunpack.c.h.b16 %v3414
    %v3418 = vpack.c.b16 %v3416, %v3416
    %v3419 = vpack.c.b16 %v3417, %v3417
    %s3422 = scalar_lea.vmem %s6, 56
    %3423 = vst [vmem:[%s3422] sm:$0xf] %v3418
    %3424 = vst [vmem:[%s3422 + $0x4] sm:$0xf] %v3419
    %3425 = vst [vmem:[%s7] sm:$0xff] %v3412
    %3426 = vst [vmem:[%s7 + $0x8] sm:$0xff] %v3413
    %3427 = vst [vmem:[%s8] sm:$0xff] %v3408
    %3428 = vst [vmem:[%s8 + $0x8] sm:$0xff] %v3409
    // Predicated region
    $region34: #{charrnn_forward.4} parent=1 // pred_check
      _
    $region35: #{charrnn_forward.4} parent=1 // pred_check_branch
      %3430 = sbr.rel (0) target = $region37
    $region36: #{charrnn_forward.4} parent=1 // pred_region
      _
    $region37: #{charrnn_forward.4} parent=1 // pred_fallthru
      _
    // Predicated region
    $region38: #{charrnn_forward.4} parent=1 // pred_check
      _
    $region39: #{charrnn_forward.4} parent=1 // pred_check_branch
      %3432 = sbr.rel (0) target = $region41
    $region40: #{charrnn_forward.4} parent=1 // pred_region
      _
    $region41: #{charrnn_forward.4} parent=1 // pred_fallthru
      _
    // Predicated region
    $region42: #{charrnn_forward.4} parent=1 // pred_check
      _
    $region43: #{charrnn_forward.4} parent=1 // pred_check_branch
      %3434 = sbr.rel (0) target = $region45
    $region44: #{charrnn_forward.4} parent=1 // pred_region
      _
    $region45: #{charrnn_forward.4} parent=1 // pred_fallthru
      _
    // Predicated region
    $region46: #{charrnn_forward.4} parent=1 // pred_check
      _
    $region47: #{charrnn_forward.4} parent=1 // pred_check_branch
      %3436 = sbr.rel (0) target = $region49
    $region48: #{charrnn_forward.4} parent=1 // pred_region
      _
    $region49: #{charrnn_forward.4} parent=1 // pred_fallthru
      _
    // Predicated region
    $region50: #{charrnn_forward.4} parent=1 // pred_check
      _
    $region51: #{charrnn_forward.4} parent=1 // pred_check_branch
      %3438 = sbr.rel (0) target = $region53
    $region52: #{charrnn_forward.4} parent=1 // pred_region
      _
    $region53: #{charrnn_forward.4} parent=1 // pred_fallthru
      _
    // Predicated region
    $region54: #{charrnn_forward.4} parent=1 // pred_check
      _
    $region55: #{charrnn_forward.4} parent=1 // pred_check_branch
      %3440 = sbr.rel (0) target = $region57
    $region56: #{charrnn_forward.4} parent=1 // pred_region
      _
    $region57: #{charrnn_forward.4} parent=1 // pred_fallthru
      _
    %3441 = vsyncpa [#allocation4], 1

</llo_original>
